<compile_context>
chip_gen: v5e
topology: v5e:2x2
jax: 0.10.0
libtpu: 0.0.40
codegen_flags: <defaults>
</compile_context>

<pallas_src>
import functools
import math

import jax
import jax.numpy as jnp
from jax.experimental import pallas as pl
from jax.experimental.pallas import tpu as pltpu


# ----------------------------------------------------------------------------
# Pallas kernel: full MolGNet stack, grid = (num_layer, num_message_passing)
# ----------------------------------------------------------------------------
def _molgnet_kernel(
    # shared inputs (constant block index over the whole grid)
    x0_ref, ea_ref, s_tgt_ref, s_tgt_t_ref, s_src_t_ref, bd_ref,
    # per-layer stacked parameters (block index follows the layer axis)
    wq_ref, bq_ref, wkv_ref, bkv_ref, wo_ref, bo_ref, g1_ref, be1_ref,
    wi_ref, bi_ref, wg_ref, bg_ref, g2_ref, be2_ref,
    wih_ref, bih_ref, whh_ref, bhh_ref, g3_ref, be3_ref,
    # output (resident x carry) / scratch (GRU hidden carry)
    x_out_ref, h_ref,
    *, hidden, heads,
):
    f32, bf16 = jnp.float32, jnp.bfloat16
    H = hidden
    d_head = H // heads
    inv_sqrt_d = 1.0 / math.sqrt(d_head)

    l = pl.program_id(0)   # layer index
    t = pl.program_id(1)   # message-passing step index

    def mm(a, b):
        # bf16 MXU inputs, f32 accumulation (cast is a no-op if already bf16).
        return jnp.dot(a.astype(bf16), b.astype(bf16),
                       preferred_element_type=f32)

    def layer_norm(v, gamma, beta):
        # two-pass BertLayerNorm (matches the torch reference; the centered
        # difference is reused for the normalization, so no extra cost vs the
        # single-pass E[x^2]-mean^2 form and no catastrophic cancellation).
        u = jnp.mean(v, axis=-1, keepdims=True)
        d = v - u
        var = jnp.mean(d * d, axis=-1, keepdims=True)
        return gamma * (d * jax.lax.rsqrt(var + 1e-12)) + beta

    def erf(z):
        # TODO(synk): torch.erf has no direct Mosaic primitive; Abramowitz &
        # Stegun 7.1.26 polynomial (Horner form). The divide is pushed to the
        # EUP reciprocal slot (frees VALU issue slots on the (N,4H) GELU).
        pc = 0.3275911
        a1, a2, a3, a4, a5 = (0.254829592, -0.284496736, 1.421413741,
                              -1.453152027, 1.061405429)
        az = jnp.abs(z)
        tt = pl.reciprocal(1.0 + pc * az, approx=True)
        poly = ((((a5 * tt + a4) * tt + a3) * tt + a2) * tt + a1) * tt
        y = 1.0 - poly * jnp.exp(-az * az)
        return jnp.where(z >= 0, y, -y)

    def gelu(z):
        # reference uses x * 0.5 * (1 + erf(x / 1.41421)); constant kept as-is
        return z * 0.5 * (1.0 + erf(z * (1.0 / 1.41421)))

    # ---- state initialization ----------------------------------------------
    @pl.when(jnp.logical_and(l == 0, t == 0))
    def _():
        x_out_ref[...] = x0_ref[...]            # x state starts from embeddings

    @pl.when(t == 0)
    def _():
        h_ref[...] = x_out_ref[...]             # GTLayer: h = x.unsqueeze(0)

    x = x_out_ref[...]                          # (N, H) f32 node state
    x_bf = x.astype(bf16)                       # hoisted: reused by two matmuls
    h_prev = h_ref[...]                         # (N, H) f32 GRU hidden
    ea = ea_ref[...].astype(f32)                # (E, H)
    s_tgt = s_tgt_ref[...]                      # (N, E) bf16 one-hot (scatter-add)
    s_tgt_t = s_tgt_t_ref[...]                  # (E, N) bf16 (gather target rows)
    s_src_t = s_src_t_ref[...]                  # (E, N) bf16 (gather source rows)
    bd = bd_ref[...]                            # (H, H) block-diag ones (per-head sum)

    # ---- GraphAttentionConv -------------------------------------------------
    # Q projected at node level, then gathered per edge.
    q_nodes = mm(x_bf, wq_ref[0]) + bq_ref[0]               # (N, H)
    q = mm(s_tgt_t, q_nodes)                                 # (E, H)

    x_j = mm(s_src_t, x_bf)                                  # (E, H) source feats
    xe = x_j + ea
    kv = mm(xe, wkv_ref[0]) + bkv_ref[0]                     # (E, 2H) fused K|V
    k = kv[:, :H]
    v = kv[:, H:]

    qk = q * k                                               # (E, H)
    # lane-dense per-head logits: head value replicated over its d_head lanes
    logits_b = mm(qk, bd) * inv_sqrt_d                       # (E, H)
    # per-head GLOBAL max over edges: exact shift inside every target segment.
    max_b = jnp.max(logits_b, axis=0, keepdims=True)         # (1, H)
    p_b = jnp.exp(logits_b - max_b)                          # (E, H)

    # node-level normalization: segment-sum numerator and denominator once,
    # divide at node level (the denominator is constant within a segment).
    denom_nodes = mm(s_tgt, p_b)                             # (N, H)
    aggr_un = mm(s_tgt, p_b * v)                             # (N, H)
    aggr = aggr_un * pl.reciprocal(denom_nodes + 1e-16, approx=True)

    # ---- AttentionOut (dropout ratio = 0 -> identity) ------------------------
    h1 = mm(aggr, wo_ref[0]) + bo_ref[0]
    h1 = layer_norm(h1 + x, g1_ref[0], be1_ref[0])

    # ---- Intermediate: LinearActivation with bias_gelu -----------------------
    inter = gelu(mm(h1, wi_ref[0]) + bi_ref[0])              # (N, 4H)

    # ---- GTOut ----------------------------------------------------------------
    m = mm(inter, wg_ref[0]) + bg_ref[0]
    m = layer_norm(m + h1, g2_ref[0], be2_ref[0])

    # ---- single-step nn.GRU (fused gate matmuls, PyTorch gate order r|z|n) ----
    gi = mm(m, wih_ref[0]) + bih_ref[0]                      # (N, 3H)
    gh = mm(h_prev, whh_ref[0]) + bhh_ref[0]                 # (N, 3H)
    r = jax.nn.sigmoid(gi[:, 0:H] + gh[:, 0:H])
    z = jax.nn.sigmoid(gi[:, H:2 * H] + gh[:, H:2 * H])
    n = jnp.tanh(gi[:, 2 * H:] + r * gh[:, 2 * H:])
    h_new = (1.0 - z) * n + z * h_prev

    # ---- final BertLayerNorm + state write-back --------------------------------
    x_out_ref[...] = layer_norm(h_new, g3_ref[0], be3_ref[0])
    h_ref[...] = h_new


# ----------------------------------------------------------------------------
# Wrapper: embeddings + scatter-matrix construction + pallas_call
# ----------------------------------------------------------------------------
def mol_gnet_forward(params, x_idx, edge_index, edge_attr_idx, node_seg,
                     edge_seg, *, hidden, heads, num_message_passing):
    f32, bf16 = jnp.float32, jnp.bfloat16
    n_nodes = x_idx.shape[0]

    # Embedding lookups + sum over feature columns (glue JAX).
    x0 = params["x_emb"][x_idx].sum(axis=1) + params["x_seg_emb"][node_seg]          # (N, H)
    ea = params["e_emb"][edge_attr_idx].sum(axis=1) + params["e_seg_emb"][edge_seg]  # (E, H)

    # Dense one-hot scatter matrices (exact 0/1 in bf16).
    # TODO(synk): production sizes -> index-based gather / sorted segment-sum
    # with E/N tiling; these (N,E)/(E,N) buffers are VMEM-quadratic in graph size.
    s_src_t = jax.nn.one_hot(edge_index[0], n_nodes, dtype=f32)   # (E, N)
    s_tgt_t = jax.nn.one_hot(edge_index[1], n_nodes, dtype=f32)   # (E, N)
    s_tgt = s_tgt_t.T                                             # (N, E)

    d_head = hidden // heads
    hs = jnp.repeat(jnp.eye(heads, dtype=f32), d_head, axis=0)    # (H, heads)
    bd = hs @ hs.T                                                # (H, H) block-diag ones

    lp = params["layers"]                 # dict of (L, ...) stacked arrays
    L = lp["wq"].shape[0]
    T = num_message_passing

    shared_inputs = [
        x0.astype(f32), ea.astype(bf16), s_tgt.astype(bf16),
        s_tgt_t.astype(bf16), s_src_t.astype(bf16), bd.astype(bf16),
    ]
    wcast = lambda a: a.astype(bf16)
    layer_inputs = [
        wcast(lp["wq"]), lp["bq"], wcast(lp["wkv"]), lp["bkv"],
        wcast(lp["wo"]), lp["bo"], lp["g1"], lp["be1"],
        wcast(lp["wi"]), lp["bi"], wcast(lp["wg"]), lp["bg"],
        lp["g2"], lp["be2"],
        wcast(lp["wih"]), lp["bih"], wcast(lp["whh"]), lp["bhh"],
        lp["g3"], lp["be3"],
    ]

    smap = lambda l, t: (0, 0)          # shared 2-D blocks: resident for whole grid
    lmap = lambda l, t: (l, 0, 0)       # per-layer blocks: fetched once per layer

    kernel = functools.partial(_molgnet_kernel, hidden=hidden, heads=heads)
    out_shape = jax.ShapeDtypeStruct((n_nodes, hidden), f32)

    def run(single_buffer_shared):
        if single_buffer_shared:
            # constant-index inputs are fetched exactly once: the second
            # pipeline buffer is pure VMEM waste (critical on v7x's 64 MiB).
            sspec = lambda a: pl.BlockSpec(a.shape, smap,
                                           pipeline_mode=pl.Buffered(1))
        else:
            sspec = lambda a: pl.BlockSpec(a.shape, smap)
        in_specs = ([sspec(a) for a in shared_inputs] +
                    [pl.BlockSpec((1,) + a.shape[1:], lmap)   # default double-buffer:
                     for a in layer_inputs])                  # prefetch next layer's weights
        out_specs = pl.BlockSpec((n_nodes, hidden), smap)     # resident carry for x
        return pl.pallas_call(
            kernel,
            out_shape=out_shape,
            grid_spec=pltpu.PrefetchScalarGridSpec(
                num_scalar_prefetch=0,
                grid=(L, T),
                in_specs=in_specs,
                out_specs=out_specs,
                scratch_shapes=[pltpu.VMEM((n_nodes, hidden), f32)],  # GRU hidden carry
            ),
            compiler_params=pltpu.CompilerParams(
                dimension_semantics=("arbitrary", "arbitrary"),   # sequential carries
                # 32 MiB is safe on every generation (v7x has only 64 MiB VMEM).
                vmem_limit_bytes=32 * 1024 * 1024,
            ),
        )(*shared_inputs, *layer_inputs)

    # NOTE: x0 is not aliased to the output: it must stay VMEM-resident anyway
    # to seed the carry, so aliasing would not recover the block (TODO when the
    # N-tiled variant lands).
    try:
        return run(True)
    except Exception:
        # Fallback for jax builds where pipeline_mode=pl.Buffered(1) is not
        # supported on TPU pallas_call inputs (keeps default double-buffering).
        return run(False)


# ----------------------------------------------------------------------------
# Parameter construction (deterministic synthetic init, fused weight layouts)
# ----------------------------------------------------------------------------
def _init_layer(key, hidden):
    ks = jax.random.split(key, 7)

    def dense(k, fin, fout, scale=0.05):
        kw, kb = jax.random.split(k)
        return (scale * jax.random.normal(kw, (fin, fout), jnp.float32),
                scale * jax.random.normal(kb, (1, fout), jnp.float32))

    wq, bq = dense(ks[0], hidden, hidden)
    wkv, bkv = dense(ks[1], hidden, 2 * hidden)        # fused K|V
    wo, bo = dense(ks[2], hidden, hidden)
    wi, bi = dense(ks[3], hidden, 4 * hidden)
    wg, bg = dense(ks[4], 4 * hidden, hidden)
    wih, bih = dense(ks[5], hidden, 3 * hidden)        # fused GRU r|z|n (input)
    whh, bhh = dense(ks[6], hidden, 3 * hidden)        # fused GRU r|z|n (hidden)
    ones = jnp.ones((1, hidden), jnp.float32)
    zeros = jnp.zeros((1, hidden), jnp.float32)
    return dict(
        wq=wq, bq=bq, wkv=wkv, bkv=bkv, wo=wo, bo=bo,
        g1=ones, be1=zeros, wi=wi, bi=bi, wg=wg, bg=bg,
        g2=ones, be2=zeros, wih=wih, bih=bih, whh=whh, bhh=bhh,
        g3=ones, be3=zeros,
    )


def init_params(key, hidden, num_layer, seg_size=3):
    ks = jax.random.split(key, 4 + num_layer)
    layers = [_init_layer(ks[4 + i], hidden) for i in range(num_layer)]
    stacked = jax.tree_util.tree_map(lambda *xs: jnp.stack(xs, axis=0), *layers)
    return {
        "x_emb": 0.05 * jax.random.normal(ks[0], (178, hidden), jnp.float32),
        "x_seg_emb": 0.05 * jax.random.normal(ks[1], (seg_size, hidden), jnp.float32),
        "e_emb": 0.05 * jax.random.normal(ks[2], (18, hidden), jnp.float32),
        "e_seg_emb": 0.05 * jax.random.normal(ks[3], (seg_size, hidden), jnp.float32),
        "layers": stacked,
    }


# ----------------------------------------------------------------------------
if __name__ == "__main__":
    # hidden = 128 keeps every tensor lane-dense; node/edge counts are small
    # sublane-aligned multiples of 8.  TODO(synk): production runs should batch
    # molecules into a block-diagonal supergraph and pad N, E to multiples of
    # 128 so every MXU tile is full.
    hidden, heads = 128, 4
    num_layer, num_message_passing = 2, 2
    n_nodes, n_edges = 16, 32
    n_node_feats, n_edge_feats = 3, 2

    key = jax.random.PRNGKey(0)
    k = jax.random.split(key, 8)

    x_idx = jax.random.randint(k[0], (n_nodes, n_node_feats), 0, 178)
    node_seg = jax.random.randint(k[1], (n_nodes,), 0, 3)
    edge_attr_idx = jax.random.randint(k[2], (n_edges, n_edge_feats), 0, 18)
    edge_seg = jax.random.randint(k[3], (n_edges,), 0, 3)
    src = jax.random.randint(k[4], (n_edges,), 0, n_nodes)
    tgt = jax.random.randint(k[5], (n_edges,), 0, n_nodes)
    edge_index = jnp.stack([src, tgt], axis=0).astype(jnp.int32)

    params = init_params(k[6], hidden, num_layer)

    out = mol_gnet_forward(
        params, x_idx, edge_index, edge_attr_idx, node_seg, edge_seg,
        hidden=hidden, heads=heads, num_message_passing=num_message_passing,
    )
    jax.block_until_ready(out)
    assert out.shape == (n_nodes, hidden)
    assert bool(jnp.all(jnp.isfinite(out)))
    print("KERNEL_OK")
</pallas_src>

<mosaic_0001>
module attributes {stable_mosaic.version = 11 : i64} {
  func.func @_molgnet_kernel(%arg0: i32, %arg1: i32, %arg2: memref<16x128xf32, #tpu.memory_space<vmem>>, %arg3: memref<32x128xbf16, #tpu.memory_space<vmem>>, %arg4: memref<16x32xbf16, #tpu.memory_space<vmem>>, %arg5: memref<32x16xbf16, #tpu.memory_space<vmem>>, %arg6: memref<32x16xbf16, #tpu.memory_space<vmem>>, %arg7: memref<128x128xbf16, #tpu.memory_space<vmem>>, %arg8: memref<1x128x128xbf16, #tpu.memory_space<vmem>>, %arg9: memref<1x1x128xf32, #tpu.memory_space<vmem>>, %arg10: memref<1x128x256xbf16, #tpu.memory_space<vmem>>, %arg11: memref<1x1x256xf32, #tpu.memory_space<vmem>>, %arg12: memref<1x128x128xbf16, #tpu.memory_space<vmem>>, %arg13: memref<1x1x128xf32, #tpu.memory_space<vmem>>, %arg14: memref<1x1x128xf32, #tpu.memory_space<vmem>>, %arg15: memref<1x1x128xf32, #tpu.memory_space<vmem>>, %arg16: memref<1x128x512xbf16, #tpu.memory_space<vmem>>, %arg17: memref<1x1x512xf32, #tpu.memory_space<vmem>>, %arg18: memref<1x512x128xbf16, #tpu.memory_space<vmem>>, %arg19: memref<1x1x128xf32, #tpu.memory_space<vmem>>, %arg20: memref<1x1x128xf32, #tpu.memory_space<vmem>>, %arg21: memref<1x1x128xf32, #tpu.memory_space<vmem>>, %arg22: memref<1x128x384xbf16, #tpu.memory_space<vmem>>, %arg23: memref<1x1x384xf32, #tpu.memory_space<vmem>>, %arg24: memref<1x128x384xbf16, #tpu.memory_space<vmem>>, %arg25: memref<1x1x384xf32, #tpu.memory_space<vmem>>, %arg26: memref<1x1x128xf32, #tpu.memory_space<vmem>>, %arg27: memref<1x1x128xf32, #tpu.memory_space<vmem>>, %arg28: memref<16x128xf32, #tpu.memory_space<vmem>>, %arg29: memref<16x128xf32, #tpu.memory_space<vmem>>) attributes {dimension_semantics = [#tpu.dimension_semantics<arbitrary>, #tpu.dimension_semantics<arbitrary>], iteration_bounds = array<i64: 2, 2>, scalar_prefetch = 0 : i64, scratch_operands = 1 : i64, tpu.core_type = #tpu.core_type<tc>, window_params = [{pipeline_mode = #tpu.pipeline_mode<synchronous>, transform_indices = @transform_0, window_bounds = array<i64: 16, 128>}, {pipeline_mode = #tpu.pipeline_mode<synchronous>, transform_indices = @transform_1, window_bounds = array<i64: 32, 128>}, {pipeline_mode = #tpu.pipeline_mode<synchronous>, transform_indices = @transform_2, window_bounds = array<i64: 16, 32>}, {pipeline_mode = #tpu.pipeline_mode<synchronous>, transform_indices = @transform_3, window_bounds = array<i64: 32, 16>}, {pipeline_mode = #tpu.pipeline_mode<synchronous>, transform_indices = @transform_4, window_bounds = array<i64: 32, 16>}, {pipeline_mode = #tpu.pipeline_mode<synchronous>, transform_indices = @transform_5, window_bounds = array<i64: 128, 128>}, {transform_indices = @transform_6, window_bounds = array<i64: 1, 128, 128>}, {transform_indices = @transform_7, window_bounds = array<i64: 1, 1, 128>}, {transform_indices = @transform_8, window_bounds = array<i64: 1, 128, 256>}, {transform_indices = @transform_9, window_bounds = array<i64: 1, 1, 256>}, {transform_indices = @transform_10, window_bounds = array<i64: 1, 128, 128>}, {transform_indices = @transform_11, window_bounds = array<i64: 1, 1, 128>}, {transform_indices = @transform_12, window_bounds = array<i64: 1, 1, 128>}, {transform_indices = @transform_13, window_bounds = array<i64: 1, 1, 128>}, {transform_indices = @transform_14, window_bounds = array<i64: 1, 128, 512>}, {transform_indices = @transform_15, window_bounds = array<i64: 1, 1, 512>}, {transform_indices = @transform_16, window_bounds = array<i64: 1, 512, 128>}, {transform_indices = @transform_17, window_bounds = array<i64: 1, 1, 128>}, {transform_indices = @transform_18, window_bounds = array<i64: 1, 1, 128>}, {transform_indices = @transform_19, window_bounds = array<i64: 1, 1, 128>}, {transform_indices = @transform_20, window_bounds = array<i64: 1, 128, 384>}, {transform_indices = @transform_21, window_bounds = array<i64: 1, 1, 384>}, {transform_indices = @transform_22, window_bounds = array<i64: 1, 128, 384>}, {transform_indices = @transform_23, window_bounds = array<i64: 1, 1, 384>}, {transform_indices = @transform_24, window_bounds = array<i64: 1, 1, 128>}, {transform_indices = @transform_25, window_bounds = array<i64: 1, 1, 128>}, {pipeline_mode = #tpu.pipeline_mode<synchronous>, transform_indices = @transform_26, window_bounds = array<i64: 16, 128>}]} {
    %c0_i32 = arith.constant 0 : i32
    %0 = arith.cmpi eq, %arg0, %c0_i32 : i32
    %c0_i32_0 = arith.constant 0 : i32
    %1 = arith.cmpi eq, %arg1, %c0_i32_0 : i32
    %2 = arith.andi %0, %1 : i1
    %3 = arith.extui %2 : i1 to i32
    %c0_i32_1 = arith.constant 0 : i32
    %4 = arith.cmpi ne, %3, %c0_i32_1 : i32
    scf.if %4 {
      %c0_127 = arith.constant 0 : index
      %c0_128 = arith.constant 0 : index
      %238 = vector.load %arg2[%c0_127, %c0_128] : memref<16x128xf32, #tpu.memory_space<vmem>>, vector<16x128xf32>
      %c0_129 = arith.constant 0 : index
      %c0_130 = arith.constant 0 : index
      %239 = vector.load %arg28[%c0_129, %c0_130] : memref<16x128xf32, #tpu.memory_space<vmem>>, vector<16x128xf32>
      tpu.vector_store %arg28[%c0_129, %c0_130], %238 {strides = array<i32>} : memref<16x128xf32, #tpu.memory_space<vmem>>, vector<16x128xf32>,
    } else {
    }
    %c0_i32_2 = arith.constant 0 : i32
    %5 = arith.cmpi eq, %arg1, %c0_i32_2 : i32
    %6 = arith.extui %5 : i1 to i32
    %c0_i32_3 = arith.constant 0 : i32
    %7 = arith.cmpi ne, %6, %c0_i32_3 : i32
    scf.if %7 {
      %c0_127 = arith.constant 0 : index
      %c0_128 = arith.constant 0 : index
      %238 = vector.load %arg28[%c0_127, %c0_128] : memref<16x128xf32, #tpu.memory_space<vmem>>, vector<16x128xf32>
      %c0_129 = arith.constant 0 : index
      %c0_130 = arith.constant 0 : index
      %239 = vector.load %arg29[%c0_129, %c0_130] : memref<16x128xf32, #tpu.memory_space<vmem>>, vector<16x128xf32>
      tpu.vector_store %arg29[%c0_129, %c0_130], %238 {strides = array<i32>} : memref<16x128xf32, #tpu.memory_space<vmem>>, vector<16x128xf32>,
    } else {
    }
    %c0 = arith.constant 0 : index
    %c0_4 = arith.constant 0 : index
    %8 = vector.load %arg28[%c0, %c0_4] : memref<16x128xf32, #tpu.memory_space<vmem>>, vector<16x128xf32>
    %9 = arith.truncf %8 : vector<16x128xf32> to vector<16x128xbf16>
    %c0_5 = arith.constant 0 : index
    %c0_6 = arith.constant 0 : index
    %10 = vector.load %arg29[%c0_5, %c0_6] : memref<16x128xf32, #tpu.memory_space<vmem>>, vector<16x128xf32>
    %c0_7 = arith.constant 0 : index
    %c0_8 = arith.constant 0 : index
    %11 = vector.load %arg3[%c0_7, %c0_8] : memref<32x128xbf16, #tpu.memory_space<vmem>>, vector<32x128xbf16>
    %12 = arith.extf %11 : vector<32x128xbf16> to vector<32x128xf32>
    %c0_9 = arith.constant 0 : index
    %c0_10 = arith.constant 0 : index
    %13 = vector.load %arg4[%c0_9, %c0_10] : memref<16x32xbf16, #tpu.memory_space<vmem>>, vector<16x32xbf16>
    %c0_11 = arith.constant 0 : index
    %c0_12 = arith.constant 0 : index
    %14 = vector.load %arg5[%c0_11, %c0_12] : memref<32x16xbf16, #tpu.memory_space<vmem>>, vector<32x16xbf16>
    %c0_13 = arith.constant 0 : index
    %c0_14 = arith.constant 0 : index
    %15 = vector.load %arg6[%c0_13, %c0_14] : memref<32x16xbf16, #tpu.memory_space<vmem>>, vector<32x16xbf16>
    %c0_15 = arith.constant 0 : index
    %c0_16 = arith.constant 0 : index
    %16 = vector.load %arg7[%c0_15, %c0_16] : memref<128x128xbf16, #tpu.memory_space<vmem>>, vector<128x128xbf16>
    %c0_17 = arith.constant 0 : index
    %c0_18 = arith.constant 0 : index
    %c0_19 = arith.constant 0 : index
    %17 = vector.load %arg8[%c0_17, %c0_18, %c0_19] : memref<1x128x128xbf16, #tpu.memory_space<vmem>>, vector<1x128x128xbf16>
    %18 = vector.shape_cast %17 : vector<1x128x128xbf16> to vector<128x128xbf16>
    %cst = arith.constant dense<0.000000e+00> : vector<16x128xf32>
    %19 = tpu.matmul %9, %18, %cst {dimension_numbers = #tpu.dot_dimension_numbers<[1], [0], [0], [1], [0, 0, 1, 1], [], []>} : vector<16x128xbf16>, vector<128x128xbf16>, vector<16x128xf32> -> vector<16x128xf32>
    %c0_20 = arith.constant 0 : index
    %c0_21 = arith.constant 0 : index
    %c0_22 = arith.constant 0 : index
    %20 = vector.load %arg9[%c0_20, %c0_21, %c0_22] : memref<1x1x128xf32, #tpu.memory_space<vmem>>, vector<1x1x128xf32>
    %21 = vector.shape_cast %20 : vector<1x1x128xf32> to vector<1x128xf32>
    %22 = vector.broadcast %21 : vector<1x128xf32> to vector<16x128xf32>
    %23 = arith.addf %19, %22 : vector<16x128xf32>
    %24 = arith.truncf %23 : vector<16x128xf32> to vector<16x128xbf16>
    %cst_23 = arith.constant dense<0.000000e+00> : vector<32x128xf32>
    %25 = tpu.matmul %14, %24, %cst_23 {dimension_numbers = #tpu.dot_dimension_numbers<[1], [0], [0], [1], [0, 0, 1, 1], [], []>} : vector<32x16xbf16>, vector<16x128xbf16>, vector<32x128xf32> -> vector<32x128xf32>
    %cst_24 = arith.constant dense<0.000000e+00> : vector<32x128xf32>
    %26 = tpu.matmul %15, %9, %cst_24 {dimension_numbers = #tpu.dot_dimension_numbers<[1], [0], [0], [1], [0, 0, 1, 1], [], []>} : vector<32x16xbf16>, vector<16x128xbf16>, vector<32x128xf32> -> vector<32x128xf32>
    %27 = arith.addf %26, %12 : vector<32x128xf32>
    %c0_25 = arith.constant 0 : index
    %c0_26 = arith.constant 0 : index
    %c0_27 = arith.constant 0 : index
    %28 = vector.load %arg10[%c0_25, %c0_26, %c0_27] : memref<1x128x256xbf16, #tpu.memory_space<vmem>>, vector<1x128x256xbf16>
    %29 = vector.shape_cast %28 : vector<1x128x256xbf16> to vector<128x256xbf16>
    %30 = arith.truncf %27 : vector<32x128xf32> to vector<32x128xbf16>
    %cst_28 = arith.constant dense<0.000000e+00> : vector<32x256xf32>
    %31 = tpu.matmul %30, %29, %cst_28 {dimension_numbers = #tpu.dot_dimension_numbers<[1], [0], [0], [1], [0, 0, 1, 1], [], []>} : vector<32x128xbf16>, vector<128x256xbf16>, vector<32x256xf32> -> vector<32x256xf32>
    %c0_29 = arith.constant 0 : index
    %c0_30 = arith.constant 0 : index
    %c0_31 = arith.constant 0 : index
    %32 = vector.load %arg11[%c0_29, %c0_30, %c0_31] : memref<1x1x256xf32, #tpu.memory_space<vmem>>, vector<1x1x256xf32>
    %33 = vector.shape_cast %32 : vector<1x1x256xf32> to vector<1x256xf32>
    %34 = vector.broadcast %33 : vector<1x256xf32> to vector<32x256xf32>
    %35 = arith.addf %31, %34 : vector<32x256xf32>
    %36 = vector.extract_strided_slice %35 {offsets = [0, 0], sizes = [32, 128], strides = [1, 1]} : vector<32x256xf32> to vector<32x128xf32>
    %37 = vector.extract_strided_slice %35 {offsets = [0, 128], sizes = [32, 128], strides = [1, 1]} : vector<32x256xf32> to vector<32x128xf32>
    %38 = arith.mulf %25, %36 : vector<32x128xf32>
    %39 = arith.truncf %38 : vector<32x128xf32> to vector<32x128xbf16>
    %cst_32 = arith.constant dense<0.000000e+00> : vector<32x128xf32>
    %40 = tpu.matmul %39, %16, %cst_32 {dimension_numbers = #tpu.dot_dimension_numbers<[1], [0], [0], [1], [0, 0, 1, 1], [], []>} : vector<32x128xbf16>, vector<128x128xbf16>, vector<32x128xf32> -> vector<32x128xf32>
    %cst_33 = arith.constant 0.176776692 : f32
    %41 = vector.broadcast %cst_33 : f32 to vector<32x128xf32>
    %42 = arith.mulf %40, %41 : vector<32x128xf32>
    %cst_34 = arith.constant dense<0xFF800000> : vector<128xf32>
    %43 = vector.multi_reduction <maximumf>, %42, %cst_34 [0] : vector<32x128xf32> to vector<128xf32>
    %44 = vector.shape_cast %43 : vector<128xf32> to vector<1x128xf32>
    %45 = vector.broadcast %44 : vector<1x128xf32> to vector<32x128xf32>
    %46 = arith.subf %42, %45 : vector<32x128xf32>
    %47 = math.exp %46 : vector<32x128xf32>
    %48 = arith.truncf %47 : vector<32x128xf32> to vector<32x128xbf16>
    %cst_35 = arith.constant dense<0.000000e+00> : vector<16x128xf32>
    %49 = tpu.matmul %13, %48, %cst_35 {dimension_numbers = #tpu.dot_dimension_numbers<[1], [0], [0], [1], [0, 0, 1, 1], [], []>} : vector<16x32xbf16>, vector<32x128xbf16>, vector<16x128xf32> -> vector<16x128xf32>
    %50 = arith.mulf %47, %37 : vector<32x128xf32>
    %51 = arith.truncf %50 : vector<32x128xf32> to vector<32x128xbf16>
    %cst_36 = arith.constant dense<0.000000e+00> : vector<16x128xf32>
    %52 = tpu.matmul %13, %51, %cst_36 {dimension_numbers = #tpu.dot_dimension_numbers<[1], [0], [0], [1], [0, 0, 1, 1], [], []>} : vector<16x32xbf16>, vector<32x128xbf16>, vector<16x128xf32> -> vector<16x128xf32>
    %cst_37 = arith.constant 1.000000e-16 : f32
    %53 = vector.broadcast %cst_37 : f32 to vector<16x128xf32>
    %54 = arith.addf %49, %53 : vector<16x128xf32>
    %55 = tpu.reciprocal %54 {approx = true} : vector<16x128xf32> -> vector<16x128xf32>
    %56 = arith.mulf %52, %55 : vector<16x128xf32>
    %c0_38 = arith.constant 0 : index
    %c0_39 = arith.constant 0 : index
    %c0_40 = arith.constant 0 : index
    %57 = vector.load %arg12[%c0_38, %c0_39, %c0_40] : memref<1x128x128xbf16, #tpu.memory_space<vmem>>, vector<1x128x128xbf16>
    %58 = vector.shape_cast %57 : vector<1x128x128xbf16> to vector<128x128xbf16>
    %59 = arith.truncf %56 : vector<16x128xf32> to vector<16x128xbf16>
    %cst_41 = arith.constant dense<0.000000e+00> : vector<16x128xf32>
    %60 = tpu.matmul %59, %58, %cst_41 {dimension_numbers = #tpu.dot_dimension_numbers<[1], [0], [0], [1], [0, 0, 1, 1], [], []>} : vector<16x128xbf16>, vector<128x128xbf16>, vector<16x128xf32> -> vector<16x128xf32>
    %c0_42 = arith.constant 0 : index
    %c0_43 = arith.constant 0 : index
    %c0_44 = arith.constant 0 : index
    %61 = vector.load %arg13[%c0_42, %c0_43, %c0_44] : memref<1x1x128xf32, #tpu.memory_space<vmem>>, vector<1x1x128xf32>
    %62 = vector.shape_cast %61 : vector<1x1x128xf32> to vector<1x128xf32>
    %63 = vector.broadcast %62 : vector<1x128xf32> to vector<16x128xf32>
    %64 = arith.addf %60, %63 : vector<16x128xf32>
    %65 = arith.addf %64, %8 : vector<16x128xf32>
    %c0_45 = arith.constant 0 : index
    %c0_46 = arith.constant 0 : index
    %c0_47 = arith.constant 0 : index
    %66 = vector.load %arg14[%c0_45, %c0_46, %c0_47] : memref<1x1x128xf32, #tpu.memory_space<vmem>>, vector<1x1x128xf32>
    %67 = vector.shape_cast %66 : vector<1x1x128xf32> to vector<1x128xf32>
    %c0_48 = arith.constant 0 : index
    %c0_49 = arith.constant 0 : index
    %c0_50 = arith.constant 0 : index
    %68 = vector.load %arg15[%c0_48, %c0_49, %c0_50] : memref<1x1x128xf32, #tpu.memory_space<vmem>>, vector<1x1x128xf32>
    %69 = vector.shape_cast %68 : vector<1x1x128xf32> to vector<1x128xf32>
    %cst_51 = arith.constant dense<0.000000e+00> : vector<16xf32>
    %70 = vector.multi_reduction <add>, %65, %cst_51 [1] : vector<16x128xf32> to vector<16xf32>
    %71 = vector.shape_cast %70 : vector<16xf32> to vector<16x1xf32>
    %cst_52 = arith.constant 1.280000e+02 : f32
    %72 = vector.broadcast %cst_52 : f32 to vector<16x1xf32>
    %73 = arith.divf %71, %72 : vector<16x1xf32>
    %74 = vector.broadcast %73 : vector<16x1xf32> to vector<16x128xf32>
    %75 = arith.subf %65, %74 : vector<16x128xf32>
    %76 = arith.mulf %75, %75 : vector<16x128xf32>
    %cst_53 = arith.constant dense<0.000000e+00> : vector<16xf32>
    %77 = vector.multi_reduction <add>, %76, %cst_53 [1] : vector<16x128xf32> to vector<16xf32>
    %78 = vector.shape_cast %77 : vector<16xf32> to vector<16x1xf32>
    %cst_54 = arith.constant 1.280000e+02 : f32
    %79 = vector.broadcast %cst_54 : f32 to vector<16x1xf32>
    %80 = arith.divf %78, %79 : vector<16x1xf32>
    %cst_55 = arith.constant 9.99999996E-13 : f32
    %81 = vector.broadcast %cst_55 : f32 to vector<16x1xf32>
    %82 = arith.addf %80, %81 : vector<16x1xf32>
    %83 = math.rsqrt %82 : vector<16x1xf32>
    %84 = vector.broadcast %83 : vector<16x1xf32> to vector<16x128xf32>
    %85 = arith.mulf %75, %84 : vector<16x128xf32>
    %86 = vector.broadcast %67 : vector<1x128xf32> to vector<16x128xf32>
    %87 = arith.mulf %86, %85 : vector<16x128xf32>
    %88 = vector.broadcast %69 : vector<1x128xf32> to vector<16x128xf32>
    %89 = arith.addf %87, %88 : vector<16x128xf32>
    %c0_56 = arith.constant 0 : index
    %c0_57 = arith.constant 0 : index
    %c0_58 = arith.constant 0 : index
    %90 = vector.load %arg16[%c0_56, %c0_57, %c0_58] : memref<1x128x512xbf16, #tpu.memory_space<vmem>>, vector<1x128x512xbf16>
    %91 = vector.shape_cast %90 : vector<1x128x512xbf16> to vector<128x512xbf16>
    %92 = arith.truncf %89 : vector<16x128xf32> to vector<16x128xbf16>
    %cst_59 = arith.constant dense<0.000000e+00> : vector<16x512xf32>
    %93 = tpu.matmul %92, %91, %cst_59 {dimension_numbers = #tpu.dot_dimension_numbers<[1], [0], [0], [1], [0, 0, 1, 1], [], []>} : vector<16x128xbf16>, vector<128x512xbf16>, vector<16x512xf32> -> vector<16x512xf32>
    %c0_60 = arith.constant 0 : index
    %c0_61 = arith.constant 0 : index
    %c0_62 = arith.constant 0 : index
    %94 = vector.load %arg17[%c0_60, %c0_61, %c0_62] : memref<1x1x512xf32, #tpu.memory_space<vmem>>, vector<1x1x512xf32>
    %95 = vector.shape_cast %94 : vector<1x1x512xf32> to vector<1x512xf32>
    %96 = vector.broadcast %95 : vector<1x512xf32> to vector<16x512xf32>
    %97 = arith.addf %93, %96 : vector<16x512xf32>
    %cst_63 = arith.constant 5.000000e-01 : f32
    %98 = vector.broadcast %cst_63 : f32 to vector<16x512xf32>
    %99 = arith.mulf %97, %98 : vector<16x512xf32>
    %cst_64 = arith.constant 0.707108557 : f32
    %100 = vector.broadcast %cst_64 : f32 to vector<16x512xf32>
    %101 = arith.mulf %97, %100 : vector<16x512xf32>
    %102 = math.absf %101 : vector<16x512xf32>
    %cst_65 = arith.constant 0.327591091 : f32
    %103 = vector.broadcast %cst_65 : f32 to vector<16x512xf32>
    %104 = arith.mulf %103, %102 : vector<16x512xf32>
    %cst_66 = arith.constant 1.000000e+00 : f32
    %105 = vector.broadcast %cst_66 : f32 to vector<16x512xf32>
    %106 = arith.addf %105, %104 : vector<16x512xf32>
    %107 = tpu.reciprocal %106 {approx = true} : vector<16x512xf32> -> vector<16x512xf32>
    %cst_67 = arith.constant 1.06140542 : f32
    %108 = vector.broadcast %cst_67 : f32 to vector<16x512xf32>
    %109 = arith.mulf %108, %107 : vector<16x512xf32>
    %cst_68 = arith.constant -1.45315206 : f32
    %110 = vector.broadcast %cst_68 : f32 to vector<16x512xf32>
    %111 = arith.addf %109, %110 : vector<16x512xf32>
    %112 = arith.mulf %111, %107 : vector<16x512xf32>
    %cst_69 = arith.constant 1.42141378 : f32
    %113 = vector.broadcast %cst_69 : f32 to vector<16x512xf32>
    %114 = arith.addf %112, %113 : vector<16x512xf32>
    %115 = arith.mulf %114, %107 : vector<16x512xf32>
    %cst_70 = arith.constant -0.284496725 : f32
    %116 = vector.broadcast %cst_70 : f32 to vector<16x512xf32>
    %117 = arith.addf %115, %116 : vector<16x512xf32>
    %118 = arith.mulf %117, %107 : vector<16x512xf32>
    %cst_71 = arith.constant 0.254829586 : f32
    %119 = vector.broadcast %cst_71 : f32 to vector<16x512xf32>
    %120 = arith.addf %118, %119 : vector<16x512xf32>
    %121 = arith.mulf %120, %107 : vector<16x512xf32>
    %cst_72 = arith.constant 0.000000e+00 : f32
    %122 = vector.broadcast %cst_72 : f32 to vector<16x512xf32>
    %123 = arith.subf %122, %102 : vector<16x512xf32>
    %124 = arith.mulf %123, %102 : vector<16x512xf32>
    %125 = math.exp %124 : vector<16x512xf32>
    %126 = arith.mulf %121, %125 : vector<16x512xf32>
    %cst_73 = arith.constant 1.000000e+00 : f32
    %127 = vector.broadcast %cst_73 : f32 to vector<16x512xf32>
    %128 = arith.subf %127, %126 : vector<16x512xf32>
    %cst_74 = arith.constant 0.000000e+00 : f32
    %129 = vector.broadcast %cst_74 : f32 to vector<16x512xf32>
    %130 = arith.cmpf oge, %101, %129 : vector<16x512xf32>
    %cst_75 = arith.constant 0.000000e+00 : f32
    %131 = vector.broadcast %cst_75 : f32 to vector<16x512xf32>
    %132 = arith.subf %131, %128 : vector<16x512xf32>
    %133 = arith.select %130, %128, %132 : vector<16x512xi1>, vector<16x512xf32>
    %cst_76 = arith.constant 1.000000e+00 : f32
    %134 = vector.broadcast %cst_76 : f32 to vector<16x512xf32>
    %135 = arith.addf %134, %133 : vector<16x512xf32>
    %136 = arith.mulf %99, %135 : vector<16x512xf32>
    %c0_77 = arith.constant 0 : index
    %c0_78 = arith.constant 0 : index
    %c0_79 = arith.constant 0 : index
    %137 = vector.load %arg18[%c0_77, %c0_78, %c0_79] : memref<1x512x128xbf16, #tpu.memory_space<vmem>>, vector<1x512x128xbf16>
    %138 = vector.shape_cast %137 : vector<1x512x128xbf16> to vector<512x128xbf16>
    %139 = arith.truncf %136 : vector<16x512xf32> to vector<16x512xbf16>
    %cst_80 = arith.constant dense<0.000000e+00> : vector<16x128xf32>
    %140 = tpu.matmul %139, %138, %cst_80 {dimension_numbers = #tpu.dot_dimension_numbers<[1], [0], [0], [1], [0, 0, 1, 1], [], []>} : vector<16x512xbf16>, vector<512x128xbf16>, vector<16x128xf32> -> vector<16x128xf32>
    %c0_81 = arith.constant 0 : index
    %c0_82 = arith.constant 0 : index
    %c0_83 = arith.constant 0 : index
    %141 = vector.load %arg19[%c0_81, %c0_82, %c0_83] : memref<1x1x128xf32, #tpu.memory_space<vmem>>, vector<1x1x128xf32>
    %142 = vector.shape_cast %141 : vector<1x1x128xf32> to vector<1x128xf32>
    %143 = vector.broadcast %142 : vector<1x128xf32> to vector<16x128xf32>
    %144 = arith.addf %140, %143 : vector<16x128xf32>
    %145 = arith.addf %144, %89 : vector<16x128xf32>
    %c0_84 = arith.constant 0 : index
    %c0_85 = arith.constant 0 : index
    %c0_86 = arith.constant 0 : index
    %146 = vector.load %arg20[%c0_84, %c0_85, %c0_86] : memref<1x1x128xf32, #tpu.memory_space<vmem>>, vector<1x1x128xf32>
    %147 = vector.shape_cast %146 : vector<1x1x128xf32> to vector<1x128xf32>
    %c0_87 = arith.constant 0 : index
    %c0_88 = arith.constant 0 : index
    %c0_89 = arith.constant 0 : index
    %148 = vector.load %arg21[%c0_87, %c0_88, %c0_89] : memref<1x1x128xf32, #tpu.memory_space<vmem>>, vector<1x1x128xf32>
    %149 = vector.shape_cast %148 : vector<1x1x128xf32> to vector<1x128xf32>
    %cst_90 = arith.constant dense<0.000000e+00> : vector<16xf32>
    %150 = vector.multi_reduction <add>, %145, %cst_90 [1] : vector<16x128xf32> to vector<16xf32>
    %151 = vector.shape_cast %150 : vector<16xf32> to vector<16x1xf32>
    %cst_91 = arith.constant 1.280000e+02 : f32
    %152 = vector.broadcast %cst_91 : f32 to vector<16x1xf32>
    %153 = arith.divf %151, %152 : vector<16x1xf32>
    %154 = vector.broadcast %153 : vector<16x1xf32> to vector<16x128xf32>
    %155 = arith.subf %145, %154 : vector<16x128xf32>
    %156 = arith.mulf %155, %155 : vector<16x128xf32>
    %cst_92 = arith.constant dense<0.000000e+00> : vector<16xf32>
    %157 = vector.multi_reduction <add>, %156, %cst_92 [1] : vector<16x128xf32> to vector<16xf32>
    %158 = vector.shape_cast %157 : vector<16xf32> to vector<16x1xf32>
    %cst_93 = arith.constant 1.280000e+02 : f32
    %159 = vector.broadcast %cst_93 : f32 to vector<16x1xf32>
    %160 = arith.divf %158, %159 : vector<16x1xf32>
    %cst_94 = arith.constant 9.99999996E-13 : f32
    %161 = vector.broadcast %cst_94 : f32 to vector<16x1xf32>
    %162 = arith.addf %160, %161 : vector<16x1xf32>
    %163 = math.rsqrt %162 : vector<16x1xf32>
    %164 = vector.broadcast %163 : vector<16x1xf32> to vector<16x128xf32>
    %165 = arith.mulf %155, %164 : vector<16x128xf32>
    %166 = vector.broadcast %147 : vector<1x128xf32> to vector<16x128xf32>
    %167 = arith.mulf %166, %165 : vector<16x128xf32>
    %168 = vector.broadcast %149 : vector<1x128xf32> to vector<16x128xf32>
    %169 = arith.addf %167, %168 : vector<16x128xf32>
    %c0_95 = arith.constant 0 : index
    %c0_96 = arith.constant 0 : index
    %c0_97 = arith.constant 0 : index
    %170 = vector.load %arg22[%c0_95, %c0_96, %c0_97] : memref<1x128x384xbf16, #tpu.memory_space<vmem>>, vector<1x128x384xbf16>
    %171 = vector.shape_cast %170 : vector<1x128x384xbf16> to vector<128x384xbf16>
    %172 = arith.truncf %169 : vector<16x128xf32> to vector<16x128xbf16>
    %cst_98 = arith.constant dense<0.000000e+00> : vector<16x384xf32>
    %173 = tpu.matmul %172, %171, %cst_98 {dimension_numbers = #tpu.dot_dimension_numbers<[1], [0], [0], [1], [0, 0, 1, 1], [], []>} : vector<16x128xbf16>, vector<128x384xbf16>, vector<16x384xf32> -> vector<16x384xf32>
    %c0_99 = arith.constant 0 : index
    %c0_100 = arith.constant 0 : index
    %c0_101 = arith.constant 0 : index
    %174 = vector.load %arg23[%c0_99, %c0_100, %c0_101] : memref<1x1x384xf32, #tpu.memory_space<vmem>>, vector<1x1x384xf32>
    %175 = vector.shape_cast %174 : vector<1x1x384xf32> to vector<1x384xf32>
    %176 = vector.broadcast %175 : vector<1x384xf32> to vector<16x384xf32>
    %177 = arith.addf %173, %176 : vector<16x384xf32>
    %c0_102 = arith.constant 0 : index
    %c0_103 = arith.constant 0 : index
    %c0_104 = arith.constant 0 : index
    %178 = vector.load %arg24[%c0_102, %c0_103, %c0_104] : memref<1x128x384xbf16, #tpu.memory_space<vmem>>, vector<1x128x384xbf16>
    %179 = vector.shape_cast %178 : vector<1x128x384xbf16> to vector<128x384xbf16>
    %180 = arith.truncf %10 : vector<16x128xf32> to vector<16x128xbf16>
    %cst_105 = arith.constant dense<0.000000e+00> : vector<16x384xf32>
    %181 = tpu.matmul %180, %179, %cst_105 {dimension_numbers = #tpu.dot_dimension_numbers<[1], [0], [0], [1], [0, 0, 1, 1], [], []>} : vector<16x128xbf16>, vector<128x384xbf16>, vector<16x384xf32> -> vector<16x384xf32>
    %c0_106 = arith.constant 0 : index
    %c0_107 = arith.constant 0 : index
    %c0_108 = arith.constant 0 : index
    %182 = vector.load %arg25[%c0_106, %c0_107, %c0_108] : memref<1x1x384xf32, #tpu.memory_space<vmem>>, vector<1x1x384xf32>
    %183 = vector.shape_cast %182 : vector<1x1x384xf32> to vector<1x384xf32>
    %184 = vector.broadcast %183 : vector<1x384xf32> to vector<16x384xf32>
    %185 = arith.addf %181, %184 : vector<16x384xf32>
    %186 = vector.extract_strided_slice %177 {offsets = [0, 0], sizes = [16, 128], strides = [1, 1]} : vector<16x384xf32> to vector<16x128xf32>
    %187 = vector.extract_strided_slice %185 {offsets = [0, 0], sizes = [16, 128], strides = [1, 1]} : vector<16x384xf32> to vector<16x128xf32>
    %188 = arith.addf %186, %187 : vector<16x128xf32>
    %189 = arith.negf %188 : vector<16x128xf32>
    %190 = math.exp %189 : vector<16x128xf32>
    %cst_109 = arith.constant 1.000000e+00 : f32
    %191 = vector.broadcast %cst_109 : f32 to vector<16x128xf32>
    %192 = arith.addf %191, %190 : vector<16x128xf32>
    %193 = arith.divf %191, %192 : vector<16x128xf32>
    %194 = vector.extract_strided_slice %177 {offsets = [0, 128], sizes = [16, 128], strides = [1, 1]} : vector<16x384xf32> to vector<16x128xf32>
    %195 = vector.extract_strided_slice %185 {offsets = [0, 128], sizes = [16, 128], strides = [1, 1]} : vector<16x384xf32> to vector<16x128xf32>
    %196 = arith.addf %194, %195 : vector<16x128xf32>
    %197 = arith.negf %196 : vector<16x128xf32>
    %198 = math.exp %197 : vector<16x128xf32>
    %cst_110 = arith.constant 1.000000e+00 : f32
    %199 = vector.broadcast %cst_110 : f32 to vector<16x128xf32>
    %200 = arith.addf %199, %198 : vector<16x128xf32>
    %201 = arith.divf %199, %200 : vector<16x128xf32>
    %202 = vector.extract_strided_slice %177 {offsets = [0, 256], sizes = [16, 128], strides = [1, 1]} : vector<16x384xf32> to vector<16x128xf32>
    %203 = vector.extract_strided_slice %185 {offsets = [0, 256], sizes = [16, 128], strides = [1, 1]} : vector<16x384xf32> to vector<16x128xf32>
    %204 = arith.mulf %193, %203 : vector<16x128xf32>
    %205 = arith.addf %202, %204 : vector<16x128xf32>
    %206 = math.tanh %205 : vector<16x128xf32>
    %cst_111 = arith.constant 1.000000e+00 : f32
    %207 = vector.broadcast %cst_111 : f32 to vector<16x128xf32>
    %208 = arith.subf %207, %201 : vector<16x128xf32>
    %209 = arith.mulf %208, %206 : vector<16x128xf32>
    %210 = arith.mulf %201, %10 : vector<16x128xf32>
    %211 = arith.addf %209, %210 : vector<16x128xf32>
    %c0_112 = arith.constant 0 : index
    %c0_113 = arith.constant 0 : index
    %c0_114 = arith.constant 0 : index
    %212 = vector.load %arg26[%c0_112, %c0_113, %c0_114] : memref<1x1x128xf32, #tpu.memory_space<vmem>>, vector<1x1x128xf32>
    %213 = vector.shape_cast %212 : vector<1x1x128xf32> to vector<1x128xf32>
    %c0_115 = arith.constant 0 : index
    %c0_116 = arith.constant 0 : index
    %c0_117 = arith.constant 0 : index
    %214 = vector.load %arg27[%c0_115, %c0_116, %c0_117] : memref<1x1x128xf32, #tpu.memory_space<vmem>>, vector<1x1x128xf32>
    %215 = vector.shape_cast %214 : vector<1x1x128xf32> to vector<1x128xf32>
    %cst_118 = arith.constant dense<0.000000e+00> : vector<16xf32>
    %216 = vector.multi_reduction <add>, %211, %cst_118 [1] : vector<16x128xf32> to vector<16xf32>
    %217 = vector.shape_cast %216 : vector<16xf32> to vector<16x1xf32>
    %cst_119 = arith.constant 1.280000e+02 : f32
    %218 = vector.broadcast %cst_119 : f32 to vector<16x1xf32>
    %219 = arith.divf %217, %218 : vector<16x1xf32>
    %220 = vector.broadcast %219 : vector<16x1xf32> to vector<16x128xf32>
    %221 = arith.subf %211, %220 : vector<16x128xf32>
    %222 = arith.mulf %221, %221 : vector<16x128xf32>
    %cst_120 = arith.constant dense<0.000000e+00> : vector<16xf32>
    %223 = vector.multi_reduction <add>, %222, %cst_120 [1] : vector<16x128xf32> to vector<16xf32>
    %224 = vector.shape_cast %223 : vector<16xf32> to vector<16x1xf32>
    %cst_121 = arith.constant 1.280000e+02 : f32
    %225 = vector.broadcast %cst_121 : f32 to vector<16x1xf32>
    %226 = arith.divf %224, %225 : vector<16x1xf32>
    %cst_122 = arith.constant 9.99999996E-13 : f32
    %227 = vector.broadcast %cst_122 : f32 to vector<16x1xf32>
    %228 = arith.addf %226, %227 : vector<16x1xf32>
    %229 = math.rsqrt %228 : vector<16x1xf32>
    %230 = vector.broadcast %229 : vector<16x1xf32> to vector<16x128xf32>
    %231 = arith.mulf %221, %230 : vector<16x128xf32>
    %232 = vector.broadcast %213 : vector<1x128xf32> to vector<16x128xf32>
    %233 = arith.mulf %232, %231 : vector<16x128xf32>
    %234 = vector.broadcast %215 : vector<1x128xf32> to vector<16x128xf32>
    %235 = arith.addf %233, %234 : vector<16x128xf32>
    %c0_123 = arith.constant 0 : index
    %c0_124 = arith.constant 0 : index
    %236 = vector.load %arg28[%c0_123, %c0_124] : memref<16x128xf32, #tpu.memory_space<vmem>>, vector<16x128xf32>
    tpu.vector_store %arg28[%c0_123, %c0_124], %235 {strides = array<i32>} : memref<16x128xf32, #tpu.memory_space<vmem>>, vector<16x128xf32>,
    %c0_125 = arith.constant 0 : index
    %c0_126 = arith.constant 0 : index
    %237 = vector.load %arg29[%c0_125, %c0_126] : memref<16x128xf32, #tpu.memory_space<vmem>>, vector<16x128xf32>
    tpu.vector_store %arg29[%c0_125, %c0_126], %211 {strides = array<i32>} : memref<16x128xf32, #tpu.memory_space<vmem>>, vector<16x128xf32>,
    return
  }
  func.func @transform_0(%arg0: i32, %arg1: i32) -> (i32, i32) {
    %c0_i32 = arith.constant 0 : i32
    %c0_i32_0 = arith.constant 0 : i32
    %c0_i32_1 = arith.constant 0 : i32
    return %c0_i32, %c0_i32_0 : i32, i32
  }
  func.func @transform_1(%arg0: i32, %arg1: i32) -> (i32, i32) {
    %c0_i32 = arith.constant 0 : i32
    %c0_i32_0 = arith.constant 0 : i32
    %c0_i32_1 = arith.constant 0 : i32
    return %c0_i32, %c0_i32_0 : i32, i32
  }
  func.func @transform_2(%arg0: i32, %arg1: i32) -> (i32, i32) {
    %c0_i32 = arith.constant 0 : i32
    %c0_i32_0 = arith.constant 0 : i32
    %c0_i32_1 = arith.constant 0 : i32
    return %c0_i32, %c0_i32_0 : i32, i32
  }
  func.func @transform_3(%arg0: i32, %arg1: i32) -> (i32, i32) {
    %c0_i32 = arith.constant 0 : i32
    %c0_i32_0 = arith.constant 0 : i32
    %c0_i32_1 = arith.constant 0 : i32
    return %c0_i32, %c0_i32_0 : i32, i32
  }
  func.func @transform_4(%arg0: i32, %arg1: i32) -> (i32, i32) {
    %c0_i32 = arith.constant 0 : i32
    %c0_i32_0 = arith.constant 0 : i32
    %c0_i32_1 = arith.constant 0 : i32
    return %c0_i32, %c0_i32_0 : i32, i32
  }
  func.func @transform_5(%arg0: i32, %arg1: i32) -> (i32, i32) {
    %c0_i32 = arith.constant 0 : i32
    %c0_i32_0 = arith.constant 0 : i32
    %c0_i32_1 = arith.constant 0 : i32
    return %c0_i32, %c0_i32_0 : i32, i32
  }
  func.func @transform_6(%arg0: i32, %arg1: i32) -> (i32, i32, i32) {
    %c0_i32 = arith.constant 0 : i32
    %c0_i32_0 = arith.constant 0 : i32
    %c0_i32_1 = arith.constant 0 : i32
    return %arg0, %c0_i32, %c0_i32_0 : i32, i32, i32
  }
  func.func @transform_7(%arg0: i32, %arg1: i32) -> (i32, i32, i32) {
    %c0_i32 = arith.constant 0 : i32
    %c0_i32_0 = arith.constant 0 : i32
    %c0_i32_1 = arith.constant 0 : i32
    return %arg0, %c0_i32, %c0_i32_0 : i32, i32, i32
  }
  func.func @transform_8(%arg0: i32, %arg1: i32) -> (i32, i32, i32) {
    %c0_i32 = arith.constant 0 : i32
    %c0_i32_0 = arith.constant 0 : i32
    %c0_i32_1 = arith.constant 0 : i32
    return %arg0, %c0_i32, %c0_i32_0 : i32, i32, i32
  }
  func.func @transform_9(%arg0: i32, %arg1: i32) -> (i32, i32, i32) {
    %c0_i32 = arith.constant 0 : i32
    %c0_i32_0 = arith.constant 0 : i32
    %c0_i32_1 = arith.constant 0 : i32
    return %arg0, %c0_i32, %c0_i32_0 : i32, i32, i32
  }
  func.func @transform_10(%arg0: i32, %arg1: i32) -> (i32, i32, i32) {
    %c0_i32 = arith.constant 0 : i32
    %c0_i32_0 = arith.constant 0 : i32
    %c0_i32_1 = arith.constant 0 : i32
    return %arg0, %c0_i32, %c0_i32_0 : i32, i32, i32
  }
  func.func @transform_11(%arg0: i32, %arg1: i32) -> (i32, i32, i32) {
    %c0_i32 = arith.constant 0 : i32
    %c0_i32_0 = arith.constant 0 : i32
    %c0_i32_1 = arith.constant 0 : i32
    return %arg0, %c0_i32, %c0_i32_0 : i32, i32, i32
  }
  func.func @transform_12(%arg0: i32, %arg1: i32) -> (i32, i32, i32) {
    %c0_i32 = arith.constant 0 : i32
    %c0_i32_0 = arith.constant 0 : i32
    %c0_i32_1 = arith.constant 0 : i32
    return %arg0, %c0_i32, %c0_i32_0 : i32, i32, i32
  }
  func.func @transform_13(%arg0: i32, %arg1: i32) -> (i32, i32, i32) {
    %c0_i32 = arith.constant 0 : i32
    %c0_i32_0 = arith.constant 0 : i32
    %c0_i32_1 = arith.constant 0 : i32
    return %arg0, %c0_i32, %c0_i32_0 : i32, i32, i32
  }
  func.func @transform_14(%arg0: i32, %arg1: i32) -> (i32, i32, i32) {
    %c0_i32 = arith.constant 0 : i32
    %c0_i32_0 = arith.constant 0 : i32
    %c0_i32_1 = arith.constant 0 : i32
    return %arg0, %c0_i32, %c0_i32_0 : i32, i32, i32
  }
  func.func @transform_15(%arg0: i32, %arg1: i32) -> (i32, i32, i32) {
    %c0_i32 = arith.constant 0 : i32
    %c0_i32_0 = arith.constant 0 : i32
    %c0_i32_1 = arith.constant 0 : i32
    return %arg0, %c0_i32, %c0_i32_0 : i32, i32, i32
  }
  func.func @transform_16(%arg0: i32, %arg1: i32) -> (i32, i32, i32) {
    %c0_i32 = arith.constant 0 : i32
    %c0_i32_0 = arith.constant 0 : i32
    %c0_i32_1 = arith.constant 0 : i32
    return %arg0, %c0_i32, %c0_i32_0 : i32, i32, i32
  }
  func.func @transform_17(%arg0: i32, %arg1: i32) -> (i32, i32, i32) {
    %c0_i32 = arith.constant 0 : i32
    %c0_i32_0 = arith.constant 0 : i32
    %c0_i32_1 = arith.constant 0 : i32
    return %arg0, %c0_i32, %c0_i32_0 : i32, i32, i32
  }
  func.func @transform_18(%arg0: i32, %arg1: i32) -> (i32, i32, i32) {
    %c0_i32 = arith.constant 0 : i32
    %c0_i32_0 = arith.constant 0 : i32
    %c0_i32_1 = arith.constant 0 : i32
    return %arg0, %c0_i32, %c0_i32_0 : i32, i32, i32
  }
  func.func @transform_19(%arg0: i32, %arg1: i32) -> (i32, i32, i32) {
    %c0_i32 = arith.constant 0 : i32
    %c0_i32_0 = arith.constant 0 : i32
    %c0_i32_1 = arith.constant 0 : i32
    return %arg0, %c0_i32, %c0_i32_0 : i32, i32, i32
  }
  func.func @transform_20(%arg0: i32, %arg1: i32) -> (i32, i32, i32) {
    %c0_i32 = arith.constant 0 : i32
    %c0_i32_0 = arith.constant 0 : i32
    %c0_i32_1 = arith.constant 0 : i32
    return %arg0, %c0_i32, %c0_i32_0 : i32, i32, i32
  }
  func.func @transform_21(%arg0: i32, %arg1: i32) -> (i32, i32, i32) {
    %c0_i32 = arith.constant 0 : i32
    %c0_i32_0 = arith.constant 0 : i32
    %c0_i32_1 = arith.constant 0 : i32
    return %arg0, %c0_i32, %c0_i32_0 : i32, i32, i32
  }
  func.func @transform_22(%arg0: i32, %arg1: i32) -> (i32, i32, i32) {
    %c0_i32 = arith.constant 0 : i32
    %c0_i32_0 = arith.constant 0 : i32
    %c0_i32_1 = arith.constant 0 : i32
    return %arg0, %c0_i32, %c0_i32_0 : i32, i32, i32
  }
  func.func @transform_23(%arg0: i32, %arg1: i32) -> (i32, i32, i32) {
    %c0_i32 = arith.constant 0 : i32
    %c0_i32_0 = arith.constant 0 : i32
    %c0_i32_1 = arith.constant 0 : i32
    return %arg0, %c0_i32, %c0_i32_0 : i32, i32, i32
  }
  func.func @transform_24(%arg0: i32, %arg1: i32) -> (i32, i32, i32) {
    %c0_i32 = arith.constant 0 : i32
    %c0_i32_0 = arith.constant 0 : i32
    %c0_i32_1 = arith.constant 0 : i32
    return %arg0, %c0_i32, %c0_i32_0 : i32, i32, i32
  }
  func.func @transform_25(%arg0: i32, %arg1: i32) -> (i32, i32, i32) {
    %c0_i32 = arith.constant 0 : i32
    %c0_i32_0 = arith.constant 0 : i32
    %c0_i32_1 = arith.constant 0 : i32
    return %arg0, %c0_i32, %c0_i32_0 : i32, i32, i32
  }
  func.func @transform_26(%arg0: i32, %arg1: i32) -> (i32, i32) {
    %c0_i32 = arith.constant 0 : i32
    %c0_i32_0 = arith.constant 0 : i32
    %c0_i32_1 = arith.constant 0 : i32
    return %c0_i32, %c0_i32_0 : i32, i32
  }
}

module attributes {stable_mosaic.version = 11 : i64} {
  func.func @_molgnet_kernel(%arg0: i32, %arg1: i32, %arg2: memref<16x128xf32, #tpu.memory_space<vmem>>, %arg3: memref<32x128xbf16, #tpu.memory_space<vmem>>, %arg4: memref<16x32xbf16, #tpu.memory_space<vmem>>, %arg5: memref<32x16xbf16, #tpu.memory_space<vmem>>, %arg6: memref<32x16xbf16, #tpu.memory_space<vmem>>, %arg7: memref<128x128xbf16, #tpu.memory_space<vmem>>, %arg8: memref<1x128x128xbf16, #tpu.memory_space<vmem>>, %arg9: memref<1x1x128xf32, #tpu.memory_space<vmem>>, %arg10: memref<1x128x256xbf16, #tpu.memory_space<vmem>>, %arg11: memref<1x1x256xf32, #tpu.memory_space<vmem>>, %arg12: memref<1x128x128xbf16, #tpu.memory_space<vmem>>, %arg13: memref<1x1x128xf32, #tpu.memory_space<vmem>>, %arg14: memref<1x1x128xf32, #tpu.memory_space<vmem>>, %arg15: memref<1x1x128xf32, #tpu.memory_space<vmem>>, %arg16: memref<1x128x512xbf16, #tpu.memory_space<vmem>>, %arg17: memref<1x1x512xf32, #tpu.memory_space<vmem>>, %arg18: memref<1x512x128xbf16, #tpu.memory_space<vmem>>, %arg19: memref<1x1x128xf32, #tpu.memory_space<vmem>>, %arg20: memref<1x1x128xf32, #tpu.memory_space<vmem>>, %arg21: memref<1x1x128xf32, #tpu.memory_space<vmem>>, %arg22: memref<1x128x384xbf16, #tpu.memory_space<vmem>>, %arg23: memref<1x1x384xf32, #tpu.memory_space<vmem>>, %arg24: memref<1x128x384xbf16, #tpu.memory_space<vmem>>, %arg25: memref<1x1x384xf32, #tpu.memory_space<vmem>>, %arg26: memref<1x1x128xf32, #tpu.memory_space<vmem>>, %arg27: memref<1x1x128xf32, #tpu.memory_space<vmem>>, %arg28: memref<16x128xf32, #tpu.memory_space<vmem>>, %arg29: memref<16x128xf32, #tpu.memory_space<vmem>>) attributes {dimension_semantics = [#tpu.dimension_semantics<arbitrary>, #tpu.dimension_semantics<arbitrary>], iteration_bounds = array<i64: 2, 2>, scalar_prefetch = 0 : i64, scratch_operands = 1 : i64, tpu.core_type = #tpu.core_type<tc>, window_params = [{pipeline_mode = #tpu.pipeline_mode<synchronous>, transform_indices = @transform_0, window_bounds = array<i64: 16, 128>}, {pipeline_mode = #tpu.pipeline_mode<synchronous>, transform_indices = @transform_1, window_bounds = array<i64: 32, 128>}, {pipeline_mode = #tpu.pipeline_mode<synchronous>, transform_indices = @transform_2, window_bounds = array<i64: 16, 32>}, {pipeline_mode = #tpu.pipeline_mode<synchronous>, transform_indices = @transform_3, window_bounds = array<i64: 32, 16>}, {pipeline_mode = #tpu.pipeline_mode<synchronous>, transform_indices = @transform_4, window_bounds = array<i64: 32, 16>}, {pipeline_mode = #tpu.pipeline_mode<synchronous>, transform_indices = @transform_5, window_bounds = array<i64: 128, 128>}, {transform_indices = @transform_6, window_bounds = array<i64: 1, 128, 128>}, {transform_indices = @transform_7, window_bounds = array<i64: 1, 1, 128>}, {transform_indices = @transform_8, window_bounds = array<i64: 1, 128, 256>}, {transform_indices = @transform_9, window_bounds = array<i64: 1, 1, 256>}, {transform_indices = @transform_10, window_bounds = array<i64: 1, 128, 128>}, {transform_indices = @transform_11, window_bounds = array<i64: 1, 1, 128>}, {transform_indices = @transform_12, window_bounds = array<i64: 1, 1, 128>}, {transform_indices = @transform_13, window_bounds = array<i64: 1, 1, 128>}, {transform_indices = @transform_14, window_bounds = array<i64: 1, 128, 512>}, {transform_indices = @transform_15, window_bounds = array<i64: 1, 1, 512>}, {transform_indices = @transform_16, window_bounds = array<i64: 1, 512, 128>}, {transform_indices = @transform_17, window_bounds = array<i64: 1, 1, 128>}, {transform_indices = @transform_18, window_bounds = array<i64: 1, 1, 128>}, {transform_indices = @transform_19, window_bounds = array<i64: 1, 1, 128>}, {transform_indices = @transform_20, window_bounds = array<i64: 1, 128, 384>}, {transform_indices = @transform_21, window_bounds = array<i64: 1, 1, 384>}, {transform_indices = @transform_22, window_bounds = array<i64: 1, 128, 384>}, {transform_indices = @transform_23, window_bounds = array<i64: 1, 1, 384>}, {transform_indices = @transform_24, window_bounds = array<i64: 1, 1, 128>}, {transform_indices = @transform_25, window_bounds = array<i64: 1, 1, 128>}, {pipeline_mode = #tpu.pipeline_mode<synchronous>, transform_indices = @transform_26, window_bounds = array<i64: 16, 128>}]} {
    %c0_i32 = arith.constant 0 : i32
    %0 = arith.cmpi eq, %arg0, %c0_i32 : i32
    %c0_i32_0 = arith.constant 0 : i32
    %1 = arith.cmpi eq, %arg1, %c0_i32_0 : i32
    %2 = arith.andi %0, %1 : i1
    %3 = arith.extui %2 : i1 to i32
    %c0_i32_1 = arith.constant 0 : i32
    %4 = arith.cmpi ne, %3, %c0_i32_1 : i32
    scf.if %4 {
      %c0_127 = arith.constant 0 : index
      %c0_128 = arith.constant 0 : index
      %238 = vector.load %arg2[%c0_127, %c0_128] : memref<16x128xf32, #tpu.memory_space<vmem>>, vector<16x128xf32>
      %c0_129 = arith.constant 0 : index
      %c0_130 = arith.constant 0 : index
      %239 = vector.load %arg28[%c0_129, %c0_130] : memref<16x128xf32, #tpu.memory_space<vmem>>, vector<16x128xf32>
      tpu.vector_store %arg28[%c0_129, %c0_130], %238 {strides = array<i32>} : memref<16x128xf32, #tpu.memory_space<vmem>>, vector<16x128xf32>,
    } else {
    }
    %c0_i32_2 = arith.constant 0 : i32
    %5 = arith.cmpi eq, %arg1, %c0_i32_2 : i32
    %6 = arith.extui %5 : i1 to i32
    %c0_i32_3 = arith.constant 0 : i32
    %7 = arith.cmpi ne, %6, %c0_i32_3 : i32
    scf.if %7 {
      %c0_127 = arith.constant 0 : index
      %c0_128 = arith.constant 0 : index
      %238 = vector.load %arg28[%c0_127, %c0_128] : memref<16x128xf32, #tpu.memory_space<vmem>>, vector<16x128xf32>
      %c0_129 = arith.constant 0 : index
      %c0_130 = arith.constant 0 : index
      %239 = vector.load %arg29[%c0_129, %c0_130] : memref<16x128xf32, #tpu.memory_space<vmem>>, vector<16x128xf32>
      tpu.vector_store %arg29[%c0_129, %c0_130], %238 {strides = array<i32>} : memref<16x128xf32, #tpu.memory_space<vmem>>, vector<16x128xf32>,
    } else {
    }
    %c0 = arith.constant 0 : index
    %c0_4 = arith.constant 0 : index
    %8 = vector.load %arg28[%c0, %c0_4] : memref<16x128xf32, #tpu.memory_space<vmem>>, vector<16x128xf32>
    %9 = arith.truncf %8 : vector<16x128xf32> to vector<16x128xbf16>
    %c0_5 = arith.constant 0 : index
    %c0_6 = arith.constant 0 : index
    %10 = vector.load %arg29[%c0_5, %c0_6] : memref<16x128xf32, #tpu.memory_space<vmem>>, vector<16x128xf32>
    %c0_7 = arith.constant 0 : index
    %c0_8 = arith.constant 0 : index
    %11 = vector.load %arg3[%c0_7, %c0_8] : memref<32x128xbf16, #tpu.memory_space<vmem>>, vector<32x128xbf16>
    %12 = arith.extf %11 : vector<32x128xbf16> to vector<32x128xf32>
    %c0_9 = arith.constant 0 : index
    %c0_10 = arith.constant 0 : index
    %13 = vector.load %arg4[%c0_9, %c0_10] : memref<16x32xbf16, #tpu.memory_space<vmem>>, vector<16x32xbf16>
    %c0_11 = arith.constant 0 : index
    %c0_12 = arith.constant 0 : index
    %14 = vector.load %arg5[%c0_11, %c0_12] : memref<32x16xbf16, #tpu.memory_space<vmem>>, vector<32x16xbf16>
    %c0_13 = arith.constant 0 : index
    %c0_14 = arith.constant 0 : index
    %15 = vector.load %arg6[%c0_13, %c0_14] : memref<32x16xbf16, #tpu.memory_space<vmem>>, vector<32x16xbf16>
    %c0_15 = arith.constant 0 : index
    %c0_16 = arith.constant 0 : index
    %16 = vector.load %arg7[%c0_15, %c0_16] : memref<128x128xbf16, #tpu.memory_space<vmem>>, vector<128x128xbf16>
    %c0_17 = arith.constant 0 : index
    %c0_18 = arith.constant 0 : index
    %c0_19 = arith.constant 0 : index
    %17 = vector.load %arg8[%c0_17, %c0_18, %c0_19] : memref<1x128x128xbf16, #tpu.memory_space<vmem>>, vector<1x128x128xbf16>
    %18 = vector.shape_cast %17 : vector<1x128x128xbf16> to vector<128x128xbf16>
    %cst = arith.constant dense<0.000000e+00> : vector<16x128xf32>
    %19 = tpu.matmul %9, %18, %cst {dimension_numbers = #tpu.dot_dimension_numbers<[1], [0], [0], [1], [0, 0, 1, 1], [], []>} : vector<16x128xbf16>, vector<128x128xbf16>, vector<16x128xf32> -> vector<16x128xf32>
    %c0_20 = arith.constant 0 : index
    %c0_21 = arith.constant 0 : index
    %c0_22 = arith.constant 0 : index
    %20 = vector.load %arg9[%c0_20, %c0_21, %c0_22] : memref<1x1x128xf32, #tpu.memory_space<vmem>>, vector<1x1x128xf32>
    %21 = vector.shape_cast %20 : vector<1x1x128xf32> to vector<1x128xf32>
    %22 = vector.broadcast %21 : vector<1x128xf32> to vector<16x128xf32>
    %23 = arith.addf %19, %22 : vector<16x128xf32>
    %24 = arith.truncf %23 : vector<16x128xf32> to vector<16x128xbf16>
    %cst_23 = arith.constant dense<0.000000e+00> : vector<32x128xf32>
    %25 = tpu.matmul %14, %24, %cst_23 {dimension_numbers = #tpu.dot_dimension_numbers<[1], [0], [0], [1], [0, 0, 1, 1], [], []>} : vector<32x16xbf16>, vector<16x128xbf16>, vector<32x128xf32> -> vector<32x128xf32>
    %cst_24 = arith.constant dense<0.000000e+00> : vector<32x128xf32>
    %26 = tpu.matmul %15, %9, %cst_24 {dimension_numbers = #tpu.dot_dimension_numbers<[1], [0], [0], [1], [0, 0, 1, 1], [], []>} : vector<32x16xbf16>, vector<16x128xbf16>, vector<32x128xf32> -> vector<32x128xf32>
    %27 = arith.addf %26, %12 : vector<32x128xf32>
    %c0_25 = arith.constant 0 : index
    %c0_26 = arith.constant 0 : index
    %c0_27 = arith.constant 0 : index
    %28 = vector.load %arg10[%c0_25, %c0_26, %c0_27] : memref<1x128x256xbf16, #tpu.memory_space<vmem>>, vector<1x128x256xbf16>
    %29 = vector.shape_cast %28 : vector<1x128x256xbf16> to vector<128x256xbf16>
    %30 = arith.truncf %27 : vector<32x128xf32> to vector<32x128xbf16>
    %cst_28 = arith.constant dense<0.000000e+00> : vector<32x256xf32>
    %31 = tpu.matmul %30, %29, %cst_28 {dimension_numbers = #tpu.dot_dimension_numbers<[1], [0], [0], [1], [0, 0, 1, 1], [], []>} : vector<32x128xbf16>, vector<128x256xbf16>, vector<32x256xf32> -> vector<32x256xf32>
    %c0_29 = arith.constant 0 : index
    %c0_30 = arith.constant 0 : index
    %c0_31 = arith.constant 0 : index
    %32 = vector.load %arg11[%c0_29, %c0_30, %c0_31] : memref<1x1x256xf32, #tpu.memory_space<vmem>>, vector<1x1x256xf32>
    %33 = vector.shape_cast %32 : vector<1x1x256xf32> to vector<1x256xf32>
    %34 = vector.broadcast %33 : vector<1x256xf32> to vector<32x256xf32>
    %35 = arith.addf %31, %34 : vector<32x256xf32>
    %36 = vector.extract_strided_slice %35 {offsets = [0, 0], sizes = [32, 128], strides = [1, 1]} : vector<32x256xf32> to vector<32x128xf32>
    %37 = vector.extract_strided_slice %35 {offsets = [0, 128], sizes = [32, 128], strides = [1, 1]} : vector<32x256xf32> to vector<32x128xf32>
    %38 = arith.mulf %25, %36 : vector<32x128xf32>
    %39 = arith.truncf %38 : vector<32x128xf32> to vector<32x128xbf16>
    %cst_32 = arith.constant dense<0.000000e+00> : vector<32x128xf32>
    %40 = tpu.matmul %39, %16, %cst_32 {dimension_numbers = #tpu.dot_dimension_numbers<[1], [0], [0], [1], [0, 0, 1, 1], [], []>} : vector<32x128xbf16>, vector<128x128xbf16>, vector<32x128xf32> -> vector<32x128xf32>
    %cst_33 = arith.constant 0.176776692 : f32
    %41 = vector.broadcast %cst_33 : f32 to vector<32x128xf32>
    %42 = arith.mulf %40, %41 : vector<32x128xf32>
    %cst_34 = arith.constant dense<0xFF800000> : vector<128xf32>
    %43 = vector.multi_reduction <maximumf>, %42, %cst_34 [0] : vector<32x128xf32> to vector<128xf32>
    %44 = vector.shape_cast %43 : vector<128xf32> to vector<1x128xf32>
    %45 = vector.broadcast %44 : vector<1x128xf32> to vector<32x128xf32>
    %46 = arith.subf %42, %45 : vector<32x128xf32>
    %47 = math.exp %46 : vector<32x128xf32>
    %48 = arith.truncf %47 : vector<32x128xf32> to vector<32x128xbf16>
    %cst_35 = arith.constant dense<0.000000e+00> : vector<16x128xf32>
    %49 = tpu.matmul %13, %48, %cst_35 {dimension_numbers = #tpu.dot_dimension_numbers<[1], [0], [0], [1], [0, 0, 1, 1], [], []>} : vector<16x32xbf16>, vector<32x128xbf16>, vector<16x128xf32> -> vector<16x128xf32>
    %50 = arith.mulf %47, %37 : vector<32x128xf32>
    %51 = arith.truncf %50 : vector<32x128xf32> to vector<32x128xbf16>
    %cst_36 = arith.constant dense<0.000000e+00> : vector<16x128xf32>
    %52 = tpu.matmul %13, %51, %cst_36 {dimension_numbers = #tpu.dot_dimension_numbers<[1], [0], [0], [1], [0, 0, 1, 1], [], []>} : vector<16x32xbf16>, vector<32x128xbf16>, vector<16x128xf32> -> vector<16x128xf32>
    %cst_37 = arith.constant 1.000000e-16 : f32
    %53 = vector.broadcast %cst_37 : f32 to vector<16x128xf32>
    %54 = arith.addf %49, %53 : vector<16x128xf32>
    %55 = tpu.reciprocal %54 {approx = true} : vector<16x128xf32> -> vector<16x128xf32>
    %56 = arith.mulf %52, %55 : vector<16x128xf32>
    %c0_38 = arith.constant 0 : index
    %c0_39 = arith.constant 0 : index
    %c0_40 = arith.constant 0 : index
    %57 = vector.load %arg12[%c0_38, %c0_39, %c0_40] : memref<1x128x128xbf16, #tpu.memory_space<vmem>>, vector<1x128x128xbf16>
    %58 = vector.shape_cast %57 : vector<1x128x128xbf16> to vector<128x128xbf16>
    %59 = arith.truncf %56 : vector<16x128xf32> to vector<16x128xbf16>
    %cst_41 = arith.constant dense<0.000000e+00> : vector<16x128xf32>
    %60 = tpu.matmul %59, %58, %cst_41 {dimension_numbers = #tpu.dot_dimension_numbers<[1], [0], [0], [1], [0, 0, 1, 1], [], []>} : vector<16x128xbf16>, vector<128x128xbf16>, vector<16x128xf32> -> vector<16x128xf32>
    %c0_42 = arith.constant 0 : index
    %c0_43 = arith.constant 0 : index
    %c0_44 = arith.constant 0 : index
    %61 = vector.load %arg13[%c0_42, %c0_43, %c0_44] : memref<1x1x128xf32, #tpu.memory_space<vmem>>, vector<1x1x128xf32>
    %62 = vector.shape_cast %61 : vector<1x1x128xf32> to vector<1x128xf32>
    %63 = vector.broadcast %62 : vector<1x128xf32> to vector<16x128xf32>
    %64 = arith.addf %60, %63 : vector<16x128xf32>
    %65 = arith.addf %64, %8 : vector<16x128xf32>
    %c0_45 = arith.constant 0 : index
    %c0_46 = arith.constant 0 : index
    %c0_47 = arith.constant 0 : index
    %66 = vector.load %arg14[%c0_45, %c0_46, %c0_47] : memref<1x1x128xf32, #tpu.memory_space<vmem>>, vector<1x1x128xf32>
    %67 = vector.shape_cast %66 : vector<1x1x128xf32> to vector<1x128xf32>
    %c0_48 = arith.constant 0 : index
    %c0_49 = arith.constant 0 : index
    %c0_50 = arith.constant 0 : index
    %68 = vector.load %arg15[%c0_48, %c0_49, %c0_50] : memref<1x1x128xf32, #tpu.memory_space<vmem>>, vector<1x1x128xf32>
    %69 = vector.shape_cast %68 : vector<1x1x128xf32> to vector<1x128xf32>
    %cst_51 = arith.constant dense<0.000000e+00> : vector<16xf32>
    %70 = vector.multi_reduction <add>, %65, %cst_51 [1] : vector<16x128xf32> to vector<16xf32>
    %71 = vector.shape_cast %70 : vector<16xf32> to vector<16x1xf32>
    %cst_52 = arith.constant 1.280000e+02 : f32
    %72 = vector.broadcast %cst_52 : f32 to vector<16x1xf32>
    %73 = arith.divf %71, %72 : vector<16x1xf32>
    %74 = vector.broadcast %73 : vector<16x1xf32> to vector<16x128xf32>
    %75 = arith.subf %65, %74 : vector<16x128xf32>
    %76 = arith.mulf %75, %75 : vector<16x128xf32>
    %cst_53 = arith.constant dense<0.000000e+00> : vector<16xf32>
    %77 = vector.multi_reduction <add>, %76, %cst_53 [1] : vector<16x128xf32> to vector<16xf32>
    %78 = vector.shape_cast %77 : vector<16xf32> to vector<16x1xf32>
    %cst_54 = arith.constant 1.280000e+02 : f32
    %79 = vector.broadcast %cst_54 : f32 to vector<16x1xf32>
    %80 = arith.divf %78, %79 : vector<16x1xf32>
    %cst_55 = arith.constant 9.99999996E-13 : f32
    %81 = vector.broadcast %cst_55 : f32 to vector<16x1xf32>
    %82 = arith.addf %80, %81 : vector<16x1xf32>
    %83 = math.rsqrt %82 : vector<16x1xf32>
    %84 = vector.broadcast %83 : vector<16x1xf32> to vector<16x128xf32>
    %85 = arith.mulf %75, %84 : vector<16x128xf32>
    %86 = vector.broadcast %67 : vector<1x128xf32> to vector<16x128xf32>
    %87 = arith.mulf %86, %85 : vector<16x128xf32>
    %88 = vector.broadcast %69 : vector<1x128xf32> to vector<16x128xf32>
    %89 = arith.addf %87, %88 : vector<16x128xf32>
    %c0_56 = arith.constant 0 : index
    %c0_57 = arith.constant 0 : index
    %c0_58 = arith.constant 0 : index
    %90 = vector.load %arg16[%c0_56, %c0_57, %c0_58] : memref<1x128x512xbf16, #tpu.memory_space<vmem>>, vector<1x128x512xbf16>
    %91 = vector.shape_cast %90 : vector<1x128x512xbf16> to vector<128x512xbf16>
    %92 = arith.truncf %89 : vector<16x128xf32> to vector<16x128xbf16>
    %cst_59 = arith.constant dense<0.000000e+00> : vector<16x512xf32>
    %93 = tpu.matmul %92, %91, %cst_59 {dimension_numbers = #tpu.dot_dimension_numbers<[1], [0], [0], [1], [0, 0, 1, 1], [], []>} : vector<16x128xbf16>, vector<128x512xbf16>, vector<16x512xf32> -> vector<16x512xf32>
    %c0_60 = arith.constant 0 : index
    %c0_61 = arith.constant 0 : index
    %c0_62 = arith.constant 0 : index
    %94 = vector.load %arg17[%c0_60, %c0_61, %c0_62] : memref<1x1x512xf32, #tpu.memory_space<vmem>>, vector<1x1x512xf32>
    %95 = vector.shape_cast %94 : vector<1x1x512xf32> to vector<1x512xf32>
    %96 = vector.broadcast %95 : vector<1x512xf32> to vector<16x512xf32>
    %97 = arith.addf %93, %96 : vector<16x512xf32>
    %cst_63 = arith.constant 5.000000e-01 : f32
    %98 = vector.broadcast %cst_63 : f32 to vector<16x512xf32>
    %99 = arith.mulf %97, %98 : vector<16x512xf32>
    %cst_64 = arith.constant 0.707108557 : f32
    %100 = vector.broadcast %cst_64 : f32 to vector<16x512xf32>
    %101 = arith.mulf %97, %100 : vector<16x512xf32>
    %102 = math.absf %101 : vector<16x512xf32>
    %cst_65 = arith.constant 0.327591091 : f32
    %103 = vector.broadcast %cst_65 : f32 to vector<16x512xf32>
    %104 = arith.mulf %103, %102 : vector<16x512xf32>
    %cst_66 = arith.constant 1.000000e+00 : f32
    %105 = vector.broadcast %cst_66 : f32 to vector<16x512xf32>
    %106 = arith.addf %105, %104 : vector<16x512xf32>
    %107 = tpu.reciprocal %106 {approx = true} : vector<16x512xf32> -> vector<16x512xf32>
    %cst_67 = arith.constant 1.06140542 : f32
    %108 = vector.broadcast %cst_67 : f32 to vector<16x512xf32>
    %109 = arith.mulf %108, %107 : vector<16x512xf32>
    %cst_68 = arith.constant -1.45315206 : f32
    %110 = vector.broadcast %cst_68 : f32 to vector<16x512xf32>
    %111 = arith.addf %109, %110 : vector<16x512xf32>
    %112 = arith.mulf %111, %107 : vector<16x512xf32>
    %cst_69 = arith.constant 1.42141378 : f32
    %113 = vector.broadcast %cst_69 : f32 to vector<16x512xf32>
    %114 = arith.addf %112, %113 : vector<16x512xf32>
    %115 = arith.mulf %114, %107 : vector<16x512xf32>
    %cst_70 = arith.constant -0.284496725 : f32
    %116 = vector.broadcast %cst_70 : f32 to vector<16x512xf32>
    %117 = arith.addf %115, %116 : vector<16x512xf32>
    %118 = arith.mulf %117, %107 : vector<16x512xf32>
    %cst_71 = arith.constant 0.254829586 : f32
    %119 = vector.broadcast %cst_71 : f32 to vector<16x512xf32>
    %120 = arith.addf %118, %119 : vector<16x512xf32>
    %121 = arith.mulf %120, %107 : vector<16x512xf32>
    %cst_72 = arith.constant 0.000000e+00 : f32
    %122 = vector.broadcast %cst_72 : f32 to vector<16x512xf32>
    %123 = arith.subf %122, %102 : vector<16x512xf32>
    %124 = arith.mulf %123, %102 : vector<16x512xf32>
    %125 = math.exp %124 : vector<16x512xf32>
    %126 = arith.mulf %121, %125 : vector<16x512xf32>
    %cst_73 = arith.constant 1.000000e+00 : f32
    %127 = vector.broadcast %cst_73 : f32 to vector<16x512xf32>
    %128 = arith.subf %127, %126 : vector<16x512xf32>
    %cst_74 = arith.constant 0.000000e+00 : f32
    %129 = vector.broadcast %cst_74 : f32 to vector<16x512xf32>
    %130 = arith.cmpf oge, %101, %129 : vector<16x512xf32>
    %cst_75 = arith.constant 0.000000e+00 : f32
    %131 = vector.broadcast %cst_75 : f32 to vector<16x512xf32>
    %132 = arith.subf %131, %128 : vector<16x512xf32>
    %133 = arith.select %130, %128, %132 : vector<16x512xi1>, vector<16x512xf32>
    %cst_76 = arith.constant 1.000000e+00 : f32
    %134 = vector.broadcast %cst_76 : f32 to vector<16x512xf32>
    %135 = arith.addf %134, %133 : vector<16x512xf32>
    %136 = arith.mulf %99, %135 : vector<16x512xf32>
    %c0_77 = arith.constant 0 : index
    %c0_78 = arith.constant 0 : index
    %c0_79 = arith.constant 0 : index
    %137 = vector.load %arg18[%c0_77, %c0_78, %c0_79] : memref<1x512x128xbf16, #tpu.memory_space<vmem>>, vector<1x512x128xbf16>
    %138 = vector.shape_cast %137 : vector<1x512x128xbf16> to vector<512x128xbf16>
    %139 = arith.truncf %136 : vector<16x512xf32> to vector<16x512xbf16>
    %cst_80 = arith.constant dense<0.000000e+00> : vector<16x128xf32>
    %140 = tpu.matmul %139, %138, %cst_80 {dimension_numbers = #tpu.dot_dimension_numbers<[1], [0], [0], [1], [0, 0, 1, 1], [], []>} : vector<16x512xbf16>, vector<512x128xbf16>, vector<16x128xf32> -> vector<16x128xf32>
    %c0_81 = arith.constant 0 : index
    %c0_82 = arith.constant 0 : index
    %c0_83 = arith.constant 0 : index
    %141 = vector.load %arg19[%c0_81, %c0_82, %c0_83] : memref<1x1x128xf32, #tpu.memory_space<vmem>>, vector<1x1x128xf32>
    %142 = vector.shape_cast %141 : vector<1x1x128xf32> to vector<1x128xf32>
    %143 = vector.broadcast %142 : vector<1x128xf32> to vector<16x128xf32>
    %144 = arith.addf %140, %143 : vector<16x128xf32>
    %145 = arith.addf %144, %89 : vector<16x128xf32>
    %c0_84 = arith.constant 0 : index
    %c0_85 = arith.constant 0 : index
    %c0_86 = arith.constant 0 : index
    %146 = vector.load %arg20[%c0_84, %c0_85, %c0_86] : memref<1x1x128xf32, #tpu.memory_space<vmem>>, vector<1x1x128xf32>
    %147 = vector.shape_cast %146 : vector<1x1x128xf32> to vector<1x128xf32>
    %c0_87 = arith.constant 0 : index
    %c0_88 = arith.constant 0 : index
    %c0_89 = arith.constant 0 : index
    %148 = vector.load %arg21[%c0_87, %c0_88, %c0_89] : memref<1x1x128xf32, #tpu.memory_space<vmem>>, vector<1x1x128xf32>
    %149 = vector.shape_cast %148 : vector<1x1x128xf32> to vector<1x128xf32>
    %cst_90 = arith.constant dense<0.000000e+00> : vector<16xf32>
    %150 = vector.multi_reduction <add>, %145, %cst_90 [1] : vector<16x128xf32> to vector<16xf32>
    %151 = vector.shape_cast %150 : vector<16xf32> to vector<16x1xf32>
    %cst_91 = arith.constant 1.280000e+02 : f32
    %152 = vector.broadcast %cst_91 : f32 to vector<16x1xf32>
    %153 = arith.divf %151, %152 : vector<16x1xf32>
    %154 = vector.broadcast %153 : vector<16x1xf32> to vector<16x128xf32>
    %155 = arith.subf %145, %154 : vector<16x128xf32>
    %156 = arith.mulf %155, %155 : vector<16x128xf32>
    %cst_92 = arith.constant dense<0.000000e+00> : vector<16xf32>
    %157 = vector.multi_reduction <add>, %156, %cst_92 [1] : vector<16x128xf32> to vector<16xf32>
    %158 = vector.shape_cast %157 : vector<16xf32> to vector<16x1xf32>
    %cst_93 = arith.constant 1.280000e+02 : f32
    %159 = vector.broadcast %cst_93 : f32 to vector<16x1xf32>
    %160 = arith.divf %158, %159 : vector<16x1xf32>
    %cst_94 = arith.constant 9.99999996E-13 : f32
    %161 = vector.broadcast %cst_94 : f32 to vector<16x1xf32>
    %162 = arith.addf %160, %161 : vector<16x1xf32>
    %163 = math.rsqrt %162 : vector<16x1xf32>
    %164 = vector.broadcast %163 : vector<16x1xf32> to vector<16x128xf32>
    %165 = arith.mulf %155, %164 : vector<16x128xf32>
    %166 = vector.broadcast %147 : vector<1x128xf32> to vector<16x128xf32>
    %167 = arith.mulf %166, %165 : vector<16x128xf32>
    %168 = vector.broadcast %149 : vector<1x128xf32> to vector<16x128xf32>
    %169 = arith.addf %167, %168 : vector<16x128xf32>
    %c0_95 = arith.constant 0 : index
    %c0_96 = arith.constant 0 : index
    %c0_97 = arith.constant 0 : index
    %170 = vector.load %arg22[%c0_95, %c0_96, %c0_97] : memref<1x128x384xbf16, #tpu.memory_space<vmem>>, vector<1x128x384xbf16>
    %171 = vector.shape_cast %170 : vector<1x128x384xbf16> to vector<128x384xbf16>
    %172 = arith.truncf %169 : vector<16x128xf32> to vector<16x128xbf16>
    %cst_98 = arith.constant dense<0.000000e+00> : vector<16x384xf32>
    %173 = tpu.matmul %172, %171, %cst_98 {dimension_numbers = #tpu.dot_dimension_numbers<[1], [0], [0], [1], [0, 0, 1, 1], [], []>} : vector<16x128xbf16>, vector<128x384xbf16>, vector<16x384xf32> -> vector<16x384xf32>
    %c0_99 = arith.constant 0 : index
    %c0_100 = arith.constant 0 : index
    %c0_101 = arith.constant 0 : index
    %174 = vector.load %arg23[%c0_99, %c0_100, %c0_101] : memref<1x1x384xf32, #tpu.memory_space<vmem>>, vector<1x1x384xf32>
    %175 = vector.shape_cast %174 : vector<1x1x384xf32> to vector<1x384xf32>
    %176 = vector.broadcast %175 : vector<1x384xf32> to vector<16x384xf32>
    %177 = arith.addf %173, %176 : vector<16x384xf32>
    %c0_102 = arith.constant 0 : index
    %c0_103 = arith.constant 0 : index
    %c0_104 = arith.constant 0 : index
    %178 = vector.load %arg24[%c0_102, %c0_103, %c0_104] : memref<1x128x384xbf16, #tpu.memory_space<vmem>>, vector<1x128x384xbf16>
    %179 = vector.shape_cast %178 : vector<1x128x384xbf16> to vector<128x384xbf16>
    %180 = arith.truncf %10 : vector<16x128xf32> to vector<16x128xbf16>
    %cst_105 = arith.constant dense<0.000000e+00> : vector<16x384xf32>
    %181 = tpu.matmul %180, %179, %cst_105 {dimension_numbers = #tpu.dot_dimension_numbers<[1], [0], [0], [1], [0, 0, 1, 1], [], []>} : vector<16x128xbf16>, vector<128x384xbf16>, vector<16x384xf32> -> vector<16x384xf32>
    %c0_106 = arith.constant 0 : index
    %c0_107 = arith.constant 0 : index
    %c0_108 = arith.constant 0 : index
    %182 = vector.load %arg25[%c0_106, %c0_107, %c0_108] : memref<1x1x384xf32, #tpu.memory_space<vmem>>, vector<1x1x384xf32>
    %183 = vector.shape_cast %182 : vector<1x1x384xf32> to vector<1x384xf32>
    %184 = vector.broadcast %183 : vector<1x384xf32> to vector<16x384xf32>
    %185 = arith.addf %181, %184 : vector<16x384xf32>
    %186 = vector.extract_strided_slice %177 {offsets = [0, 0], sizes = [16, 128], strides = [1, 1]} : vector<16x384xf32> to vector<16x128xf32>
    %187 = vector.extract_strided_slice %185 {offsets = [0, 0], sizes = [16, 128], strides = [1, 1]} : vector<16x384xf32> to vector<16x128xf32>
    %188 = arith.addf %186, %187 : vector<16x128xf32>
    %189 = arith.negf %188 : vector<16x128xf32>
    %190 = math.exp %189 : vector<16x128xf32>
    %cst_109 = arith.constant 1.000000e+00 : f32
    %191 = vector.broadcast %cst_109 : f32 to vector<16x128xf32>
    %192 = arith.addf %191, %190 : vector<16x128xf32>
    %193 = arith.divf %191, %192 : vector<16x128xf32>
    %194 = vector.extract_strided_slice %177 {offsets = [0, 128], sizes = [16, 128], strides = [1, 1]} : vector<16x384xf32> to vector<16x128xf32>
    %195 = vector.extract_strided_slice %185 {offsets = [0, 128], sizes = [16, 128], strides = [1, 1]} : vector<16x384xf32> to vector<16x128xf32>
    %196 = arith.addf %194, %195 : vector<16x128xf32>
    %197 = arith.negf %196 : vector<16x128xf32>
    %198 = math.exp %197 : vector<16x128xf32>
    %cst_110 = arith.constant 1.000000e+00 : f32
    %199 = vector.broadcast %cst_110 : f32 to vector<16x128xf32>
    %200 = arith.addf %199, %198 : vector<16x128xf32>
    %201 = arith.divf %199, %200 : vector<16x128xf32>
    %202 = vector.extract_strided_slice %177 {offsets = [0, 256], sizes = [16, 128], strides = [1, 1]} : vector<16x384xf32> to vector<16x128xf32>
    %203 = vector.extract_strided_slice %185 {offsets = [0, 256], sizes = [16, 128], strides = [1, 1]} : vector<16x384xf32> to vector<16x128xf32>
    %204 = arith.mulf %193, %203 : vector<16x128xf32>
    %205 = arith.addf %202, %204 : vector<16x128xf32>
    %206 = math.tanh %205 : vector<16x128xf32>
    %cst_111 = arith.constant 1.000000e+00 : f32
    %207 = vector.broadcast %cst_111 : f32 to vector<16x128xf32>
    %208 = arith.subf %207, %201 : vector<16x128xf32>
    %209 = arith.mulf %208, %206 : vector<16x128xf32>
    %210 = arith.mulf %201, %10 : vector<16x128xf32>
    %211 = arith.addf %209, %210 : vector<16x128xf32>
    %c0_112 = arith.constant 0 : index
    %c0_113 = arith.constant 0 : index
    %c0_114 = arith.constant 0 : index
    %212 = vector.load %arg26[%c0_112, %c0_113, %c0_114] : memref<1x1x128xf32, #tpu.memory_space<vmem>>, vector<1x1x128xf32>
    %213 = vector.shape_cast %212 : vector<1x1x128xf32> to vector<1x128xf32>
    %c0_115 = arith.constant 0 : index
    %c0_116 = arith.constant 0 : index
    %c0_117 = arith.constant 0 : index
    %214 = vector.load %arg27[%c0_115, %c0_116, %c0_117] : memref<1x1x128xf32, #tpu.memory_space<vmem>>, vector<1x1x128xf32>
    %215 = vector.shape_cast %214 : vector<1x1x128xf32> to vector<1x128xf32>
    %cst_118 = arith.constant dense<0.000000e+00> : vector<16xf32>
    %216 = vector.multi_reduction <add>, %211, %cst_118 [1] : vector<16x128xf32> to vector<16xf32>
    %217 = vector.shape_cast %216 : vector<16xf32> to vector<16x1xf32>
    %cst_119 = arith.constant 1.280000e+02 : f32
    %218 = vector.broadcast %cst_119 : f32 to vector<16x1xf32>
    %219 = arith.divf %217, %218 : vector<16x1xf32>
    %220 = vector.broadcast %219 : vector<16x1xf32> to vector<16x128xf32>
    %221 = arith.subf %211, %220 : vector<16x128xf32>
    %222 = arith.mulf %221, %221 : vector<16x128xf32>
    %cst_120 = arith.constant dense<0.000000e+00> : vector<16xf32>
    %223 = vector.multi_reduction <add>, %222, %cst_120 [1] : vector<16x128xf32> to vector<16xf32>
    %224 = vector.shape_cast %223 : vector<16xf32> to vector<16x1xf32>
    %cst_121 = arith.constant 1.280000e+02 : f32
    %225 = vector.broadcast %cst_121 : f32 to vector<16x1xf32>
    %226 = arith.divf %224, %225 : vector<16x1xf32>
    %cst_122 = arith.constant 9.99999996E-13 : f32
    %227 = vector.broadcast %cst_122 : f32 to vector<16x1xf32>
    %228 = arith.addf %226, %227 : vector<16x1xf32>
    %229 = math.rsqrt %228 : vector<16x1xf32>
    %230 = vector.broadcast %229 : vector<16x1xf32> to vector<16x128xf32>
    %231 = arith.mulf %221, %230 : vector<16x128xf32>
    %232 = vector.broadcast %213 : vector<1x128xf32> to vector<16x128xf32>
    %233 = arith.mulf %232, %231 : vector<16x128xf32>
    %234 = vector.broadcast %215 : vector<1x128xf32> to vector<16x128xf32>
    %235 = arith.addf %233, %234 : vector<16x128xf32>
    %c0_123 = arith.constant 0 : index
    %c0_124 = arith.constant 0 : index
    %236 = vector.load %arg28[%c0_123, %c0_124] : memref<16x128xf32, #tpu.memory_space<vmem>>, vector<16x128xf32>
    tpu.vector_store %arg28[%c0_123, %c0_124], %235 {strides = array<i32>} : memref<16x128xf32, #tpu.memory_space<vmem>>, vector<16x128xf32>,
    %c0_125 = arith.constant 0 : index
    %c0_126 = arith.constant 0 : index
    %237 = vector.load %arg29[%c0_125, %c0_126] : memref<16x128xf32, #tpu.memory_space<vmem>>, vector<16x128xf32>
    tpu.vector_store %arg29[%c0_125, %c0_126], %211 {strides = array<i32>} : memref<16x128xf32, #tpu.memory_space<vmem>>, vector<16x128xf32>,
    return
  }
  func.func @transform_0(%arg0: i32, %arg1: i32) -> (i32, i32) {
    %c0_i32 = arith.constant 0 : i32
    %c0_i32_0 = arith.constant 0 : i32
    %c0_i32_1 = arith.constant 0 : i32
    return %c0_i32, %c0_i32_0 : i32, i32
  }
  func.func @transform_1(%arg0: i32, %arg1: i32) -> (i32, i32) {
    %c0_i32 = arith.constant 0 : i32
    %c0_i32_0 = arith.constant 0 : i32
    %c0_i32_1 = arith.constant 0 : i32
    return %c0_i32, %c0_i32_0 : i32, i32
  }
  func.func @transform_2(%arg0: i32, %arg1: i32) -> (i32, i32) {
    %c0_i32 = arith.constant 0 : i32
    %c0_i32_0 = arith.constant 0 : i32
    %c0_i32_1 = arith.constant 0 : i32
    return %c0_i32, %c0_i32_0 : i32, i32
  }
  func.func @transform_3(%arg0: i32, %arg1: i32) -> (i32, i32) {
    %c0_i32 = arith.constant 0 : i32
    %c0_i32_0 = arith.constant 0 : i32
    %c0_i32_1 = arith.constant 0 : i32
    return %c0_i32, %c0_i32_0 : i32, i32
  }
  func.func @transform_4(%arg0: i32, %arg1: i32) -> (i32, i32) {
    %c0_i32 = arith.constant 0 : i32
    %c0_i32_0 = arith.constant 0 : i32
    %c0_i32_1 = arith.constant 0 : i32
    return %c0_i32, %c0_i32_0 : i32, i32
  }
  func.func @transform_5(%arg0: i32, %arg1: i32) -> (i32, i32) {
    %c0_i32 = arith.constant 0 : i32
    %c0_i32_0 = arith.constant 0 : i32
    %c0_i32_1 = arith.constant 0 : i32
    return %c0_i32, %c0_i32_0 : i32, i32
  }
  func.func @transform_6(%arg0: i32, %arg1: i32) -> (i32, i32, i32) {
    %c0_i32 = arith.constant 0 : i32
    %c0_i32_0 = arith.constant 0 : i32
    %c0_i32_1 = arith.constant 0 : i32
    return %arg0, %c0_i32, %c0_i32_0 : i32, i32, i32
  }
  func.func @transform_7(%arg0: i32, %arg1: i32) -> (i32, i32, i32) {
    %c0_i32 = arith.constant 0 : i32
    %c0_i32_0 = arith.constant 0 : i32
    %c0_i32_1 = arith.constant 0 : i32
    return %arg0, %c0_i32, %c0_i32_0 : i32, i32, i32
  }
  func.func @transform_8(%arg0: i32, %arg1: i32) -> (i32, i32, i32) {
    %c0_i32 = arith.constant 0 : i32
    %c0_i32_0 = arith.constant 0 : i32
    %c0_i32_1 = arith.constant 0 : i32
    return %arg0, %c0_i32, %c0_i32_0 : i32, i32, i32
  }
  func.func @transform_9(%arg0: i32, %arg1: i32) -> (i32, i32, i32) {
    %c0_i32 = arith.constant 0 : i32
    %c0_i32_0 = arith.constant 0 : i32
    %c0_i32_1 = arith.constant 0 : i32
    return %arg0, %c0_i32, %c0_i32_0 : i32, i32, i32
  }
  func.func @transform_10(%arg0: i32, %arg1: i32) -> (i32, i32, i32) {
    %c0_i32 = arith.constant 0 : i32
    %c0_i32_0 = arith.constant 0 : i32
    %c0_i32_1 = arith.constant 0 : i32
    return %arg0, %c0_i32, %c0_i32_0 : i32, i32, i32
  }
  func.func @transform_11(%arg0: i32, %arg1: i32) -> (i32, i32, i32) {
    %c0_i32 = arith.constant 0 : i32
    %c0_i32_0 = arith.constant 0 : i32
    %c0_i32_1 = arith.constant 0 : i32
    return %arg0, %c0_i32, %c0_i32_0 : i32, i32, i32
  }
  func.func @transform_12(%arg0: i32, %arg1: i32) -> (i32, i32, i32) {
    %c0_i32 = arith.constant 0 : i32
    %c0_i32_0 = arith.constant 0 : i32
    %c0_i32_1 = arith.constant 0 : i32
    return %arg0, %c0_i32, %c0_i32_0 : i32, i32, i32
  }
  func.func @transform_13(%arg0: i32, %arg1: i32) -> (i32, i32, i32) {
    %c0_i32 = arith.constant 0 : i32
    %c0_i32_0 = arith.constant 0 : i32
    %c0_i32_1 = arith.constant 0 : i32
    return %arg0, %c0_i32, %c0_i32_0 : i32, i32, i32
  }
  func.func @transform_14(%arg0: i32, %arg1: i32) -> (i32, i32, i32) {
    %c0_i32 = arith.constant 0 : i32
    %c0_i32_0 = arith.constant 0 : i32
    %c0_i32_1 = arith.constant 0 : i32
    return %arg0, %c0_i32, %c0_i32_0 : i32, i32, i32
  }
  func.func @transform_15(%arg0: i32, %arg1: i32) -> (i32, i32, i32) {
    %c0_i32 = arith.constant 0 : i32
    %c0_i32_0 = arith.constant 0 : i32
    %c0_i32_1 = arith.constant 0 : i32
    return %arg0, %c0_i32, %c0_i32_0 : i32, i32, i32
  }
  func.func @transform_16(%arg0: i32, %arg1: i32) -> (i32, i32, i32) {
    %c0_i32 = arith.constant 0 : i32
    %c0_i32_0 = arith.constant 0 : i32
    %c0_i32_1 = arith.constant 0 : i32
    return %arg0, %c0_i32, %c0_i32_0 : i32, i32, i32
  }
  func.func @transform_17(%arg0: i32, %arg1: i32) -> (i32, i32, i32) {
    %c0_i32 = arith.constant 0 : i32
    %c0_i32_0 = arith.constant 0 : i32
    %c0_i32_1 = arith.constant 0 : i32
    return %arg0, %c0_i32, %c0_i32_0 : i32, i32, i32
  }
  func.func @transform_18(%arg0: i32, %arg1: i32) -> (i32, i32, i32) {
    %c0_i32 = arith.constant 0 : i32
    %c0_i32_0 = arith.constant 0 : i32
    %c0_i32_1 = arith.constant 0 : i32
    return %arg0, %c0_i32, %c0_i32_0 : i32, i32, i32
  }
  func.func @transform_19(%arg0: i32, %arg1: i32) -> (i32, i32, i32) {
    %c0_i32 = arith.constant 0 : i32
    %c0_i32_0 = arith.constant 0 : i32
    %c0_i32_1 = arith.constant 0 : i32
    return %arg0, %c0_i32, %c0_i32_0 : i32, i32, i32
  }
  func.func @transform_20(%arg0: i32, %arg1: i32) -> (i32, i32, i32) {
    %c0_i32 = arith.constant 0 : i32
    %c0_i32_0 = arith.constant 0 : i32
    %c0_i32_1 = arith.constant 0 : i32
    return %arg0, %c0_i32, %c0_i32_0 : i32, i32, i32
  }
  func.func @transform_21(%arg0: i32, %arg1: i32) -> (i32, i32, i32) {
    %c0_i32 = arith.constant 0 : i32
    %c0_i32_0 = arith.constant 0 : i32
    %c0_i32_1 = arith.constant 0 : i32
    return %arg0, %c0_i32, %c0_i32_0 : i32, i32, i32
  }
  func.func @transform_22(%arg0: i32, %arg1: i32) -> (i32, i32, i32) {
    %c0_i32 = arith.constant 0 : i32
    %c0_i32_0 = arith.constant 0 : i32
    %c0_i32_1 = arith.constant 0 : i32
    return %arg0, %c0_i32, %c0_i32_0 : i32, i32, i32
  }
  func.func @transform_23(%arg0: i32, %arg1: i32) -> (i32, i32, i32) {
    %c0_i32 = arith.constant 0 : i32
    %c0_i32_0 = arith.constant 0 : i32
    %c0_i32_1 = arith.constant 0 : i32
    return %arg0, %c0_i32, %c0_i32_0 : i32, i32, i32
  }
  func.func @transform_24(%arg0: i32, %arg1: i32) -> (i32, i32, i32) {
    %c0_i32 = arith.constant 0 : i32
    %c0_i32_0 = arith.constant 0 : i32
    %c0_i32_1 = arith.constant 0 : i32
    return %arg0, %c0_i32, %c0_i32_0 : i32, i32, i32
  }
  func.func @transform_25(%arg0: i32, %arg1: i32) -> (i32, i32, i32) {
    %c0_i32 = arith.constant 0 : i32
    %c0_i32_0 = arith.constant 0 : i32
    %c0_i32_1 = arith.constant 0 : i32
    return %arg0, %c0_i32, %c0_i32_0 : i32, i32, i32
  }
  func.func @transform_26(%arg0: i32, %arg1: i32) -> (i32, i32) {
    %c0_i32 = arith.constant 0 : i32
    %c0_i32_0 = arith.constant 0 : i32
    %c0_i32_1 = arith.constant 0 : i32
    return %c0_i32, %c0_i32_0 : i32, i32
  }
}

</mosaic_0001>

<llo_original>
// kernel: tpu_custom_call.1
$region0: #{tpu_custom_call.1}
  #allocation0 [shape = 'u32[]', space=smem, size = 0x4, offset = 0x4, fixed_abs, tag = 'smem constant byte address 0x4 - core index']
  #allocation1 [shape = 'u32[72,128]{1,0:T(1,128)}', space=vmem, size = 0x9000, scoped, tag = 'internal scratch']
  #allocation2 [shape = 'f32[16,128]{1,0:T(8,128)}', space=vmem, size = 0x2000, scoped, tag = 'scratch operand']
  %s0 = inlined_call_operand.vmem [shape: f32[16,128], index: 0, kind: input, shape index: {}]
  %s1 = inlined_call_operand.vmem [shape: bf16[32,128], index: 1, kind: input, shape index: {}]
  %s2 = inlined_call_operand.vmem [shape: bf16[16,32], index: 2, kind: input, shape index: {}]
  %s3 = inlined_call_operand.vmem [shape: bf16[32,16], index: 3, kind: input, shape index: {}]
  %s4 = inlined_call_operand.vmem [shape: bf16[32,16], index: 4, kind: input, shape index: {}]
  %s5 = inlined_call_operand.hbm [shape: bf16[128,128], index: 5, kind: input, shape index: {}]
  %s6 = inlined_call_operand.hbm [shape: bf16[2,128,128], index: 6, kind: input, shape index: {}]
  %s7 = inlined_call_operand.hbm [shape: f32[2,1,128], index: 7, kind: input, shape index: {}]
  %s8 = inlined_call_operand.hbm [shape: bf16[2,128,256], index: 8, kind: input, shape index: {}]
  %s9 = inlined_call_operand.hbm [shape: f32[2,1,256], index: 9, kind: input, shape index: {}]
  %s10 = inlined_call_operand.hbm [shape: bf16[2,128,128], index: 10, kind: input, shape index: {}]
  %s11 = inlined_call_operand.hbm [shape: f32[2,1,128], index: 11, kind: input, shape index: {}]
  %s12 = inlined_call_operand.hbm [shape: f32[2,1,128], index: 12, kind: input, shape index: {}]
  %s13 = inlined_call_operand.hbm [shape: f32[2,1,128], index: 13, kind: input, shape index: {}]
  %s14 = inlined_call_operand.hbm [shape: bf16[2,128,512], index: 14, kind: input, shape index: {}]
  %s15 = inlined_call_operand.vmem [shape: f32[2,1,512], index: 15, kind: input, shape index: {}]
  %s16 = inlined_call_operand.hbm [shape: bf16[2,512,128], index: 16, kind: input, shape index: {}]
  %s17 = inlined_call_operand.hbm [shape: f32[2,1,128], index: 17, kind: input, shape index: {}]
  %s18 = inlined_call_operand.hbm [shape: f32[2,1,128], index: 18, kind: input, shape index: {}]
  %s19 = inlined_call_operand.hbm [shape: f32[2,1,128], index: 19, kind: input, shape index: {}]
  %s20 = inlined_call_operand.hbm [shape: bf16[2,128,384], index: 20, kind: input, shape index: {}]
  %s21 = inlined_call_operand.vmem [shape: f32[2,1,384], index: 21, kind: input, shape index: {}]
  %s22 = inlined_call_operand.hbm [shape: bf16[2,128,384], index: 22, kind: input, shape index: {}]
  %s23 = inlined_call_operand.vmem [shape: f32[2,1,384], index: 23, kind: input, shape index: {}]
  %s24 = inlined_call_operand.vmem [shape: f32[2,1,128], index: 24, kind: input, shape index: {}]
  %s25 = inlined_call_operand.vmem [shape: f32[2,1,128], index: 25, kind: input, shape index: {}]
  %s26 = inlined_call_operand.hbm [shape: f32[16,128], index: 26, kind: output, shape index: {}]
  %s27 = sld [smem:[#allocation0]]
  $region209: #{tpu_custom_call.1} parent=0
    _
  %s29 = ssub.s32 1, %s27
  %s30 = scalar_select 0, %s29, %s27
  $region1: #{tpu_custom_call.1} parent=0
    #allocation3 [shape = 'u8[32768]{0}', space=vmem, size = 0x8000, scoped, tag = 'input window, operand 5, single buffered']
    #allocation4 [shape = 's32[2]{0}', space=sflag, size = 0x8, scoped, tag = 'scoped memory for tpu_custom_call.1']
    #allocation5 [shape = 's32[2]{0}', space=sflag, size = 0x8, scoped, tag = 'scoped memory for tpu_custom_call.1']
    #allocation6 [shape = 'u8[65536]{0}', space=vmem, size = 0x10000, scoped, tag = 'input window, operand 6']
    #allocation7 [shape = 's32[2]{0}', space=sflag, size = 0x8, scoped, tag = 'scoped memory for tpu_custom_call.1']
    #allocation8 [shape = 'u8[1024]{0}', space=vmem, size = 0x400, scoped, tag = 'input window, operand 7']
    #allocation9 [shape = 'u8[131072]{0}', space=vmem, size = 0x20000, scoped, tag = 'input window, operand 8']
    #allocation10 [shape = 's32[2]{0}', space=sflag, size = 0x8, scoped, tag = 'scoped memory for tpu_custom_call.1']
    #allocation11 [shape = 'u8[2048]{0}', space=vmem, size = 0x800, scoped, tag = 'input window, operand 9']
    #allocation12 [shape = 'u8[65536]{0}', space=vmem, size = 0x10000, scoped, tag = 'input window, operand 10']
    #allocation13 [shape = 's32[2]{0}', space=sflag, size = 0x8, scoped, tag = 'scoped memory for tpu_custom_call.1']
    #allocation14 [shape = 'u8[1024]{0}', space=vmem, size = 0x400, scoped, tag = 'input window, operand 11']
    #allocation15 [shape = 'u8[1024]{0}', space=vmem, size = 0x400, scoped, tag = 'input window, operand 12']
    #allocation16 [shape = 's32[2]{0}', space=sflag, size = 0x8, scoped, tag = 'scoped memory for tpu_custom_call.1']
    #allocation17 [shape = 'u8[1024]{0}', space=vmem, size = 0x400, scoped, tag = 'input window, operand 13']
    #allocation18 [shape = 'u8[262144]{0}', space=vmem, size = 0x40000, scoped, tag = 'input window, operand 14']
    #allocation19 [shape = 's32[2]{0}', space=sflag, size = 0x8, scoped, tag = 'scoped memory for tpu_custom_call.1']
    #allocation20 [shape = 'u8[262144]{0}', space=vmem, size = 0x40000, scoped, tag = 'input window, operand 16']
    #allocation21 [shape = 'u8[1024]{0}', space=vmem, size = 0x400, scoped, tag = 'input window, operand 17']
    #allocation22 [shape = 's32[2]{0}', space=sflag, size = 0x8, scoped, tag = 'scoped memory for tpu_custom_call.1']
    #allocation23 [shape = 'u8[1024]{0}', space=vmem, size = 0x400, scoped, tag = 'input window, operand 18']
    #allocation24 [shape = 'u8[1024]{0}', space=vmem, size = 0x400, scoped, tag = 'input window, operand 19']
    #allocation25 [shape = 's32[2]{0}', space=sflag, size = 0x8, scoped, tag = 'scoped memory for tpu_custom_call.1']
    #allocation26 [shape = 'u8[196608]{0}', space=vmem, size = 0x30000, scoped, tag = 'input window, operand 20']
    #allocation27 [shape = 'u8[196608]{0}', space=vmem, size = 0x30000, scoped, tag = 'input window, operand 22']
    #allocation28 [shape = 's32[2]{0}', space=sflag, size = 0x8, scoped, tag = 'scoped memory for tpu_custom_call.1']
    #allocation29 [shape = 'u8[8192]{0}', space=vmem, size = 0x2000, scoped, tag = 'output window, operand 0, single buffered']
    %31 = vsyncpa [#allocation4], 0
    %32 = vsyncpa [#allocation7], 0
    %s33 = scalar_lea.sflag [#allocation7], 1
    %34 = vsyncpa %s33, 0
    %35 = vsyncpa [#allocation10], 0
    %s36 = scalar_lea.sflag [#allocation10], 1
    %37 = vsyncpa %s36, 0
    %38 = vsyncpa [#allocation13], 0
    %s39 = scalar_lea.sflag [#allocation13], 1
    %40 = vsyncpa %s39, 0
    %41 = vsyncpa [#allocation16], 0
    %s42 = scalar_lea.sflag [#allocation16], 1
    %43 = vsyncpa %s42, 0
    %44 = vsyncpa [#allocation19], 0
    %s45 = scalar_lea.sflag [#allocation19], 1
    %46 = vsyncpa %s45, 0
    %47 = vsyncpa [#allocation22], 0
    %s48 = scalar_lea.sflag [#allocation22], 1
    %49 = vsyncpa %s48, 0
    %50 = vsyncpa [#allocation25], 0
    %s51 = scalar_lea.sflag [#allocation25], 1
    %52 = vsyncpa %s51, 0
    %53 = vsyncpa [#allocation28], 0
    %s54 = scalar_lea.sflag [#allocation28], 1
    %55 = vsyncpa %s54, 0
    %56 = vsyncpa [#allocation5], 0
    loop: start=0, step=1, limit=6
    $region2: #{tpu_custom_call.1} parent=1 // loop_pre_header
      _
    $region3: #{tpu_custom_call.1} parent=1 // loop_header
      %s58 = sphi 0, %s62
      %p59 = scmp.ge.s32.totalorder %s58, 6
      %s65 = sphi 0, %s77
      %s66 = sphi 0, %s73
      %s67 = sphi 0, %s65
      %s68 = sphi 0, %s66
      %s69 = sphi 0, %s67
      %s70 = sphi 0, %s68
      %s78 = sphi 0, %s78
      %s80 = sphi 0, %s78
      %s81 = sphi 0, %s80
      %s95 = sphi 0, %s81
      %s99 = sphi 0, %s99
      %s101 = sphi 0, %s99
      %s102 = sphi 0, %s101
      %s116 = sphi 0, %s102
      %s120 = sphi 0, %s120
      %s122 = sphi 0, %s120
      %s123 = sphi 0, %s122
      %s137 = sphi 0, %s123
      %s141 = sphi 0, %s141
      %s143 = sphi 0, %s141
      %s144 = sphi 0, %s143
      %s158 = sphi 0, %s144
      %s162 = sphi 0, %s162
      %s164 = sphi 0, %s162
      %s165 = sphi 0, %s164
      %s179 = sphi 0, %s165
      %s183 = sphi 0, %s183
      %s185 = sphi 0, %s183
      %s186 = sphi 0, %s185
      %s200 = sphi 0, %s186
      %s206 = sphi 0, %s208
      %s209 = sphi 0, %s206
      %s210 = sphi 0, %s209
      %s226 = sphi 0, %s210
      %s232 = sphi 0, %s234
      %s235 = sphi 0, %s232
      %s236 = sphi 0, %s235
      %s252 = sphi 0, %s236
      %s258 = sphi 0, %s260
      %s261 = sphi 0, %s258
      %s262 = sphi 0, %s261
      %s278 = sphi 0, %s262
      %s284 = sphi 0, %s286
      %s287 = sphi 0, %s284
      %s288 = sphi 0, %s287
      %s304 = sphi 0, %s288
      %s310 = sphi 0, %s312
      %s313 = sphi 0, %s310
      %s314 = sphi 0, %s313
      %s330 = sphi 0, %s314
      %s336 = sphi 0, %s338
      %s339 = sphi 0, %s336
      %s340 = sphi 0, %s339
      %s356 = sphi 0, %s340
      %s362 = sphi 0, %s364
      %s365 = sphi 0, %s362
      %s366 = sphi 0, %s365
      %s382 = sphi 0, %s366
      %s388 = sphi 0, %s390
      %s391 = sphi 0, %s388
      %s392 = sphi 0, %s391
      %s408 = sphi 0, %s392
      %s414 = sphi 0, %s416
      %s417 = sphi 0, %s414
      %s418 = sphi 0, %s417
      %s434 = sphi 0, %s418
      %s440 = sphi 0, %s442
      %s443 = sphi 0, %s440
      %s444 = sphi 0, %s443
      %s460 = sphi 0, %s444
      %s466 = sphi 0, %s468
      %s469 = sphi 0, %s466
      %s470 = sphi 0, %s469
      %s486 = sphi 0, %s470
      %s492 = sphi 0, %s494
      %s495 = sphi 0, %s492
      %s496 = sphi 0, %s495
      %s512 = sphi 0, %s496
      %s518 = sphi 0, %s520
      %s521 = sphi 0, %s518
      %s522 = sphi 0, %s521
      %s538 = sphi 0, %s522
      %s544 = sphi 0, %s546
      %s547 = sphi 0, %s544
      %s548 = sphi 0, %s547
      %s564 = sphi 0, %s548
      %s570 = sphi 0, %s572
      %s573 = sphi 0, %s570
      %s574 = sphi 0, %s573
      %s590 = sphi 0, %s574
      %s596 = sphi 0, %s598
      %s599 = sphi 0, %s596
      %s600 = sphi 0, %s599
      %s616 = sphi 0, %s600
      %s622 = sphi 0, %s624
      %s625 = sphi 0, %s622
      %s626 = sphi 0, %s625
      %s642 = sphi 0, %s626
      %s648 = sphi 0, %s650
      %s651 = sphi 0, %s648
      %s652 = sphi 0, %s651
      %s668 = sphi 0, %s652
      %s674 = sphi 0, %s676
      %s677 = sphi 0, %s674
      %s678 = sphi 0, %s677
      %s694 = sphi 0, %s678
      %s700 = sphi 0, %s702
      %s703 = sphi 0, %s700
      %s704 = sphi 0, %s703
      %s720 = sphi 0, %s704
      %s724 = sphi 0, %s724
      %s726 = sphi 0, %s724
      %s727 = sphi 0, %s726
      %s741 = sphi 0, %s727
    $region4: #{tpu_custom_call.1} parent=1 // loop_header_branch
      %61 = sbr.rel (%p59) target = $region8
    $region5: #{tpu_custom_call.1} parent=1 // loop_body
      %s63 = ssub.s32 %s58, 1
      %s64 = ssub.s32 %s58, 2
      %s71 = sadd.s32 1, %s66
      %p72 = scmp.ge.s32.totalorder %s71, 2
      %s73 = scalar_select %p72, 0, %s71
      %s74 = sadd.s32 1, %s65
      %s75 = scalar_select %p72, %s74, %s65
      %p76 = scmp.ge.s32.totalorder %s75, 2
      %s77 = scalar_select %p76, 0, %s75
      %s79 = sadd.s32 %s78, 1
      %p82 = scmp.eq.s32.totalorder %s58, 3
      %p83 = scmp.ne.s32.totalorder %s78, %s80
      %p84 = scmp.eq.s32.totalorder %s58, 0
      %p85 = por %p83, %p84
      %p86 = scmp.ne.s32.totalorder %s78, %s80
      %p87 = scmp.eq.s32.totalorder %s63, 3
      %p88 = por %p86, %p87
      %p89 = scmp.ne.s32.totalorder %s80, %s81
      %p90 = scmp.eq.s32.totalorder %s63, 0
      %p91 = por %p89, %p90
      %p92 = scmp.ne.s32.totalorder %s80, %s81
      %p93 = scmp.eq.s32.totalorder %s64, 3
      %p94 = por %p92, %p93
      %p96 = scmp.ne.s32.totalorder %s81, %s95
      %p97 = scmp.eq.s32.totalorder %s64, 0
      %p98 = por %p96, %p97
      %s100 = sadd.s32 %s99, 1
      %p103 = scmp.eq.s32.totalorder %s58, 3
      %p104 = scmp.ne.s32.totalorder %s99, %s101
      %p105 = scmp.eq.s32.totalorder %s58, 0
      %p106 = por %p104, %p105
      %p107 = scmp.ne.s32.totalorder %s99, %s101
      %p108 = scmp.eq.s32.totalorder %s63, 3
      %p109 = por %p107, %p108
      %p110 = scmp.ne.s32.totalorder %s101, %s102
      %p111 = scmp.eq.s32.totalorder %s63, 0
      %p112 = por %p110, %p111
      %p113 = scmp.ne.s32.totalorder %s101, %s102
      %p114 = scmp.eq.s32.totalorder %s64, 3
      %p115 = por %p113, %p114
      %p117 = scmp.ne.s32.totalorder %s102, %s116
      %p118 = scmp.eq.s32.totalorder %s64, 0
      %p119 = por %p117, %p118
      %s121 = sadd.s32 %s120, 1
      %p124 = scmp.eq.s32.totalorder %s58, 3
      %p125 = scmp.ne.s32.totalorder %s120, %s122
      %p126 = scmp.eq.s32.totalorder %s58, 0
      %p127 = por %p125, %p126
      %p128 = scmp.ne.s32.totalorder %s120, %s122
      %p129 = scmp.eq.s32.totalorder %s63, 3
      %p130 = por %p128, %p129
      %p131 = scmp.ne.s32.totalorder %s122, %s123
      %p132 = scmp.eq.s32.totalorder %s63, 0
      %p133 = por %p131, %p132
      %p134 = scmp.ne.s32.totalorder %s122, %s123
      %p135 = scmp.eq.s32.totalorder %s64, 3
      %p136 = por %p134, %p135
      %p138 = scmp.ne.s32.totalorder %s123, %s137
      %p139 = scmp.eq.s32.totalorder %s64, 0
      %p140 = por %p138, %p139
      %s142 = sadd.s32 %s141, 1
      %p145 = scmp.eq.s32.totalorder %s58, 3
      %p146 = scmp.ne.s32.totalorder %s141, %s143
      %p147 = scmp.eq.s32.totalorder %s58, 0
      %p148 = por %p146, %p147
      %p149 = scmp.ne.s32.totalorder %s141, %s143
      %p150 = scmp.eq.s32.totalorder %s63, 3
      %p151 = por %p149, %p150
      %p152 = scmp.ne.s32.totalorder %s143, %s144
      %p153 = scmp.eq.s32.totalorder %s63, 0
      %p154 = por %p152, %p153
      %p155 = scmp.ne.s32.totalorder %s143, %s144
      %p156 = scmp.eq.s32.totalorder %s64, 3
      %p157 = por %p155, %p156
      %p159 = scmp.ne.s32.totalorder %s144, %s158
      %p160 = scmp.eq.s32.totalorder %s64, 0
      %p161 = por %p159, %p160
      %s163 = sadd.s32 %s162, 1
      %p166 = scmp.eq.s32.totalorder %s58, 3
      %p167 = scmp.ne.s32.totalorder %s162, %s164
      %p168 = scmp.eq.s32.totalorder %s58, 0
      %p169 = por %p167, %p168
      %p170 = scmp.ne.s32.totalorder %s162, %s164
      %p171 = scmp.eq.s32.totalorder %s63, 3
      %p172 = por %p170, %p171
      %p173 = scmp.ne.s32.totalorder %s164, %s165
      %p174 = scmp.eq.s32.totalorder %s63, 0
      %p175 = por %p173, %p174
      %p176 = scmp.ne.s32.totalorder %s164, %s165
      %p177 = scmp.eq.s32.totalorder %s64, 3
      %p178 = por %p176, %p177
      %p180 = scmp.ne.s32.totalorder %s165, %s179
      %p181 = scmp.eq.s32.totalorder %s64, 0
      %p182 = por %p180, %p181
      %s184 = sadd.s32 %s183, 1
      %p187 = scmp.eq.s32.totalorder %s58, 3
      %p188 = scmp.ne.s32.totalorder %s183, %s185
      %p189 = scmp.eq.s32.totalorder %s58, 0
      %p190 = por %p188, %p189
      %p191 = scmp.ne.s32.totalorder %s183, %s185
      %p192 = scmp.eq.s32.totalorder %s63, 3
      %p193 = por %p191, %p192
      %p194 = scmp.ne.s32.totalorder %s185, %s186
      %p195 = scmp.eq.s32.totalorder %s63, 0
      %p196 = por %p194, %p195
      %p197 = scmp.ne.s32.totalorder %s185, %s186
      %p198 = scmp.eq.s32.totalorder %s64, 3
      %p199 = por %p197, %p198
      %p201 = scmp.ne.s32.totalorder %s186, %s200
      %p202 = scmp.eq.s32.totalorder %s64, 0
      %p203 = por %p201, %p202
      %s204 = ssub.s32 %s65, %s77
      %p205 = scmp.eq.s32.totalorder %s204, 0
      %s207 = sadd.s32 %s206, 1
      %s208 = scalar_select %p205, %s206, %s207
      %p211 = pneg %p205
      %p212 = scmp.eq.s32.totalorder %s58, 3
      %p213 = por %p211, %p212
      %p214 = scmp.ne.s32.totalorder %s206, %s209
      %p215 = scmp.eq.s32.totalorder %s58, 0
      %p216 = por %p214, %p215
      %p217 = scmp.ne.s32.totalorder %s206, %s209
      %p218 = scmp.eq.s32.totalorder %s63, 3
      %p219 = por %p217, %p218
      %p220 = scmp.ne.s32.totalorder %s209, %s210
      %p221 = scmp.eq.s32.totalorder %s63, 0
      %p222 = por %p220, %p221
      %p223 = scmp.ne.s32.totalorder %s209, %s210
      %p224 = scmp.eq.s32.totalorder %s64, 3
      %p225 = por %p223, %p224
      %p227 = scmp.ne.s32.totalorder %s210, %s226
      %p228 = scmp.eq.s32.totalorder %s64, 0
      %p229 = por %p227, %p228
      %s230 = ssub.s32 %s65, %s77
      %p231 = scmp.eq.s32.totalorder %s230, 0
      %s233 = sadd.s32 %s232, 1
      %s234 = scalar_select %p231, %s232, %s233
      %p237 = pneg %p231
      %p238 = scmp.eq.s32.totalorder %s58, 3
      %p239 = por %p237, %p238
      %p240 = scmp.ne.s32.totalorder %s232, %s235
      %p241 = scmp.eq.s32.totalorder %s58, 0
      %p242 = por %p240, %p241
      %p243 = scmp.ne.s32.totalorder %s232, %s235
      %p244 = scmp.eq.s32.totalorder %s63, 3
      %p245 = por %p243, %p244
      %p246 = scmp.ne.s32.totalorder %s235, %s236
      %p247 = scmp.eq.s32.totalorder %s63, 0
      %p248 = por %p246, %p247
      %p249 = scmp.ne.s32.totalorder %s235, %s236
      %p250 = scmp.eq.s32.totalorder %s64, 3
      %p251 = por %p249, %p250
      %p253 = scmp.ne.s32.totalorder %s236, %s252
      %p254 = scmp.eq.s32.totalorder %s64, 0
      %p255 = por %p253, %p254
      %s256 = ssub.s32 %s65, %s77
      %p257 = scmp.eq.s32.totalorder %s256, 0
      %s259 = sadd.s32 %s258, 1
      %s260 = scalar_select %p257, %s258, %s259
      %p263 = pneg %p257
      %p264 = scmp.eq.s32.totalorder %s58, 3
      %p265 = por %p263, %p264
      %p266 = scmp.ne.s32.totalorder %s258, %s261
      %p267 = scmp.eq.s32.totalorder %s58, 0
      %p268 = por %p266, %p267
      %p269 = scmp.ne.s32.totalorder %s258, %s261
      %p270 = scmp.eq.s32.totalorder %s63, 3
      %p271 = por %p269, %p270
      %p272 = scmp.ne.s32.totalorder %s261, %s262
      %p273 = scmp.eq.s32.totalorder %s63, 0
      %p274 = por %p272, %p273
      %p275 = scmp.ne.s32.totalorder %s261, %s262
      %p276 = scmp.eq.s32.totalorder %s64, 3
      %p277 = por %p275, %p276
      %p279 = scmp.ne.s32.totalorder %s262, %s278
      %p280 = scmp.eq.s32.totalorder %s64, 0
      %p281 = por %p279, %p280
      %s282 = ssub.s32 %s65, %s77
      %p283 = scmp.eq.s32.totalorder %s282, 0
      %s285 = sadd.s32 %s284, 1
      %s286 = scalar_select %p283, %s284, %s285
      %p289 = pneg %p283
      %p290 = scmp.eq.s32.totalorder %s58, 3
      %p291 = por %p289, %p290
      %p292 = scmp.ne.s32.totalorder %s284, %s287
      %p293 = scmp.eq.s32.totalorder %s58, 0
      %p294 = por %p292, %p293
      %p295 = scmp.ne.s32.totalorder %s284, %s287
      %p296 = scmp.eq.s32.totalorder %s63, 3
      %p297 = por %p295, %p296
      %p298 = scmp.ne.s32.totalorder %s287, %s288
      %p299 = scmp.eq.s32.totalorder %s63, 0
      %p300 = por %p298, %p299
      %p301 = scmp.ne.s32.totalorder %s287, %s288
      %p302 = scmp.eq.s32.totalorder %s64, 3
      %p303 = por %p301, %p302
      %p305 = scmp.ne.s32.totalorder %s288, %s304
      %p306 = scmp.eq.s32.totalorder %s64, 0
      %p307 = por %p305, %p306
      %s308 = ssub.s32 %s65, %s77
      %p309 = scmp.eq.s32.totalorder %s308, 0
      %s311 = sadd.s32 %s310, 1
      %s312 = scalar_select %p309, %s310, %s311
      %p315 = pneg %p309
      %p316 = scmp.eq.s32.totalorder %s58, 3
      %p317 = por %p315, %p316
      %p318 = scmp.ne.s32.totalorder %s310, %s313
      %p319 = scmp.eq.s32.totalorder %s58, 0
      %p320 = por %p318, %p319
      %p321 = scmp.ne.s32.totalorder %s310, %s313
      %p322 = scmp.eq.s32.totalorder %s63, 3
      %p323 = por %p321, %p322
      %p324 = scmp.ne.s32.totalorder %s313, %s314
      %p325 = scmp.eq.s32.totalorder %s63, 0
      %p326 = por %p324, %p325
      %p327 = scmp.ne.s32.totalorder %s313, %s314
      %p328 = scmp.eq.s32.totalorder %s64, 3
      %p329 = por %p327, %p328
      %p331 = scmp.ne.s32.totalorder %s314, %s330
      %p332 = scmp.eq.s32.totalorder %s64, 0
      %p333 = por %p331, %p332
      %s334 = ssub.s32 %s65, %s77
      %p335 = scmp.eq.s32.totalorder %s334, 0
      %s337 = sadd.s32 %s336, 1
      %s338 = scalar_select %p335, %s336, %s337
      %p341 = pneg %p335
      %p342 = scmp.eq.s32.totalorder %s58, 3
      %p343 = por %p341, %p342
      %p344 = scmp.ne.s32.totalorder %s336, %s339
      %p345 = scmp.eq.s32.totalorder %s58, 0
      %p346 = por %p344, %p345
      %p347 = scmp.ne.s32.totalorder %s336, %s339
      %p348 = scmp.eq.s32.totalorder %s63, 3
      %p349 = por %p347, %p348
      %p350 = scmp.ne.s32.totalorder %s339, %s340
      %p351 = scmp.eq.s32.totalorder %s63, 0
      %p352 = por %p350, %p351
      %p353 = scmp.ne.s32.totalorder %s339, %s340
      %p354 = scmp.eq.s32.totalorder %s64, 3
      %p355 = por %p353, %p354
      %p357 = scmp.ne.s32.totalorder %s340, %s356
      %p358 = scmp.eq.s32.totalorder %s64, 0
      %p359 = por %p357, %p358
      %s360 = ssub.s32 %s65, %s77
      %p361 = scmp.eq.s32.totalorder %s360, 0
      %s363 = sadd.s32 %s362, 1
      %s364 = scalar_select %p361, %s362, %s363
      %p367 = pneg %p361
      %p368 = scmp.eq.s32.totalorder %s58, 3
      %p369 = por %p367, %p368
      %p370 = scmp.ne.s32.totalorder %s362, %s365
      %p371 = scmp.eq.s32.totalorder %s58, 0
      %p372 = por %p370, %p371
      %p373 = scmp.ne.s32.totalorder %s362, %s365
      %p374 = scmp.eq.s32.totalorder %s63, 3
      %p375 = por %p373, %p374
      %p376 = scmp.ne.s32.totalorder %s365, %s366
      %p377 = scmp.eq.s32.totalorder %s63, 0
      %p378 = por %p376, %p377
      %p379 = scmp.ne.s32.totalorder %s365, %s366
      %p380 = scmp.eq.s32.totalorder %s64, 3
      %p381 = por %p379, %p380
      %p383 = scmp.ne.s32.totalorder %s366, %s382
      %p384 = scmp.eq.s32.totalorder %s64, 0
      %p385 = por %p383, %p384
      %s386 = ssub.s32 %s65, %s77
      %p387 = scmp.eq.s32.totalorder %s386, 0
      %s389 = sadd.s32 %s388, 1
      %s390 = scalar_select %p387, %s388, %s389
      %p393 = pneg %p387
      %p394 = scmp.eq.s32.totalorder %s58, 3
      %p395 = por %p393, %p394
      %p396 = scmp.ne.s32.totalorder %s388, %s391
      %p397 = scmp.eq.s32.totalorder %s58, 0
      %p398 = por %p396, %p397
      %p399 = scmp.ne.s32.totalorder %s388, %s391
      %p400 = scmp.eq.s32.totalorder %s63, 3
      %p401 = por %p399, %p400
      %p402 = scmp.ne.s32.totalorder %s391, %s392
      %p403 = scmp.eq.s32.totalorder %s63, 0
      %p404 = por %p402, %p403
      %p405 = scmp.ne.s32.totalorder %s391, %s392
      %p406 = scmp.eq.s32.totalorder %s64, 3
      %p407 = por %p405, %p406
      %p409 = scmp.ne.s32.totalorder %s392, %s408
      %p410 = scmp.eq.s32.totalorder %s64, 0
      %p411 = por %p409, %p410
      %s412 = ssub.s32 %s65, %s77
      %p413 = scmp.eq.s32.totalorder %s412, 0
      %s415 = sadd.s32 %s414, 1
      %s416 = scalar_select %p413, %s414, %s415
      %p419 = pneg %p413
      %p420 = scmp.eq.s32.totalorder %s58, 3
      %p421 = por %p419, %p420
      %p422 = scmp.ne.s32.totalorder %s414, %s417
      %p423 = scmp.eq.s32.totalorder %s58, 0
      %p424 = por %p422, %p423
      %p425 = scmp.ne.s32.totalorder %s414, %s417
      %p426 = scmp.eq.s32.totalorder %s63, 3
      %p427 = por %p425, %p426
      %p428 = scmp.ne.s32.totalorder %s417, %s418
      %p429 = scmp.eq.s32.totalorder %s63, 0
      %p430 = por %p428, %p429
      %p431 = scmp.ne.s32.totalorder %s417, %s418
      %p432 = scmp.eq.s32.totalorder %s64, 3
      %p433 = por %p431, %p432
      %p435 = scmp.ne.s32.totalorder %s418, %s434
      %p436 = scmp.eq.s32.totalorder %s64, 0
      %p437 = por %p435, %p436
      %s438 = ssub.s32 %s65, %s77
      %p439 = scmp.eq.s32.totalorder %s438, 0
      %s441 = sadd.s32 %s440, 1
      %s442 = scalar_select %p439, %s440, %s441
      %p445 = pneg %p439
      %p446 = scmp.eq.s32.totalorder %s58, 3
      %p447 = por %p445, %p446
      %p448 = scmp.ne.s32.totalorder %s440, %s443
      %p449 = scmp.eq.s32.totalorder %s58, 0
      %p450 = por %p448, %p449
      %p451 = scmp.ne.s32.totalorder %s440, %s443
      %p452 = scmp.eq.s32.totalorder %s63, 3
      %p453 = por %p451, %p452
      %p454 = scmp.ne.s32.totalorder %s443, %s444
      %p455 = scmp.eq.s32.totalorder %s63, 0
      %p456 = por %p454, %p455
      %p457 = scmp.ne.s32.totalorder %s443, %s444
      %p458 = scmp.eq.s32.totalorder %s64, 3
      %p459 = por %p457, %p458
      %p461 = scmp.ne.s32.totalorder %s444, %s460
      %p462 = scmp.eq.s32.totalorder %s64, 0
      %p463 = por %p461, %p462
      %s464 = ssub.s32 %s65, %s77
      %p465 = scmp.eq.s32.totalorder %s464, 0
      %s467 = sadd.s32 %s466, 1
      %s468 = scalar_select %p465, %s466, %s467
      %p471 = pneg %p465
      %p472 = scmp.eq.s32.totalorder %s58, 3
      %p473 = por %p471, %p472
      %p474 = scmp.ne.s32.totalorder %s466, %s469
      %p475 = scmp.eq.s32.totalorder %s58, 0
      %p476 = por %p474, %p475
      %p477 = scmp.ne.s32.totalorder %s466, %s469
      %p478 = scmp.eq.s32.totalorder %s63, 3
      %p479 = por %p477, %p478
      %p480 = scmp.ne.s32.totalorder %s469, %s470
      %p481 = scmp.eq.s32.totalorder %s63, 0
      %p482 = por %p480, %p481
      %p483 = scmp.ne.s32.totalorder %s469, %s470
      %p484 = scmp.eq.s32.totalorder %s64, 3
      %p485 = por %p483, %p484
      %p487 = scmp.ne.s32.totalorder %s470, %s486
      %p488 = scmp.eq.s32.totalorder %s64, 0
      %p489 = por %p487, %p488
      %s490 = ssub.s32 %s65, %s77
      %p491 = scmp.eq.s32.totalorder %s490, 0
      %s493 = sadd.s32 %s492, 1
      %s494 = scalar_select %p491, %s492, %s493
      %p497 = pneg %p491
      %p498 = scmp.eq.s32.totalorder %s58, 3
      %p499 = por %p497, %p498
      %p500 = scmp.ne.s32.totalorder %s492, %s495
      %p501 = scmp.eq.s32.totalorder %s58, 0
      %p502 = por %p500, %p501
      %p503 = scmp.ne.s32.totalorder %s492, %s495
      %p504 = scmp.eq.s32.totalorder %s63, 3
      %p505 = por %p503, %p504
      %p506 = scmp.ne.s32.totalorder %s495, %s496
      %p507 = scmp.eq.s32.totalorder %s63, 0
      %p508 = por %p506, %p507
      %p509 = scmp.ne.s32.totalorder %s495, %s496
      %p510 = scmp.eq.s32.totalorder %s64, 3
      %p511 = por %p509, %p510
      %p513 = scmp.ne.s32.totalorder %s496, %s512
      %p514 = scmp.eq.s32.totalorder %s64, 0
      %p515 = por %p513, %p514
      %s516 = ssub.s32 %s65, %s77
      %p517 = scmp.eq.s32.totalorder %s516, 0
      %s519 = sadd.s32 %s518, 1
      %s520 = scalar_select %p517, %s518, %s519
      %p523 = pneg %p517
      %p524 = scmp.eq.s32.totalorder %s58, 3
      %p525 = por %p523, %p524
      %p526 = scmp.ne.s32.totalorder %s518, %s521
      %p527 = scmp.eq.s32.totalorder %s58, 0
      %p528 = por %p526, %p527
      %p529 = scmp.ne.s32.totalorder %s518, %s521
      %p530 = scmp.eq.s32.totalorder %s63, 3
      %p531 = por %p529, %p530
      %p532 = scmp.ne.s32.totalorder %s521, %s522
      %p533 = scmp.eq.s32.totalorder %s63, 0
      %p534 = por %p532, %p533
      %p535 = scmp.ne.s32.totalorder %s521, %s522
      %p536 = scmp.eq.s32.totalorder %s64, 3
      %p537 = por %p535, %p536
      %p539 = scmp.ne.s32.totalorder %s522, %s538
      %p540 = scmp.eq.s32.totalorder %s64, 0
      %p541 = por %p539, %p540
      %s542 = ssub.s32 %s65, %s77
      %p543 = scmp.eq.s32.totalorder %s542, 0
      %s545 = sadd.s32 %s544, 1
      %s546 = scalar_select %p543, %s544, %s545
      %p549 = pneg %p543
      %p550 = scmp.eq.s32.totalorder %s58, 3
      %p551 = por %p549, %p550
      %p552 = scmp.ne.s32.totalorder %s544, %s547
      %p553 = scmp.eq.s32.totalorder %s58, 0
      %p554 = por %p552, %p553
      %p555 = scmp.ne.s32.totalorder %s544, %s547
      %p556 = scmp.eq.s32.totalorder %s63, 3
      %p557 = por %p555, %p556
      %p558 = scmp.ne.s32.totalorder %s547, %s548
      %p559 = scmp.eq.s32.totalorder %s63, 0
      %p560 = por %p558, %p559
      %p561 = scmp.ne.s32.totalorder %s547, %s548
      %p562 = scmp.eq.s32.totalorder %s64, 3
      %p563 = por %p561, %p562
      %p565 = scmp.ne.s32.totalorder %s548, %s564
      %p566 = scmp.eq.s32.totalorder %s64, 0
      %p567 = por %p565, %p566
      %s568 = ssub.s32 %s65, %s77
      %p569 = scmp.eq.s32.totalorder %s568, 0
      %s571 = sadd.s32 %s570, 1
      %s572 = scalar_select %p569, %s570, %s571
      %p575 = pneg %p569
      %p576 = scmp.eq.s32.totalorder %s58, 3
      %p577 = por %p575, %p576
      %p578 = scmp.ne.s32.totalorder %s570, %s573
      %p579 = scmp.eq.s32.totalorder %s58, 0
      %p580 = por %p578, %p579
      %p581 = scmp.ne.s32.totalorder %s570, %s573
      %p582 = scmp.eq.s32.totalorder %s63, 3
      %p583 = por %p581, %p582
      %p584 = scmp.ne.s32.totalorder %s573, %s574
      %p585 = scmp.eq.s32.totalorder %s63, 0
      %p586 = por %p584, %p585
      %p587 = scmp.ne.s32.totalorder %s573, %s574
      %p588 = scmp.eq.s32.totalorder %s64, 3
      %p589 = por %p587, %p588
      %p591 = scmp.ne.s32.totalorder %s574, %s590
      %p592 = scmp.eq.s32.totalorder %s64, 0
      %p593 = por %p591, %p592
      %s594 = ssub.s32 %s65, %s77
      %p595 = scmp.eq.s32.totalorder %s594, 0
      %s597 = sadd.s32 %s596, 1
      %s598 = scalar_select %p595, %s596, %s597
      %p601 = pneg %p595
      %p602 = scmp.eq.s32.totalorder %s58, 3
      %p603 = por %p601, %p602
      %p604 = scmp.ne.s32.totalorder %s596, %s599
      %p605 = scmp.eq.s32.totalorder %s58, 0
      %p606 = por %p604, %p605
      %p607 = scmp.ne.s32.totalorder %s596, %s599
      %p608 = scmp.eq.s32.totalorder %s63, 3
      %p609 = por %p607, %p608
      %p610 = scmp.ne.s32.totalorder %s599, %s600
      %p611 = scmp.eq.s32.totalorder %s63, 0
      %p612 = por %p610, %p611
      %p613 = scmp.ne.s32.totalorder %s599, %s600
      %p614 = scmp.eq.s32.totalorder %s64, 3
      %p615 = por %p613, %p614
      %p617 = scmp.ne.s32.totalorder %s600, %s616
      %p618 = scmp.eq.s32.totalorder %s64, 0
      %p619 = por %p617, %p618
      %s620 = ssub.s32 %s65, %s77
      %p621 = scmp.eq.s32.totalorder %s620, 0
      %s623 = sadd.s32 %s622, 1
      %s624 = scalar_select %p621, %s622, %s623
      %p627 = pneg %p621
      %p628 = scmp.eq.s32.totalorder %s58, 3
      %p629 = por %p627, %p628
      %p630 = scmp.ne.s32.totalorder %s622, %s625
      %p631 = scmp.eq.s32.totalorder %s58, 0
      %p632 = por %p630, %p631
      %p633 = scmp.ne.s32.totalorder %s622, %s625
      %p634 = scmp.eq.s32.totalorder %s63, 3
      %p635 = por %p633, %p634
      %p636 = scmp.ne.s32.totalorder %s625, %s626
      %p637 = scmp.eq.s32.totalorder %s63, 0
      %p638 = por %p636, %p637
      %p639 = scmp.ne.s32.totalorder %s625, %s626
      %p640 = scmp.eq.s32.totalorder %s64, 3
      %p641 = por %p639, %p640
      %p643 = scmp.ne.s32.totalorder %s626, %s642
      %p644 = scmp.eq.s32.totalorder %s64, 0
      %p645 = por %p643, %p644
      %s646 = ssub.s32 %s65, %s77
      %p647 = scmp.eq.s32.totalorder %s646, 0
      %s649 = sadd.s32 %s648, 1
      %s650 = scalar_select %p647, %s648, %s649
      %p653 = pneg %p647
      %p654 = scmp.eq.s32.totalorder %s58, 3
      %p655 = por %p653, %p654
      %p656 = scmp.ne.s32.totalorder %s648, %s651
      %p657 = scmp.eq.s32.totalorder %s58, 0
      %p658 = por %p656, %p657
      %p659 = scmp.ne.s32.totalorder %s648, %s651
      %p660 = scmp.eq.s32.totalorder %s63, 3
      %p661 = por %p659, %p660
      %p662 = scmp.ne.s32.totalorder %s651, %s652
      %p663 = scmp.eq.s32.totalorder %s63, 0
      %p664 = por %p662, %p663
      %p665 = scmp.ne.s32.totalorder %s651, %s652
      %p666 = scmp.eq.s32.totalorder %s64, 3
      %p667 = por %p665, %p666
      %p669 = scmp.ne.s32.totalorder %s652, %s668
      %p670 = scmp.eq.s32.totalorder %s64, 0
      %p671 = por %p669, %p670
      %s672 = ssub.s32 %s65, %s77
      %p673 = scmp.eq.s32.totalorder %s672, 0
      %s675 = sadd.s32 %s674, 1
      %s676 = scalar_select %p673, %s674, %s675
      %p679 = pneg %p673
      %p680 = scmp.eq.s32.totalorder %s58, 3
      %p681 = por %p679, %p680
      %p682 = scmp.ne.s32.totalorder %s674, %s677
      %p683 = scmp.eq.s32.totalorder %s58, 0
      %p684 = por %p682, %p683
      %p685 = scmp.ne.s32.totalorder %s674, %s677
      %p686 = scmp.eq.s32.totalorder %s63, 3
      %p687 = por %p685, %p686
      %p688 = scmp.ne.s32.totalorder %s677, %s678
      %p689 = scmp.eq.s32.totalorder %s63, 0
      %p690 = por %p688, %p689
      %p691 = scmp.ne.s32.totalorder %s677, %s678
      %p692 = scmp.eq.s32.totalorder %s64, 3
      %p693 = por %p691, %p692
      %p695 = scmp.ne.s32.totalorder %s678, %s694
      %p696 = scmp.eq.s32.totalorder %s64, 0
      %p697 = por %p695, %p696
      %s698 = ssub.s32 %s65, %s77
      %p699 = scmp.eq.s32.totalorder %s698, 0
      %s701 = sadd.s32 %s700, 1
      %s702 = scalar_select %p699, %s700, %s701
      %p705 = pneg %p699
      %p706 = scmp.eq.s32.totalorder %s58, 3
      %p707 = por %p705, %p706
      %p708 = scmp.ne.s32.totalorder %s700, %s703
      %p709 = scmp.eq.s32.totalorder %s58, 0
      %p710 = por %p708, %p709
      %p711 = scmp.ne.s32.totalorder %s700, %s703
      %p712 = scmp.eq.s32.totalorder %s63, 3
      %p713 = por %p711, %p712
      %p714 = scmp.ne.s32.totalorder %s703, %s704
      %p715 = scmp.eq.s32.totalorder %s63, 0
      %p716 = por %p714, %p715
      %p717 = scmp.ne.s32.totalorder %s703, %s704
      %p718 = scmp.eq.s32.totalorder %s64, 3
      %p719 = por %p717, %p718
      %p721 = scmp.ne.s32.totalorder %s704, %s720
      %p722 = scmp.eq.s32.totalorder %s64, 0
      %p723 = por %p721, %p722
      %s725 = sadd.s32 %s724, 1
      %p728 = scmp.eq.s32.totalorder %s58, 3
      %p729 = scmp.ne.s32.totalorder %s724, %s726
      %p730 = scmp.eq.s32.totalorder %s58, 0
      %p731 = por %p729, %p730
      %p732 = scmp.ne.s32.totalorder %s724, %s726
      %p733 = scmp.eq.s32.totalorder %s63, 3
      %p734 = por %p732, %p733
      %p735 = scmp.ne.s32.totalorder %s726, %s727
      %p736 = scmp.eq.s32.totalorder %s63, 0
      %p737 = por %p735, %p736
      %p738 = scmp.ne.s32.totalorder %s726, %s727
      %p739 = scmp.eq.s32.totalorder %s64, 3
      %p740 = por %p738, %p739
      %p742 = scmp.ne.s32.totalorder %s727, %s741
      %p743 = scmp.eq.s32.totalorder %s64, 0
      %p744 = por %p742, %p743
      %p745 = scmp.le.s32.totalorder 1, %s58
      %p746 = scmp.lt.s32.totalorder %s58, 5
      %p747 = pnand %p745, %p746
      %p748 = pneg %p747
      // Predicated region
      $region9: #{tpu_custom_call.1} parent=5 // pred_check
        _
      $region10: #{tpu_custom_call.1} parent=5 // pred_check_branch
        %750 = sbr.rel (%p747) target = $region12
      $region11: #{tpu_custom_call.1} parent=5 // pred_region
        %s751 = ssub.s32 %s58, 1
        // Predicated region
        $region13: #{tpu_custom_call.1} parent=11 // pred_check
          %p752 = pneg %p91
        $region14: #{tpu_custom_call.1} parent=11 // pred_check_branch
          %754 = sbr.rel (%p752) target = $region16
        $region15: #{tpu_custom_call.1} parent=11 // pred_region
          _
        $region16: #{tpu_custom_call.1} parent=11 // pred_fallthru
          _
        // Predicated region
        $region17: #{tpu_custom_call.1} parent=11 // pred_check
          %p755 = pneg %p112
        $region18: #{tpu_custom_call.1} parent=11 // pred_check_branch
          %757 = sbr.rel (%p755) target = $region20
        $region19: #{tpu_custom_call.1} parent=11 // pred_region
          _
        $region20: #{tpu_custom_call.1} parent=11 // pred_fallthru
          _
        // Predicated region
        $region21: #{tpu_custom_call.1} parent=11 // pred_check
          %p758 = pneg %p133
        $region22: #{tpu_custom_call.1} parent=11 // pred_check_branch
          %760 = sbr.rel (%p758) target = $region24
        $region23: #{tpu_custom_call.1} parent=11 // pred_region
          _
        $region24: #{tpu_custom_call.1} parent=11 // pred_fallthru
          _
        // Predicated region
        $region25: #{tpu_custom_call.1} parent=11 // pred_check
          %p761 = pneg %p154
        $region26: #{tpu_custom_call.1} parent=11 // pred_check_branch
          %763 = sbr.rel (%p761) target = $region28
        $region27: #{tpu_custom_call.1} parent=11 // pred_region
          _
        $region28: #{tpu_custom_call.1} parent=11 // pred_fallthru
          _
        // Predicated region
        $region29: #{tpu_custom_call.1} parent=11 // pred_check
          %p764 = pneg %p175
        $region30: #{tpu_custom_call.1} parent=11 // pred_check_branch
          %766 = sbr.rel (%p764) target = $region32
        $region31: #{tpu_custom_call.1} parent=11 // pred_region
          _
        $region32: #{tpu_custom_call.1} parent=11 // pred_fallthru
          _
        // Predicated region
        $region33: #{tpu_custom_call.1} parent=11 // pred_check
          %p767 = pneg %p196
        $region34: #{tpu_custom_call.1} parent=11 // pred_check_branch
          %769 = sbr.rel (%p767) target = $region36
        $region35: #{tpu_custom_call.1} parent=11 // pred_region
          %771 = vsyncadd [#allocation4], 0
          %s772 = sshll.u32 %s5, 4
          %s773 = int_to_ptr.hbm [resolvable:$true] %s772
          %s774 = sshll.u32 [#allocation3], 4
          %s775 = int_to_ptr.vmem [resolvable:$true] %s774
          %780 = dma.hbm_to_vmem [thread:$0]  %s773, 1024, %s775, [#allocation4], 64, 64, 4
        $region36: #{tpu_custom_call.1} parent=11 // pred_fallthru
          _
      $region12: #{tpu_custom_call.1} parent=5 // pred_fallthru
        _
      %p781 = scmp.lt.s32.totalorder %s58, 4
      // Predicated region
      $region37: #{tpu_custom_call.1} parent=5 // pred_check
        %p782 = pneg %p781
      $region38: #{tpu_custom_call.1} parent=5 // pred_check_branch
        %784 = sbr.rel (%p782) target = $region40
      $region39: #{tpu_custom_call.1} parent=5 // pred_region
        // Predicated region
        $region41: #{tpu_custom_call.1} parent=39 // pred_check
          %p785 = pneg %p216
        $region42: #{tpu_custom_call.1} parent=39 // pred_check_branch
          %787 = sbr.rel (%p785) target = $region44
        $region43: #{tpu_custom_call.1} parent=39 // pred_region
          %s788 = sand.u32 %s58, 1
          %s789 = scalar_lea.sflag [#allocation7], %s788
          %s790 = sand.u32 %s206, 1
          %s791 = smul.addr %s790, 64
          %s792 = scalar_lea.vmem [#allocation6], %s791
          %794 = vsyncadd %s789, 0
          %s795 = smul.addr %s65, 16
          %s796 = smul.addr %s795, 4
          %s797 = scalar_lea.hbm %s6, %s796
          %s798 = sshll.u32 %s797, 4
          %s799 = int_to_ptr.hbm [resolvable:$true] %s798
          %s800 = sshll.u32 %s792, 4
          %s801 = int_to_ptr.vmem [resolvable:$true] %s800
          %806 = dma.hbm_to_vmem [thread:$0]  %s799, 1024, %s801, %s789, 64, 64, 4
        $region44: #{tpu_custom_call.1} parent=39 // pred_fallthru
          _
        // Predicated region
        $region45: #{tpu_custom_call.1} parent=39 // pred_check
          %p807 = pneg %p242
        $region46: #{tpu_custom_call.1} parent=39 // pred_check_branch
          %809 = sbr.rel (%p807) target = $region48
        $region47: #{tpu_custom_call.1} parent=39 // pred_region
          %s810 = sand.u32 %s58, 1
          %s811 = scalar_lea.sflag [#allocation7], %s810
          %s812 = sand.u32 %s232, 1
          %s813 = scalar_lea.vmem [#allocation8], %s812
          %815 = vsyncadd %s811, 0
          %s816 = scalar_lea.hbm %s7, %s65
          %s818 = sshll.u32 %s816, 4
          %s819 = int_to_ptr.hbm [resolvable:$true] %s818
          %s820 = sshll.u32 %s813, 4
          %s821 = int_to_ptr.vmem [resolvable:$true] %s820
          %823 = dma.hbm_to_vmem [thread:$0]  %s819, 16, %s821, %s811
        $region48: #{tpu_custom_call.1} parent=39 // pred_fallthru
          _
        // Predicated region
        $region49: #{tpu_custom_call.1} parent=39 // pred_check
          %p824 = pneg %p268
        $region50: #{tpu_custom_call.1} parent=39 // pred_check_branch
          %826 = sbr.rel (%p824) target = $region52
        $region51: #{tpu_custom_call.1} parent=39 // pred_region
          %s827 = sand.u32 %s58, 1
          %s828 = scalar_lea.sflag [#allocation10], %s827
          %s829 = sand.u32 %s258, 1
          %s830 = smul.addr %s829, 128
          %s831 = scalar_lea.vmem [#allocation9], %s830
          %833 = vsyncadd %s828, 0
          %s834 = smul.addr %s65, 32
          %s835 = smul.addr %s834, 4
          %s836 = scalar_lea.hbm %s8, %s835
          %s837 = sshll.u32 %s836, 4
          %s838 = int_to_ptr.hbm [resolvable:$true] %s837
          %s839 = sshll.u32 %s831, 4
          %s840 = int_to_ptr.vmem [resolvable:$true] %s839
          %845 = dma.hbm_to_vmem [thread:$0]  %s838, 2048, %s840, %s828, 128, 128, 8
        $region52: #{tpu_custom_call.1} parent=39 // pred_fallthru
          _
        // Predicated region
        $region53: #{tpu_custom_call.1} parent=39 // pred_check
          %p846 = pneg %p294
        $region54: #{tpu_custom_call.1} parent=39 // pred_check_branch
          %848 = sbr.rel (%p846) target = $region56
        $region55: #{tpu_custom_call.1} parent=39 // pred_region
          %s849 = sand.u32 %s58, 1
          %s850 = scalar_lea.sflag [#allocation10], %s849
          %s851 = sand.u32 %s284, 1
          %s852 = smul.addr %s851, 2
          %s853 = scalar_lea.vmem [#allocation11], %s852
          %855 = vsyncadd %s850, 0
          %s856 = smul.addr %s65, 2
          %s857 = scalar_lea.hbm %s9, %s856
          %s859 = sshll.u32 %s857, 4
          %s860 = int_to_ptr.hbm [resolvable:$true] %s859
          %s861 = sshll.u32 %s853, 4
          %s862 = int_to_ptr.vmem [resolvable:$true] %s861
          %864 = dma.hbm_to_vmem [thread:$0]  %s860, 32, %s862, %s850
        $region56: #{tpu_custom_call.1} parent=39 // pred_fallthru
          _
        // Predicated region
        $region57: #{tpu_custom_call.1} parent=39 // pred_check
          %p865 = pneg %p320
        $region58: #{tpu_custom_call.1} parent=39 // pred_check_branch
          %867 = sbr.rel (%p865) target = $region60
        $region59: #{tpu_custom_call.1} parent=39 // pred_region
          %s868 = sand.u32 %s58, 1
          %s869 = scalar_lea.sflag [#allocation13], %s868
          %s870 = sand.u32 %s310, 1
          %s871 = smul.addr %s870, 64
          %s872 = scalar_lea.vmem [#allocation12], %s871
          %874 = vsyncadd %s869, 0
          %s875 = smul.addr %s65, 16
          %s876 = smul.addr %s875, 4
          %s877 = scalar_lea.hbm %s10, %s876
          %s878 = sshll.u32 %s877, 4
          %s879 = int_to_ptr.hbm [resolvable:$true] %s878
          %s880 = sshll.u32 %s872, 4
          %s881 = int_to_ptr.vmem [resolvable:$true] %s880
          %886 = dma.hbm_to_vmem [thread:$0]  %s879, 1024, %s881, %s869, 64, 64, 4
        $region60: #{tpu_custom_call.1} parent=39 // pred_fallthru
          _
        // Predicated region
        $region61: #{tpu_custom_call.1} parent=39 // pred_check
          %p887 = pneg %p346
        $region62: #{tpu_custom_call.1} parent=39 // pred_check_branch
          %889 = sbr.rel (%p887) target = $region64
        $region63: #{tpu_custom_call.1} parent=39 // pred_region
          %s890 = sand.u32 %s58, 1
          %s891 = scalar_lea.sflag [#allocation13], %s890
          %s892 = sand.u32 %s336, 1
          %s893 = scalar_lea.vmem [#allocation14], %s892
          %895 = vsyncadd %s891, 0
          %s896 = scalar_lea.hbm %s11, %s65
          %s898 = sshll.u32 %s896, 4
          %s899 = int_to_ptr.hbm [resolvable:$true] %s898
          %s900 = sshll.u32 %s893, 4
          %s901 = int_to_ptr.vmem [resolvable:$true] %s900
          %903 = dma.hbm_to_vmem [thread:$0]  %s899, 16, %s901, %s891
        $region64: #{tpu_custom_call.1} parent=39 // pred_fallthru
          _
        // Predicated region
        $region65: #{tpu_custom_call.1} parent=39 // pred_check
          %p904 = pneg %p372
        $region66: #{tpu_custom_call.1} parent=39 // pred_check_branch
          %906 = sbr.rel (%p904) target = $region68
        $region67: #{tpu_custom_call.1} parent=39 // pred_region
          %s907 = sand.u32 %s58, 1
          %s908 = scalar_lea.sflag [#allocation16], %s907
          %s909 = sand.u32 %s362, 1
          %s910 = scalar_lea.vmem [#allocation15], %s909
          %912 = vsyncadd %s908, 0
          %s913 = scalar_lea.hbm %s12, %s65
          %s915 = sshll.u32 %s913, 4
          %s916 = int_to_ptr.hbm [resolvable:$true] %s915
          %s917 = sshll.u32 %s910, 4
          %s918 = int_to_ptr.vmem [resolvable:$true] %s917
          %920 = dma.hbm_to_vmem [thread:$0]  %s916, 16, %s918, %s908
        $region68: #{tpu_custom_call.1} parent=39 // pred_fallthru
          _
        // Predicated region
        $region69: #{tpu_custom_call.1} parent=39 // pred_check
          %p921 = pneg %p398
        $region70: #{tpu_custom_call.1} parent=39 // pred_check_branch
          %923 = sbr.rel (%p921) target = $region72
        $region71: #{tpu_custom_call.1} parent=39 // pred_region
          %s924 = sand.u32 %s58, 1
          %s925 = scalar_lea.sflag [#allocation16], %s924
          %s926 = sand.u32 %s388, 1
          %s927 = scalar_lea.vmem [#allocation17], %s926
          %929 = vsyncadd %s925, 0
          %s930 = scalar_lea.hbm %s13, %s65
          %s932 = sshll.u32 %s930, 4
          %s933 = int_to_ptr.hbm [resolvable:$true] %s932
          %s934 = sshll.u32 %s927, 4
          %s935 = int_to_ptr.vmem [resolvable:$true] %s934
          %937 = dma.hbm_to_vmem [thread:$0]  %s933, 16, %s935, %s925
        $region72: #{tpu_custom_call.1} parent=39 // pred_fallthru
          _
        // Predicated region
        $region73: #{tpu_custom_call.1} parent=39 // pred_check
          %p938 = pneg %p424
        $region74: #{tpu_custom_call.1} parent=39 // pred_check_branch
          %940 = sbr.rel (%p938) target = $region76
        $region75: #{tpu_custom_call.1} parent=39 // pred_region
          %s941 = sand.u32 %s58, 1
          %s942 = scalar_lea.sflag [#allocation19], %s941
          %s943 = sand.u32 %s414, 1
          %s944 = smul.addr %s943, 256
          %s945 = scalar_lea.vmem [#allocation18], %s944
          %947 = vsyncadd %s942, 0
          %s948 = smul.addr %s65, 64
          %s949 = smul.addr %s948, 4
          %s950 = scalar_lea.hbm %s14, %s949
          %s951 = sshll.u32 %s950, 4
          %s952 = int_to_ptr.hbm [resolvable:$true] %s951
          %s953 = sshll.u32 %s945, 4
          %s954 = int_to_ptr.vmem [resolvable:$true] %s953
          %959 = dma.hbm_to_vmem [thread:$0]  %s952, 4096, %s954, %s942, 256, 256, 16
        $region76: #{tpu_custom_call.1} parent=39 // pred_fallthru
          _
        // Predicated region
        $region77: #{tpu_custom_call.1} parent=39 // pred_check
          %p960 = pneg %p450
        $region78: #{tpu_custom_call.1} parent=39 // pred_check_branch
          %962 = sbr.rel (%p960) target = $region80
        $region79: #{tpu_custom_call.1} parent=39 // pred_region
          %p963 = scmp.lt.s32.totalorder %s65, 1
          %s964 = scalar_select %p963, %s65, 1
          %s965 = smul.addr %s964, 4
          %s966 = scalar_lea.vmem %s15, %s965
        $region80: #{tpu_custom_call.1} parent=39 // pred_fallthru
          _
        // Predicated region
        $region81: #{tpu_custom_call.1} parent=39 // pred_check
          %p967 = pneg %p476
        $region82: #{tpu_custom_call.1} parent=39 // pred_check_branch
          %969 = sbr.rel (%p967) target = $region84
        $region83: #{tpu_custom_call.1} parent=39 // pred_region
          %s970 = sand.u32 %s58, 1
          %s971 = scalar_lea.sflag [#allocation19], %s970
          %s972 = sand.u32 %s466, 1
          %s973 = smul.addr %s972, 256
          %s974 = scalar_lea.vmem [#allocation20], %s973
          %976 = vsyncadd %s971, 0
          %s977 = smul.addr %s65, 64
          %s978 = smul.addr %s977, 4
          %s979 = scalar_lea.hbm %s16, %s978
          %s980 = sshll.u32 %s979, 4
          %s981 = int_to_ptr.hbm [resolvable:$true] %s980
          %s982 = sshll.u32 %s974, 4
          %s983 = int_to_ptr.vmem [resolvable:$true] %s982
          %988 = dma.hbm_to_vmem [thread:$0]  %s981, 4096, %s983, %s971, 64, 64, 4
        $region84: #{tpu_custom_call.1} parent=39 // pred_fallthru
          _
        // Predicated region
        $region85: #{tpu_custom_call.1} parent=39 // pred_check
          %p989 = pneg %p502
        $region86: #{tpu_custom_call.1} parent=39 // pred_check_branch
          %991 = sbr.rel (%p989) target = $region88
        $region87: #{tpu_custom_call.1} parent=39 // pred_region
          %s992 = sand.u32 %s58, 1
          %s993 = scalar_lea.sflag [#allocation22], %s992
          %s994 = sand.u32 %s492, 1
          %s995 = scalar_lea.vmem [#allocation21], %s994
          %997 = vsyncadd %s993, 0
          %s998 = scalar_lea.hbm %s17, %s65
          %s1000 = sshll.u32 %s998, 4
          %s1001 = int_to_ptr.hbm [resolvable:$true] %s1000
          %s1002 = sshll.u32 %s995, 4
          %s1003 = int_to_ptr.vmem [resolvable:$true] %s1002
          %1005 = dma.hbm_to_vmem [thread:$0]  %s1001, 16, %s1003, %s993
        $region88: #{tpu_custom_call.1} parent=39 // pred_fallthru
          _
        // Predicated region
        $region89: #{tpu_custom_call.1} parent=39 // pred_check
          %p1006 = pneg %p528
        $region90: #{tpu_custom_call.1} parent=39 // pred_check_branch
          %1008 = sbr.rel (%p1006) target = $region92
        $region91: #{tpu_custom_call.1} parent=39 // pred_region
          %s1009 = sand.u32 %s58, 1
          %s1010 = scalar_lea.sflag [#allocation22], %s1009
          %s1011 = sand.u32 %s518, 1
          %s1012 = scalar_lea.vmem [#allocation23], %s1011
          %1014 = vsyncadd %s1010, 0
          %s1015 = scalar_lea.hbm %s18, %s65
          %s1017 = sshll.u32 %s1015, 4
          %s1018 = int_to_ptr.hbm [resolvable:$true] %s1017
          %s1019 = sshll.u32 %s1012, 4
          %s1020 = int_to_ptr.vmem [resolvable:$true] %s1019
          %1022 = dma.hbm_to_vmem [thread:$0]  %s1018, 16, %s1020, %s1010
        $region92: #{tpu_custom_call.1} parent=39 // pred_fallthru
          _
        // Predicated region
        $region93: #{tpu_custom_call.1} parent=39 // pred_check
          %p1023 = pneg %p554
        $region94: #{tpu_custom_call.1} parent=39 // pred_check_branch
          %1025 = sbr.rel (%p1023) target = $region96
        $region95: #{tpu_custom_call.1} parent=39 // pred_region
          %s1026 = sand.u32 %s58, 1
          %s1027 = scalar_lea.sflag [#allocation25], %s1026
          %s1028 = sand.u32 %s544, 1
          %s1029 = scalar_lea.vmem [#allocation24], %s1028
          %1031 = vsyncadd %s1027, 0
          %s1032 = scalar_lea.hbm %s19, %s65
          %s1034 = sshll.u32 %s1032, 4
          %s1035 = int_to_ptr.hbm [resolvable:$true] %s1034
          %s1036 = sshll.u32 %s1029, 4
          %s1037 = int_to_ptr.vmem [resolvable:$true] %s1036
          %1039 = dma.hbm_to_vmem [thread:$0]  %s1035, 16, %s1037, %s1027
        $region96: #{tpu_custom_call.1} parent=39 // pred_fallthru
          _
        // Predicated region
        $region97: #{tpu_custom_call.1} parent=39 // pred_check
          %p1040 = pneg %p580
        $region98: #{tpu_custom_call.1} parent=39 // pred_check_branch
          %1042 = sbr.rel (%p1040) target = $region100
        $region99: #{tpu_custom_call.1} parent=39 // pred_region
          %s1043 = sand.u32 %s58, 1
          %s1044 = scalar_lea.sflag [#allocation25], %s1043
          %s1045 = sand.u32 %s570, 1
          %s1046 = smul.addr %s1045, 192
          %s1047 = scalar_lea.vmem [#allocation26], %s1046
          %1049 = vsyncadd %s1044, 0
          %s1050 = smul.addr %s65, 48
          %s1051 = smul.addr %s1050, 4
          %s1052 = scalar_lea.hbm %s20, %s1051
          %s1053 = sshll.u32 %s1052, 4
          %s1054 = int_to_ptr.hbm [resolvable:$true] %s1053
          %s1055 = sshll.u32 %s1047, 4
          %s1056 = int_to_ptr.vmem [resolvable:$true] %s1055
          %1061 = dma.hbm_to_vmem [thread:$0]  %s1054, 3072, %s1056, %s1044, 192, 192, 12
        $region100: #{tpu_custom_call.1} parent=39 // pred_fallthru
          _
        // Predicated region
        $region101: #{tpu_custom_call.1} parent=39 // pred_check
          %p1062 = pneg %p606
        $region102: #{tpu_custom_call.1} parent=39 // pred_check_branch
          %1064 = sbr.rel (%p1062) target = $region104
        $region103: #{tpu_custom_call.1} parent=39 // pred_region
          %p1065 = scmp.lt.s32.totalorder %s65, 1
          %s1066 = scalar_select %p1065, %s65, 1
          %s1067 = smul.addr %s1066, 3
          %s1068 = scalar_lea.vmem %s21, %s1067
        $region104: #{tpu_custom_call.1} parent=39 // pred_fallthru
          _
        // Predicated region
        $region105: #{tpu_custom_call.1} parent=39 // pred_check
          %p1069 = pneg %p632
        $region106: #{tpu_custom_call.1} parent=39 // pred_check_branch
          %1071 = sbr.rel (%p1069) target = $region108
        $region107: #{tpu_custom_call.1} parent=39 // pred_region
          %s1072 = sand.u32 %s622, 1
          %s1073 = scalar_lea.sflag [#allocation28], %s1072
          %s1074 = sand.u32 %s622, 1
          %s1075 = smul.addr %s1074, 192
          %s1076 = scalar_lea.vmem [#allocation27], %s1075
          %1078 = vsyncadd %s1073, 0
          %s1079 = smul.addr %s65, 48
          %s1080 = smul.addr %s1079, 4
          %s1081 = scalar_lea.hbm %s22, %s1080
          %s1082 = sshll.u32 %s1081, 4
          %s1083 = int_to_ptr.hbm [resolvable:$true] %s1082
          %s1084 = sshll.u32 %s1076, 4
          %s1085 = int_to_ptr.vmem [resolvable:$true] %s1084
          %1090 = dma.hbm_to_vmem [thread:$0]  %s1083, 3072, %s1085, %s1073, 192, 192, 12
        $region108: #{tpu_custom_call.1} parent=39 // pred_fallthru
          _
        // Predicated region
        $region109: #{tpu_custom_call.1} parent=39 // pred_check
          %p1091 = pneg %p658
        $region110: #{tpu_custom_call.1} parent=39 // pred_check_branch
          %1093 = sbr.rel (%p1091) target = $region112
        $region111: #{tpu_custom_call.1} parent=39 // pred_region
          %p1094 = scmp.lt.s32.totalorder %s65, 1
          %s1095 = scalar_select %p1094, %s65, 1
          %s1096 = smul.addr %s1095, 3
          %s1097 = scalar_lea.vmem %s23, %s1096
        $region112: #{tpu_custom_call.1} parent=39 // pred_fallthru
          _
        // Predicated region
        $region113: #{tpu_custom_call.1} parent=39 // pred_check
          %p1098 = pneg %p684
        $region114: #{tpu_custom_call.1} parent=39 // pred_check_branch
          %1100 = sbr.rel (%p1098) target = $region116
        $region115: #{tpu_custom_call.1} parent=39 // pred_region
          %p1101 = scmp.lt.s32.totalorder %s65, 1
          %s1102 = scalar_select %p1101, %s65, 1
          %s1103 = scalar_lea.vmem %s24, %s1102
        $region116: #{tpu_custom_call.1} parent=39 // pred_fallthru
          _
        // Predicated region
        $region117: #{tpu_custom_call.1} parent=39 // pred_check
          %p1104 = pneg %p710
        $region118: #{tpu_custom_call.1} parent=39 // pred_check_branch
          %1106 = sbr.rel (%p1104) target = $region120
        $region119: #{tpu_custom_call.1} parent=39 // pred_region
          %p1107 = scmp.lt.s32.totalorder %s65, 1
          %s1108 = scalar_select %p1107, %s65, 1
          %s1109 = scalar_lea.vmem %s25, %s1108
        $region120: #{tpu_custom_call.1} parent=39 // pred_fallthru
          _
      $region40: #{tpu_custom_call.1} parent=5 // pred_fallthru
        _
      %p1110 = scmp.le.s32.totalorder 1, %s58
      %p1111 = scmp.lt.s32.totalorder %s58, 5
      %p1112 = pnand %p1110, %p1111
      %p1113 = pneg %p1112
      // Predicated region
      $region121: #{tpu_custom_call.1} parent=5 // pred_check
        _
      $region122: #{tpu_custom_call.1} parent=5 // pred_check_branch
        %1115 = sbr.rel (%p1112) target = $region124
      $region123: #{tpu_custom_call.1} parent=5 // pred_region
        %s1116 = ssub.s32 %s58, 1
        // Predicated region
        $region125: #{tpu_custom_call.1} parent=123 // pred_check
          %p1117 = pneg %p196
        $region126: #{tpu_custom_call.1} parent=123 // pred_check_branch
          %1119 = sbr.rel (%p1117) target = $region128
        $region127: #{tpu_custom_call.1} parent=123 // pred_region
          %1121 = dma.done [#allocation4], 1024
        $region128: #{tpu_custom_call.1} parent=123 // pred_fallthru
          _
        %s1122 = sand.u32 %s63, 1
        %s1123 = scalar_lea.sflag [#allocation7], %s1122
        %s1124 = sand.u32 %s209, 1
        %s1125 = smul.addr %s1124, 64
        %s1126 = scalar_lea.vmem [#allocation6], %s1125
        // Predicated region
        $region129: #{tpu_custom_call.1} parent=123 // pred_check
          %p1127 = pneg %p222
        $region130: #{tpu_custom_call.1} parent=123 // pred_check_branch
          %1129 = sbr.rel (%p1127) target = $region132
        $region131: #{tpu_custom_call.1} parent=123 // pred_region
          %1131 = dma.done %s1123, 1024
        $region132: #{tpu_custom_call.1} parent=123 // pred_fallthru
          _
        %s1132 = sand.u32 %s63, 1
        %s1133 = scalar_lea.sflag [#allocation7], %s1132
        %s1134 = sand.u32 %s235, 1
        %s1135 = scalar_lea.vmem [#allocation8], %s1134
        // Predicated region
        $region133: #{tpu_custom_call.1} parent=123 // pred_check
          %p1136 = pneg %p248
        $region134: #{tpu_custom_call.1} parent=123 // pred_check_branch
          %1138 = sbr.rel (%p1136) target = $region136
        $region135: #{tpu_custom_call.1} parent=123 // pred_region
          %1140 = dma.done %s1133, 16
        $region136: #{tpu_custom_call.1} parent=123 // pred_fallthru
          _
        %s1141 = sand.u32 %s63, 1
        %s1142 = scalar_lea.sflag [#allocation10], %s1141
        %s1143 = sand.u32 %s261, 1
        %s1144 = smul.addr %s1143, 128
        %s1145 = scalar_lea.vmem [#allocation9], %s1144
        // Predicated region
        $region137: #{tpu_custom_call.1} parent=123 // pred_check
          %p1146 = pneg %p274
        $region138: #{tpu_custom_call.1} parent=123 // pred_check_branch
          %1148 = sbr.rel (%p1146) target = $region140
        $region139: #{tpu_custom_call.1} parent=123 // pred_region
          %1150 = dma.done %s1142, 2048
        $region140: #{tpu_custom_call.1} parent=123 // pred_fallthru
          _
        %s1151 = sand.u32 %s63, 1
        %s1152 = scalar_lea.sflag [#allocation10], %s1151
        %s1153 = sand.u32 %s287, 1
        %s1154 = smul.addr %s1153, 2
        %s1155 = scalar_lea.vmem [#allocation11], %s1154
        // Predicated region
        $region141: #{tpu_custom_call.1} parent=123 // pred_check
          %p1156 = pneg %p300
        $region142: #{tpu_custom_call.1} parent=123 // pred_check_branch
          %1158 = sbr.rel (%p1156) target = $region144
        $region143: #{tpu_custom_call.1} parent=123 // pred_region
          %1160 = dma.done %s1152, 32
        $region144: #{tpu_custom_call.1} parent=123 // pred_fallthru
          _
        %s1161 = sand.u32 %s63, 1
        %s1162 = scalar_lea.sflag [#allocation13], %s1161
        %s1163 = sand.u32 %s313, 1
        %s1164 = smul.addr %s1163, 64
        %s1165 = scalar_lea.vmem [#allocation12], %s1164
        // Predicated region
        $region145: #{tpu_custom_call.1} parent=123 // pred_check
          %p1166 = pneg %p326
        $region146: #{tpu_custom_call.1} parent=123 // pred_check_branch
          %1168 = sbr.rel (%p1166) target = $region148
        $region147: #{tpu_custom_call.1} parent=123 // pred_region
          %1170 = dma.done %s1162, 1024
        $region148: #{tpu_custom_call.1} parent=123 // pred_fallthru
          _
        %s1171 = sand.u32 %s63, 1
        %s1172 = scalar_lea.sflag [#allocation13], %s1171
        %s1173 = sand.u32 %s339, 1
        %s1174 = scalar_lea.vmem [#allocation14], %s1173
        // Predicated region
        $region149: #{tpu_custom_call.1} parent=123 // pred_check
          %p1175 = pneg %p352
        $region150: #{tpu_custom_call.1} parent=123 // pred_check_branch
          %1177 = sbr.rel (%p1175) target = $region152
        $region151: #{tpu_custom_call.1} parent=123 // pred_region
          %1179 = dma.done %s1172, 16
        $region152: #{tpu_custom_call.1} parent=123 // pred_fallthru
          _
        %s1180 = sand.u32 %s63, 1
        %s1181 = scalar_lea.sflag [#allocation16], %s1180
        %s1182 = sand.u32 %s365, 1
        %s1183 = scalar_lea.vmem [#allocation15], %s1182
        // Predicated region
        $region153: #{tpu_custom_call.1} parent=123 // pred_check
          %p1184 = pneg %p378
        $region154: #{tpu_custom_call.1} parent=123 // pred_check_branch
          %1186 = sbr.rel (%p1184) target = $region156
        $region155: #{tpu_custom_call.1} parent=123 // pred_region
          %1188 = dma.done %s1181, 16
        $region156: #{tpu_custom_call.1} parent=123 // pred_fallthru
          _
        %s1189 = sand.u32 %s63, 1
        %s1190 = scalar_lea.sflag [#allocation16], %s1189
        %s1191 = sand.u32 %s391, 1
        %s1192 = scalar_lea.vmem [#allocation17], %s1191
        // Predicated region
        $region157: #{tpu_custom_call.1} parent=123 // pred_check
          %p1193 = pneg %p404
        $region158: #{tpu_custom_call.1} parent=123 // pred_check_branch
          %1195 = sbr.rel (%p1193) target = $region160
        $region159: #{tpu_custom_call.1} parent=123 // pred_region
          %1197 = dma.done %s1190, 16
        $region160: #{tpu_custom_call.1} parent=123 // pred_fallthru
          _
        %s1198 = sand.u32 %s63, 1
        %s1199 = scalar_lea.sflag [#allocation19], %s1198
        %s1200 = sand.u32 %s417, 1
        %s1201 = smul.addr %s1200, 256
        %s1202 = scalar_lea.vmem [#allocation18], %s1201
        // Predicated region
        $region161: #{tpu_custom_call.1} parent=123 // pred_check
          %p1203 = pneg %p430
        $region162: #{tpu_custom_call.1} parent=123 // pred_check_branch
          %1205 = sbr.rel (%p1203) target = $region164
        $region163: #{tpu_custom_call.1} parent=123 // pred_region
          %1207 = dma.done %s1199, 4096
        $region164: #{tpu_custom_call.1} parent=123 // pred_fallthru
          _
        %s1208 = sand.u32 %s63, 1
        %s1209 = scalar_lea.sflag [#allocation19], %s1208
        %s1210 = sand.u32 %s469, 1
        %s1211 = smul.addr %s1210, 256
        %s1212 = scalar_lea.vmem [#allocation20], %s1211
        // Predicated region
        $region165: #{tpu_custom_call.1} parent=123 // pred_check
          %p1213 = pneg %p482
        $region166: #{tpu_custom_call.1} parent=123 // pred_check_branch
          %1215 = sbr.rel (%p1213) target = $region168
        $region167: #{tpu_custom_call.1} parent=123 // pred_region
          %1217 = dma.done %s1209, 4096
        $region168: #{tpu_custom_call.1} parent=123 // pred_fallthru
          _
        %s1218 = sand.u32 %s63, 1
        %s1219 = scalar_lea.sflag [#allocation22], %s1218
        %s1220 = sand.u32 %s495, 1
        %s1221 = scalar_lea.vmem [#allocation21], %s1220
        // Predicated region
        $region169: #{tpu_custom_call.1} parent=123 // pred_check
          %p1222 = pneg %p508
        $region170: #{tpu_custom_call.1} parent=123 // pred_check_branch
          %1224 = sbr.rel (%p1222) target = $region172
        $region171: #{tpu_custom_call.1} parent=123 // pred_region
          %1226 = dma.done %s1219, 16
        $region172: #{tpu_custom_call.1} parent=123 // pred_fallthru
          _
        %s1227 = sand.u32 %s63, 1
        %s1228 = scalar_lea.sflag [#allocation22], %s1227
        %s1229 = sand.u32 %s521, 1
        %s1230 = scalar_lea.vmem [#allocation23], %s1229
        // Predicated region
        $region173: #{tpu_custom_call.1} parent=123 // pred_check
          %p1231 = pneg %p534
        $region174: #{tpu_custom_call.1} parent=123 // pred_check_branch
          %1233 = sbr.rel (%p1231) target = $region176
        $region175: #{tpu_custom_call.1} parent=123 // pred_region
          %1235 = dma.done %s1228, 16
        $region176: #{tpu_custom_call.1} parent=123 // pred_fallthru
          _
        %s1236 = sand.u32 %s63, 1
        %s1237 = scalar_lea.sflag [#allocation25], %s1236
        %s1238 = sand.u32 %s547, 1
        %s1239 = scalar_lea.vmem [#allocation24], %s1238
        // Predicated region
        $region177: #{tpu_custom_call.1} parent=123 // pred_check
          %p1240 = pneg %p560
        $region178: #{tpu_custom_call.1} parent=123 // pred_check_branch
          %1242 = sbr.rel (%p1240) target = $region180
        $region179: #{tpu_custom_call.1} parent=123 // pred_region
          %1244 = dma.done %s1237, 16
        $region180: #{tpu_custom_call.1} parent=123 // pred_fallthru
          _
        %s1245 = sand.u32 %s63, 1
        %s1246 = scalar_lea.sflag [#allocation25], %s1245
        %s1247 = sand.u32 %s573, 1
        %s1248 = smul.addr %s1247, 192
        %s1249 = scalar_lea.vmem [#allocation26], %s1248
        // Predicated region
        $region181: #{tpu_custom_call.1} parent=123 // pred_check
          %p1250 = pneg %p586
        $region182: #{tpu_custom_call.1} parent=123 // pred_check_branch
          %1252 = sbr.rel (%p1250) target = $region184
        $region183: #{tpu_custom_call.1} parent=123 // pred_region
          %1254 = dma.done %s1246, 3072
        $region184: #{tpu_custom_call.1} parent=123 // pred_fallthru
          _
        %s1255 = sand.u32 %s625, 1
        %s1256 = scalar_lea.sflag [#allocation28], %s1255
        %s1257 = sand.u32 %s625, 1
        %s1258 = smul.addr %s1257, 192
        %s1259 = scalar_lea.vmem [#allocation27], %s1258
        // Predicated region
        $region185: #{tpu_custom_call.1} parent=123 // pred_check
          %p1260 = pneg %p638
        $region186: #{tpu_custom_call.1} parent=123 // pred_check_branch
          %1262 = sbr.rel (%p1260) target = $region188
        $region187: #{tpu_custom_call.1} parent=123 // pred_region
          %1264 = dma.done %s1256, 3072
        $region188: #{tpu_custom_call.1} parent=123 // pred_fallthru
          _
        %p1265 = pneg %p91
        %p1266 = pneg %p88
        %p1267 = pneg %p112
        %p1268 = pneg %p109
        %p1269 = pneg %p133
        %p1270 = pneg %p130
        %p1271 = pneg %p154
        %p1272 = pneg %p151
        %p1273 = pneg %p175
        %p1274 = pneg %p172
        %p1275 = pneg %p196
        %p1276 = pneg %p193
        %s1277 = sand.u32 %s63, 1
        %s1278 = scalar_lea.sflag [#allocation7], %s1277
        %s1279 = sand.u32 %s209, 1
        %s1280 = smul.addr %s1279, 64
        %s1281 = scalar_lea.vmem [#allocation6], %s1280
        %p1282 = pneg %p222
        %p1283 = pneg %p219
        %s1284 = sand.u32 %s63, 1
        %s1285 = scalar_lea.sflag [#allocation7], %s1284
        %s1286 = sand.u32 %s235, 1
        %s1287 = scalar_lea.vmem [#allocation8], %s1286
        %p1288 = pneg %p248
        %p1289 = pneg %p245
        %s1290 = sand.u32 %s63, 1
        %s1291 = scalar_lea.sflag [#allocation10], %s1290
        %s1292 = sand.u32 %s261, 1
        %s1293 = smul.addr %s1292, 128
        %s1294 = scalar_lea.vmem [#allocation9], %s1293
        %p1295 = pneg %p274
        %p1296 = pneg %p271
        %s1297 = sand.u32 %s63, 1
        %s1298 = scalar_lea.sflag [#allocation10], %s1297
        %s1299 = sand.u32 %s287, 1
        %s1300 = smul.addr %s1299, 2
        %s1301 = scalar_lea.vmem [#allocation11], %s1300
        %p1302 = pneg %p300
        %p1303 = pneg %p297
        %s1304 = sand.u32 %s63, 1
        %s1305 = scalar_lea.sflag [#allocation13], %s1304
        %s1306 = sand.u32 %s313, 1
        %s1307 = smul.addr %s1306, 64
        %s1308 = scalar_lea.vmem [#allocation12], %s1307
        %p1309 = pneg %p326
        %p1310 = pneg %p323
        %s1311 = sand.u32 %s63, 1
        %s1312 = scalar_lea.sflag [#allocation13], %s1311
        %s1313 = sand.u32 %s339, 1
        %s1314 = scalar_lea.vmem [#allocation14], %s1313
        %p1315 = pneg %p352
        %p1316 = pneg %p349
        %s1317 = sand.u32 %s63, 1
        %s1318 = scalar_lea.sflag [#allocation16], %s1317
        %s1319 = sand.u32 %s365, 1
        %s1320 = scalar_lea.vmem [#allocation15], %s1319
        %p1321 = pneg %p378
        %p1322 = pneg %p375
        %s1323 = sand.u32 %s63, 1
        %s1324 = scalar_lea.sflag [#allocation16], %s1323
        %s1325 = sand.u32 %s391, 1
        %s1326 = scalar_lea.vmem [#allocation17], %s1325
        %p1327 = pneg %p404
        %p1328 = pneg %p401
        %s1329 = sand.u32 %s63, 1
        %s1330 = scalar_lea.sflag [#allocation19], %s1329
        %s1331 = sand.u32 %s417, 1
        %s1332 = smul.addr %s1331, 256
        %s1333 = scalar_lea.vmem [#allocation18], %s1332
        %p1334 = pneg %p430
        %p1335 = pneg %p427
        %p1336 = scmp.lt.s32.totalorder %s67, 1
        %s1337 = scalar_select %p1336, %s67, 1
        %s1338 = smul.addr %s1337, 4
        %s1339 = scalar_lea.vmem %s15, %s1338
        %p1340 = pneg %p456
        %p1341 = pneg %p453
        %s1342 = sand.u32 %s63, 1
        %s1343 = scalar_lea.sflag [#allocation19], %s1342
        %s1344 = sand.u32 %s469, 1
        %s1345 = smul.addr %s1344, 256
        %s1346 = scalar_lea.vmem [#allocation20], %s1345
        %p1347 = pneg %p482
        %p1348 = pneg %p479
        %s1349 = sand.u32 %s63, 1
        %s1350 = scalar_lea.sflag [#allocation22], %s1349
        %s1351 = sand.u32 %s495, 1
        %s1352 = scalar_lea.vmem [#allocation21], %s1351
        %p1353 = pneg %p508
        %p1354 = pneg %p505
        %s1355 = sand.u32 %s63, 1
        %s1356 = scalar_lea.sflag [#allocation22], %s1355
        %s1357 = sand.u32 %s521, 1
        %s1358 = scalar_lea.vmem [#allocation23], %s1357
        %p1359 = pneg %p534
        %p1360 = pneg %p531
        %s1361 = sand.u32 %s63, 1
        %s1362 = scalar_lea.sflag [#allocation25], %s1361
        %s1363 = sand.u32 %s547, 1
        %s1364 = scalar_lea.vmem [#allocation24], %s1363
        %p1365 = pneg %p560
        %p1366 = pneg %p557
        %s1367 = sand.u32 %s63, 1
        %s1368 = scalar_lea.sflag [#allocation25], %s1367
        %s1369 = sand.u32 %s573, 1
        %s1370 = smul.addr %s1369, 192
        %s1371 = scalar_lea.vmem [#allocation26], %s1370
        %p1372 = pneg %p586
        %p1373 = pneg %p583
        %p1374 = scmp.lt.s32.totalorder %s67, 1
        %s1375 = scalar_select %p1374, %s67, 1
        %s1376 = smul.addr %s1375, 3
        %s1377 = scalar_lea.vmem %s21, %s1376
        %p1378 = pneg %p612
        %p1379 = pneg %p609
        %s1380 = sand.u32 %s625, 1
        %s1381 = scalar_lea.sflag [#allocation28], %s1380
        %s1382 = sand.u32 %s625, 1
        %s1383 = smul.addr %s1382, 192
        %s1384 = scalar_lea.vmem [#allocation27], %s1383
        %p1385 = pneg %p638
        %p1386 = pneg %p635
        %p1387 = scmp.lt.s32.totalorder %s67, 1
        %s1388 = scalar_select %p1387, %s67, 1
        %s1389 = smul.addr %s1388, 3
        %s1390 = scalar_lea.vmem %s23, %s1389
        %p1391 = pneg %p664
        %p1392 = pneg %p661
        %p1393 = scmp.lt.s32.totalorder %s67, 1
        %s1394 = scalar_select %p1393, %s67, 1
        %s1395 = scalar_lea.vmem %s24, %s1394
        %p1396 = pneg %p690
        %p1397 = pneg %p687
        %p1398 = scmp.lt.s32.totalorder %s67, 1
        %s1399 = scalar_select %p1398, %s67, 1
        %s1400 = scalar_lea.vmem %s25, %s1399
        %p1401 = pneg %p716
        %p1402 = pneg %p713
        %p1403 = pneg %p737
        %p1404 = pneg %p734
        %p1405 = scmp.lt.s32.totalorder %s67, 1
        %s1406 = scalar_select %p1405, %s67, 1
        %s1407 = smul.addr %s1406, 4
        %s1408 = scalar_lea.vmem %s15, %s1407
        %p1409 = scmp.lt.s32.totalorder %s67, 1
        %s1410 = scalar_select %p1409, %s67, 1
        %s1411 = smul.addr %s1410, 3
        %s1412 = scalar_lea.vmem %s21, %s1411
        %p1413 = scmp.lt.s32.totalorder %s67, 1
        %s1414 = scalar_select %p1413, %s67, 1
        %s1415 = smul.addr %s1414, 3
        %s1416 = scalar_lea.vmem %s23, %s1415
        %p1417 = scmp.lt.s32.totalorder %s67, 1
        %s1418 = scalar_select %p1417, %s67, 1
        %s1419 = scalar_lea.vmem %s24, %s1418
        %p1420 = scmp.lt.s32.totalorder %s67, 1
        %s1421 = scalar_select %p1420, %s67, 1
        %s1422 = scalar_lea.vmem %s25, %s1421
        %p1424 = scmp.eq.s32.totalorder %s67, 0
        %p1425 = scmp.eq.s32.totalorder %s68, 0
        %p1426 = pnand %p1424, %p1425
        %p1427 = pneg %p1426
        // Predicated region
        $region189: #{tpu_custom_call.1} parent=123 // pred_check
          _
        $region190: #{tpu_custom_call.1} parent=123 // pred_check_branch
          %1429 = sbr.rel (%p1426) target = $region192
        $region191: #{tpu_custom_call.1} parent=123 // pred_region
          %v1430 = vld [vmem:[%s0] sm:$0xff]
          %v1431 = vld [vmem:[%s0 + $0x8] sm:$0xff]
          %1432 = vst [vmem:[#allocation29] sm:$0xff] %v1430
          %1433 = vst [vmem:[#allocation29 + $0x8] sm:$0xff] %v1431
        $region192: #{tpu_custom_call.1} parent=123 // pred_fallthru
          _
        // Predicated region
        $region193: #{tpu_custom_call.1} parent=123 // pred_check
          %p1434 = pneg %p1425
        $region194: #{tpu_custom_call.1} parent=123 // pred_check_branch
          %1436 = sbr.rel (%p1434) target = $region196
        $region195: #{tpu_custom_call.1} parent=123 // pred_region
          %v1437 = vld [vmem:[#allocation29] sm:$0xff]
          %v1438 = vld [vmem:[#allocation29 + $0x8] sm:$0xff]
          %1439 = vst [vmem:[#allocation2] sm:$0xff] %v1437
          %1440 = vst [vmem:[#allocation2 + $0x8] sm:$0xff] %v1438
        $region196: #{tpu_custom_call.1} parent=123 // pred_fallthru
          _
        %v1441 = vld [vmem:[#allocation29] sm:$0xff]
        %v1442 = vld [vmem:[#allocation29 + $0x8] sm:$0xff]
        %v1443 = vpack.c.bf16 %v1442, %v1441
        %v1444 = vld [vmem:[#allocation2] sm:$0xff]
        %v1445 = vld [vmem:[#allocation2 + $0x8] sm:$0xff]
        %v1446 = vld [vmem:[%s1] sm:$0xf]
        %v1447 = vld [vmem:[%s1 + $0x4] sm:$0xf]
        %v1448 = vld [vmem:[%s1 + $0x8] sm:$0xf]
        %v1449 = vld [vmem:[%s1 + $0xc] sm:$0xf]
        %v1450 = vunpack.c.l.bf16 %v1446
        %v1451 = vunpack.c.l.bf16 %v1447
        %v1452 = vunpack.c.l.bf16 %v1448
        %v1453 = vunpack.c.l.bf16 %v1449
        %v1454 = vld [vmem:[%s2] sm:$0xf]
        %v1455 = vld [vmem:[%s2 + $0x4] sm:$0xf]
        %v1456 = vld [vmem:[%s3] sm:$0xf]
        %v1457 = vld [vmem:[%s3 + $0x4] sm:$0xf]
        %v1458 = vld [vmem:[%s3 + $0x8] sm:$0xf]
        %v1459 = vld [vmem:[%s3 + $0xc] sm:$0xf]
        %v1460 = vld [vmem:[%s4] sm:$0xf]
        %v1461 = vld [vmem:[%s4 + $0x4] sm:$0xf]
        %v1462 = vld [vmem:[%s4 + $0x8] sm:$0xf]
        %v1463 = vld [vmem:[%s4 + $0xc] sm:$0xf]
        %v1464 = vld [vmem:[#allocation3] sm:$0xf]
        %v1465 = vld [vmem:[#allocation3 + $0x4] sm:$0xf]
        %v1466 = vld [vmem:[#allocation3 + $0x8] sm:$0xf]
        %v1467 = vld [vmem:[#allocation3 + $0xc] sm:$0xf]
        %v1468 = vld [vmem:[#allocation3 + $0x10] sm:$0xf]
        %v1469 = vld [vmem:[#allocation3 + $0x14] sm:$0xf]
        %v1470 = vld [vmem:[#allocation3 + $0x18] sm:$0xf]
        %v1471 = vld [vmem:[#allocation3 + $0x1c] sm:$0xf]
        %v1472 = vld [vmem:[#allocation3 + $0x20] sm:$0xf]
        %v1473 = vld [vmem:[#allocation3 + $0x24] sm:$0xf]
        %v1474 = vld [vmem:[#allocation3 + $0x28] sm:$0xf]
        %v1475 = vld [vmem:[#allocation3 + $0x2c] sm:$0xf]
        %v1476 = vld [vmem:[#allocation3 + $0x30] sm:$0xf]
        %v1477 = vld [vmem:[#allocation3 + $0x34] sm:$0xf]
        %v1478 = vld [vmem:[#allocation3 + $0x38] sm:$0xf]
        %v1479 = vld [vmem:[#allocation3 + $0x3c] sm:$0xf]
        %v1480 = vld [vmem:[%s1126] sm:$0xf]
        %v1481 = vld [vmem:[%s1126 + $0x4] sm:$0xf]
        %v1482 = vld [vmem:[%s1126 + $0x8] sm:$0xf]
        %v1483 = vld [vmem:[%s1126 + $0xc] sm:$0xf]
        %v1484 = vld [vmem:[%s1126 + $0x10] sm:$0xf]
        %v1485 = vld [vmem:[%s1126 + $0x14] sm:$0xf]
        %v1486 = vld [vmem:[%s1126 + $0x18] sm:$0xf]
        %v1487 = vld [vmem:[%s1126 + $0x1c] sm:$0xf]
        %v1488 = vld [vmem:[%s1126 + $0x20] sm:$0xf]
        %v1489 = vld [vmem:[%s1126 + $0x24] sm:$0xf]
        %v1490 = vld [vmem:[%s1126 + $0x28] sm:$0xf]
        %v1491 = vld [vmem:[%s1126 + $0x2c] sm:$0xf]
        %v1492 = vld [vmem:[%s1126 + $0x30] sm:$0xf]
        %v1493 = vld [vmem:[%s1126 + $0x34] sm:$0xf]
        %v1494 = vld [vmem:[%s1126 + $0x38] sm:$0xf]
        %v1495 = vld [vmem:[%s1126 + $0x3c] sm:$0xf]
        %v1496 = vld [vmem:[%s1135] sm:$0x1]
        %v1498 = vperm.slane %v1496, 0
        %v1516 = vunpack.c.l.b16 %v1480
        %v1517 = vunpack.c.l.b16 %v1481
        %v1518 = vunpack.c.l.b16 %v1482
        %v1519 = vunpack.c.l.b16 %v1483
        %v1520 = vunpack.c.l.b16 %v1484
        %v1521 = vunpack.c.l.b16 %v1485
        %v1522 = vunpack.c.l.b16 %v1486
        %v1523 = vunpack.c.l.b16 %v1487
        %v1524 = vunpack.c.l.b16 %v1488
        %v1525 = vunpack.c.l.b16 %v1489
        %v1526 = vunpack.c.l.b16 %v1490
        %v1527 = vunpack.c.l.b16 %v1491
        %v1528 = vunpack.c.l.b16 %v1492
        %v1529 = vunpack.c.l.b16 %v1493
        %v1530 = vunpack.c.l.b16 %v1494
        %v1531 = vunpack.c.l.b16 %v1495
        %v1532 = vpack.c.b16 %v1517, %v1516
        %v1533 = vpack.c.b16 %v1519, %v1518
        %v1534 = vpack.c.b16 %v1521, %v1520
        %v1535 = vpack.c.b16 %v1523, %v1522
        %v1536 = vpack.c.b16 %v1525, %v1524
        %v1537 = vpack.c.b16 %v1527, %v1526
        %v1538 = vpack.c.b16 %v1529, %v1528
        %v1539 = vpack.c.b16 %v1531, %v1530
        %1548 = vmatpush.bf16.msra.mxu0 %v1539
        %1549 = vmatpush.bf16.msra.mxu0 %v1538
        %1550 = vmatpush.bf16.msra.mxu0 %v1537
        %1551 = vmatpush.bf16.msra.mxu0 %v1536
        %1552 = vmatpush.bf16.msra.mxu0 %v1535
        %1553 = vmatpush.bf16.msra.mxu0 %v1534
        %1554 = vmatpush.bf16.msra.mxu0 %v1533
        %1555 = vmatpush.bf16.msra.mxu0 %v1532
        %1556 = vmatmul.bf16.gmra.mxu0 %v1443
        %v1557 = vpop.f32.mrf.mxu0
        %v1558 = vadd.f32 %v1498, %v1557
        %v1559 = vpop.f32.mrf.mxu0
        %v1560 = vadd.f32 %v1498, %v1559
        %1561 = vdwg.mxu0
        %v1562 = vpack.c.bf16 %v1560, %v1558
        %v1567 = vunpack.c.l.b16 %v1456
        %v1568 = vunpack.c.l.b16 %v1457
        %v1569 = vunpack.c.l.b16 %v1458
        %v1570 = vunpack.c.l.b16 %v1459
        %v1571 = vpack.c.b16 %v1568, %v1567
        %v1572 = vpack.c.b16 %v1570, %v1569
        %vm1573 = vcmask 130048
        %v1575 = vsel %vm1573, %v1571, 0
        %v1578 = vsel %vm1573, %v1572, 0
        %1580 = vmatpush.bf16.msra.mxu0 0
        %1581 = vmatpush.bf16.msra.mxu0 0
        %1582 = vmatpush.bf16.msra.mxu0 0
        %1583 = vmatpush.bf16.msra.mxu0 0
        %1584 = vmatpush.bf16.msra.mxu0 0
        %1585 = vmatpush.bf16.msra.mxu0 0
        %1586 = vmatpush.bf16.msra.mxu0 0
        %1587 = vmatpush.bf16.msra.mxu0 %v1562
        %1588 = vmatmul.bf16.gmra.mxu0 %v1575
        %v1589 = vpop.f32.mrf.mxu0
        %v1590 = vadd.f32 0.0, %v1589
        %v1591 = vpop.f32.mrf.mxu0
        %v1592 = vadd.f32 0.0, %v1591
        %1593 = vmatmul.bf16.gmra.mxu0 %v1578
        %v1594 = vpop.f32.mrf.mxu0
        %v1595 = vadd.f32 0.0, %v1594
        %v1596 = vpop.f32.mrf.mxu0
        %v1597 = vadd.f32 0.0, %v1596
        %1598 = vdwg.mxu0
        %v1603 = vunpack.c.l.b16 %v1460
        %v1604 = vunpack.c.l.b16 %v1461
        %v1605 = vunpack.c.l.b16 %v1462
        %v1606 = vunpack.c.l.b16 %v1463
        %v1607 = vpack.c.b16 %v1604, %v1603
        %v1608 = vpack.c.b16 %v1606, %v1605
        %v1610 = vsel %vm1573, %v1607, 0
        %v1613 = vsel %vm1573, %v1608, 0
        %1615 = vmatpush.bf16.msra.mxu0 0
        %1616 = vmatpush.bf16.msra.mxu0 0
        %1617 = vmatpush.bf16.msra.mxu0 0
        %1618 = vmatpush.bf16.msra.mxu0 0
        %1619 = vmatpush.bf16.msra.mxu0 0
        %1620 = vmatpush.bf16.msra.mxu0 0
        %1621 = vmatpush.bf16.msra.mxu0 0
        %1622 = vmatpush.bf16.msra.mxu0 %v1443
        %1623 = vmatmul.bf16.gmra.mxu0 %v1610
        %v1624 = vpop.f32.mrf.mxu0
        %v1625 = vadd.f32 %v1450, %v1624
        %v1626 = vpop.f32.mrf.mxu0
        %v1627 = vadd.f32 %v1451, %v1626
        %1628 = vmatmul.bf16.gmra.mxu0 %v1613
        %v1629 = vpop.f32.mrf.mxu0
        %v1630 = vadd.f32 %v1452, %v1629
        %v1631 = vpop.f32.mrf.mxu0
        %v1632 = vadd.f32 %v1453, %v1631
        %1633 = vdwg.mxu0
        %v1634 = vld [vmem:[%s1145] sm:$0xff]
        %v1635 = vld [vmem:[%s1145 + $0x8] sm:$0xff]
        %v1636 = vld [vmem:[%s1145 + $0x10] sm:$0xff]
        %v1637 = vld [vmem:[%s1145 + $0x18] sm:$0xff]
        %v1638 = vld [vmem:[%s1145 + $0x20] sm:$0xff]
        %v1639 = vld [vmem:[%s1145 + $0x28] sm:$0xff]
        %v1640 = vld [vmem:[%s1145 + $0x30] sm:$0xff]
        %v1641 = vld [vmem:[%s1145 + $0x38] sm:$0xff]
        %v1642 = vld [vmem:[%s1145 + $0x40] sm:$0xff]
        %v1643 = vld [vmem:[%s1145 + $0x48] sm:$0xff]
        %v1644 = vld [vmem:[%s1145 + $0x50] sm:$0xff]
        %v1645 = vld [vmem:[%s1145 + $0x58] sm:$0xff]
        %v1646 = vld [vmem:[%s1145 + $0x60] sm:$0xff]
        %v1647 = vld [vmem:[%s1145 + $0x68] sm:$0xff]
        %v1648 = vld [vmem:[%s1145 + $0x70] sm:$0xff]
        %v1649 = vld [vmem:[%s1145 + $0x78] sm:$0xff]
        %v1650 = vpack.c.bf16 %v1627, %v1625
        %v1651 = vpack.c.bf16 %v1632, %v1630
        %v1652 = vld [vmem:[%s1155] sm:$0x3]
        %v1654 = vperm.slane %v1652, 0
        %v1655 = vperm.slane %v1652, 1
        %v1674 = vunpack.c.l.b16 %v1634
        %v1675 = vunpack.c.h.b16 %v1634
        %v1676 = vunpack.c.l.b16 %v1635
        %v1677 = vunpack.c.h.b16 %v1635
        %v1678 = vunpack.c.l.b16 %v1636
        %v1679 = vunpack.c.h.b16 %v1636
        %v1680 = vunpack.c.l.b16 %v1637
        %v1681 = vunpack.c.h.b16 %v1637
        %v1682 = vunpack.c.l.b16 %v1638
        %v1683 = vunpack.c.h.b16 %v1638
        %v1684 = vunpack.c.l.b16 %v1639
        %v1685 = vunpack.c.h.b16 %v1639
        %v1686 = vunpack.c.l.b16 %v1640
        %v1687 = vunpack.c.h.b16 %v1640
        %v1688 = vunpack.c.l.b16 %v1641
        %v1689 = vunpack.c.h.b16 %v1641
        %v1690 = vunpack.c.l.b16 %v1642
        %v1691 = vunpack.c.h.b16 %v1642
        %v1692 = vunpack.c.l.b16 %v1643
        %v1693 = vunpack.c.h.b16 %v1643
        %v1694 = vunpack.c.l.b16 %v1644
        %v1695 = vunpack.c.h.b16 %v1644
        %v1696 = vunpack.c.l.b16 %v1645
        %v1697 = vunpack.c.h.b16 %v1645
        %v1698 = vunpack.c.l.b16 %v1646
        %v1699 = vunpack.c.h.b16 %v1646
        %v1700 = vunpack.c.l.b16 %v1647
        %v1701 = vunpack.c.h.b16 %v1647
        %v1702 = vunpack.c.l.b16 %v1648
        %v1703 = vunpack.c.h.b16 %v1648
        %v1704 = vunpack.c.l.b16 %v1649
        %v1705 = vunpack.c.h.b16 %v1649
        %v1706 = vpack.c.b16 %v1676, %v1674
        %v1707 = vpack.c.b16 %v1677, %v1675
        %v1708 = vpack.c.b16 %v1680, %v1678
        %v1709 = vpack.c.b16 %v1681, %v1679
        %v1710 = vpack.c.b16 %v1684, %v1682
        %v1711 = vpack.c.b16 %v1685, %v1683
        %v1712 = vpack.c.b16 %v1688, %v1686
        %v1713 = vpack.c.b16 %v1689, %v1687
        %v1714 = vpack.c.b16 %v1692, %v1690
        %v1715 = vpack.c.b16 %v1693, %v1691
        %v1716 = vpack.c.b16 %v1696, %v1694
        %v1717 = vpack.c.b16 %v1697, %v1695
        %v1718 = vpack.c.b16 %v1700, %v1698
        %v1719 = vpack.c.b16 %v1701, %v1699
        %v1720 = vpack.c.b16 %v1704, %v1702
        %v1721 = vpack.c.b16 %v1705, %v1703
        %1738 = vmatpush.bf16.msra.mxu0 %v1720
        %1739 = vmatpush.bf16.msra.mxu0 %v1718
        %1740 = vmatpush.bf16.msra.mxu0 %v1716
        %1741 = vmatpush.bf16.msra.mxu0 %v1714
        %1742 = vmatpush.bf16.msra.mxu0 %v1712
        %1743 = vmatpush.bf16.msra.mxu0 %v1710
        %1744 = vmatpush.bf16.msra.mxu0 %v1708
        %1745 = vmatpush.bf16.msra.mxu0 %v1706
        %1746 = vmatmul.bf16.gmra.mxu0 %v1650
        %v1747 = vpop.f32.mrf.mxu0
        %v1748 = vadd.f32 %v1654, %v1747
        %v1749 = vpop.f32.mrf.mxu0
        %v1750 = vadd.f32 %v1654, %v1749
        %1751 = vmatmul.bf16.gmra.mxu0 %v1651
        %v1752 = vpop.f32.mrf.mxu0
        %v1753 = vadd.f32 %v1654, %v1752
        %v1754 = vpop.f32.mrf.mxu0
        %v1755 = vadd.f32 %v1654, %v1754
        %1756 = vdwg.mxu0
        %1757 = vmatpush.bf16.msra.mxu0 %v1721
        %1758 = vmatpush.bf16.msra.mxu0 %v1719
        %1759 = vmatpush.bf16.msra.mxu0 %v1717
        %1760 = vmatpush.bf16.msra.mxu0 %v1715
        %1761 = vmatpush.bf16.msra.mxu0 %v1713
        %1762 = vmatpush.bf16.msra.mxu0 %v1711
        %1763 = vmatpush.bf16.msra.mxu0 %v1709
        %1764 = vmatpush.bf16.msra.mxu0 %v1707
        %1765 = vmatmul.bf16.gmra.mxu0 %v1650
        %v1766 = vpop.f32.mrf.mxu0
        %v1767 = vadd.f32 %v1655, %v1766
        %v1768 = vpop.f32.mrf.mxu0
        %v1769 = vadd.f32 %v1655, %v1768
        %1770 = vmatmul.bf16.gmra.mxu0 %v1651
        %v1771 = vpop.f32.mrf.mxu0
        %v1772 = vadd.f32 %v1655, %v1771
        %v1773 = vpop.f32.mrf.mxu0
        %v1774 = vadd.f32 %v1655, %v1773
        %1775 = vdwg.mxu0
        %v1776 = vmul.f32 %v1590, %v1748
        %v1777 = vmul.f32 %v1592, %v1750
        %v1778 = vmul.f32 %v1595, %v1753
        %v1779 = vmul.f32 %v1597, %v1755
        %v1780 = vpack.c.bf16 %v1777, %v1776
        %v1781 = vpack.c.bf16 %v1779, %v1778
        %v1798 = vunpack.c.l.b16 %v1464
        %v1799 = vunpack.c.l.b16 %v1465
        %v1800 = vunpack.c.l.b16 %v1466
        %v1801 = vunpack.c.l.b16 %v1467
        %v1802 = vunpack.c.l.b16 %v1468
        %v1803 = vunpack.c.l.b16 %v1469
        %v1804 = vunpack.c.l.b16 %v1470
        %v1805 = vunpack.c.l.b16 %v1471
        %v1806 = vunpack.c.l.b16 %v1472
        %v1807 = vunpack.c.l.b16 %v1473
        %v1808 = vunpack.c.l.b16 %v1474
        %v1809 = vunpack.c.l.b16 %v1475
        %v1810 = vunpack.c.l.b16 %v1476
        %v1811 = vunpack.c.l.b16 %v1477
        %v1812 = vunpack.c.l.b16 %v1478
        %v1813 = vunpack.c.l.b16 %v1479
        %v1814 = vpack.c.b16 %v1799, %v1798
        %v1815 = vpack.c.b16 %v1801, %v1800
        %v1816 = vpack.c.b16 %v1803, %v1802
        %v1817 = vpack.c.b16 %v1805, %v1804
        %v1818 = vpack.c.b16 %v1807, %v1806
        %v1819 = vpack.c.b16 %v1809, %v1808
        %v1820 = vpack.c.b16 %v1811, %v1810
        %v1821 = vpack.c.b16 %v1813, %v1812
        %1830 = vmatpush.bf16.msra.mxu0 %v1821
        %1831 = vmatpush.bf16.msra.mxu0 %v1820
        %1832 = vmatpush.bf16.msra.mxu0 %v1819
        %1833 = vmatpush.bf16.msra.mxu0 %v1818
        %1834 = vmatpush.bf16.msra.mxu0 %v1817
        %1835 = vmatpush.bf16.msra.mxu0 %v1816
        %1836 = vmatpush.bf16.msra.mxu0 %v1815
        %1837 = vmatpush.bf16.msra.mxu0 %v1814
        %1838 = vmatmul.bf16.gmra.mxu0 %v1780
        %v1839 = vpop.f32.mrf.mxu0
        %v1840 = vadd.f32 0.0, %v1839
        %v1841 = vpop.f32.mrf.mxu0
        %v1842 = vadd.f32 0.0, %v1841
        %1843 = vmatmul.bf16.gmra.mxu0 %v1781
        %v1844 = vpop.f32.mrf.mxu0
        %v1845 = vadd.f32 0.0, %v1844
        %v1846 = vpop.f32.mrf.mxu0
        %v1847 = vadd.f32 0.0, %v1846
        %1848 = vdwg.mxu0
        %v1849 = vmul.f32 %v1840, 0.17677669
        %v1850 = vmul.f32 %v1842, 0.17677669
        %v1851 = vmul.f32 %v1845, 0.17677669
        %v1852 = vmul.f32 %v1847, 0.17677669
        %v1853 = vmax.f32 %v1849, %v1850
        %v1854 = vmax.f32 %v1851, %v1852
        %v1855 = vmax.f32 %v1853, %v1854
        %v1856 = vrot.slane %v1855, 4
        %v1857 = vmax.f32 %v1855, %v1856
        %v1858 = vrot.slane %v1857, 2
        %v1859 = vmax.f32 %v1857, %v1858
        %v1860 = vrot.slane %v1859, 1
        %v1861 = vmax.f32 %v1859, %v1860
        %v1862 = vsub.f32 %v1849, %v1861
        %v1863 = vsub.f32 %v1850, %v1861
        %v1864 = vsub.f32 %v1851, %v1861
        %v1865 = vsub.f32 %v1852, %v1861
        %v1866 = vmul.f32 %v1862, 1.442695
        %v1867 = vpow.pop %v1866
        %v1868 = vmul.f32 %v1863, 1.442695
        %v1869 = vpow.pop %v1868
        %v1870 = vmul.f32 %v1864, 1.442695
        %v1871 = vpow.pop %v1870
        %v1872 = vmul.f32 %v1865, 1.442695
        %v1873 = vpow.pop %v1872
        %v1874 = vpack.c.bf16 %v1869, %v1867
        %v1875 = vpack.c.bf16 %v1873, %v1871
        %v1876 = vmul.f32 %v1867, %v1767
        %v1877 = vmul.f32 %v1869, %v1769
        %v1878 = vmul.f32 %v1871, %v1772
        %v1879 = vmul.f32 %v1873, %v1774
        %v1880 = vpack.c.bf16 %v1877, %v1876
        %v1881 = vpack.c.bf16 %v1879, %v1878
        %v1884 = vunpack.c.l.b16 %v1454
        %v1885 = vunpack.c.l.b16 %v1455
        %v1886 = vpack.c.b16 %v1885, %v1884
        %vm1887 = vcmask 261120
        %v1889 = vsel %vm1887, %v1886, 0
        %1891 = vmatpush.bf16.msra.mxu0 0
        %1892 = vmatpush.bf16.msra.mxu0 0
        %1893 = vmatpush.bf16.msra.mxu0 0
        %1894 = vmatpush.bf16.msra.mxu0 0
        %1895 = vmatpush.bf16.msra.mxu0 0
        %1896 = vmatpush.bf16.msra.mxu0 0
        %1897 = vmatpush.bf16.msra.mxu0 %v1881
        %1898 = vmatpush.bf16.msra.mxu0 %v1880
        %1899 = vmatmul.bf16.gmra.mxu0 %v1889
        %v1900 = vpop.f32.mrf.mxu0
        %v1901 = vadd.f32 0.0, %v1900
        %v1902 = vpop.f32.mrf.mxu0
        %v1903 = vadd.f32 0.0, %v1902
        %1904 = vdwg.mxu0
        %1905 = vmatpush.bf16.msra.mxu0 0
        %1906 = vmatpush.bf16.msra.mxu0 0
        %1907 = vmatpush.bf16.msra.mxu0 0
        %1908 = vmatpush.bf16.msra.mxu0 0
        %1909 = vmatpush.bf16.msra.mxu0 0
        %1910 = vmatpush.bf16.msra.mxu0 0
        %1911 = vmatpush.bf16.msra.mxu0 %v1875
        %1912 = vmatpush.bf16.msra.mxu0 %v1874
        %1913 = vmatmul.bf16.gmra.mxu0 %v1889
        %v1914 = vpop.f32.mrf.mxu0
        %v1915 = vadd.f32 1e-16, %v1914
        %v1916 = vpop.f32.mrf.mxu0
        %v1917 = vadd.f32 1e-16, %v1916
        %1918 = vdwg.mxu0
        %v1919 = vrcp.pop %v1915
        %v1920 = vrcp.pop %v1917
        %v1921 = vmul.f32 %v1901, %v1919
        %v1922 = vmul.f32 %v1903, %v1920
        %v1923 = vld [vmem:[%s1165] sm:$0xf]
        %v1924 = vld [vmem:[%s1165 + $0x4] sm:$0xf]
        %v1925 = vld [vmem:[%s1165 + $0x8] sm:$0xf]
        %v1926 = vld [vmem:[%s1165 + $0xc] sm:$0xf]
        %v1927 = vld [vmem:[%s1165 + $0x10] sm:$0xf]
        %v1928 = vld [vmem:[%s1165 + $0x14] sm:$0xf]
        %v1929 = vld [vmem:[%s1165 + $0x18] sm:$0xf]
        %v1930 = vld [vmem:[%s1165 + $0x1c] sm:$0xf]
        %v1931 = vld [vmem:[%s1165 + $0x20] sm:$0xf]
        %v1932 = vld [vmem:[%s1165 + $0x24] sm:$0xf]
        %v1933 = vld [vmem:[%s1165 + $0x28] sm:$0xf]
        %v1934 = vld [vmem:[%s1165 + $0x2c] sm:$0xf]
        %v1935 = vld [vmem:[%s1165 + $0x30] sm:$0xf]
        %v1936 = vld [vmem:[%s1165 + $0x34] sm:$0xf]
        %v1937 = vld [vmem:[%s1165 + $0x38] sm:$0xf]
        %v1938 = vld [vmem:[%s1165 + $0x3c] sm:$0xf]
        %v1939 = vpack.c.bf16 %v1922, %v1921
        %v1940 = vld [vmem:[%s1174] sm:$0x1]
        %v1942 = vperm.slane %v1940, 0
        %v1960 = vunpack.c.l.b16 %v1923
        %v1961 = vunpack.c.l.b16 %v1924
        %v1962 = vunpack.c.l.b16 %v1925
        %v1963 = vunpack.c.l.b16 %v1926
        %v1964 = vunpack.c.l.b16 %v1927
        %v1965 = vunpack.c.l.b16 %v1928
        %v1966 = vunpack.c.l.b16 %v1929
        %v1967 = vunpack.c.l.b16 %v1930
        %v1968 = vunpack.c.l.b16 %v1931
        %v1969 = vunpack.c.l.b16 %v1932
        %v1970 = vunpack.c.l.b16 %v1933
        %v1971 = vunpack.c.l.b16 %v1934
        %v1972 = vunpack.c.l.b16 %v1935
        %v1973 = vunpack.c.l.b16 %v1936
        %v1974 = vunpack.c.l.b16 %v1937
        %v1975 = vunpack.c.l.b16 %v1938
        %v1976 = vpack.c.b16 %v1961, %v1960
        %v1977 = vpack.c.b16 %v1963, %v1962
        %v1978 = vpack.c.b16 %v1965, %v1964
        %v1979 = vpack.c.b16 %v1967, %v1966
        %v1980 = vpack.c.b16 %v1969, %v1968
        %v1981 = vpack.c.b16 %v1971, %v1970
        %v1982 = vpack.c.b16 %v1973, %v1972
        %v1983 = vpack.c.b16 %v1975, %v1974
        %1992 = vmatpush.bf16.msra.mxu0 %v1983
        %1993 = vmatpush.bf16.msra.mxu0 %v1982
        %1994 = vmatpush.bf16.msra.mxu0 %v1981
        %1995 = vmatpush.bf16.msra.mxu0 %v1980
        %1996 = vmatpush.bf16.msra.mxu0 %v1979
        %1997 = vmatpush.bf16.msra.mxu0 %v1978
        %1998 = vmatpush.bf16.msra.mxu0 %v1977
        %1999 = vmatpush.bf16.msra.mxu0 %v1976
        %2000 = vmatmul.bf16.gmra.mxu0 %v1939
        %v2001 = vpop.f32.mrf.mxu0
        %v2002 = vadd.f32 %v1942, %v2001
        %v2003 = vpop.f32.mrf.mxu0
        %v2004 = vadd.f32 %v1942, %v2003
        %2005 = vdwg.mxu0
        %v2006 = vadd.f32 %v2002, %v1441
        %v2007 = vadd.f32 %v2004, %v1442
        %v2008 = vld [vmem:[%s1183] sm:$0x1]
        %v2009 = vld [vmem:[%s1192] sm:$0x1]
        %2010 = vadd.xlane.f32.xlu0 %v2006
        %v2011 = vpop.xlane.xlu0 %2010
        %2012 = vadd.xlane.f32.xlu0 %v2007
        %v2013 = vpop.xlane.xlu0 %2012
        %v2014 = vrcp.pop 128.0
        %v2015 = vmul.f32 128.0, %v2014
        %v2016 = vsub.f32 1.0, %v2015
        %v2017 = vmul.f32 %v2014, %v2016
        %v2018 = vadd.f32 %v2014, %v2017
        %vm2019 = vweird.f32 %v2014
        %v2020 = vsel %vm2019, %v2014, %v2018
        %v2021 = vmul.f32 %v2011, %v2020
        %v2022 = vmul.f32 %v2013, %v2020
        %v2023 = vsub.f32 %v2006, %v2021
        %v2024 = vsub.f32 %v2007, %v2022
        %v2025 = vmul.f32 %v2023, %v2023
        %v2026 = vmul.f32 %v2024, %v2024
        %2027 = vadd.xlane.f32.xlu0 %v2025
        %v2028 = vpop.xlane.xlu0 %2027
        %2029 = vadd.xlane.f32.xlu0 %v2026
        %v2030 = vpop.xlane.xlu0 %2029
        %v2031 = vmul.f32 %v2028, %v2020
        %v2032 = vmul.f32 %v2030, %v2020
        %v2033 = vadd.f32 %v2031, 1e-12
        %v2034 = vadd.f32 %v2032, 1e-12
        %v2035 = vrsqrt.pop %v2033
        %v2036 = vmul.f32 %v2035, %v2033
        %v2037 = vmul.f32 %v2036, %v2035
        %v2038 = vmul.f32 0.5, %v2037
        %v2039 = vsub.f32 1.5, %v2038
        %v2040 = vmul.f32 %v2035, %v2039
        %vm2041 = vweird.f32 %v2033
        %vm2042 = vweird.f32 %v2035
        %vm2043 = vmor %vm2041, %vm2042
        %v2044 = vsel %vm2043, %v2035, %v2040
        %v2045 = vrsqrt.pop %v2034
        %v2046 = vmul.f32 %v2045, %v2034
        %v2047 = vmul.f32 %v2046, %v2045
        %v2048 = vmul.f32 0.5, %v2047
        %v2049 = vsub.f32 1.5, %v2048
        %v2050 = vmul.f32 %v2045, %v2049
        %vm2051 = vweird.f32 %v2034
        %vm2052 = vweird.f32 %v2045
        %vm2053 = vmor %vm2051, %vm2052
        %v2054 = vsel %vm2053, %v2045, %v2050
        %v2055 = vmul.f32 %v2023, %v2044
        %v2056 = vmul.f32 %v2024, %v2054
        %v2058 = vperm.slane %v2008, 0
        %v2060 = vmul.f32 %v2058, %v2055
        %v2061 = vmul.f32 %v2058, %v2056
        %v2063 = vperm.slane %v2009, 0
        %v2065 = vadd.f32 %v2060, %v2063
        %v2066 = vadd.f32 %v2061, %v2063
        %v2067 = vld [vmem:[%s1202] sm:$0xff]
        %v2068 = vld [vmem:[%s1202 + $0x8] sm:$0xff]
        %v2069 = vld [vmem:[%s1202 + $0x10] sm:$0xff]
        %v2070 = vld [vmem:[%s1202 + $0x18] sm:$0xff]
        %v2071 = vld [vmem:[%s1202 + $0x20] sm:$0xff]
        %v2072 = vld [vmem:[%s1202 + $0x28] sm:$0xff]
        %v2073 = vld [vmem:[%s1202 + $0x30] sm:$0xff]
        %v2074 = vld [vmem:[%s1202 + $0x38] sm:$0xff]
        %v2075 = vld [vmem:[%s1202 + $0x40] sm:$0xff]
        %v2076 = vld [vmem:[%s1202 + $0x48] sm:$0xff]
        %v2077 = vld [vmem:[%s1202 + $0x50] sm:$0xff]
        %v2078 = vld [vmem:[%s1202 + $0x58] sm:$0xff]
        %v2079 = vld [vmem:[%s1202 + $0x60] sm:$0xff]
        %v2080 = vld [vmem:[%s1202 + $0x68] sm:$0xff]
        %v2081 = vld [vmem:[%s1202 + $0x70] sm:$0xff]
        %v2082 = vld [vmem:[%s1202 + $0x78] sm:$0xff]
        %v2083 = vld [vmem:[%s1202 + $0x80] sm:$0xff]
        %v2084 = vld [vmem:[%s1202 + $0x88] sm:$0xff]
        %v2085 = vld [vmem:[%s1202 + $0x90] sm:$0xff]
        %v2086 = vld [vmem:[%s1202 + $0x98] sm:$0xff]
        %v2087 = vld [vmem:[%s1202 + $0xa0] sm:$0xff]
        %v2088 = vld [vmem:[%s1202 + $0xa8] sm:$0xff]
        %v2089 = vld [vmem:[%s1202 + $0xb0] sm:$0xff]
        %v2090 = vld [vmem:[%s1202 + $0xb8] sm:$0xff]
        %v2091 = vld [vmem:[%s1202 + $0xc0] sm:$0xff]
        %v2092 = vld [vmem:[%s1202 + $0xc8] sm:$0xff]
        %v2093 = vld [vmem:[%s1202 + $0xd0] sm:$0xff]
        %v2094 = vld [vmem:[%s1202 + $0xd8] sm:$0xff]
        %v2095 = vld [vmem:[%s1202 + $0xe0] sm:$0xff]
        %v2096 = vld [vmem:[%s1202 + $0xe8] sm:$0xff]
        %v2097 = vld [vmem:[%s1202 + $0xf0] sm:$0xff]
        %v2098 = vld [vmem:[%s1202 + $0xf8] sm:$0xff]
        %v2099 = vpack.c.bf16 %v2066, %v2065
        %v2100 = vld [vmem:[%s1408] sm:$0xf]
        %v2102 = vperm.slane %v2100, 0
        %v2103 = vperm.slane %v2100, 1
        %v2104 = vperm.slane %v2100, 2
        %v2105 = vperm.slane %v2100, 3
        %v2142 = vunpack.c.l.b16 %v2067
        %v2143 = vunpack.c.h.b16 %v2067
        %v2144 = vunpack.c.l.b16 %v2068
        %v2145 = vunpack.c.h.b16 %v2068
        %v2146 = vunpack.c.l.b16 %v2069
        %v2147 = vunpack.c.h.b16 %v2069
        %v2148 = vunpack.c.l.b16 %v2070
        %v2149 = vunpack.c.h.b16 %v2070
        %v2150 = vunpack.c.l.b16 %v2071
        %v2151 = vunpack.c.h.b16 %v2071
        %v2152 = vunpack.c.l.b16 %v2072
        %v2153 = vunpack.c.h.b16 %v2072
        %v2154 = vunpack.c.l.b16 %v2073
        %v2155 = vunpack.c.h.b16 %v2073
        %v2156 = vunpack.c.l.b16 %v2074
        %v2157 = vunpack.c.h.b16 %v2074
        %v2158 = vunpack.c.l.b16 %v2075
        %v2159 = vunpack.c.h.b16 %v2075
        %v2160 = vunpack.c.l.b16 %v2076
        %v2161 = vunpack.c.h.b16 %v2076
        %v2162 = vunpack.c.l.b16 %v2077
        %v2163 = vunpack.c.h.b16 %v2077
        %v2164 = vunpack.c.l.b16 %v2078
        %v2165 = vunpack.c.h.b16 %v2078
        %v2166 = vunpack.c.l.b16 %v2079
        %v2167 = vunpack.c.h.b16 %v2079
        %v2168 = vunpack.c.l.b16 %v2080
        %v2169 = vunpack.c.h.b16 %v2080
        %v2170 = vunpack.c.l.b16 %v2081
        %v2171 = vunpack.c.h.b16 %v2081
        %v2172 = vunpack.c.l.b16 %v2082
        %v2173 = vunpack.c.h.b16 %v2082
        %v2174 = vunpack.c.l.b16 %v2083
        %v2175 = vunpack.c.h.b16 %v2083
        %v2176 = vunpack.c.l.b16 %v2084
        %v2177 = vunpack.c.h.b16 %v2084
        %v2178 = vunpack.c.l.b16 %v2085
        %v2179 = vunpack.c.h.b16 %v2085
        %v2180 = vunpack.c.l.b16 %v2086
        %v2181 = vunpack.c.h.b16 %v2086
        %v2182 = vunpack.c.l.b16 %v2087
        %v2183 = vunpack.c.h.b16 %v2087
        %v2184 = vunpack.c.l.b16 %v2088
        %v2185 = vunpack.c.h.b16 %v2088
        %v2186 = vunpack.c.l.b16 %v2089
        %v2187 = vunpack.c.h.b16 %v2089
        %v2188 = vunpack.c.l.b16 %v2090
        %v2189 = vunpack.c.h.b16 %v2090
        %v2190 = vunpack.c.l.b16 %v2091
        %v2191 = vunpack.c.h.b16 %v2091
        %v2192 = vunpack.c.l.b16 %v2092
        %v2193 = vunpack.c.h.b16 %v2092
        %v2194 = vunpack.c.l.b16 %v2093
        %v2195 = vunpack.c.h.b16 %v2093
        %v2196 = vunpack.c.l.b16 %v2094
        %v2197 = vunpack.c.h.b16 %v2094
        %v2198 = vunpack.c.l.b16 %v2095
        %v2199 = vunpack.c.h.b16 %v2095
        %v2200 = vunpack.c.l.b16 %v2096
        %v2201 = vunpack.c.h.b16 %v2096
        %v2202 = vunpack.c.l.b16 %v2097
        %v2203 = vunpack.c.h.b16 %v2097
        %v2204 = vunpack.c.l.b16 %v2098
        %v2205 = vunpack.c.h.b16 %v2098
        %v2206 = vpack.c.b16 %v2146, %v2142
        %v2207 = vpack.c.b16 %v2147, %v2143
        %v2208 = vpack.c.b16 %v2148, %v2144
        %v2209 = vpack.c.b16 %v2149, %v2145
        %v2210 = vpack.c.b16 %v2154, %v2150
        %v2211 = vpack.c.b16 %v2155, %v2151
        %v2212 = vpack.c.b16 %v2156, %v2152
        %v2213 = vpack.c.b16 %v2157, %v2153
        %v2214 = vpack.c.b16 %v2162, %v2158
        %v2215 = vpack.c.b16 %v2163, %v2159
        %v2216 = vpack.c.b16 %v2164, %v2160
        %v2217 = vpack.c.b16 %v2165, %v2161
        %v2218 = vpack.c.b16 %v2170, %v2166
        %v2219 = vpack.c.b16 %v2171, %v2167
        %v2220 = vpack.c.b16 %v2172, %v2168
        %v2221 = vpack.c.b16 %v2173, %v2169
        %v2222 = vpack.c.b16 %v2178, %v2174
        %v2223 = vpack.c.b16 %v2179, %v2175
        %v2224 = vpack.c.b16 %v2180, %v2176
        %v2225 = vpack.c.b16 %v2181, %v2177
        %v2226 = vpack.c.b16 %v2186, %v2182
        %v2227 = vpack.c.b16 %v2187, %v2183
        %v2228 = vpack.c.b16 %v2188, %v2184
        %v2229 = vpack.c.b16 %v2189, %v2185
        %v2230 = vpack.c.b16 %v2194, %v2190
        %v2231 = vpack.c.b16 %v2195, %v2191
        %v2232 = vpack.c.b16 %v2196, %v2192
        %v2233 = vpack.c.b16 %v2197, %v2193
        %v2234 = vpack.c.b16 %v2202, %v2198
        %v2235 = vpack.c.b16 %v2203, %v2199
        %v2236 = vpack.c.b16 %v2204, %v2200
        %v2237 = vpack.c.b16 %v2205, %v2201
        %2270 = vmatpush.bf16.msra.mxu0 %v2234
        %2271 = vmatpush.bf16.msra.mxu0 %v2230
        %2272 = vmatpush.bf16.msra.mxu0 %v2226
        %2273 = vmatpush.bf16.msra.mxu0 %v2222
        %2274 = vmatpush.bf16.msra.mxu0 %v2218
        %2275 = vmatpush.bf16.msra.mxu0 %v2214
        %2276 = vmatpush.bf16.msra.mxu0 %v2210
        %2277 = vmatpush.bf16.msra.mxu0 %v2206
        %2278 = vmatmul.bf16.gmra.mxu0 %v2099
        %v2279 = vpop.f32.mrf.mxu0
        %v2280 = vadd.f32 %v2102, %v2279
        %v2281 = vpop.f32.mrf.mxu0
        %v2282 = vadd.f32 %v2102, %v2281
        %2283 = vdwg.mxu0
        %2284 = vmatpush.bf16.msra.mxu0 %v2235
        %2285 = vmatpush.bf16.msra.mxu0 %v2231
        %2286 = vmatpush.bf16.msra.mxu0 %v2227
        %2287 = vmatpush.bf16.msra.mxu0 %v2223
        %2288 = vmatpush.bf16.msra.mxu0 %v2219
        %2289 = vmatpush.bf16.msra.mxu0 %v2215
        %2290 = vmatpush.bf16.msra.mxu0 %v2211
        %2291 = vmatpush.bf16.msra.mxu0 %v2207
        %2292 = vmatmul.bf16.gmra.mxu0 %v2099
        %v2293 = vpop.f32.mrf.mxu0
        %v2294 = vadd.f32 %v2103, %v2293
        %v2295 = vpop.f32.mrf.mxu0
        %v2296 = vadd.f32 %v2103, %v2295
        %2297 = vdwg.mxu0
        %2298 = vmatpush.bf16.msra.mxu0 %v2236
        %2299 = vmatpush.bf16.msra.mxu0 %v2232
        %2300 = vmatpush.bf16.msra.mxu0 %v2228
        %2301 = vmatpush.bf16.msra.mxu0 %v2224
        %2302 = vmatpush.bf16.msra.mxu0 %v2220
        %2303 = vmatpush.bf16.msra.mxu0 %v2216
        %2304 = vmatpush.bf16.msra.mxu0 %v2212
        %2305 = vmatpush.bf16.msra.mxu0 %v2208
        %2306 = vmatmul.bf16.gmra.mxu0 %v2099
        %v2307 = vpop.f32.mrf.mxu0
        %v2308 = vadd.f32 %v2104, %v2307
        %v2309 = vpop.f32.mrf.mxu0
        %v2310 = vadd.f32 %v2104, %v2309
        %2311 = vdwg.mxu0
        %2312 = vmatpush.bf16.msra.mxu0 %v2237
        %2313 = vmatpush.bf16.msra.mxu0 %v2233
        %2314 = vmatpush.bf16.msra.mxu0 %v2229
        %2315 = vmatpush.bf16.msra.mxu0 %v2225
        %2316 = vmatpush.bf16.msra.mxu0 %v2221
        %2317 = vmatpush.bf16.msra.mxu0 %v2217
        %2318 = vmatpush.bf16.msra.mxu0 %v2213
        %2319 = vmatpush.bf16.msra.mxu0 %v2209
        %2320 = vmatmul.bf16.gmra.mxu0 %v2099
        %v2321 = vpop.f32.mrf.mxu0
        %v2322 = vadd.f32 %v2105, %v2321
        %v2323 = vpop.f32.mrf.mxu0
        %v2324 = vadd.f32 %v2105, %v2323
        %2325 = vdwg.mxu0
        %v2326 = vmul.f32 %v2280, 0.5
        %v2327 = vmul.f32 %v2294, 0.5
        %v2328 = vmul.f32 %v2308, 0.5
        %v2329 = vmul.f32 %v2322, 0.5
        %v2330 = vmul.f32 %v2282, 0.5
        %v2331 = vmul.f32 %v2296, 0.5
        %v2332 = vmul.f32 %v2310, 0.5
        %v2333 = vmul.f32 %v2324, 0.5
        %v2334 = vmul.f32 %v2280, 0.70710856
        %v2335 = vmul.f32 %v2294, 0.70710856
        %v2336 = vmul.f32 %v2308, 0.70710856
        %v2337 = vmul.f32 %v2322, 0.70710856
        %v2338 = vmul.f32 %v2282, 0.70710856
        %v2339 = vmul.f32 %v2296, 0.70710856
        %v2340 = vmul.f32 %v2310, 0.70710856
        %v2341 = vmul.f32 %v2324, 0.70710856
        %v2342 = vand.u32 2147483647, %v2334
        %v2343 = vand.u32 2147483647, %v2335
        %v2344 = vand.u32 2147483647, %v2336
        %v2345 = vand.u32 2147483647, %v2337
        %v2346 = vand.u32 2147483647, %v2338
        %v2347 = vand.u32 2147483647, %v2339
        %v2348 = vand.u32 2147483647, %v2340
        %v2349 = vand.u32 2147483647, %v2341
        %v2350 = vmul.f32 %v2342, 0.3275911
        %v2351 = vmul.f32 %v2343, 0.3275911
        %v2352 = vmul.f32 %v2344, 0.3275911
        %v2353 = vmul.f32 %v2345, 0.3275911
        %v2354 = vmul.f32 %v2346, 0.3275911
        %v2355 = vmul.f32 %v2347, 0.3275911
        %v2356 = vmul.f32 %v2348, 0.3275911
        %v2357 = vmul.f32 %v2349, 0.3275911
        %v2358 = vadd.f32 %v2350, 1.0
        %v2359 = vadd.f32 %v2351, 1.0
        %v2360 = vadd.f32 %v2352, 1.0
        %v2361 = vadd.f32 %v2353, 1.0
        %v2362 = vadd.f32 %v2354, 1.0
        %v2363 = vadd.f32 %v2355, 1.0
        %v2364 = vadd.f32 %v2356, 1.0
        %v2365 = vadd.f32 %v2357, 1.0
        %v2366 = vrcp.pop %v2358
        %v2367 = vrcp.pop %v2359
        %v2368 = vrcp.pop %v2360
        %v2369 = vrcp.pop %v2361
        %v2370 = vrcp.pop %v2362
        %v2371 = vrcp.pop %v2363
        %v2372 = vrcp.pop %v2364
        %v2373 = vrcp.pop %v2365
        %v2374 = vmul.f32 %v2366, 1.0614054
        %v2375 = vmul.f32 %v2367, 1.0614054
        %v2376 = vmul.f32 %v2368, 1.0614054
        %v2377 = vmul.f32 %v2369, 1.0614054
        %v2378 = vmul.f32 %v2370, 1.0614054
        %v2379 = vmul.f32 %v2371, 1.0614054
        %v2380 = vmul.f32 %v2372, 1.0614054
        %v2381 = vmul.f32 %v2373, 1.0614054
        %v2382 = vadd.f32 %v2374, -1.4531521
        %v2383 = vadd.f32 %v2375, -1.4531521
        %v2384 = vadd.f32 %v2376, -1.4531521
        %v2385 = vadd.f32 %v2377, -1.4531521
        %v2386 = vadd.f32 %v2378, -1.4531521
        %v2387 = vadd.f32 %v2379, -1.4531521
        %v2388 = vadd.f32 %v2380, -1.4531521
        %v2389 = vadd.f32 %v2381, -1.4531521
        %v2390 = vmul.f32 %v2382, %v2366
        %v2391 = vmul.f32 %v2383, %v2367
        %v2392 = vmul.f32 %v2384, %v2368
        %v2393 = vmul.f32 %v2385, %v2369
        %v2394 = vmul.f32 %v2386, %v2370
        %v2395 = vmul.f32 %v2387, %v2371
        %v2396 = vmul.f32 %v2388, %v2372
        %v2397 = vmul.f32 %v2389, %v2373
        %v2398 = vadd.f32 %v2390, 1.4214138
        %v2399 = vadd.f32 %v2391, 1.4214138
        %v2400 = vadd.f32 %v2392, 1.4214138
        %v2401 = vadd.f32 %v2393, 1.4214138
        %v2402 = vadd.f32 %v2394, 1.4214138
        %v2403 = vadd.f32 %v2395, 1.4214138
        %v2404 = vadd.f32 %v2396, 1.4214138
        %v2405 = vadd.f32 %v2397, 1.4214138
        %v2406 = vmul.f32 %v2398, %v2366
        %v2407 = vmul.f32 %v2399, %v2367
        %v2408 = vmul.f32 %v2400, %v2368
        %v2409 = vmul.f32 %v2401, %v2369
        %v2410 = vmul.f32 %v2402, %v2370
        %v2411 = vmul.f32 %v2403, %v2371
        %v2412 = vmul.f32 %v2404, %v2372
        %v2413 = vmul.f32 %v2405, %v2373
        %v2414 = vadd.f32 %v2406, -0.28449672
        %v2415 = vadd.f32 %v2407, -0.28449672
        %v2416 = vadd.f32 %v2408, -0.28449672
        %v2417 = vadd.f32 %v2409, -0.28449672
        %v2418 = vadd.f32 %v2410, -0.28449672
        %v2419 = vadd.f32 %v2411, -0.28449672
        %v2420 = vadd.f32 %v2412, -0.28449672
        %v2421 = vadd.f32 %v2413, -0.28449672
        %v2422 = vmul.f32 %v2414, %v2366
        %v2423 = vmul.f32 %v2415, %v2367
        %v2424 = vmul.f32 %v2416, %v2368
        %v2425 = vmul.f32 %v2417, %v2369
        %v2426 = vmul.f32 %v2418, %v2370
        %v2427 = vmul.f32 %v2419, %v2371
        %v2428 = vmul.f32 %v2420, %v2372
        %v2429 = vmul.f32 %v2421, %v2373
        %v2430 = vadd.f32 %v2422, 0.2548296
        %v2431 = vadd.f32 %v2423, 0.2548296
        %v2432 = vadd.f32 %v2424, 0.2548296
        %v2433 = vadd.f32 %v2425, 0.2548296
        %v2434 = vadd.f32 %v2426, 0.2548296
        %v2435 = vadd.f32 %v2427, 0.2548296
        %v2436 = vadd.f32 %v2428, 0.2548296
        %v2437 = vadd.f32 %v2429, 0.2548296
        %v2438 = vmul.f32 %v2430, %v2366
        %v2439 = vmul.f32 %v2431, %v2367
        %v2440 = vmul.f32 %v2432, %v2368
        %v2441 = vmul.f32 %v2433, %v2369
        %v2442 = vmul.f32 %v2434, %v2370
        %v2443 = vmul.f32 %v2435, %v2371
        %v2444 = vmul.f32 %v2436, %v2372
        %v2445 = vmul.f32 %v2437, %v2373
        %v2446 = vsub.f32 0.0, %v2342
        %v2447 = vsub.f32 0.0, %v2343
        %v2448 = vsub.f32 0.0, %v2344
        %v2449 = vsub.f32 0.0, %v2345
        %v2450 = vsub.f32 0.0, %v2346
        %v2451 = vsub.f32 0.0, %v2347
        %v2452 = vsub.f32 0.0, %v2348
        %v2453 = vsub.f32 0.0, %v2349
        %v2454 = vmul.f32 %v2446, %v2342
        %v2455 = vmul.f32 %v2447, %v2343
        %v2456 = vmul.f32 %v2448, %v2344
        %v2457 = vmul.f32 %v2449, %v2345
        %v2458 = vmul.f32 %v2450, %v2346
        %v2459 = vmul.f32 %v2451, %v2347
        %v2460 = vmul.f32 %v2452, %v2348
        %v2461 = vmul.f32 %v2453, %v2349
        %v2462 = vmul.f32 %v2454, 1.442695
        %v2463 = vpow.pop %v2462
        %v2464 = vmul.f32 %v2455, 1.442695
        %v2465 = vpow.pop %v2464
        %v2466 = vmul.f32 %v2456, 1.442695
        %v2467 = vpow.pop %v2466
        %v2468 = vmul.f32 %v2457, 1.442695
        %v2469 = vpow.pop %v2468
        %v2470 = vmul.f32 %v2458, 1.442695
        %v2471 = vpow.pop %v2470
        %v2472 = vmul.f32 %v2459, 1.442695
        %v2473 = vpow.pop %v2472
        %v2474 = vmul.f32 %v2460, 1.442695
        %v2475 = vpow.pop %v2474
        %v2476 = vmul.f32 %v2461, 1.442695
        %v2477 = vpow.pop %v2476
        %v2478 = vmul.f32 %v2438, %v2463
        %v2479 = vmul.f32 %v2439, %v2465
        %v2480 = vmul.f32 %v2440, %v2467
        %v2481 = vmul.f32 %v2441, %v2469
        %v2482 = vmul.f32 %v2442, %v2471
        %v2483 = vmul.f32 %v2443, %v2473
        %v2484 = vmul.f32 %v2444, %v2475
        %v2485 = vmul.f32 %v2445, %v2477
        %v2486 = vsub.f32 1.0, %v2478
        %v2487 = vsub.f32 1.0, %v2479
        %v2488 = vsub.f32 1.0, %v2480
        %v2489 = vsub.f32 1.0, %v2481
        %v2490 = vsub.f32 1.0, %v2482
        %v2491 = vsub.f32 1.0, %v2483
        %v2492 = vsub.f32 1.0, %v2484
        %v2493 = vsub.f32 1.0, %v2485
        %vm2494 = vcmp.ge.f32.partialorder %v2334, 0.0
        %vm2495 = vcmp.ge.f32.partialorder %v2335, 0.0
        %vm2496 = vcmp.ge.f32.partialorder %v2336, 0.0
        %vm2497 = vcmp.ge.f32.partialorder %v2337, 0.0
        %vm2498 = vcmp.ge.f32.partialorder %v2338, 0.0
        %vm2499 = vcmp.ge.f32.partialorder %v2339, 0.0
        %vm2500 = vcmp.ge.f32.partialorder %v2340, 0.0
        %vm2501 = vcmp.ge.f32.partialorder %v2341, 0.0
        %v2502 = vsub.f32 0.0, %v2486
        %v2503 = vsub.f32 0.0, %v2487
        %v2504 = vsub.f32 0.0, %v2488
        %v2505 = vsub.f32 0.0, %v2489
        %v2506 = vsub.f32 0.0, %v2490
        %v2507 = vsub.f32 0.0, %v2491
        %v2508 = vsub.f32 0.0, %v2492
        %v2509 = vsub.f32 0.0, %v2493
        %v2510 = vsel %vm2494, %v2486, %v2502
        %v2511 = vsel %vm2495, %v2487, %v2503
        %v2512 = vsel %vm2496, %v2488, %v2504
        %v2513 = vsel %vm2497, %v2489, %v2505
        %v2514 = vsel %vm2498, %v2490, %v2506
        %v2515 = vsel %vm2499, %v2491, %v2507
        %v2516 = vsel %vm2500, %v2492, %v2508
        %v2517 = vsel %vm2501, %v2493, %v2509
        %v2518 = vadd.f32 %v2510, 1.0
        %v2519 = vadd.f32 %v2511, 1.0
        %v2520 = vadd.f32 %v2512, 1.0
        %v2521 = vadd.f32 %v2513, 1.0
        %v2522 = vadd.f32 %v2514, 1.0
        %v2523 = vadd.f32 %v2515, 1.0
        %v2524 = vadd.f32 %v2516, 1.0
        %v2525 = vadd.f32 %v2517, 1.0
        %v2526 = vmul.f32 %v2326, %v2518
        %v2527 = vmul.f32 %v2327, %v2519
        %v2528 = vmul.f32 %v2328, %v2520
        %v2529 = vmul.f32 %v2329, %v2521
        %v2530 = vmul.f32 %v2330, %v2522
        %v2531 = vmul.f32 %v2331, %v2523
        %v2532 = vmul.f32 %v2332, %v2524
        %v2533 = vmul.f32 %v2333, %v2525
        %v2534 = vld [vmem:[%s1212] sm:$0xf]
        %v2535 = vld [vmem:[%s1212 + $0x4] sm:$0xf]
        %v2536 = vld [vmem:[%s1212 + $0x8] sm:$0xf]
        %v2537 = vld [vmem:[%s1212 + $0xc] sm:$0xf]
        %v2538 = vld [vmem:[%s1212 + $0x10] sm:$0xf]
        %v2539 = vld [vmem:[%s1212 + $0x14] sm:$0xf]
        %v2540 = vld [vmem:[%s1212 + $0x18] sm:$0xf]
        %v2541 = vld [vmem:[%s1212 + $0x1c] sm:$0xf]
        %v2542 = vld [vmem:[%s1212 + $0x20] sm:$0xf]
        %v2543 = vld [vmem:[%s1212 + $0x24] sm:$0xf]
        %v2544 = vld [vmem:[%s1212 + $0x28] sm:$0xf]
        %v2545 = vld [vmem:[%s1212 + $0x2c] sm:$0xf]
        %v2546 = vld [vmem:[%s1212 + $0x30] sm:$0xf]
        %v2547 = vld [vmem:[%s1212 + $0x34] sm:$0xf]
        %v2548 = vld [vmem:[%s1212 + $0x38] sm:$0xf]
        %v2549 = vld [vmem:[%s1212 + $0x3c] sm:$0xf]
        %v2550 = vld [vmem:[%s1212 + $0x40] sm:$0xf]
        %v2551 = vld [vmem:[%s1212 + $0x44] sm:$0xf]
        %v2552 = vld [vmem:[%s1212 + $0x48] sm:$0xf]
        %v2553 = vld [vmem:[%s1212 + $0x4c] sm:$0xf]
        %v2554 = vld [vmem:[%s1212 + $0x50] sm:$0xf]
        %v2555 = vld [vmem:[%s1212 + $0x54] sm:$0xf]
        %v2556 = vld [vmem:[%s1212 + $0x58] sm:$0xf]
        %v2557 = vld [vmem:[%s1212 + $0x5c] sm:$0xf]
        %v2558 = vld [vmem:[%s1212 + $0x60] sm:$0xf]
        %v2559 = vld [vmem:[%s1212 + $0x64] sm:$0xf]
        %v2560 = vld [vmem:[%s1212 + $0x68] sm:$0xf]
        %v2561 = vld [vmem:[%s1212 + $0x6c] sm:$0xf]
        %v2562 = vld [vmem:[%s1212 + $0x70] sm:$0xf]
        %v2563 = vld [vmem:[%s1212 + $0x74] sm:$0xf]
        %v2564 = vld [vmem:[%s1212 + $0x78] sm:$0xf]
        %v2565 = vld [vmem:[%s1212 + $0x7c] sm:$0xf]
        %v2566 = vld [vmem:[%s1212 + $0x80] sm:$0xf]
        %v2567 = vld [vmem:[%s1212 + $0x84] sm:$0xf]
        %v2568 = vld [vmem:[%s1212 + $0x88] sm:$0xf]
        %v2569 = vld [vmem:[%s1212 + $0x8c] sm:$0xf]
        %v2570 = vld [vmem:[%s1212 + $0x90] sm:$0xf]
        %v2571 = vld [vmem:[%s1212 + $0x94] sm:$0xf]
        %v2572 = vld [vmem:[%s1212 + $0x98] sm:$0xf]
        %v2573 = vld [vmem:[%s1212 + $0x9c] sm:$0xf]
        %v2574 = vld [vmem:[%s1212 + $0xa0] sm:$0xf]
        %v2575 = vld [vmem:[%s1212 + $0xa4] sm:$0xf]
        %v2576 = vld [vmem:[%s1212 + $0xa8] sm:$0xf]
        %v2577 = vld [vmem:[%s1212 + $0xac] sm:$0xf]
        %v2578 = vld [vmem:[%s1212 + $0xb0] sm:$0xf]
        %v2579 = vld [vmem:[%s1212 + $0xb4] sm:$0xf]
        %v2580 = vld [vmem:[%s1212 + $0xb8] sm:$0xf]
        %v2581 = vld [vmem:[%s1212 + $0xbc] sm:$0xf]
        %v2582 = vld [vmem:[%s1212 + $0xc0] sm:$0xf]
        %v2583 = vld [vmem:[%s1212 + $0xc4] sm:$0xf]
        %v2584 = vld [vmem:[%s1212 + $0xc8] sm:$0xf]
        %v2585 = vld [vmem:[%s1212 + $0xcc] sm:$0xf]
        %v2586 = vld [vmem:[%s1212 + $0xd0] sm:$0xf]
        %v2587 = vld [vmem:[%s1212 + $0xd4] sm:$0xf]
        %v2588 = vld [vmem:[%s1212 + $0xd8] sm:$0xf]
        %v2589 = vld [vmem:[%s1212 + $0xdc] sm:$0xf]
        %v2590 = vld [vmem:[%s1212 + $0xe0] sm:$0xf]
        %v2591 = vld [vmem:[%s1212 + $0xe4] sm:$0xf]
        %v2592 = vld [vmem:[%s1212 + $0xe8] sm:$0xf]
        %v2593 = vld [vmem:[%s1212 + $0xec] sm:$0xf]
        %v2594 = vld [vmem:[%s1212 + $0xf0] sm:$0xf]
        %v2595 = vld [vmem:[%s1212 + $0xf4] sm:$0xf]
        %v2596 = vld [vmem:[%s1212 + $0xf8] sm:$0xf]
        %v2597 = vld [vmem:[%s1212 + $0xfc] sm:$0xf]
        %v2598 = vpack.c.bf16 %v2530, %v2526
        %v2599 = vpack.c.bf16 %v2531, %v2527
        %v2600 = vpack.c.bf16 %v2532, %v2528
        %v2601 = vpack.c.bf16 %v2533, %v2529
        %v2602 = vld [vmem:[%s1221] sm:$0x1]
        %v2604 = vperm.slane %v2602, 0
        %v2670 = vunpack.c.l.b16 %v2534
        %v2671 = vunpack.c.l.b16 %v2535
        %v2672 = vunpack.c.l.b16 %v2536
        %v2673 = vunpack.c.l.b16 %v2537
        %v2674 = vunpack.c.l.b16 %v2538
        %v2675 = vunpack.c.l.b16 %v2539
        %v2676 = vunpack.c.l.b16 %v2540
        %v2677 = vunpack.c.l.b16 %v2541
        %v2678 = vunpack.c.l.b16 %v2542
        %v2679 = vunpack.c.l.b16 %v2543
        %v2680 = vunpack.c.l.b16 %v2544
        %v2681 = vunpack.c.l.b16 %v2545
        %v2682 = vunpack.c.l.b16 %v2546
        %v2683 = vunpack.c.l.b16 %v2547
        %v2684 = vunpack.c.l.b16 %v2548
        %v2685 = vunpack.c.l.b16 %v2549
        %v2686 = vunpack.c.l.b16 %v2550
        %v2687 = vunpack.c.l.b16 %v2551
        %v2688 = vunpack.c.l.b16 %v2552
        %v2689 = vunpack.c.l.b16 %v2553
        %v2690 = vunpack.c.l.b16 %v2554
        %v2691 = vunpack.c.l.b16 %v2555
        %v2692 = vunpack.c.l.b16 %v2556
        %v2693 = vunpack.c.l.b16 %v2557
        %v2694 = vunpack.c.l.b16 %v2558
        %v2695 = vunpack.c.l.b16 %v2559
        %v2696 = vunpack.c.l.b16 %v2560
        %v2697 = vunpack.c.l.b16 %v2561
        %v2698 = vunpack.c.l.b16 %v2562
        %v2699 = vunpack.c.l.b16 %v2563
        %v2700 = vunpack.c.l.b16 %v2564
        %v2701 = vunpack.c.l.b16 %v2565
        %v2702 = vunpack.c.l.b16 %v2566
        %v2703 = vunpack.c.l.b16 %v2567
        %v2704 = vunpack.c.l.b16 %v2568
        %v2705 = vunpack.c.l.b16 %v2569
        %v2706 = vunpack.c.l.b16 %v2570
        %v2707 = vunpack.c.l.b16 %v2571
        %v2708 = vunpack.c.l.b16 %v2572
        %v2709 = vunpack.c.l.b16 %v2573
        %v2710 = vunpack.c.l.b16 %v2574
        %v2711 = vunpack.c.l.b16 %v2575
        %v2712 = vunpack.c.l.b16 %v2576
        %v2713 = vunpack.c.l.b16 %v2577
        %v2714 = vunpack.c.l.b16 %v2578
        %v2715 = vunpack.c.l.b16 %v2579
        %v2716 = vunpack.c.l.b16 %v2580
        %v2717 = vunpack.c.l.b16 %v2581
        %v2718 = vunpack.c.l.b16 %v2582
        %v2719 = vunpack.c.l.b16 %v2583
        %v2720 = vunpack.c.l.b16 %v2584
        %v2721 = vunpack.c.l.b16 %v2585
        %v2722 = vunpack.c.l.b16 %v2586
        %v2723 = vunpack.c.l.b16 %v2587
        %v2724 = vunpack.c.l.b16 %v2588
        %v2725 = vunpack.c.l.b16 %v2589
        %v2726 = vunpack.c.l.b16 %v2590
        %v2727 = vunpack.c.l.b16 %v2591
        %v2728 = vunpack.c.l.b16 %v2592
        %v2729 = vunpack.c.l.b16 %v2593
        %v2730 = vunpack.c.l.b16 %v2594
        %v2731 = vunpack.c.l.b16 %v2595
        %v2732 = vunpack.c.l.b16 %v2596
        %v2733 = vunpack.c.l.b16 %v2597
        %v2734 = vpack.c.b16 %v2671, %v2670
        %v2735 = vpack.c.b16 %v2673, %v2672
        %v2736 = vpack.c.b16 %v2675, %v2674
        %v2737 = vpack.c.b16 %v2677, %v2676
        %v2738 = vpack.c.b16 %v2679, %v2678
        %v2739 = vpack.c.b16 %v2681, %v2680
        %v2740 = vpack.c.b16 %v2683, %v2682
        %v2741 = vpack.c.b16 %v2685, %v2684
        %v2742 = vpack.c.b16 %v2687, %v2686
        %v2743 = vpack.c.b16 %v2689, %v2688
        %v2744 = vpack.c.b16 %v2691, %v2690
        %v2745 = vpack.c.b16 %v2693, %v2692
        %v2746 = vpack.c.b16 %v2695, %v2694
        %v2747 = vpack.c.b16 %v2697, %v2696
        %v2748 = vpack.c.b16 %v2699, %v2698
        %v2749 = vpack.c.b16 %v2701, %v2700
        %v2750 = vpack.c.b16 %v2703, %v2702
        %v2751 = vpack.c.b16 %v2705, %v2704
        %v2752 = vpack.c.b16 %v2707, %v2706
        %v2753 = vpack.c.b16 %v2709, %v2708
        %v2754 = vpack.c.b16 %v2711, %v2710
        %v2755 = vpack.c.b16 %v2713, %v2712
        %v2756 = vpack.c.b16 %v2715, %v2714
        %v2757 = vpack.c.b16 %v2717, %v2716
        %v2758 = vpack.c.b16 %v2719, %v2718
        %v2759 = vpack.c.b16 %v2721, %v2720
        %v2760 = vpack.c.b16 %v2723, %v2722
        %v2761 = vpack.c.b16 %v2725, %v2724
        %v2762 = vpack.c.b16 %v2727, %v2726
        %v2763 = vpack.c.b16 %v2729, %v2728
        %v2764 = vpack.c.b16 %v2731, %v2730
        %v2765 = vpack.c.b16 %v2733, %v2732
        %2798 = vmatpush.bf16.msra.mxu0 %v2741
        %2799 = vmatpush.bf16.msra.mxu0 %v2740
        %2800 = vmatpush.bf16.msra.mxu0 %v2739
        %2801 = vmatpush.bf16.msra.mxu0 %v2738
        %2802 = vmatpush.bf16.msra.mxu0 %v2737
        %2803 = vmatpush.bf16.msra.mxu0 %v2736
        %2804 = vmatpush.bf16.msra.mxu0 %v2735
        %2805 = vmatpush.bf16.msra.mxu0 %v2734
        %2806 = vmatmul.bf16.gmra.mxu0 %v2598
        %v2807 = vpop.f32.mrf.mxu0
        %v2808 = vadd.f32 %v2604, %v2807
        %v2809 = vpop.f32.mrf.mxu0
        %v2810 = vadd.f32 %v2604, %v2809
        %2811 = vdwg.mxu0
        %2812 = vmatpush.bf16.msra.mxu0 %v2749
        %2813 = vmatpush.bf16.msra.mxu0 %v2748
        %2814 = vmatpush.bf16.msra.mxu0 %v2747
        %2815 = vmatpush.bf16.msra.mxu0 %v2746
        %2816 = vmatpush.bf16.msra.mxu0 %v2745
        %2817 = vmatpush.bf16.msra.mxu0 %v2744
        %2818 = vmatpush.bf16.msra.mxu0 %v2743
        %2819 = vmatpush.bf16.msra.mxu0 %v2742
        %2820 = vmatmul.bf16.gmra.mxu0 %v2599
        %v2821 = vpop.f32.mrf.mxu0
        %v2822 = vadd.f32 %v2808, %v2821
        %v2823 = vpop.f32.mrf.mxu0
        %v2824 = vadd.f32 %v2810, %v2823
        %2825 = vdwg.mxu0
        %2826 = vmatpush.bf16.msra.mxu0 %v2757
        %2827 = vmatpush.bf16.msra.mxu0 %v2756
        %2828 = vmatpush.bf16.msra.mxu0 %v2755
        %2829 = vmatpush.bf16.msra.mxu0 %v2754
        %2830 = vmatpush.bf16.msra.mxu0 %v2753
        %2831 = vmatpush.bf16.msra.mxu0 %v2752
        %2832 = vmatpush.bf16.msra.mxu0 %v2751
        %2833 = vmatpush.bf16.msra.mxu0 %v2750
        %2834 = vmatmul.bf16.gmra.mxu0 %v2600
        %v2835 = vpop.f32.mrf.mxu0
        %v2836 = vadd.f32 %v2822, %v2835
        %v2837 = vpop.f32.mrf.mxu0
        %v2838 = vadd.f32 %v2824, %v2837
        %2839 = vdwg.mxu0
        %2840 = vmatpush.bf16.msra.mxu0 %v2765
        %2841 = vmatpush.bf16.msra.mxu0 %v2764
        %2842 = vmatpush.bf16.msra.mxu0 %v2763
        %2843 = vmatpush.bf16.msra.mxu0 %v2762
        %2844 = vmatpush.bf16.msra.mxu0 %v2761
        %2845 = vmatpush.bf16.msra.mxu0 %v2760
        %2846 = vmatpush.bf16.msra.mxu0 %v2759
        %2847 = vmatpush.bf16.msra.mxu0 %v2758
        %2848 = vmatmul.bf16.gmra.mxu0 %v2601
        %v2849 = vpop.f32.mrf.mxu0
        %v2850 = vadd.f32 %v2836, %v2849
        %v2851 = vpop.f32.mrf.mxu0
        %v2852 = vadd.f32 %v2838, %v2851
        %2853 = vdwg.mxu0
        %v2854 = vadd.f32 %v2850, %v2065
        %v2855 = vadd.f32 %v2852, %v2066
        %v2856 = vld [vmem:[%s1230] sm:$0x1]
        %v2857 = vld [vmem:[%s1239] sm:$0x1]
        %2858 = vadd.xlane.f32.xlu0 %v2854
        %v2859 = vpop.xlane.xlu0 %2858
        %2860 = vadd.xlane.f32.xlu0 %v2855
        %v2861 = vpop.xlane.xlu0 %2860
        %v2862 = vmul.f32 %v2859, %v2020
        %v2863 = vmul.f32 %v2861, %v2020
        %v2864 = vsub.f32 %v2854, %v2862
        %v2865 = vsub.f32 %v2855, %v2863
        %v2866 = vmul.f32 %v2864, %v2864
        %v2867 = vmul.f32 %v2865, %v2865
        %2868 = vadd.xlane.f32.xlu0 %v2866
        %v2869 = vpop.xlane.xlu0 %2868
        %2870 = vadd.xlane.f32.xlu0 %v2867
        %v2871 = vpop.xlane.xlu0 %2870
        %v2872 = vmul.f32 %v2869, %v2020
        %v2873 = vmul.f32 %v2871, %v2020
        %v2874 = vadd.f32 %v2872, 1e-12
        %v2875 = vadd.f32 %v2873, 1e-12
        %v2876 = vrsqrt.pop %v2874
        %v2877 = vmul.f32 %v2876, %v2874
        %v2878 = vmul.f32 %v2877, %v2876
        %v2879 = vmul.f32 0.5, %v2878
        %v2880 = vsub.f32 1.5, %v2879
        %v2881 = vmul.f32 %v2876, %v2880
        %vm2882 = vweird.f32 %v2874
        %vm2883 = vweird.f32 %v2876
        %vm2884 = vmor %vm2882, %vm2883
        %v2885 = vsel %vm2884, %v2876, %v2881
        %v2886 = vrsqrt.pop %v2875
        %v2887 = vmul.f32 %v2886, %v2875
        %v2888 = vmul.f32 %v2887, %v2886
        %v2889 = vmul.f32 0.5, %v2888
        %v2890 = vsub.f32 1.5, %v2889
        %v2891 = vmul.f32 %v2886, %v2890
        %vm2892 = vweird.f32 %v2875
        %vm2893 = vweird.f32 %v2886
        %vm2894 = vmor %vm2892, %vm2893
        %v2895 = vsel %vm2894, %v2886, %v2891
        %v2896 = vmul.f32 %v2864, %v2885
        %v2897 = vmul.f32 %v2865, %v2895
        %v2899 = vperm.slane %v2856, 0
        %v2901 = vmul.f32 %v2899, %v2896
        %v2902 = vmul.f32 %v2899, %v2897
        %v2904 = vperm.slane %v2857, 0
        %v2906 = vadd.f32 %v2901, %v2904
        %v2907 = vadd.f32 %v2902, %v2904
        %v2908 = vld [vmem:[%s1249] sm:$0xff]
        %v2909 = vld [vmem:[%s1249 + $0x8] sm:$0xf]
        %v2910 = vld [vmem:[%s1249 + $0xc] sm:$0xff]
        %v2911 = vld [vmem:[%s1249 + $0x14] sm:$0xf]
        %v2912 = vld [vmem:[%s1249 + $0x18] sm:$0xff]
        %v2913 = vld [vmem:[%s1249 + $0x20] sm:$0xf]
        %v2914 = vld [vmem:[%s1249 + $0x24] sm:$0xff]
        %v2915 = vld [vmem:[%s1249 + $0x2c] sm:$0xf]
        %v2916 = vld [vmem:[%s1249 + $0x30] sm:$0xff]
        %v2917 = vld [vmem:[%s1249 + $0x38] sm:$0xf]
        %v2918 = vld [vmem:[%s1249 + $0x3c] sm:$0xff]
        %v2919 = vld [vmem:[%s1249 + $0x44] sm:$0xf]
        %v2920 = vld [vmem:[%s1249 + $0x48] sm:$0xff]
        %v2921 = vld [vmem:[%s1249 + $0x50] sm:$0xf]
        %v2922 = vld [vmem:[%s1249 + $0x54] sm:$0xff]
        %v2923 = vld [vmem:[%s1249 + $0x5c] sm:$0xf]
        %v2924 = vld [vmem:[%s1249 + $0x60] sm:$0xff]
        %v2925 = vld [vmem:[%s1249 + $0x68] sm:$0xf]
        %v2926 = vld [vmem:[%s1249 + $0x6c] sm:$0xff]
        %v2927 = vld [vmem:[%s1249 + $0x74] sm:$0xf]
        %v2928 = vld [vmem:[%s1249 + $0x78] sm:$0xff]
        %v2929 = vld [vmem:[%s1249 + $0x80] sm:$0xf]
        %v2930 = vld [vmem:[%s1249 + $0x84] sm:$0xff]
        %v2931 = vld [vmem:[%s1249 + $0x8c] sm:$0xf]
        %v2932 = vld [vmem:[%s1249 + $0x90] sm:$0xff]
        %v2933 = vld [vmem:[%s1249 + $0x98] sm:$0xf]
        %v2934 = vld [vmem:[%s1249 + $0x9c] sm:$0xff]
        %v2935 = vld [vmem:[%s1249 + $0xa4] sm:$0xf]
        %v2936 = vld [vmem:[%s1249 + $0xa8] sm:$0xff]
        %v2937 = vld [vmem:[%s1249 + $0xb0] sm:$0xf]
        %v2938 = vld [vmem:[%s1249 + $0xb4] sm:$0xff]
        %v2939 = vld [vmem:[%s1249 + $0xbc] sm:$0xf]
        %v2940 = vpack.c.bf16 %v2907, %v2906
        %v2941 = vld [vmem:[%s1412] sm:$0x7]
        %v2943 = vperm.slane %v2941, 0
        %v2944 = vperm.slane %v2941, 1
        %v2945 = vperm.slane %v2941, 2
        %v2981 = vunpack.c.l.b16 %v2908
        %v2982 = vunpack.c.h.b16 %v2908
        %v2983 = vunpack.c.l.b16 %v2909
        %v2984 = vunpack.c.l.b16 %v2910
        %v2985 = vunpack.c.h.b16 %v2910
        %v2986 = vunpack.c.l.b16 %v2911
        %v2987 = vunpack.c.l.b16 %v2912
        %v2988 = vunpack.c.h.b16 %v2912
        %v2989 = vunpack.c.l.b16 %v2913
        %v2990 = vunpack.c.l.b16 %v2914
        %v2991 = vunpack.c.h.b16 %v2914
        %v2992 = vunpack.c.l.b16 %v2915
        %v2993 = vunpack.c.l.b16 %v2916
        %v2994 = vunpack.c.h.b16 %v2916
        %v2995 = vunpack.c.l.b16 %v2917
        %v2996 = vunpack.c.l.b16 %v2918
        %v2997 = vunpack.c.h.b16 %v2918
        %v2998 = vunpack.c.l.b16 %v2919
        %v2999 = vunpack.c.l.b16 %v2920
        %v3000 = vunpack.c.h.b16 %v2920
        %v3001 = vunpack.c.l.b16 %v2921
        %v3002 = vunpack.c.l.b16 %v2922
        %v3003 = vunpack.c.h.b16 %v2922
        %v3004 = vunpack.c.l.b16 %v2923
        %v3005 = vunpack.c.l.b16 %v2924
        %v3006 = vunpack.c.h.b16 %v2924
        %v3007 = vunpack.c.l.b16 %v2925
        %v3008 = vunpack.c.l.b16 %v2926
        %v3009 = vunpack.c.h.b16 %v2926
        %v3010 = vunpack.c.l.b16 %v2927
        %v3011 = vunpack.c.l.b16 %v2928
        %v3012 = vunpack.c.h.b16 %v2928
        %v3013 = vunpack.c.l.b16 %v2929
        %v3014 = vunpack.c.l.b16 %v2930
        %v3015 = vunpack.c.h.b16 %v2930
        %v3016 = vunpack.c.l.b16 %v2931
        %v3017 = vunpack.c.l.b16 %v2932
        %v3018 = vunpack.c.h.b16 %v2932
        %v3019 = vunpack.c.l.b16 %v2933
        %v3020 = vunpack.c.l.b16 %v2934
        %v3021 = vunpack.c.h.b16 %v2934
        %v3022 = vunpack.c.l.b16 %v2935
        %v3023 = vunpack.c.l.b16 %v2936
        %v3024 = vunpack.c.h.b16 %v2936
        %v3025 = vunpack.c.l.b16 %v2937
        %v3026 = vunpack.c.l.b16 %v2938
        %v3027 = vunpack.c.h.b16 %v2938
        %v3028 = vunpack.c.l.b16 %v2939
        %v3029 = vpack.c.b16 %v2984, %v2981
        %v3030 = vpack.c.b16 %v2985, %v2982
        %v3031 = vpack.c.b16 %v2986, %v2983
        %v3032 = vpack.c.b16 %v2990, %v2987
        %v3033 = vpack.c.b16 %v2991, %v2988
        %v3034 = vpack.c.b16 %v2992, %v2989
        %v3035 = vpack.c.b16 %v2996, %v2993
        %v3036 = vpack.c.b16 %v2997, %v2994
        %v3037 = vpack.c.b16 %v2998, %v2995
        %v3038 = vpack.c.b16 %v3002, %v2999
        %v3039 = vpack.c.b16 %v3003, %v3000
        %v3040 = vpack.c.b16 %v3004, %v3001
        %v3041 = vpack.c.b16 %v3008, %v3005
        %v3042 = vpack.c.b16 %v3009, %v3006
        %v3043 = vpack.c.b16 %v3010, %v3007
        %v3044 = vpack.c.b16 %v3014, %v3011
        %v3045 = vpack.c.b16 %v3015, %v3012
        %v3046 = vpack.c.b16 %v3016, %v3013
        %v3047 = vpack.c.b16 %v3020, %v3017
        %v3048 = vpack.c.b16 %v3021, %v3018
        %v3049 = vpack.c.b16 %v3022, %v3019
        %v3050 = vpack.c.b16 %v3026, %v3023
        %v3051 = vpack.c.b16 %v3027, %v3024
        %v3052 = vpack.c.b16 %v3028, %v3025
        %3077 = vmatpush.bf16.msra.mxu0 %v3050
        %3078 = vmatpush.bf16.msra.mxu0 %v3047
        %3079 = vmatpush.bf16.msra.mxu0 %v3044
        %3080 = vmatpush.bf16.msra.mxu0 %v3041
        %3081 = vmatpush.bf16.msra.mxu0 %v3038
        %3082 = vmatpush.bf16.msra.mxu0 %v3035
        %3083 = vmatpush.bf16.msra.mxu0 %v3032
        %3084 = vmatpush.bf16.msra.mxu0 %v3029
        %3085 = vmatmul.bf16.gmra.mxu0 %v2940
        %v3086 = vpop.f32.mrf.mxu0
        %v3087 = vadd.f32 %v2943, %v3086
        %v3088 = vpop.f32.mrf.mxu0
        %v3089 = vadd.f32 %v2943, %v3088
        %3090 = vdwg.mxu0
        %3091 = vmatpush.bf16.msra.mxu0 %v3051
        %3092 = vmatpush.bf16.msra.mxu0 %v3048
        %3093 = vmatpush.bf16.msra.mxu0 %v3045
        %3094 = vmatpush.bf16.msra.mxu0 %v3042
        %3095 = vmatpush.bf16.msra.mxu0 %v3039
        %3096 = vmatpush.bf16.msra.mxu0 %v3036
        %3097 = vmatpush.bf16.msra.mxu0 %v3033
        %3098 = vmatpush.bf16.msra.mxu0 %v3030
        %3099 = vmatmul.bf16.gmra.mxu0 %v2940
        %v3100 = vpop.f32.mrf.mxu0
        %v3101 = vadd.f32 %v2944, %v3100
        %v3102 = vpop.f32.mrf.mxu0
        %v3103 = vadd.f32 %v2944, %v3102
        %3104 = vdwg.mxu0
        %3105 = vmatpush.bf16.msra.mxu0 %v3052
        %3106 = vmatpush.bf16.msra.mxu0 %v3049
        %3107 = vmatpush.bf16.msra.mxu0 %v3046
        %3108 = vmatpush.bf16.msra.mxu0 %v3043
        %3109 = vmatpush.bf16.msra.mxu0 %v3040
        %3110 = vmatpush.bf16.msra.mxu0 %v3037
        %3111 = vmatpush.bf16.msra.mxu0 %v3034
        %3112 = vmatpush.bf16.msra.mxu0 %v3031
        %3113 = vmatmul.bf16.gmra.mxu0 %v2940
        %v3114 = vpop.f32.mrf.mxu0
        %v3115 = vadd.f32 %v2945, %v3114
        %v3116 = vpop.f32.mrf.mxu0
        %v3117 = vadd.f32 %v2945, %v3116
        %3118 = vdwg.mxu0
        %v3119 = vld [vmem:[%s1259] sm:$0xff]
        %v3120 = vld [vmem:[%s1259 + $0x8] sm:$0xf]
        %v3121 = vld [vmem:[%s1259 + $0xc] sm:$0xff]
        %v3122 = vld [vmem:[%s1259 + $0x14] sm:$0xf]
        %v3123 = vld [vmem:[%s1259 + $0x18] sm:$0xff]
        %v3124 = vld [vmem:[%s1259 + $0x20] sm:$0xf]
        %v3125 = vld [vmem:[%s1259 + $0x24] sm:$0xff]
        %v3126 = vld [vmem:[%s1259 + $0x2c] sm:$0xf]
        %v3127 = vld [vmem:[%s1259 + $0x30] sm:$0xff]
        %v3128 = vld [vmem:[%s1259 + $0x38] sm:$0xf]
        %v3129 = vld [vmem:[%s1259 + $0x3c] sm:$0xff]
        %v3130 = vld [vmem:[%s1259 + $0x44] sm:$0xf]
        %v3131 = vld [vmem:[%s1259 + $0x48] sm:$0xff]
        %v3132 = vld [vmem:[%s1259 + $0x50] sm:$0xf]
        %v3133 = vld [vmem:[%s1259 + $0x54] sm:$0xff]
        %v3134 = vld [vmem:[%s1259 + $0x5c] sm:$0xf]
        %v3135 = vld [vmem:[%s1259 + $0x60] sm:$0xff]
        %v3136 = vld [vmem:[%s1259 + $0x68] sm:$0xf]
        %v3137 = vld [vmem:[%s1259 + $0x6c] sm:$0xff]
        %v3138 = vld [vmem:[%s1259 + $0x74] sm:$0xf]
        %v3139 = vld [vmem:[%s1259 + $0x78] sm:$0xff]
        %v3140 = vld [vmem:[%s1259 + $0x80] sm:$0xf]
        %v3141 = vld [vmem:[%s1259 + $0x84] sm:$0xff]
        %v3142 = vld [vmem:[%s1259 + $0x8c] sm:$0xf]
        %v3143 = vld [vmem:[%s1259 + $0x90] sm:$0xff]
        %v3144 = vld [vmem:[%s1259 + $0x98] sm:$0xf]
        %v3145 = vld [vmem:[%s1259 + $0x9c] sm:$0xff]
        %v3146 = vld [vmem:[%s1259 + $0xa4] sm:$0xf]
        %v3147 = vld [vmem:[%s1259 + $0xa8] sm:$0xff]
        %v3148 = vld [vmem:[%s1259 + $0xb0] sm:$0xf]
        %v3149 = vld [vmem:[%s1259 + $0xb4] sm:$0xff]
        %v3150 = vld [vmem:[%s1259 + $0xbc] sm:$0xf]
        %v3151 = vpack.c.bf16 %v1445, %v1444
        %v3152 = vld [vmem:[%s1416] sm:$0x7]
        %v3154 = vperm.slane %v3152, 0
        %v3155 = vperm.slane %v3152, 1
        %v3156 = vperm.slane %v3152, 2
        %v3192 = vunpack.c.l.b16 %v3119
        %v3193 = vunpack.c.h.b16 %v3119
        %v3194 = vunpack.c.l.b16 %v3120
        %v3195 = vunpack.c.l.b16 %v3121
        %v3196 = vunpack.c.h.b16 %v3121
        %v3197 = vunpack.c.l.b16 %v3122
        %v3198 = vunpack.c.l.b16 %v3123
        %v3199 = vunpack.c.h.b16 %v3123
        %v3200 = vunpack.c.l.b16 %v3124
        %v3201 = vunpack.c.l.b16 %v3125
        %v3202 = vunpack.c.h.b16 %v3125
        %v3203 = vunpack.c.l.b16 %v3126
        %v3204 = vunpack.c.l.b16 %v3127
        %v3205 = vunpack.c.h.b16 %v3127
        %v3206 = vunpack.c.l.b16 %v3128
        %v3207 = vunpack.c.l.b16 %v3129
        %v3208 = vunpack.c.h.b16 %v3129
        %v3209 = vunpack.c.l.b16 %v3130
        %v3210 = vunpack.c.l.b16 %v3131
        %v3211 = vunpack.c.h.b16 %v3131
        %v3212 = vunpack.c.l.b16 %v3132
        %v3213 = vunpack.c.l.b16 %v3133
        %v3214 = vunpack.c.h.b16 %v3133
        %v3215 = vunpack.c.l.b16 %v3134
        %v3216 = vunpack.c.l.b16 %v3135
        %v3217 = vunpack.c.h.b16 %v3135
        %v3218 = vunpack.c.l.b16 %v3136
        %v3219 = vunpack.c.l.b16 %v3137
        %v3220 = vunpack.c.h.b16 %v3137
        %v3221 = vunpack.c.l.b16 %v3138
        %v3222 = vunpack.c.l.b16 %v3139
        %v3223 = vunpack.c.h.b16 %v3139
        %v3224 = vunpack.c.l.b16 %v3140
        %v3225 = vunpack.c.l.b16 %v3141
        %v3226 = vunpack.c.h.b16 %v3141
        %v3227 = vunpack.c.l.b16 %v3142
        %v3228 = vunpack.c.l.b16 %v3143
        %v3229 = vunpack.c.h.b16 %v3143
        %v3230 = vunpack.c.l.b16 %v3144
        %v3231 = vunpack.c.l.b16 %v3145
        %v3232 = vunpack.c.h.b16 %v3145
        %v3233 = vunpack.c.l.b16 %v3146
        %v3234 = vunpack.c.l.b16 %v3147
        %v3235 = vunpack.c.h.b16 %v3147
        %v3236 = vunpack.c.l.b16 %v3148
        %v3237 = vunpack.c.l.b16 %v3149
        %v3238 = vunpack.c.h.b16 %v3149
        %v3239 = vunpack.c.l.b16 %v3150
        %v3240 = vpack.c.b16 %v3195, %v3192
        %v3241 = vpack.c.b16 %v3196, %v3193
        %v3242 = vpack.c.b16 %v3197, %v3194
        %v3243 = vpack.c.b16 %v3201, %v3198
        %v3244 = vpack.c.b16 %v3202, %v3199
        %v3245 = vpack.c.b16 %v3203, %v3200
        %v3246 = vpack.c.b16 %v3207, %v3204
        %v3247 = vpack.c.b16 %v3208, %v3205
        %v3248 = vpack.c.b16 %v3209, %v3206
        %v3249 = vpack.c.b16 %v3213, %v3210
        %v3250 = vpack.c.b16 %v3214, %v3211
        %v3251 = vpack.c.b16 %v3215, %v3212
        %v3252 = vpack.c.b16 %v3219, %v3216
        %v3253 = vpack.c.b16 %v3220, %v3217
        %v3254 = vpack.c.b16 %v3221, %v3218
        %v3255 = vpack.c.b16 %v3225, %v3222
        %v3256 = vpack.c.b16 %v3226, %v3223
        %v3257 = vpack.c.b16 %v3227, %v3224
        %v3258 = vpack.c.b16 %v3231, %v3228
        %v3259 = vpack.c.b16 %v3232, %v3229
        %v3260 = vpack.c.b16 %v3233, %v3230
        %v3261 = vpack.c.b16 %v3237, %v3234
        %v3262 = vpack.c.b16 %v3238, %v3235
        %v3263 = vpack.c.b16 %v3239, %v3236
        %3288 = vmatpush.bf16.msra.mxu0 %v3261
        %3289 = vmatpush.bf16.msra.mxu0 %v3258
        %3290 = vmatpush.bf16.msra.mxu0 %v3255
        %3291 = vmatpush.bf16.msra.mxu0 %v3252
        %3292 = vmatpush.bf16.msra.mxu0 %v3249
        %3293 = vmatpush.bf16.msra.mxu0 %v3246
        %3294 = vmatpush.bf16.msra.mxu0 %v3243
        %3295 = vmatpush.bf16.msra.mxu0 %v3240
        %3296 = vmatmul.bf16.gmra.mxu0 %v3151
        %v3297 = vpop.f32.mrf.mxu0
        %v3298 = vadd.f32 %v3154, %v3297
        %v3299 = vpop.f32.mrf.mxu0
        %v3300 = vadd.f32 %v3154, %v3299
        %3301 = vdwg.mxu0
        %3302 = vmatpush.bf16.msra.mxu0 %v3262
        %3303 = vmatpush.bf16.msra.mxu0 %v3259
        %3304 = vmatpush.bf16.msra.mxu0 %v3256
        %3305 = vmatpush.bf16.msra.mxu0 %v3253
        %3306 = vmatpush.bf16.msra.mxu0 %v3250
        %3307 = vmatpush.bf16.msra.mxu0 %v3247
        %3308 = vmatpush.bf16.msra.mxu0 %v3244
        %3309 = vmatpush.bf16.msra.mxu0 %v3241
        %3310 = vmatmul.bf16.gmra.mxu0 %v3151
        %v3311 = vpop.f32.mrf.mxu0
        %v3312 = vadd.f32 %v3155, %v3311
        %v3313 = vpop.f32.mrf.mxu0
        %v3314 = vadd.f32 %v3155, %v3313
        %3315 = vdwg.mxu0
        %3316 = vmatpush.bf16.msra.mxu0 %v3263
        %3317 = vmatpush.bf16.msra.mxu0 %v3260
        %3318 = vmatpush.bf16.msra.mxu0 %v3257
        %3319 = vmatpush.bf16.msra.mxu0 %v3254
        %3320 = vmatpush.bf16.msra.mxu0 %v3251
        %3321 = vmatpush.bf16.msra.mxu0 %v3248
        %3322 = vmatpush.bf16.msra.mxu0 %v3245
        %3323 = vmatpush.bf16.msra.mxu0 %v3242
        %3324 = vmatmul.bf16.gmra.mxu0 %v3151
        %v3325 = vpop.f32.mrf.mxu0
        %v3326 = vadd.f32 %v3156, %v3325
        %v3327 = vpop.f32.mrf.mxu0
        %v3328 = vadd.f32 %v3156, %v3327
        %3329 = vdwg.mxu0
        %v3330 = vadd.f32 %v3087, %v3298
        %v3331 = vadd.f32 %v3089, %v3300
        %v3332 = vxor.u32 %v3330, 2147483648
        %v3333 = vxor.u32 %v3331, 2147483648
        %v3334 = vmul.f32 %v3332, 1.442695
        %v3335 = vpow.pop %v3334
        %v3336 = vmul.f32 %v3333, 1.442695
        %v3337 = vpow.pop %v3336
        %v3338 = vadd.f32 %v3335, 1.0
        %v3339 = vadd.f32 %v3337, 1.0
        %v3340 = vrcp.pop %v3338
        %v3341 = vmul.f32 %v3338, %v3340
        %v3342 = vsub.f32 1.0, %v3341
        %v3343 = vmul.f32 %v3340, %v3342
        %v3344 = vadd.f32 %v3340, %v3343
        %vm3345 = vweird.f32 %v3338
        %vm3346 = vweird.f32 %v3340
        %vm3347 = vmor %vm3345, %vm3346
        %v3348 = vsel %vm3347, %v3340, %v3344
        %v3349 = vand.u32 2147483647, %v3338
        %vm3350 = vcmp.eq.f32.partialorder %v3349, 8.507059e+37
        %v3351 = vand.u32 %v3338, 2147483648
        %v3352 = vor.u32 1.1754944e-38, %v3351
        %v3353 = vsel %vm3350, %v3352, %v3348
        %v3354 = vmul.f32 1.0, %v3353
        %v3355 = vrcp.pop %v3339
        %v3356 = vmul.f32 %v3339, %v3355
        %v3357 = vsub.f32 1.0, %v3356
        %v3358 = vmul.f32 %v3355, %v3357
        %v3359 = vadd.f32 %v3355, %v3358
        %vm3360 = vweird.f32 %v3339
        %vm3361 = vweird.f32 %v3355
        %vm3362 = vmor %vm3360, %vm3361
        %v3363 = vsel %vm3362, %v3355, %v3359
        %v3364 = vand.u32 2147483647, %v3339
        %vm3365 = vcmp.eq.f32.partialorder %v3364, 8.507059e+37
        %v3366 = vand.u32 %v3339, 2147483648
        %v3367 = vor.u32 1.1754944e-38, %v3366
        %v3368 = vsel %vm3365, %v3367, %v3363
        %v3369 = vmul.f32 1.0, %v3368
        %v3370 = vadd.f32 %v3101, %v3312
        %v3371 = vadd.f32 %v3103, %v3314
        %v3372 = vxor.u32 %v3370, 2147483648
        %v3373 = vxor.u32 %v3371, 2147483648
        %v3374 = vmul.f32 %v3372, 1.442695
        %v3375 = vpow.pop %v3374
        %v3376 = vmul.f32 %v3373, 1.442695
        %v3377 = vpow.pop %v3376
        %v3378 = vadd.f32 %v3375, 1.0
        %v3379 = vadd.f32 %v3377, 1.0
        %v3380 = vrcp.pop %v3378
        %v3381 = vmul.f32 %v3378, %v3380
        %v3382 = vsub.f32 1.0, %v3381
        %v3383 = vmul.f32 %v3380, %v3382
        %v3384 = vadd.f32 %v3380, %v3383
        %vm3385 = vweird.f32 %v3378
        %vm3386 = vweird.f32 %v3380
        %vm3387 = vmor %vm3385, %vm3386
        %v3388 = vsel %vm3387, %v3380, %v3384
        %v3389 = vand.u32 2147483647, %v3378
        %vm3390 = vcmp.eq.f32.partialorder %v3389, 8.507059e+37
        %v3391 = vand.u32 %v3378, 2147483648
        %v3392 = vor.u32 1.1754944e-38, %v3391
        %v3393 = vsel %vm3390, %v3392, %v3388
        %v3394 = vmul.f32 1.0, %v3393
        %v3395 = vrcp.pop %v3379
        %v3396 = vmul.f32 %v3379, %v3395
        %v3397 = vsub.f32 1.0, %v3396
        %v3398 = vmul.f32 %v3395, %v3397
        %v3399 = vadd.f32 %v3395, %v3398
        %vm3400 = vweird.f32 %v3379
        %vm3401 = vweird.f32 %v3395
        %vm3402 = vmor %vm3400, %vm3401
        %v3403 = vsel %vm3402, %v3395, %v3399
        %v3404 = vand.u32 2147483647, %v3379
        %vm3405 = vcmp.eq.f32.partialorder %v3404, 8.507059e+37
        %v3406 = vand.u32 %v3379, 2147483648
        %v3407 = vor.u32 1.1754944e-38, %v3406
        %v3408 = vsel %vm3405, %v3407, %v3403
        %v3409 = vmul.f32 1.0, %v3408
        %v3410 = vmul.f32 %v3354, %v3326
        %v3411 = vmul.f32 %v3369, %v3328
        %v3412 = vadd.f32 %v3115, %v3410
        %v3413 = vadd.f32 %v3117, %v3411
        %v3414 = vtanh.pop %v3412
        %v3415 = vtanh.pop %v3413
        %v3416 = vsub.f32 1.0, %v3394
        %v3417 = vsub.f32 1.0, %v3409
        %v3418 = vmul.f32 %v3416, %v3414
        %v3419 = vmul.f32 %v3417, %v3415
        %v3420 = vmul.f32 %v3394, %v1444
        %v3421 = vmul.f32 %v3409, %v1445
        %v3422 = vadd.f32 %v3418, %v3420
        %v3423 = vadd.f32 %v3419, %v3421
        %v3424 = vld [vmem:[%s1419] sm:$0x1]
        %v3425 = vld [vmem:[%s1422] sm:$0x1]
        %3426 = vadd.xlane.f32.xlu0 %v3422
        %v3427 = vpop.xlane.xlu0 %3426
        %3428 = vadd.xlane.f32.xlu0 %v3423
        %v3429 = vpop.xlane.xlu0 %3428
        %v3430 = vmul.f32 %v3427, %v2020
        %v3431 = vmul.f32 %v3429, %v2020
        %v3432 = vsub.f32 %v3422, %v3430
        %v3433 = vsub.f32 %v3423, %v3431
        %v3434 = vmul.f32 %v3432, %v3432
        %v3435 = vmul.f32 %v3433, %v3433
        %3436 = vadd.xlane.f32.xlu0 %v3434
        %v3437 = vpop.xlane.xlu0 %3436
        %3438 = vadd.xlane.f32.xlu0 %v3435
        %v3439 = vpop.xlane.xlu0 %3438
        %v3440 = vmul.f32 %v3437, %v2020
        %v3441 = vmul.f32 %v3439, %v2020
        %v3442 = vadd.f32 %v3440, 1e-12
        %v3443 = vadd.f32 %v3441, 1e-12
        %v3444 = vrsqrt.pop %v3442
        %v3445 = vmul.f32 %v3444, %v3442
        %v3446 = vmul.f32 %v3445, %v3444
        %v3447 = vmul.f32 0.5, %v3446
        %v3448 = vsub.f32 1.5, %v3447
        %v3449 = vmul.f32 %v3444, %v3448
        %vm3450 = vweird.f32 %v3442
        %vm3451 = vweird.f32 %v3444
        %vm3452 = vmor %vm3450, %vm3451
        %v3453 = vsel %vm3452, %v3444, %v3449
        %v3454 = vrsqrt.pop %v3443
        %v3455 = vmul.f32 %v3454, %v3443
        %v3456 = vmul.f32 %v3455, %v3454
        %v3457 = vmul.f32 0.5, %v3456
        %v3458 = vsub.f32 1.5, %v3457
        %v3459 = vmul.f32 %v3454, %v3458
        %vm3460 = vweird.f32 %v3443
        %vm3461 = vweird.f32 %v3454
        %vm3462 = vmor %vm3460, %vm3461
        %v3463 = vsel %vm3462, %v3454, %v3459
        %v3464 = vmul.f32 %v3432, %v3453
        %v3465 = vmul.f32 %v3433, %v3463
        %v3467 = vperm.slane %v3424, 0
        %v3469 = vmul.f32 %v3467, %v3464
        %v3470 = vmul.f32 %v3467, %v3465
        %v3472 = vperm.slane %v3425, 0
        %v3474 = vadd.f32 %v3469, %v3472
        %v3475 = vadd.f32 %v3470, %v3472
        %3476 = vst [vmem:[#allocation29] sm:$0xff] %v3474
        %3477 = vst [vmem:[#allocation29 + $0x8] sm:$0xff] %v3475
        %3478 = vst [vmem:[#allocation2] sm:$0xff] %v3422
        %3479 = vst [vmem:[#allocation2 + $0x8] sm:$0xff] %v3423
        // Predicated region
        $region197: #{tpu_custom_call.1} parent=123 // pred_check
          %p3480 = pneg %p734
        $region198: #{tpu_custom_call.1} parent=123 // pred_check_branch
          %3482 = sbr.rel (%p3480) target = $region200
        $region199: #{tpu_custom_call.1} parent=123 // pred_region
          %3484 = vsyncadd [#allocation5], 0
          %s3485 = sshll.u32 [#allocation29], 4
          %s3486 = int_to_ptr.vmem [resolvable:$true] %s3485
          %s3487 = sshll.u32 %s26, 4
          %s3488 = int_to_ptr.hbm [resolvable:$true] %s3487
          %3493 = dma.vmem_to_hbm [thread:$0]  %s3486, 256, %s3488, [#allocation5], 128, 128, 8
        $region200: #{tpu_custom_call.1} parent=123 // pred_fallthru
          _
        // Predicated region
        $region201: #{tpu_custom_call.1} parent=123 // pred_check
          %p3494 = pneg %p734
        $region202: #{tpu_custom_call.1} parent=123 // pred_check_branch
          %3496 = sbr.rel (%p3494) target = $region204
        $region203: #{tpu_custom_call.1} parent=123 // pred_region
          %3498 = dma.done [#allocation5], 256
        $region204: #{tpu_custom_call.1} parent=123 // pred_fallthru
          _
      $region124: #{tpu_custom_call.1} parent=5 // pred_fallthru
        _
      %p3499 = scmp.le.s32.totalorder 2, %s58
      // Predicated region
      $region205: #{tpu_custom_call.1} parent=5 // pred_check
        %p3500 = pneg %p3499
      $region206: #{tpu_custom_call.1} parent=5 // pred_check_branch
        %3502 = sbr.rel (%p3500) target = $region208
      $region207: #{tpu_custom_call.1} parent=5 // pred_region
        %s3503 = ssub.s32 %s58, 2
      $region208: #{tpu_custom_call.1} parent=5 // pred_fallthru
        _
    $region6: #{tpu_custom_call.1} parent=1 // loop_footer
      %s62 = sadd.s32 1, %s58
    $region7: #{tpu_custom_call.1} parent=1 // loop_footer_branch
      %57 = sbr.rel target = $region3
    $region8: #{tpu_custom_call.1} parent=1 // loop_exit
      _
    %3504 = vsyncpa [#allocation4], 1
    %s3505 = scalar_lea.sflag [#allocation4], 1
    %3506 = vsyncpa %s3505, 1
    %3507 = vsyncpa [#allocation7], 1
    %s3508 = scalar_lea.sflag [#allocation7], 1
    %3509 = vsyncpa %s3508, 1
    %3510 = vsyncpa [#allocation10], 1
    %s3511 = scalar_lea.sflag [#allocation10], 1
    %3512 = vsyncpa %s3511, 1
    %3513 = vsyncpa [#allocation13], 1
    %s3514 = scalar_lea.sflag [#allocation13], 1
    %3515 = vsyncpa %s3514, 1
    %3516 = vsyncpa [#allocation16], 1
    %s3517 = scalar_lea.sflag [#allocation16], 1
    %3518 = vsyncpa %s3517, 1
    %3519 = vsyncpa [#allocation19], 1
    %s3520 = scalar_lea.sflag [#allocation19], 1
    %3521 = vsyncpa %s3520, 1
    %3522 = vsyncpa [#allocation22], 1
    %s3523 = scalar_lea.sflag [#allocation22], 1
    %3524 = vsyncpa %s3523, 1
    %3525 = vsyncpa [#allocation25], 1
    %s3526 = scalar_lea.sflag [#allocation25], 1
    %3527 = vsyncpa %s3526, 1
    %3528 = vsyncpa [#allocation28], 1
    %s3529 = scalar_lea.sflag [#allocation28], 1
    %3530 = vsyncpa %s3529, 1
    %3531 = vsyncpa [#allocation5], 1
    %s3532 = scalar_lea.sflag [#allocation5], 1
    %3533 = vsyncpa %s3532, 1

// kernel: tpu_custom_call.1
$region0: #{tpu_custom_call.1}
  #allocation0 [shape = 'u32[]', space=smem, size = 0x4, offset = 0x4, fixed_abs, tag = 'smem constant byte address 0x4 - core index']
  #allocation1 [shape = 'u32[72,128]{1,0:T(1,128)}', space=vmem, size = 0x9000, scoped, tag = 'internal scratch']
  #allocation2 [shape = 'f32[16,128]{1,0:T(8,128)}', space=vmem, size = 0x2000, scoped, tag = 'scratch operand']
  %s0 = inlined_call_operand.vmem [shape: f32[16,128], index: 0, kind: input, shape index: {}]
  %s1 = inlined_call_operand.vmem [shape: bf16[32,128], index: 1, kind: input, shape index: {}]
  %s2 = inlined_call_operand.vmem [shape: bf16[16,32], index: 2, kind: input, shape index: {}]
  %s3 = inlined_call_operand.vmem [shape: bf16[32,16], index: 3, kind: input, shape index: {}]
  %s4 = inlined_call_operand.vmem [shape: bf16[32,16], index: 4, kind: input, shape index: {}]
  %s5 = inlined_call_operand.hbm [shape: bf16[128,128], index: 5, kind: input, shape index: {}]
  %s6 = inlined_call_operand.hbm [shape: bf16[2,128,128], index: 6, kind: input, shape index: {}]
  %s7 = inlined_call_operand.hbm [shape: f32[2,1,128], index: 7, kind: input, shape index: {}]
  %s8 = inlined_call_operand.hbm [shape: bf16[2,128,256], index: 8, kind: input, shape index: {}]
  %s9 = inlined_call_operand.hbm [shape: f32[2,1,256], index: 9, kind: input, shape index: {}]
  %s10 = inlined_call_operand.hbm [shape: bf16[2,128,128], index: 10, kind: input, shape index: {}]
  %s11 = inlined_call_operand.hbm [shape: f32[2,1,128], index: 11, kind: input, shape index: {}]
  %s12 = inlined_call_operand.hbm [shape: f32[2,1,128], index: 12, kind: input, shape index: {}]
  %s13 = inlined_call_operand.hbm [shape: f32[2,1,128], index: 13, kind: input, shape index: {}]
  %s14 = inlined_call_operand.hbm [shape: bf16[2,128,512], index: 14, kind: input, shape index: {}]
  %s15 = inlined_call_operand.vmem [shape: f32[2,1,512], index: 15, kind: input, shape index: {}]
  %s16 = inlined_call_operand.hbm [shape: bf16[2,512,128], index: 16, kind: input, shape index: {}]
  %s17 = inlined_call_operand.hbm [shape: f32[2,1,128], index: 17, kind: input, shape index: {}]
  %s18 = inlined_call_operand.hbm [shape: f32[2,1,128], index: 18, kind: input, shape index: {}]
  %s19 = inlined_call_operand.hbm [shape: f32[2,1,128], index: 19, kind: input, shape index: {}]
  %s20 = inlined_call_operand.hbm [shape: bf16[2,128,384], index: 20, kind: input, shape index: {}]
  %s21 = inlined_call_operand.vmem [shape: f32[2,1,384], index: 21, kind: input, shape index: {}]
  %s22 = inlined_call_operand.hbm [shape: bf16[2,128,384], index: 22, kind: input, shape index: {}]
  %s23 = inlined_call_operand.vmem [shape: f32[2,1,384], index: 23, kind: input, shape index: {}]
  %s24 = inlined_call_operand.vmem [shape: f32[2,1,128], index: 24, kind: input, shape index: {}]
  %s25 = inlined_call_operand.vmem [shape: f32[2,1,128], index: 25, kind: input, shape index: {}]
  %s26 = inlined_call_operand.hbm [shape: f32[16,128], index: 26, kind: output, shape index: {}]
  %s27 = sld [smem:[#allocation0]]
  $region209: #{tpu_custom_call.1} parent=0
    _
  %s29 = ssub.s32 1, %s27
  %s30 = scalar_select 0, %s29, %s27
  $region1: #{tpu_custom_call.1} parent=0
    #allocation3 [shape = 'u8[32768]{0}', space=vmem, size = 0x8000, scoped, tag = 'input window, operand 5, single buffered']
    #allocation4 [shape = 's32[2]{0}', space=sflag, size = 0x8, scoped, tag = 'scoped memory for tpu_custom_call.1']
    #allocation5 [shape = 's32[2]{0}', space=sflag, size = 0x8, scoped, tag = 'scoped memory for tpu_custom_call.1']
    #allocation6 [shape = 'u8[65536]{0}', space=vmem, size = 0x10000, scoped, tag = 'input window, operand 6']
    #allocation7 [shape = 's32[2]{0}', space=sflag, size = 0x8, scoped, tag = 'scoped memory for tpu_custom_call.1']
    #allocation8 [shape = 'u8[1024]{0}', space=vmem, size = 0x400, scoped, tag = 'input window, operand 7']
    #allocation9 [shape = 'u8[131072]{0}', space=vmem, size = 0x20000, scoped, tag = 'input window, operand 8']
    #allocation10 [shape = 's32[2]{0}', space=sflag, size = 0x8, scoped, tag = 'scoped memory for tpu_custom_call.1']
    #allocation11 [shape = 'u8[2048]{0}', space=vmem, size = 0x800, scoped, tag = 'input window, operand 9']
    #allocation12 [shape = 'u8[65536]{0}', space=vmem, size = 0x10000, scoped, tag = 'input window, operand 10']
    #allocation13 [shape = 's32[2]{0}', space=sflag, size = 0x8, scoped, tag = 'scoped memory for tpu_custom_call.1']
    #allocation14 [shape = 'u8[1024]{0}', space=vmem, size = 0x400, scoped, tag = 'input window, operand 11']
    #allocation15 [shape = 'u8[1024]{0}', space=vmem, size = 0x400, scoped, tag = 'input window, operand 12']
    #allocation16 [shape = 's32[2]{0}', space=sflag, size = 0x8, scoped, tag = 'scoped memory for tpu_custom_call.1']
    #allocation17 [shape = 'u8[1024]{0}', space=vmem, size = 0x400, scoped, tag = 'input window, operand 13']
    #allocation18 [shape = 'u8[262144]{0}', space=vmem, size = 0x40000, scoped, tag = 'input window, operand 14']
    #allocation19 [shape = 's32[2]{0}', space=sflag, size = 0x8, scoped, tag = 'scoped memory for tpu_custom_call.1']
    #allocation20 [shape = 'u8[262144]{0}', space=vmem, size = 0x40000, scoped, tag = 'input window, operand 16']
    #allocation21 [shape = 'u8[1024]{0}', space=vmem, size = 0x400, scoped, tag = 'input window, operand 17']
    #allocation22 [shape = 's32[2]{0}', space=sflag, size = 0x8, scoped, tag = 'scoped memory for tpu_custom_call.1']
    #allocation23 [shape = 'u8[1024]{0}', space=vmem, size = 0x400, scoped, tag = 'input window, operand 18']
    #allocation24 [shape = 'u8[1024]{0}', space=vmem, size = 0x400, scoped, tag = 'input window, operand 19']
    #allocation25 [shape = 's32[2]{0}', space=sflag, size = 0x8, scoped, tag = 'scoped memory for tpu_custom_call.1']
    #allocation26 [shape = 'u8[196608]{0}', space=vmem, size = 0x30000, scoped, tag = 'input window, operand 20']
    #allocation27 [shape = 'u8[196608]{0}', space=vmem, size = 0x30000, scoped, tag = 'input window, operand 22']
    #allocation28 [shape = 's32[2]{0}', space=sflag, size = 0x8, scoped, tag = 'scoped memory for tpu_custom_call.1']
    #allocation29 [shape = 'u8[8192]{0}', space=vmem, size = 0x2000, scoped, tag = 'output window, operand 0, single buffered']
    %31 = vsyncpa [#allocation4], 0
    %32 = vsyncpa [#allocation7], 0
    %s33 = scalar_lea.sflag [#allocation7], 1
    %34 = vsyncpa %s33, 0
    %35 = vsyncpa [#allocation10], 0
    %s36 = scalar_lea.sflag [#allocation10], 1
    %37 = vsyncpa %s36, 0
    %38 = vsyncpa [#allocation13], 0
    %s39 = scalar_lea.sflag [#allocation13], 1
    %40 = vsyncpa %s39, 0
    %41 = vsyncpa [#allocation16], 0
    %s42 = scalar_lea.sflag [#allocation16], 1
    %43 = vsyncpa %s42, 0
    %44 = vsyncpa [#allocation19], 0
    %s45 = scalar_lea.sflag [#allocation19], 1
    %46 = vsyncpa %s45, 0
    %47 = vsyncpa [#allocation22], 0
    %s48 = scalar_lea.sflag [#allocation22], 1
    %49 = vsyncpa %s48, 0
    %50 = vsyncpa [#allocation25], 0
    %s51 = scalar_lea.sflag [#allocation25], 1
    %52 = vsyncpa %s51, 0
    %53 = vsyncpa [#allocation28], 0
    %s54 = scalar_lea.sflag [#allocation28], 1
    %55 = vsyncpa %s54, 0
    %56 = vsyncpa [#allocation5], 0
    loop: start=0, step=1, limit=6
    $region2: #{tpu_custom_call.1} parent=1 // loop_pre_header
      _
    $region3: #{tpu_custom_call.1} parent=1 // loop_header
      %s58 = sphi 0, %s62
      %p59 = scmp.ge.s32.totalorder %s58, 6
      %s65 = sphi 0, %s77
      %s66 = sphi 0, %s73
      %s67 = sphi 0, %s65
      %s68 = sphi 0, %s66
      %s69 = sphi 0, %s67
      %s70 = sphi 0, %s68
      %s78 = sphi 0, %s78
      %s80 = sphi 0, %s78
      %s81 = sphi 0, %s80
      %s95 = sphi 0, %s81
      %s99 = sphi 0, %s99
      %s101 = sphi 0, %s99
      %s102 = sphi 0, %s101
      %s116 = sphi 0, %s102
      %s120 = sphi 0, %s120
      %s122 = sphi 0, %s120
      %s123 = sphi 0, %s122
      %s137 = sphi 0, %s123
      %s141 = sphi 0, %s141
      %s143 = sphi 0, %s141
      %s144 = sphi 0, %s143
      %s158 = sphi 0, %s144
      %s162 = sphi 0, %s162
      %s164 = sphi 0, %s162
      %s165 = sphi 0, %s164
      %s179 = sphi 0, %s165
      %s183 = sphi 0, %s183
      %s185 = sphi 0, %s183
      %s186 = sphi 0, %s185
      %s200 = sphi 0, %s186
      %s206 = sphi 0, %s208
      %s209 = sphi 0, %s206
      %s210 = sphi 0, %s209
      %s226 = sphi 0, %s210
      %s232 = sphi 0, %s234
      %s235 = sphi 0, %s232
      %s236 = sphi 0, %s235
      %s252 = sphi 0, %s236
      %s258 = sphi 0, %s260
      %s261 = sphi 0, %s258
      %s262 = sphi 0, %s261
      %s278 = sphi 0, %s262
      %s284 = sphi 0, %s286
      %s287 = sphi 0, %s284
      %s288 = sphi 0, %s287
      %s304 = sphi 0, %s288
      %s310 = sphi 0, %s312
      %s313 = sphi 0, %s310
      %s314 = sphi 0, %s313
      %s330 = sphi 0, %s314
      %s336 = sphi 0, %s338
      %s339 = sphi 0, %s336
      %s340 = sphi 0, %s339
      %s356 = sphi 0, %s340
      %s362 = sphi 0, %s364
      %s365 = sphi 0, %s362
      %s366 = sphi 0, %s365
      %s382 = sphi 0, %s366
      %s388 = sphi 0, %s390
      %s391 = sphi 0, %s388
      %s392 = sphi 0, %s391
      %s408 = sphi 0, %s392
      %s414 = sphi 0, %s416
      %s417 = sphi 0, %s414
      %s418 = sphi 0, %s417
      %s434 = sphi 0, %s418
      %s440 = sphi 0, %s442
      %s443 = sphi 0, %s440
      %s444 = sphi 0, %s443
      %s460 = sphi 0, %s444
      %s466 = sphi 0, %s468
      %s469 = sphi 0, %s466
      %s470 = sphi 0, %s469
      %s486 = sphi 0, %s470
      %s492 = sphi 0, %s494
      %s495 = sphi 0, %s492
      %s496 = sphi 0, %s495
      %s512 = sphi 0, %s496
      %s518 = sphi 0, %s520
      %s521 = sphi 0, %s518
      %s522 = sphi 0, %s521
      %s538 = sphi 0, %s522
      %s544 = sphi 0, %s546
      %s547 = sphi 0, %s544
      %s548 = sphi 0, %s547
      %s564 = sphi 0, %s548
      %s570 = sphi 0, %s572
      %s573 = sphi 0, %s570
      %s574 = sphi 0, %s573
      %s590 = sphi 0, %s574
      %s596 = sphi 0, %s598
      %s599 = sphi 0, %s596
      %s600 = sphi 0, %s599
      %s616 = sphi 0, %s600
      %s622 = sphi 0, %s624
      %s625 = sphi 0, %s622
      %s626 = sphi 0, %s625
      %s642 = sphi 0, %s626
      %s648 = sphi 0, %s650
      %s651 = sphi 0, %s648
      %s652 = sphi 0, %s651
      %s668 = sphi 0, %s652
      %s674 = sphi 0, %s676
      %s677 = sphi 0, %s674
      %s678 = sphi 0, %s677
      %s694 = sphi 0, %s678
      %s700 = sphi 0, %s702
      %s703 = sphi 0, %s700
      %s704 = sphi 0, %s703
      %s720 = sphi 0, %s704
      %s724 = sphi 0, %s724
      %s726 = sphi 0, %s724
      %s727 = sphi 0, %s726
      %s741 = sphi 0, %s727
    $region4: #{tpu_custom_call.1} parent=1 // loop_header_branch
      %61 = sbr.rel (%p59) target = $region8
    $region5: #{tpu_custom_call.1} parent=1 // loop_body
      %s63 = ssub.s32 %s58, 1
      %s64 = ssub.s32 %s58, 2
      %s71 = sadd.s32 1, %s66
      %p72 = scmp.ge.s32.totalorder %s71, 2
      %s73 = scalar_select %p72, 0, %s71
      %s74 = sadd.s32 1, %s65
      %s75 = scalar_select %p72, %s74, %s65
      %p76 = scmp.ge.s32.totalorder %s75, 2
      %s77 = scalar_select %p76, 0, %s75
      %s79 = sadd.s32 %s78, 1
      %p82 = scmp.eq.s32.totalorder %s58, 3
      %p83 = scmp.ne.s32.totalorder %s78, %s80
      %p84 = scmp.eq.s32.totalorder %s58, 0
      %p85 = por %p83, %p84
      %p86 = scmp.ne.s32.totalorder %s78, %s80
      %p87 = scmp.eq.s32.totalorder %s63, 3
      %p88 = por %p86, %p87
      %p89 = scmp.ne.s32.totalorder %s80, %s81
      %p90 = scmp.eq.s32.totalorder %s63, 0
      %p91 = por %p89, %p90
      %p92 = scmp.ne.s32.totalorder %s80, %s81
      %p93 = scmp.eq.s32.totalorder %s64, 3
      %p94 = por %p92, %p93
      %p96 = scmp.ne.s32.totalorder %s81, %s95
      %p97 = scmp.eq.s32.totalorder %s64, 0
      %p98 = por %p96, %p97
      %s100 = sadd.s32 %s99, 1
      %p103 = scmp.eq.s32.totalorder %s58, 3
      %p104 = scmp.ne.s32.totalorder %s99, %s101
      %p105 = scmp.eq.s32.totalorder %s58, 0
      %p106 = por %p104, %p105
      %p107 = scmp.ne.s32.totalorder %s99, %s101
      %p108 = scmp.eq.s32.totalorder %s63, 3
      %p109 = por %p107, %p108
      %p110 = scmp.ne.s32.totalorder %s101, %s102
      %p111 = scmp.eq.s32.totalorder %s63, 0
      %p112 = por %p110, %p111
      %p113 = scmp.ne.s32.totalorder %s101, %s102
      %p114 = scmp.eq.s32.totalorder %s64, 3
      %p115 = por %p113, %p114
      %p117 = scmp.ne.s32.totalorder %s102, %s116
      %p118 = scmp.eq.s32.totalorder %s64, 0
      %p119 = por %p117, %p118
      %s121 = sadd.s32 %s120, 1
      %p124 = scmp.eq.s32.totalorder %s58, 3
      %p125 = scmp.ne.s32.totalorder %s120, %s122
      %p126 = scmp.eq.s32.totalorder %s58, 0
      %p127 = por %p125, %p126
      %p128 = scmp.ne.s32.totalorder %s120, %s122
      %p129 = scmp.eq.s32.totalorder %s63, 3
      %p130 = por %p128, %p129
      %p131 = scmp.ne.s32.totalorder %s122, %s123
      %p132 = scmp.eq.s32.totalorder %s63, 0
      %p133 = por %p131, %p132
      %p134 = scmp.ne.s32.totalorder %s122, %s123
      %p135 = scmp.eq.s32.totalorder %s64, 3
      %p136 = por %p134, %p135
      %p138 = scmp.ne.s32.totalorder %s123, %s137
      %p139 = scmp.eq.s32.totalorder %s64, 0
      %p140 = por %p138, %p139
      %s142 = sadd.s32 %s141, 1
      %p145 = scmp.eq.s32.totalorder %s58, 3
      %p146 = scmp.ne.s32.totalorder %s141, %s143
      %p147 = scmp.eq.s32.totalorder %s58, 0
      %p148 = por %p146, %p147
      %p149 = scmp.ne.s32.totalorder %s141, %s143
      %p150 = scmp.eq.s32.totalorder %s63, 3
      %p151 = por %p149, %p150
      %p152 = scmp.ne.s32.totalorder %s143, %s144
      %p153 = scmp.eq.s32.totalorder %s63, 0
      %p154 = por %p152, %p153
      %p155 = scmp.ne.s32.totalorder %s143, %s144
      %p156 = scmp.eq.s32.totalorder %s64, 3
      %p157 = por %p155, %p156
      %p159 = scmp.ne.s32.totalorder %s144, %s158
      %p160 = scmp.eq.s32.totalorder %s64, 0
      %p161 = por %p159, %p160
      %s163 = sadd.s32 %s162, 1
      %p166 = scmp.eq.s32.totalorder %s58, 3
      %p167 = scmp.ne.s32.totalorder %s162, %s164
      %p168 = scmp.eq.s32.totalorder %s58, 0
      %p169 = por %p167, %p168
      %p170 = scmp.ne.s32.totalorder %s162, %s164
      %p171 = scmp.eq.s32.totalorder %s63, 3
      %p172 = por %p170, %p171
      %p173 = scmp.ne.s32.totalorder %s164, %s165
      %p174 = scmp.eq.s32.totalorder %s63, 0
      %p175 = por %p173, %p174
      %p176 = scmp.ne.s32.totalorder %s164, %s165
      %p177 = scmp.eq.s32.totalorder %s64, 3
      %p178 = por %p176, %p177
      %p180 = scmp.ne.s32.totalorder %s165, %s179
      %p181 = scmp.eq.s32.totalorder %s64, 0
      %p182 = por %p180, %p181
      %s184 = sadd.s32 %s183, 1
      %p187 = scmp.eq.s32.totalorder %s58, 3
      %p188 = scmp.ne.s32.totalorder %s183, %s185
      %p189 = scmp.eq.s32.totalorder %s58, 0
      %p190 = por %p188, %p189
      %p191 = scmp.ne.s32.totalorder %s183, %s185
      %p192 = scmp.eq.s32.totalorder %s63, 3
      %p193 = por %p191, %p192
      %p194 = scmp.ne.s32.totalorder %s185, %s186
      %p195 = scmp.eq.s32.totalorder %s63, 0
      %p196 = por %p194, %p195
      %p197 = scmp.ne.s32.totalorder %s185, %s186
      %p198 = scmp.eq.s32.totalorder %s64, 3
      %p199 = por %p197, %p198
      %p201 = scmp.ne.s32.totalorder %s186, %s200
      %p202 = scmp.eq.s32.totalorder %s64, 0
      %p203 = por %p201, %p202
      %s204 = ssub.s32 %s65, %s77
      %p205 = scmp.eq.s32.totalorder %s204, 0
      %s207 = sadd.s32 %s206, 1
      %s208 = scalar_select %p205, %s206, %s207
      %p211 = pneg %p205
      %p212 = scmp.eq.s32.totalorder %s58, 3
      %p213 = por %p211, %p212
      %p214 = scmp.ne.s32.totalorder %s206, %s209
      %p215 = scmp.eq.s32.totalorder %s58, 0
      %p216 = por %p214, %p215
      %p217 = scmp.ne.s32.totalorder %s206, %s209
      %p218 = scmp.eq.s32.totalorder %s63, 3
      %p219 = por %p217, %p218
      %p220 = scmp.ne.s32.totalorder %s209, %s210
      %p221 = scmp.eq.s32.totalorder %s63, 0
      %p222 = por %p220, %p221
      %p223 = scmp.ne.s32.totalorder %s209, %s210
      %p224 = scmp.eq.s32.totalorder %s64, 3
      %p225 = por %p223, %p224
      %p227 = scmp.ne.s32.totalorder %s210, %s226
      %p228 = scmp.eq.s32.totalorder %s64, 0
      %p229 = por %p227, %p228
      %s230 = ssub.s32 %s65, %s77
      %p231 = scmp.eq.s32.totalorder %s230, 0
      %s233 = sadd.s32 %s232, 1
      %s234 = scalar_select %p231, %s232, %s233
      %p237 = pneg %p231
      %p238 = scmp.eq.s32.totalorder %s58, 3
      %p239 = por %p237, %p238
      %p240 = scmp.ne.s32.totalorder %s232, %s235
      %p241 = scmp.eq.s32.totalorder %s58, 0
      %p242 = por %p240, %p241
      %p243 = scmp.ne.s32.totalorder %s232, %s235
      %p244 = scmp.eq.s32.totalorder %s63, 3
      %p245 = por %p243, %p244
      %p246 = scmp.ne.s32.totalorder %s235, %s236
      %p247 = scmp.eq.s32.totalorder %s63, 0
      %p248 = por %p246, %p247
      %p249 = scmp.ne.s32.totalorder %s235, %s236
      %p250 = scmp.eq.s32.totalorder %s64, 3
      %p251 = por %p249, %p250
      %p253 = scmp.ne.s32.totalorder %s236, %s252
      %p254 = scmp.eq.s32.totalorder %s64, 0
      %p255 = por %p253, %p254
      %s256 = ssub.s32 %s65, %s77
      %p257 = scmp.eq.s32.totalorder %s256, 0
      %s259 = sadd.s32 %s258, 1
      %s260 = scalar_select %p257, %s258, %s259
      %p263 = pneg %p257
      %p264 = scmp.eq.s32.totalorder %s58, 3
      %p265 = por %p263, %p264
      %p266 = scmp.ne.s32.totalorder %s258, %s261
      %p267 = scmp.eq.s32.totalorder %s58, 0
      %p268 = por %p266, %p267
      %p269 = scmp.ne.s32.totalorder %s258, %s261
      %p270 = scmp.eq.s32.totalorder %s63, 3
      %p271 = por %p269, %p270
      %p272 = scmp.ne.s32.totalorder %s261, %s262
      %p273 = scmp.eq.s32.totalorder %s63, 0
      %p274 = por %p272, %p273
      %p275 = scmp.ne.s32.totalorder %s261, %s262
      %p276 = scmp.eq.s32.totalorder %s64, 3
      %p277 = por %p275, %p276
      %p279 = scmp.ne.s32.totalorder %s262, %s278
      %p280 = scmp.eq.s32.totalorder %s64, 0
      %p281 = por %p279, %p280
      %s282 = ssub.s32 %s65, %s77
      %p283 = scmp.eq.s32.totalorder %s282, 0
      %s285 = sadd.s32 %s284, 1
      %s286 = scalar_select %p283, %s284, %s285
      %p289 = pneg %p283
      %p290 = scmp.eq.s32.totalorder %s58, 3
      %p291 = por %p289, %p290
      %p292 = scmp.ne.s32.totalorder %s284, %s287
      %p293 = scmp.eq.s32.totalorder %s58, 0
      %p294 = por %p292, %p293
      %p295 = scmp.ne.s32.totalorder %s284, %s287
      %p296 = scmp.eq.s32.totalorder %s63, 3
      %p297 = por %p295, %p296
      %p298 = scmp.ne.s32.totalorder %s287, %s288
      %p299 = scmp.eq.s32.totalorder %s63, 0
      %p300 = por %p298, %p299
      %p301 = scmp.ne.s32.totalorder %s287, %s288
      %p302 = scmp.eq.s32.totalorder %s64, 3
      %p303 = por %p301, %p302
      %p305 = scmp.ne.s32.totalorder %s288, %s304
      %p306 = scmp.eq.s32.totalorder %s64, 0
      %p307 = por %p305, %p306
      %s308 = ssub.s32 %s65, %s77
      %p309 = scmp.eq.s32.totalorder %s308, 0
      %s311 = sadd.s32 %s310, 1
      %s312 = scalar_select %p309, %s310, %s311
      %p315 = pneg %p309
      %p316 = scmp.eq.s32.totalorder %s58, 3
      %p317 = por %p315, %p316
      %p318 = scmp.ne.s32.totalorder %s310, %s313
      %p319 = scmp.eq.s32.totalorder %s58, 0
      %p320 = por %p318, %p319
      %p321 = scmp.ne.s32.totalorder %s310, %s313
      %p322 = scmp.eq.s32.totalorder %s63, 3
      %p323 = por %p321, %p322
      %p324 = scmp.ne.s32.totalorder %s313, %s314
      %p325 = scmp.eq.s32.totalorder %s63, 0
      %p326 = por %p324, %p325
      %p327 = scmp.ne.s32.totalorder %s313, %s314
      %p328 = scmp.eq.s32.totalorder %s64, 3
      %p329 = por %p327, %p328
      %p331 = scmp.ne.s32.totalorder %s314, %s330
      %p332 = scmp.eq.s32.totalorder %s64, 0
      %p333 = por %p331, %p332
      %s334 = ssub.s32 %s65, %s77
      %p335 = scmp.eq.s32.totalorder %s334, 0
      %s337 = sadd.s32 %s336, 1
      %s338 = scalar_select %p335, %s336, %s337
      %p341 = pneg %p335
      %p342 = scmp.eq.s32.totalorder %s58, 3
      %p343 = por %p341, %p342
      %p344 = scmp.ne.s32.totalorder %s336, %s339
      %p345 = scmp.eq.s32.totalorder %s58, 0
      %p346 = por %p344, %p345
      %p347 = scmp.ne.s32.totalorder %s336, %s339
      %p348 = scmp.eq.s32.totalorder %s63, 3
      %p349 = por %p347, %p348
      %p350 = scmp.ne.s32.totalorder %s339, %s340
      %p351 = scmp.eq.s32.totalorder %s63, 0
      %p352 = por %p350, %p351
      %p353 = scmp.ne.s32.totalorder %s339, %s340
      %p354 = scmp.eq.s32.totalorder %s64, 3
      %p355 = por %p353, %p354
      %p357 = scmp.ne.s32.totalorder %s340, %s356
      %p358 = scmp.eq.s32.totalorder %s64, 0
      %p359 = por %p357, %p358
      %s360 = ssub.s32 %s65, %s77
      %p361 = scmp.eq.s32.totalorder %s360, 0
      %s363 = sadd.s32 %s362, 1
      %s364 = scalar_select %p361, %s362, %s363
      %p367 = pneg %p361
      %p368 = scmp.eq.s32.totalorder %s58, 3
      %p369 = por %p367, %p368
      %p370 = scmp.ne.s32.totalorder %s362, %s365
      %p371 = scmp.eq.s32.totalorder %s58, 0
      %p372 = por %p370, %p371
      %p373 = scmp.ne.s32.totalorder %s362, %s365
      %p374 = scmp.eq.s32.totalorder %s63, 3
      %p375 = por %p373, %p374
      %p376 = scmp.ne.s32.totalorder %s365, %s366
      %p377 = scmp.eq.s32.totalorder %s63, 0
      %p378 = por %p376, %p377
      %p379 = scmp.ne.s32.totalorder %s365, %s366
      %p380 = scmp.eq.s32.totalorder %s64, 3
      %p381 = por %p379, %p380
      %p383 = scmp.ne.s32.totalorder %s366, %s382
      %p384 = scmp.eq.s32.totalorder %s64, 0
      %p385 = por %p383, %p384
      %s386 = ssub.s32 %s65, %s77
      %p387 = scmp.eq.s32.totalorder %s386, 0
      %s389 = sadd.s32 %s388, 1
      %s390 = scalar_select %p387, %s388, %s389
      %p393 = pneg %p387
      %p394 = scmp.eq.s32.totalorder %s58, 3
      %p395 = por %p393, %p394
      %p396 = scmp.ne.s32.totalorder %s388, %s391
      %p397 = scmp.eq.s32.totalorder %s58, 0
      %p398 = por %p396, %p397
      %p399 = scmp.ne.s32.totalorder %s388, %s391
      %p400 = scmp.eq.s32.totalorder %s63, 3
      %p401 = por %p399, %p400
      %p402 = scmp.ne.s32.totalorder %s391, %s392
      %p403 = scmp.eq.s32.totalorder %s63, 0
      %p404 = por %p402, %p403
      %p405 = scmp.ne.s32.totalorder %s391, %s392
      %p406 = scmp.eq.s32.totalorder %s64, 3
      %p407 = por %p405, %p406
      %p409 = scmp.ne.s32.totalorder %s392, %s408
      %p410 = scmp.eq.s32.totalorder %s64, 0
      %p411 = por %p409, %p410
      %s412 = ssub.s32 %s65, %s77
      %p413 = scmp.eq.s32.totalorder %s412, 0
      %s415 = sadd.s32 %s414, 1
      %s416 = scalar_select %p413, %s414, %s415
      %p419 = pneg %p413
      %p420 = scmp.eq.s32.totalorder %s58, 3
      %p421 = por %p419, %p420
      %p422 = scmp.ne.s32.totalorder %s414, %s417
      %p423 = scmp.eq.s32.totalorder %s58, 0
      %p424 = por %p422, %p423
      %p425 = scmp.ne.s32.totalorder %s414, %s417
      %p426 = scmp.eq.s32.totalorder %s63, 3
      %p427 = por %p425, %p426
      %p428 = scmp.ne.s32.totalorder %s417, %s418
      %p429 = scmp.eq.s32.totalorder %s63, 0
      %p430 = por %p428, %p429
      %p431 = scmp.ne.s32.totalorder %s417, %s418
      %p432 = scmp.eq.s32.totalorder %s64, 3
      %p433 = por %p431, %p432
      %p435 = scmp.ne.s32.totalorder %s418, %s434
      %p436 = scmp.eq.s32.totalorder %s64, 0
      %p437 = por %p435, %p436
      %s438 = ssub.s32 %s65, %s77
      %p439 = scmp.eq.s32.totalorder %s438, 0
      %s441 = sadd.s32 %s440, 1
      %s442 = scalar_select %p439, %s440, %s441
      %p445 = pneg %p439
      %p446 = scmp.eq.s32.totalorder %s58, 3
      %p447 = por %p445, %p446
      %p448 = scmp.ne.s32.totalorder %s440, %s443
      %p449 = scmp.eq.s32.totalorder %s58, 0
      %p450 = por %p448, %p449
      %p451 = scmp.ne.s32.totalorder %s440, %s443
      %p452 = scmp.eq.s32.totalorder %s63, 3
      %p453 = por %p451, %p452
      %p454 = scmp.ne.s32.totalorder %s443, %s444
      %p455 = scmp.eq.s32.totalorder %s63, 0
      %p456 = por %p454, %p455
      %p457 = scmp.ne.s32.totalorder %s443, %s444
      %p458 = scmp.eq.s32.totalorder %s64, 3
      %p459 = por %p457, %p458
      %p461 = scmp.ne.s32.totalorder %s444, %s460
      %p462 = scmp.eq.s32.totalorder %s64, 0
      %p463 = por %p461, %p462
      %s464 = ssub.s32 %s65, %s77
      %p465 = scmp.eq.s32.totalorder %s464, 0
      %s467 = sadd.s32 %s466, 1
      %s468 = scalar_select %p465, %s466, %s467
      %p471 = pneg %p465
      %p472 = scmp.eq.s32.totalorder %s58, 3
      %p473 = por %p471, %p472
      %p474 = scmp.ne.s32.totalorder %s466, %s469
      %p475 = scmp.eq.s32.totalorder %s58, 0
      %p476 = por %p474, %p475
      %p477 = scmp.ne.s32.totalorder %s466, %s469
      %p478 = scmp.eq.s32.totalorder %s63, 3
      %p479 = por %p477, %p478
      %p480 = scmp.ne.s32.totalorder %s469, %s470
      %p481 = scmp.eq.s32.totalorder %s63, 0
      %p482 = por %p480, %p481
      %p483 = scmp.ne.s32.totalorder %s469, %s470
      %p484 = scmp.eq.s32.totalorder %s64, 3
      %p485 = por %p483, %p484
      %p487 = scmp.ne.s32.totalorder %s470, %s486
      %p488 = scmp.eq.s32.totalorder %s64, 0
      %p489 = por %p487, %p488
      %s490 = ssub.s32 %s65, %s77
      %p491 = scmp.eq.s32.totalorder %s490, 0
      %s493 = sadd.s32 %s492, 1
      %s494 = scalar_select %p491, %s492, %s493
      %p497 = pneg %p491
      %p498 = scmp.eq.s32.totalorder %s58, 3
      %p499 = por %p497, %p498
      %p500 = scmp.ne.s32.totalorder %s492, %s495
      %p501 = scmp.eq.s32.totalorder %s58, 0
      %p502 = por %p500, %p501
      %p503 = scmp.ne.s32.totalorder %s492, %s495
      %p504 = scmp.eq.s32.totalorder %s63, 3
      %p505 = por %p503, %p504
      %p506 = scmp.ne.s32.totalorder %s495, %s496
      %p507 = scmp.eq.s32.totalorder %s63, 0
      %p508 = por %p506, %p507
      %p509 = scmp.ne.s32.totalorder %s495, %s496
      %p510 = scmp.eq.s32.totalorder %s64, 3
      %p511 = por %p509, %p510
      %p513 = scmp.ne.s32.totalorder %s496, %s512
      %p514 = scmp.eq.s32.totalorder %s64, 0
      %p515 = por %p513, %p514
      %s516 = ssub.s32 %s65, %s77
      %p517 = scmp.eq.s32.totalorder %s516, 0
      %s519 = sadd.s32 %s518, 1
      %s520 = scalar_select %p517, %s518, %s519
      %p523 = pneg %p517
      %p524 = scmp.eq.s32.totalorder %s58, 3
      %p525 = por %p523, %p524
      %p526 = scmp.ne.s32.totalorder %s518, %s521
      %p527 = scmp.eq.s32.totalorder %s58, 0
      %p528 = por %p526, %p527
      %p529 = scmp.ne.s32.totalorder %s518, %s521
      %p530 = scmp.eq.s32.totalorder %s63, 3
      %p531 = por %p529, %p530
      %p532 = scmp.ne.s32.totalorder %s521, %s522
      %p533 = scmp.eq.s32.totalorder %s63, 0
      %p534 = por %p532, %p533
      %p535 = scmp.ne.s32.totalorder %s521, %s522
      %p536 = scmp.eq.s32.totalorder %s64, 3
      %p537 = por %p535, %p536
      %p539 = scmp.ne.s32.totalorder %s522, %s538
      %p540 = scmp.eq.s32.totalorder %s64, 0
      %p541 = por %p539, %p540
      %s542 = ssub.s32 %s65, %s77
      %p543 = scmp.eq.s32.totalorder %s542, 0
      %s545 = sadd.s32 %s544, 1
      %s546 = scalar_select %p543, %s544, %s545
      %p549 = pneg %p543
      %p550 = scmp.eq.s32.totalorder %s58, 3
      %p551 = por %p549, %p550
      %p552 = scmp.ne.s32.totalorder %s544, %s547
      %p553 = scmp.eq.s32.totalorder %s58, 0
      %p554 = por %p552, %p553
      %p555 = scmp.ne.s32.totalorder %s544, %s547
      %p556 = scmp.eq.s32.totalorder %s63, 3
      %p557 = por %p555, %p556
      %p558 = scmp.ne.s32.totalorder %s547, %s548
      %p559 = scmp.eq.s32.totalorder %s63, 0
      %p560 = por %p558, %p559
      %p561 = scmp.ne.s32.totalorder %s547, %s548
      %p562 = scmp.eq.s32.totalorder %s64, 3
      %p563 = por %p561, %p562
      %p565 = scmp.ne.s32.totalorder %s548, %s564
      %p566 = scmp.eq.s32.totalorder %s64, 0
      %p567 = por %p565, %p566
      %s568 = ssub.s32 %s65, %s77
      %p569 = scmp.eq.s32.totalorder %s568, 0
      %s571 = sadd.s32 %s570, 1
      %s572 = scalar_select %p569, %s570, %s571
      %p575 = pneg %p569
      %p576 = scmp.eq.s32.totalorder %s58, 3
      %p577 = por %p575, %p576
      %p578 = scmp.ne.s32.totalorder %s570, %s573
      %p579 = scmp.eq.s32.totalorder %s58, 0
      %p580 = por %p578, %p579
      %p581 = scmp.ne.s32.totalorder %s570, %s573
      %p582 = scmp.eq.s32.totalorder %s63, 3
      %p583 = por %p581, %p582
      %p584 = scmp.ne.s32.totalorder %s573, %s574
      %p585 = scmp.eq.s32.totalorder %s63, 0
      %p586 = por %p584, %p585
      %p587 = scmp.ne.s32.totalorder %s573, %s574
      %p588 = scmp.eq.s32.totalorder %s64, 3
      %p589 = por %p587, %p588
      %p591 = scmp.ne.s32.totalorder %s574, %s590
      %p592 = scmp.eq.s32.totalorder %s64, 0
      %p593 = por %p591, %p592
      %s594 = ssub.s32 %s65, %s77
      %p595 = scmp.eq.s32.totalorder %s594, 0
      %s597 = sadd.s32 %s596, 1
      %s598 = scalar_select %p595, %s596, %s597
      %p601 = pneg %p595
      %p602 = scmp.eq.s32.totalorder %s58, 3
      %p603 = por %p601, %p602
      %p604 = scmp.ne.s32.totalorder %s596, %s599
      %p605 = scmp.eq.s32.totalorder %s58, 0
      %p606 = por %p604, %p605
      %p607 = scmp.ne.s32.totalorder %s596, %s599
      %p608 = scmp.eq.s32.totalorder %s63, 3
      %p609 = por %p607, %p608
      %p610 = scmp.ne.s32.totalorder %s599, %s600
      %p611 = scmp.eq.s32.totalorder %s63, 0
      %p612 = por %p610, %p611
      %p613 = scmp.ne.s32.totalorder %s599, %s600
      %p614 = scmp.eq.s32.totalorder %s64, 3
      %p615 = por %p613, %p614
      %p617 = scmp.ne.s32.totalorder %s600, %s616
      %p618 = scmp.eq.s32.totalorder %s64, 0
      %p619 = por %p617, %p618
      %s620 = ssub.s32 %s65, %s77
      %p621 = scmp.eq.s32.totalorder %s620, 0
      %s623 = sadd.s32 %s622, 1
      %s624 = scalar_select %p621, %s622, %s623
      %p627 = pneg %p621
      %p628 = scmp.eq.s32.totalorder %s58, 3
      %p629 = por %p627, %p628
      %p630 = scmp.ne.s32.totalorder %s622, %s625
      %p631 = scmp.eq.s32.totalorder %s58, 0
      %p632 = por %p630, %p631
      %p633 = scmp.ne.s32.totalorder %s622, %s625
      %p634 = scmp.eq.s32.totalorder %s63, 3
      %p635 = por %p633, %p634
      %p636 = scmp.ne.s32.totalorder %s625, %s626
      %p637 = scmp.eq.s32.totalorder %s63, 0
      %p638 = por %p636, %p637
      %p639 = scmp.ne.s32.totalorder %s625, %s626
      %p640 = scmp.eq.s32.totalorder %s64, 3
      %p641 = por %p639, %p640
      %p643 = scmp.ne.s32.totalorder %s626, %s642
      %p644 = scmp.eq.s32.totalorder %s64, 0
      %p645 = por %p643, %p644
      %s646 = ssub.s32 %s65, %s77
      %p647 = scmp.eq.s32.totalorder %s646, 0
      %s649 = sadd.s32 %s648, 1
      %s650 = scalar_select %p647, %s648, %s649
      %p653 = pneg %p647
      %p654 = scmp.eq.s32.totalorder %s58, 3
      %p655 = por %p653, %p654
      %p656 = scmp.ne.s32.totalorder %s648, %s651
      %p657 = scmp.eq.s32.totalorder %s58, 0
      %p658 = por %p656, %p657
      %p659 = scmp.ne.s32.totalorder %s648, %s651
      %p660 = scmp.eq.s32.totalorder %s63, 3
      %p661 = por %p659, %p660
      %p662 = scmp.ne.s32.totalorder %s651, %s652
      %p663 = scmp.eq.s32.totalorder %s63, 0
      %p664 = por %p662, %p663
      %p665 = scmp.ne.s32.totalorder %s651, %s652
      %p666 = scmp.eq.s32.totalorder %s64, 3
      %p667 = por %p665, %p666
      %p669 = scmp.ne.s32.totalorder %s652, %s668
      %p670 = scmp.eq.s32.totalorder %s64, 0
      %p671 = por %p669, %p670
      %s672 = ssub.s32 %s65, %s77
      %p673 = scmp.eq.s32.totalorder %s672, 0
      %s675 = sadd.s32 %s674, 1
      %s676 = scalar_select %p673, %s674, %s675
      %p679 = pneg %p673
      %p680 = scmp.eq.s32.totalorder %s58, 3
      %p681 = por %p679, %p680
      %p682 = scmp.ne.s32.totalorder %s674, %s677
      %p683 = scmp.eq.s32.totalorder %s58, 0
      %p684 = por %p682, %p683
      %p685 = scmp.ne.s32.totalorder %s674, %s677
      %p686 = scmp.eq.s32.totalorder %s63, 3
      %p687 = por %p685, %p686
      %p688 = scmp.ne.s32.totalorder %s677, %s678
      %p689 = scmp.eq.s32.totalorder %s63, 0
      %p690 = por %p688, %p689
      %p691 = scmp.ne.s32.totalorder %s677, %s678
      %p692 = scmp.eq.s32.totalorder %s64, 3
      %p693 = por %p691, %p692
      %p695 = scmp.ne.s32.totalorder %s678, %s694
      %p696 = scmp.eq.s32.totalorder %s64, 0
      %p697 = por %p695, %p696
      %s698 = ssub.s32 %s65, %s77
      %p699 = scmp.eq.s32.totalorder %s698, 0
      %s701 = sadd.s32 %s700, 1
      %s702 = scalar_select %p699, %s700, %s701
      %p705 = pneg %p699
      %p706 = scmp.eq.s32.totalorder %s58, 3
      %p707 = por %p705, %p706
      %p708 = scmp.ne.s32.totalorder %s700, %s703
      %p709 = scmp.eq.s32.totalorder %s58, 0
      %p710 = por %p708, %p709
      %p711 = scmp.ne.s32.totalorder %s700, %s703
      %p712 = scmp.eq.s32.totalorder %s63, 3
      %p713 = por %p711, %p712
      %p714 = scmp.ne.s32.totalorder %s703, %s704
      %p715 = scmp.eq.s32.totalorder %s63, 0
      %p716 = por %p714, %p715
      %p717 = scmp.ne.s32.totalorder %s703, %s704
      %p718 = scmp.eq.s32.totalorder %s64, 3
      %p719 = por %p717, %p718
      %p721 = scmp.ne.s32.totalorder %s704, %s720
      %p722 = scmp.eq.s32.totalorder %s64, 0
      %p723 = por %p721, %p722
      %s725 = sadd.s32 %s724, 1
      %p728 = scmp.eq.s32.totalorder %s58, 3
      %p729 = scmp.ne.s32.totalorder %s724, %s726
      %p730 = scmp.eq.s32.totalorder %s58, 0
      %p731 = por %p729, %p730
      %p732 = scmp.ne.s32.totalorder %s724, %s726
      %p733 = scmp.eq.s32.totalorder %s63, 3
      %p734 = por %p732, %p733
      %p735 = scmp.ne.s32.totalorder %s726, %s727
      %p736 = scmp.eq.s32.totalorder %s63, 0
      %p737 = por %p735, %p736
      %p738 = scmp.ne.s32.totalorder %s726, %s727
      %p739 = scmp.eq.s32.totalorder %s64, 3
      %p740 = por %p738, %p739
      %p742 = scmp.ne.s32.totalorder %s727, %s741
      %p743 = scmp.eq.s32.totalorder %s64, 0
      %p744 = por %p742, %p743
      %p745 = scmp.le.s32.totalorder 1, %s58
      %p746 = scmp.lt.s32.totalorder %s58, 5
      %p747 = pnand %p745, %p746
      %p748 = pneg %p747
      // Predicated region
      $region9: #{tpu_custom_call.1} parent=5 // pred_check
        _
      $region10: #{tpu_custom_call.1} parent=5 // pred_check_branch
        %750 = sbr.rel (%p747) target = $region12
      $region11: #{tpu_custom_call.1} parent=5 // pred_region
        %s751 = ssub.s32 %s58, 1
        // Predicated region
        $region13: #{tpu_custom_call.1} parent=11 // pred_check
          %p752 = pneg %p91
        $region14: #{tpu_custom_call.1} parent=11 // pred_check_branch
          %754 = sbr.rel (%p752) target = $region16
        $region15: #{tpu_custom_call.1} parent=11 // pred_region
          _
        $region16: #{tpu_custom_call.1} parent=11 // pred_fallthru
          _
        // Predicated region
        $region17: #{tpu_custom_call.1} parent=11 // pred_check
          %p755 = pneg %p112
        $region18: #{tpu_custom_call.1} parent=11 // pred_check_branch
          %757 = sbr.rel (%p755) target = $region20
        $region19: #{tpu_custom_call.1} parent=11 // pred_region
          _
        $region20: #{tpu_custom_call.1} parent=11 // pred_fallthru
          _
        // Predicated region
        $region21: #{tpu_custom_call.1} parent=11 // pred_check
          %p758 = pneg %p133
        $region22: #{tpu_custom_call.1} parent=11 // pred_check_branch
          %760 = sbr.rel (%p758) target = $region24
        $region23: #{tpu_custom_call.1} parent=11 // pred_region
          _
        $region24: #{tpu_custom_call.1} parent=11 // pred_fallthru
          _
        // Predicated region
        $region25: #{tpu_custom_call.1} parent=11 // pred_check
          %p761 = pneg %p154
        $region26: #{tpu_custom_call.1} parent=11 // pred_check_branch
          %763 = sbr.rel (%p761) target = $region28
        $region27: #{tpu_custom_call.1} parent=11 // pred_region
          _
        $region28: #{tpu_custom_call.1} parent=11 // pred_fallthru
          _
        // Predicated region
        $region29: #{tpu_custom_call.1} parent=11 // pred_check
          %p764 = pneg %p175
        $region30: #{tpu_custom_call.1} parent=11 // pred_check_branch
          %766 = sbr.rel (%p764) target = $region32
        $region31: #{tpu_custom_call.1} parent=11 // pred_region
          _
        $region32: #{tpu_custom_call.1} parent=11 // pred_fallthru
          _
        // Predicated region
        $region33: #{tpu_custom_call.1} parent=11 // pred_check
          %p767 = pneg %p196
        $region34: #{tpu_custom_call.1} parent=11 // pred_check_branch
          %769 = sbr.rel (%p767) target = $region36
        $region35: #{tpu_custom_call.1} parent=11 // pred_region
          %771 = vsyncadd [#allocation4], 0
          %s772 = sshll.u32 %s5, 4
          %s773 = int_to_ptr.hbm [resolvable:$true] %s772
          %s774 = sshll.u32 [#allocation3], 4
          %s775 = int_to_ptr.vmem [resolvable:$true] %s774
          %780 = dma.hbm_to_vmem [thread:$0]  %s773, 1024, %s775, [#allocation4], 64, 64, 4
        $region36: #{tpu_custom_call.1} parent=11 // pred_fallthru
          _
      $region12: #{tpu_custom_call.1} parent=5 // pred_fallthru
        _
      %p781 = scmp.lt.s32.totalorder %s58, 4
      // Predicated region
      $region37: #{tpu_custom_call.1} parent=5 // pred_check
        %p782 = pneg %p781
      $region38: #{tpu_custom_call.1} parent=5 // pred_check_branch
        %784 = sbr.rel (%p782) target = $region40
      $region39: #{tpu_custom_call.1} parent=5 // pred_region
        // Predicated region
        $region41: #{tpu_custom_call.1} parent=39 // pred_check
          %p785 = pneg %p216
        $region42: #{tpu_custom_call.1} parent=39 // pred_check_branch
          %787 = sbr.rel (%p785) target = $region44
        $region43: #{tpu_custom_call.1} parent=39 // pred_region
          %s788 = sand.u32 %s58, 1
          %s789 = scalar_lea.sflag [#allocation7], %s788
          %s790 = sand.u32 %s206, 1
          %s791 = smul.addr %s790, 64
          %s792 = scalar_lea.vmem [#allocation6], %s791
          %794 = vsyncadd %s789, 0
          %s795 = smul.addr %s65, 16
          %s796 = smul.addr %s795, 4
          %s797 = scalar_lea.hbm %s6, %s796
          %s798 = sshll.u32 %s797, 4
          %s799 = int_to_ptr.hbm [resolvable:$true] %s798
          %s800 = sshll.u32 %s792, 4
          %s801 = int_to_ptr.vmem [resolvable:$true] %s800
          %806 = dma.hbm_to_vmem [thread:$0]  %s799, 1024, %s801, %s789, 64, 64, 4
        $region44: #{tpu_custom_call.1} parent=39 // pred_fallthru
          _
        // Predicated region
        $region45: #{tpu_custom_call.1} parent=39 // pred_check
          %p807 = pneg %p242
        $region46: #{tpu_custom_call.1} parent=39 // pred_check_branch
          %809 = sbr.rel (%p807) target = $region48
        $region47: #{tpu_custom_call.1} parent=39 // pred_region
          %s810 = sand.u32 %s58, 1
          %s811 = scalar_lea.sflag [#allocation7], %s810
          %s812 = sand.u32 %s232, 1
          %s813 = scalar_lea.vmem [#allocation8], %s812
          %815 = vsyncadd %s811, 0
          %s816 = scalar_lea.hbm %s7, %s65
          %s818 = sshll.u32 %s816, 4
          %s819 = int_to_ptr.hbm [resolvable:$true] %s818
          %s820 = sshll.u32 %s813, 4
          %s821 = int_to_ptr.vmem [resolvable:$true] %s820
          %823 = dma.hbm_to_vmem [thread:$0]  %s819, 16, %s821, %s811
        $region48: #{tpu_custom_call.1} parent=39 // pred_fallthru
          _
        // Predicated region
        $region49: #{tpu_custom_call.1} parent=39 // pred_check
          %p824 = pneg %p268
        $region50: #{tpu_custom_call.1} parent=39 // pred_check_branch
          %826 = sbr.rel (%p824) target = $region52
        $region51: #{tpu_custom_call.1} parent=39 // pred_region
          %s827 = sand.u32 %s58, 1
          %s828 = scalar_lea.sflag [#allocation10], %s827
          %s829 = sand.u32 %s258, 1
          %s830 = smul.addr %s829, 128
          %s831 = scalar_lea.vmem [#allocation9], %s830
          %833 = vsyncadd %s828, 0
          %s834 = smul.addr %s65, 32
          %s835 = smul.addr %s834, 4
          %s836 = scalar_lea.hbm %s8, %s835
          %s837 = sshll.u32 %s836, 4
          %s838 = int_to_ptr.hbm [resolvable:$true] %s837
          %s839 = sshll.u32 %s831, 4
          %s840 = int_to_ptr.vmem [resolvable:$true] %s839
          %845 = dma.hbm_to_vmem [thread:$0]  %s838, 2048, %s840, %s828, 128, 128, 8
        $region52: #{tpu_custom_call.1} parent=39 // pred_fallthru
          _
        // Predicated region
        $region53: #{tpu_custom_call.1} parent=39 // pred_check
          %p846 = pneg %p294
        $region54: #{tpu_custom_call.1} parent=39 // pred_check_branch
          %848 = sbr.rel (%p846) target = $region56
        $region55: #{tpu_custom_call.1} parent=39 // pred_region
          %s849 = sand.u32 %s58, 1
          %s850 = scalar_lea.sflag [#allocation10], %s849
          %s851 = sand.u32 %s284, 1
          %s852 = smul.addr %s851, 2
          %s853 = scalar_lea.vmem [#allocation11], %s852
          %855 = vsyncadd %s850, 0
          %s856 = smul.addr %s65, 2
          %s857 = scalar_lea.hbm %s9, %s856
          %s859 = sshll.u32 %s857, 4
          %s860 = int_to_ptr.hbm [resolvable:$true] %s859
          %s861 = sshll.u32 %s853, 4
          %s862 = int_to_ptr.vmem [resolvable:$true] %s861
          %864 = dma.hbm_to_vmem [thread:$0]  %s860, 32, %s862, %s850
        $region56: #{tpu_custom_call.1} parent=39 // pred_fallthru
          _
        // Predicated region
        $region57: #{tpu_custom_call.1} parent=39 // pred_check
          %p865 = pneg %p320
        $region58: #{tpu_custom_call.1} parent=39 // pred_check_branch
          %867 = sbr.rel (%p865) target = $region60
        $region59: #{tpu_custom_call.1} parent=39 // pred_region
          %s868 = sand.u32 %s58, 1
          %s869 = scalar_lea.sflag [#allocation13], %s868
          %s870 = sand.u32 %s310, 1
          %s871 = smul.addr %s870, 64
          %s872 = scalar_lea.vmem [#allocation12], %s871
          %874 = vsyncadd %s869, 0
          %s875 = smul.addr %s65, 16
          %s876 = smul.addr %s875, 4
          %s877 = scalar_lea.hbm %s10, %s876
          %s878 = sshll.u32 %s877, 4
          %s879 = int_to_ptr.hbm [resolvable:$true] %s878
          %s880 = sshll.u32 %s872, 4
          %s881 = int_to_ptr.vmem [resolvable:$true] %s880
          %886 = dma.hbm_to_vmem [thread:$0]  %s879, 1024, %s881, %s869, 64, 64, 4
        $region60: #{tpu_custom_call.1} parent=39 // pred_fallthru
          _
        // Predicated region
        $region61: #{tpu_custom_call.1} parent=39 // pred_check
          %p887 = pneg %p346
        $region62: #{tpu_custom_call.1} parent=39 // pred_check_branch
          %889 = sbr.rel (%p887) target = $region64
        $region63: #{tpu_custom_call.1} parent=39 // pred_region
          %s890 = sand.u32 %s58, 1
          %s891 = scalar_lea.sflag [#allocation13], %s890
          %s892 = sand.u32 %s336, 1
          %s893 = scalar_lea.vmem [#allocation14], %s892
          %895 = vsyncadd %s891, 0
          %s896 = scalar_lea.hbm %s11, %s65
          %s898 = sshll.u32 %s896, 4
          %s899 = int_to_ptr.hbm [resolvable:$true] %s898
          %s900 = sshll.u32 %s893, 4
          %s901 = int_to_ptr.vmem [resolvable:$true] %s900
          %903 = dma.hbm_to_vmem [thread:$0]  %s899, 16, %s901, %s891
        $region64: #{tpu_custom_call.1} parent=39 // pred_fallthru
          _
        // Predicated region
        $region65: #{tpu_custom_call.1} parent=39 // pred_check
          %p904 = pneg %p372
        $region66: #{tpu_custom_call.1} parent=39 // pred_check_branch
          %906 = sbr.rel (%p904) target = $region68
        $region67: #{tpu_custom_call.1} parent=39 // pred_region
          %s907 = sand.u32 %s58, 1
          %s908 = scalar_lea.sflag [#allocation16], %s907
          %s909 = sand.u32 %s362, 1
          %s910 = scalar_lea.vmem [#allocation15], %s909
          %912 = vsyncadd %s908, 0
          %s913 = scalar_lea.hbm %s12, %s65
          %s915 = sshll.u32 %s913, 4
          %s916 = int_to_ptr.hbm [resolvable:$true] %s915
          %s917 = sshll.u32 %s910, 4
          %s918 = int_to_ptr.vmem [resolvable:$true] %s917
          %920 = dma.hbm_to_vmem [thread:$0]  %s916, 16, %s918, %s908
        $region68: #{tpu_custom_call.1} parent=39 // pred_fallthru
          _
        // Predicated region
        $region69: #{tpu_custom_call.1} parent=39 // pred_check
          %p921 = pneg %p398
        $region70: #{tpu_custom_call.1} parent=39 // pred_check_branch
          %923 = sbr.rel (%p921) target = $region72
        $region71: #{tpu_custom_call.1} parent=39 // pred_region
          %s924 = sand.u32 %s58, 1
          %s925 = scalar_lea.sflag [#allocation16], %s924
          %s926 = sand.u32 %s388, 1
          %s927 = scalar_lea.vmem [#allocation17], %s926
          %929 = vsyncadd %s925, 0
          %s930 = scalar_lea.hbm %s13, %s65
          %s932 = sshll.u32 %s930, 4
          %s933 = int_to_ptr.hbm [resolvable:$true] %s932
          %s934 = sshll.u32 %s927, 4
          %s935 = int_to_ptr.vmem [resolvable:$true] %s934
          %937 = dma.hbm_to_vmem [thread:$0]  %s933, 16, %s935, %s925
        $region72: #{tpu_custom_call.1} parent=39 // pred_fallthru
          _
        // Predicated region
        $region73: #{tpu_custom_call.1} parent=39 // pred_check
          %p938 = pneg %p424
        $region74: #{tpu_custom_call.1} parent=39 // pred_check_branch
          %940 = sbr.rel (%p938) target = $region76
        $region75: #{tpu_custom_call.1} parent=39 // pred_region
          %s941 = sand.u32 %s58, 1
          %s942 = scalar_lea.sflag [#allocation19], %s941
          %s943 = sand.u32 %s414, 1
          %s944 = smul.addr %s943, 256
          %s945 = scalar_lea.vmem [#allocation18], %s944
          %947 = vsyncadd %s942, 0
          %s948 = smul.addr %s65, 64
          %s949 = smul.addr %s948, 4
          %s950 = scalar_lea.hbm %s14, %s949
          %s951 = sshll.u32 %s950, 4
          %s952 = int_to_ptr.hbm [resolvable:$true] %s951
          %s953 = sshll.u32 %s945, 4
          %s954 = int_to_ptr.vmem [resolvable:$true] %s953
          %959 = dma.hbm_to_vmem [thread:$0]  %s952, 4096, %s954, %s942, 256, 256, 16
        $region76: #{tpu_custom_call.1} parent=39 // pred_fallthru
          _
        // Predicated region
        $region77: #{tpu_custom_call.1} parent=39 // pred_check
          %p960 = pneg %p450
        $region78: #{tpu_custom_call.1} parent=39 // pred_check_branch
          %962 = sbr.rel (%p960) target = $region80
        $region79: #{tpu_custom_call.1} parent=39 // pred_region
          %p963 = scmp.lt.s32.totalorder %s65, 1
          %s964 = scalar_select %p963, %s65, 1
          %s965 = smul.addr %s964, 4
          %s966 = scalar_lea.vmem %s15, %s965
        $region80: #{tpu_custom_call.1} parent=39 // pred_fallthru
          _
        // Predicated region
        $region81: #{tpu_custom_call.1} parent=39 // pred_check
          %p967 = pneg %p476
        $region82: #{tpu_custom_call.1} parent=39 // pred_check_branch
          %969 = sbr.rel (%p967) target = $region84
        $region83: #{tpu_custom_call.1} parent=39 // pred_region
          %s970 = sand.u32 %s58, 1
          %s971 = scalar_lea.sflag [#allocation19], %s970
          %s972 = sand.u32 %s466, 1
          %s973 = smul.addr %s972, 256
          %s974 = scalar_lea.vmem [#allocation20], %s973
          %976 = vsyncadd %s971, 0
          %s977 = smul.addr %s65, 64
          %s978 = smul.addr %s977, 4
          %s979 = scalar_lea.hbm %s16, %s978
          %s980 = sshll.u32 %s979, 4
          %s981 = int_to_ptr.hbm [resolvable:$true] %s980
          %s982 = sshll.u32 %s974, 4
          %s983 = int_to_ptr.vmem [resolvable:$true] %s982
          %988 = dma.hbm_to_vmem [thread:$0]  %s981, 4096, %s983, %s971, 64, 64, 4
        $region84: #{tpu_custom_call.1} parent=39 // pred_fallthru
          _
        // Predicated region
        $region85: #{tpu_custom_call.1} parent=39 // pred_check
          %p989 = pneg %p502
        $region86: #{tpu_custom_call.1} parent=39 // pred_check_branch
          %991 = sbr.rel (%p989) target = $region88
        $region87: #{tpu_custom_call.1} parent=39 // pred_region
          %s992 = sand.u32 %s58, 1
          %s993 = scalar_lea.sflag [#allocation22], %s992
          %s994 = sand.u32 %s492, 1
          %s995 = scalar_lea.vmem [#allocation21], %s994
          %997 = vsyncadd %s993, 0
          %s998 = scalar_lea.hbm %s17, %s65
          %s1000 = sshll.u32 %s998, 4
          %s1001 = int_to_ptr.hbm [resolvable:$true] %s1000
          %s1002 = sshll.u32 %s995, 4
          %s1003 = int_to_ptr.vmem [resolvable:$true] %s1002
          %1005 = dma.hbm_to_vmem [thread:$0]  %s1001, 16, %s1003, %s993
        $region88: #{tpu_custom_call.1} parent=39 // pred_fallthru
          _
        // Predicated region
        $region89: #{tpu_custom_call.1} parent=39 // pred_check
          %p1006 = pneg %p528
        $region90: #{tpu_custom_call.1} parent=39 // pred_check_branch
          %1008 = sbr.rel (%p1006) target = $region92
        $region91: #{tpu_custom_call.1} parent=39 // pred_region
          %s1009 = sand.u32 %s58, 1
          %s1010 = scalar_lea.sflag [#allocation22], %s1009
          %s1011 = sand.u32 %s518, 1
          %s1012 = scalar_lea.vmem [#allocation23], %s1011
          %1014 = vsyncadd %s1010, 0
          %s1015 = scalar_lea.hbm %s18, %s65
          %s1017 = sshll.u32 %s1015, 4
          %s1018 = int_to_ptr.hbm [resolvable:$true] %s1017
          %s1019 = sshll.u32 %s1012, 4
          %s1020 = int_to_ptr.vmem [resolvable:$true] %s1019
          %1022 = dma.hbm_to_vmem [thread:$0]  %s1018, 16, %s1020, %s1010
        $region92: #{tpu_custom_call.1} parent=39 // pred_fallthru
          _
        // Predicated region
        $region93: #{tpu_custom_call.1} parent=39 // pred_check
          %p1023 = pneg %p554
        $region94: #{tpu_custom_call.1} parent=39 // pred_check_branch
          %1025 = sbr.rel (%p1023) target = $region96
        $region95: #{tpu_custom_call.1} parent=39 // pred_region
          %s1026 = sand.u32 %s58, 1
          %s1027 = scalar_lea.sflag [#allocation25], %s1026
          %s1028 = sand.u32 %s544, 1
          %s1029 = scalar_lea.vmem [#allocation24], %s1028
          %1031 = vsyncadd %s1027, 0
          %s1032 = scalar_lea.hbm %s19, %s65
          %s1034 = sshll.u32 %s1032, 4
          %s1035 = int_to_ptr.hbm [resolvable:$true] %s1034
          %s1036 = sshll.u32 %s1029, 4
          %s1037 = int_to_ptr.vmem [resolvable:$true] %s1036
          %1039 = dma.hbm_to_vmem [thread:$0]  %s1035, 16, %s1037, %s1027
        $region96: #{tpu_custom_call.1} parent=39 // pred_fallthru
          _
        // Predicated region
        $region97: #{tpu_custom_call.1} parent=39 // pred_check
          %p1040 = pneg %p580
        $region98: #{tpu_custom_call.1} parent=39 // pred_check_branch
          %1042 = sbr.rel (%p1040) target = $region100
        $region99: #{tpu_custom_call.1} parent=39 // pred_region
          %s1043 = sand.u32 %s58, 1
          %s1044 = scalar_lea.sflag [#allocation25], %s1043
          %s1045 = sand.u32 %s570, 1
          %s1046 = smul.addr %s1045, 192
          %s1047 = scalar_lea.vmem [#allocation26], %s1046
          %1049 = vsyncadd %s1044, 0
          %s1050 = smul.addr %s65, 48
          %s1051 = smul.addr %s1050, 4
          %s1052 = scalar_lea.hbm %s20, %s1051
          %s1053 = sshll.u32 %s1052, 4
          %s1054 = int_to_ptr.hbm [resolvable:$true] %s1053
          %s1055 = sshll.u32 %s1047, 4
          %s1056 = int_to_ptr.vmem [resolvable:$true] %s1055
          %1061 = dma.hbm_to_vmem [thread:$0]  %s1054, 3072, %s1056, %s1044, 192, 192, 12
        $region100: #{tpu_custom_call.1} parent=39 // pred_fallthru
          _
        // Predicated region
        $region101: #{tpu_custom_call.1} parent=39 // pred_check
          %p1062 = pneg %p606
        $region102: #{tpu_custom_call.1} parent=39 // pred_check_branch
          %1064 = sbr.rel (%p1062) target = $region104
        $region103: #{tpu_custom_call.1} parent=39 // pred_region
          %p1065 = scmp.lt.s32.totalorder %s65, 1
          %s1066 = scalar_select %p1065, %s65, 1
          %s1067 = smul.addr %s1066, 3
          %s1068 = scalar_lea.vmem %s21, %s1067
        $region104: #{tpu_custom_call.1} parent=39 // pred_fallthru
          _
        // Predicated region
        $region105: #{tpu_custom_call.1} parent=39 // pred_check
          %p1069 = pneg %p632
        $region106: #{tpu_custom_call.1} parent=39 // pred_check_branch
          %1071 = sbr.rel (%p1069) target = $region108
        $region107: #{tpu_custom_call.1} parent=39 // pred_region
          %s1072 = sand.u32 %s622, 1
          %s1073 = scalar_lea.sflag [#allocation28], %s1072
          %s1074 = sand.u32 %s622, 1
          %s1075 = smul.addr %s1074, 192
          %s1076 = scalar_lea.vmem [#allocation27], %s1075
          %1078 = vsyncadd %s1073, 0
          %s1079 = smul.addr %s65, 48
          %s1080 = smul.addr %s1079, 4
          %s1081 = scalar_lea.hbm %s22, %s1080
          %s1082 = sshll.u32 %s1081, 4
          %s1083 = int_to_ptr.hbm [resolvable:$true] %s1082
          %s1084 = sshll.u32 %s1076, 4
          %s1085 = int_to_ptr.vmem [resolvable:$true] %s1084
          %1090 = dma.hbm_to_vmem [thread:$0]  %s1083, 3072, %s1085, %s1073, 192, 192, 12
        $region108: #{tpu_custom_call.1} parent=39 // pred_fallthru
          _
        // Predicated region
        $region109: #{tpu_custom_call.1} parent=39 // pred_check
          %p1091 = pneg %p658
        $region110: #{tpu_custom_call.1} parent=39 // pred_check_branch
          %1093 = sbr.rel (%p1091) target = $region112
        $region111: #{tpu_custom_call.1} parent=39 // pred_region
          %p1094 = scmp.lt.s32.totalorder %s65, 1
          %s1095 = scalar_select %p1094, %s65, 1
          %s1096 = smul.addr %s1095, 3
          %s1097 = scalar_lea.vmem %s23, %s1096
        $region112: #{tpu_custom_call.1} parent=39 // pred_fallthru
          _
        // Predicated region
        $region113: #{tpu_custom_call.1} parent=39 // pred_check
          %p1098 = pneg %p684
        $region114: #{tpu_custom_call.1} parent=39 // pred_check_branch
          %1100 = sbr.rel (%p1098) target = $region116
        $region115: #{tpu_custom_call.1} parent=39 // pred_region
          %p1101 = scmp.lt.s32.totalorder %s65, 1
          %s1102 = scalar_select %p1101, %s65, 1
          %s1103 = scalar_lea.vmem %s24, %s1102
        $region116: #{tpu_custom_call.1} parent=39 // pred_fallthru
          _
        // Predicated region
        $region117: #{tpu_custom_call.1} parent=39 // pred_check
          %p1104 = pneg %p710
        $region118: #{tpu_custom_call.1} parent=39 // pred_check_branch
          %1106 = sbr.rel (%p1104) target = $region120
        $region119: #{tpu_custom_call.1} parent=39 // pred_region
          %p1107 = scmp.lt.s32.totalorder %s65, 1
          %s1108 = scalar_select %p1107, %s65, 1
          %s1109 = scalar_lea.vmem %s25, %s1108
        $region120: #{tpu_custom_call.1} parent=39 // pred_fallthru
          _
      $region40: #{tpu_custom_call.1} parent=5 // pred_fallthru
        _
      %p1110 = scmp.le.s32.totalorder 1, %s58
      %p1111 = scmp.lt.s32.totalorder %s58, 5
      %p1112 = pnand %p1110, %p1111
      %p1113 = pneg %p1112
      // Predicated region
      $region121: #{tpu_custom_call.1} parent=5 // pred_check
        _
      $region122: #{tpu_custom_call.1} parent=5 // pred_check_branch
        %1115 = sbr.rel (%p1112) target = $region124
      $region123: #{tpu_custom_call.1} parent=5 // pred_region
        %s1116 = ssub.s32 %s58, 1
        // Predicated region
        $region125: #{tpu_custom_call.1} parent=123 // pred_check
          %p1117 = pneg %p196
        $region126: #{tpu_custom_call.1} parent=123 // pred_check_branch
          %1119 = sbr.rel (%p1117) target = $region128
        $region127: #{tpu_custom_call.1} parent=123 // pred_region
          %1121 = dma.done [#allocation4], 1024
        $region128: #{tpu_custom_call.1} parent=123 // pred_fallthru
          _
        %s1122 = sand.u32 %s63, 1
        %s1123 = scalar_lea.sflag [#allocation7], %s1122
        %s1124 = sand.u32 %s209, 1
        %s1125 = smul.addr %s1124, 64
        %s1126 = scalar_lea.vmem [#allocation6], %s1125
        // Predicated region
        $region129: #{tpu_custom_call.1} parent=123 // pred_check
          %p1127 = pneg %p222
        $region130: #{tpu_custom_call.1} parent=123 // pred_check_branch
          %1129 = sbr.rel (%p1127) target = $region132
        $region131: #{tpu_custom_call.1} parent=123 // pred_region
          %1131 = dma.done %s1123, 1024
        $region132: #{tpu_custom_call.1} parent=123 // pred_fallthru
          _
        %s1132 = sand.u32 %s63, 1
        %s1133 = scalar_lea.sflag [#allocation7], %s1132
        %s1134 = sand.u32 %s235, 1
        %s1135 = scalar_lea.vmem [#allocation8], %s1134
        // Predicated region
        $region133: #{tpu_custom_call.1} parent=123 // pred_check
          %p1136 = pneg %p248
        $region134: #{tpu_custom_call.1} parent=123 // pred_check_branch
          %1138 = sbr.rel (%p1136) target = $region136
        $region135: #{tpu_custom_call.1} parent=123 // pred_region
          %1140 = dma.done %s1133, 16
        $region136: #{tpu_custom_call.1} parent=123 // pred_fallthru
          _
        %s1141 = sand.u32 %s63, 1
        %s1142 = scalar_lea.sflag [#allocation10], %s1141
        %s1143 = sand.u32 %s261, 1
        %s1144 = smul.addr %s1143, 128
        %s1145 = scalar_lea.vmem [#allocation9], %s1144
        // Predicated region
        $region137: #{tpu_custom_call.1} parent=123 // pred_check
          %p1146 = pneg %p274
        $region138: #{tpu_custom_call.1} parent=123 // pred_check_branch
          %1148 = sbr.rel (%p1146) target = $region140
        $region139: #{tpu_custom_call.1} parent=123 // pred_region
          %1150 = dma.done %s1142, 2048
        $region140: #{tpu_custom_call.1} parent=123 // pred_fallthru
          _
        %s1151 = sand.u32 %s63, 1
        %s1152 = scalar_lea.sflag [#allocation10], %s1151
        %s1153 = sand.u32 %s287, 1
        %s1154 = smul.addr %s1153, 2
        %s1155 = scalar_lea.vmem [#allocation11], %s1154
        // Predicated region
        $region141: #{tpu_custom_call.1} parent=123 // pred_check
          %p1156 = pneg %p300
        $region142: #{tpu_custom_call.1} parent=123 // pred_check_branch
          %1158 = sbr.rel (%p1156) target = $region144
        $region143: #{tpu_custom_call.1} parent=123 // pred_region
          %1160 = dma.done %s1152, 32
        $region144: #{tpu_custom_call.1} parent=123 // pred_fallthru
          _
        %s1161 = sand.u32 %s63, 1
        %s1162 = scalar_lea.sflag [#allocation13], %s1161
        %s1163 = sand.u32 %s313, 1
        %s1164 = smul.addr %s1163, 64
        %s1165 = scalar_lea.vmem [#allocation12], %s1164
        // Predicated region
        $region145: #{tpu_custom_call.1} parent=123 // pred_check
          %p1166 = pneg %p326
        $region146: #{tpu_custom_call.1} parent=123 // pred_check_branch
          %1168 = sbr.rel (%p1166) target = $region148
        $region147: #{tpu_custom_call.1} parent=123 // pred_region
          %1170 = dma.done %s1162, 1024
        $region148: #{tpu_custom_call.1} parent=123 // pred_fallthru
          _
        %s1171 = sand.u32 %s63, 1
        %s1172 = scalar_lea.sflag [#allocation13], %s1171
        %s1173 = sand.u32 %s339, 1
        %s1174 = scalar_lea.vmem [#allocation14], %s1173
        // Predicated region
        $region149: #{tpu_custom_call.1} parent=123 // pred_check
          %p1175 = pneg %p352
        $region150: #{tpu_custom_call.1} parent=123 // pred_check_branch
          %1177 = sbr.rel (%p1175) target = $region152
        $region151: #{tpu_custom_call.1} parent=123 // pred_region
          %1179 = dma.done %s1172, 16
        $region152: #{tpu_custom_call.1} parent=123 // pred_fallthru
          _
        %s1180 = sand.u32 %s63, 1
        %s1181 = scalar_lea.sflag [#allocation16], %s1180
        %s1182 = sand.u32 %s365, 1
        %s1183 = scalar_lea.vmem [#allocation15], %s1182
        // Predicated region
        $region153: #{tpu_custom_call.1} parent=123 // pred_check
          %p1184 = pneg %p378
        $region154: #{tpu_custom_call.1} parent=123 // pred_check_branch
          %1186 = sbr.rel (%p1184) target = $region156
        $region155: #{tpu_custom_call.1} parent=123 // pred_region
          %1188 = dma.done %s1181, 16
        $region156: #{tpu_custom_call.1} parent=123 // pred_fallthru
          _
        %s1189 = sand.u32 %s63, 1
        %s1190 = scalar_lea.sflag [#allocation16], %s1189
        %s1191 = sand.u32 %s391, 1
        %s1192 = scalar_lea.vmem [#allocation17], %s1191
        // Predicated region
        $region157: #{tpu_custom_call.1} parent=123 // pred_check
          %p1193 = pneg %p404
        $region158: #{tpu_custom_call.1} parent=123 // pred_check_branch
          %1195 = sbr.rel (%p1193) target = $region160
        $region159: #{tpu_custom_call.1} parent=123 // pred_region
          %1197 = dma.done %s1190, 16
        $region160: #{tpu_custom_call.1} parent=123 // pred_fallthru
          _
        %s1198 = sand.u32 %s63, 1
        %s1199 = scalar_lea.sflag [#allocation19], %s1198
        %s1200 = sand.u32 %s417, 1
        %s1201 = smul.addr %s1200, 256
        %s1202 = scalar_lea.vmem [#allocation18], %s1201
        // Predicated region
        $region161: #{tpu_custom_call.1} parent=123 // pred_check
          %p1203 = pneg %p430
        $region162: #{tpu_custom_call.1} parent=123 // pred_check_branch
          %1205 = sbr.rel (%p1203) target = $region164
        $region163: #{tpu_custom_call.1} parent=123 // pred_region
          %1207 = dma.done %s1199, 4096
        $region164: #{tpu_custom_call.1} parent=123 // pred_fallthru
          _
        %s1208 = sand.u32 %s63, 1
        %s1209 = scalar_lea.sflag [#allocation19], %s1208
        %s1210 = sand.u32 %s469, 1
        %s1211 = smul.addr %s1210, 256
        %s1212 = scalar_lea.vmem [#allocation20], %s1211
        // Predicated region
        $region165: #{tpu_custom_call.1} parent=123 // pred_check
          %p1213 = pneg %p482
        $region166: #{tpu_custom_call.1} parent=123 // pred_check_branch
          %1215 = sbr.rel (%p1213) target = $region168
        $region167: #{tpu_custom_call.1} parent=123 // pred_region
          %1217 = dma.done %s1209, 4096
        $region168: #{tpu_custom_call.1} parent=123 // pred_fallthru
          _
        %s1218 = sand.u32 %s63, 1
        %s1219 = scalar_lea.sflag [#allocation22], %s1218
        %s1220 = sand.u32 %s495, 1
        %s1221 = scalar_lea.vmem [#allocation21], %s1220
        // Predicated region
        $region169: #{tpu_custom_call.1} parent=123 // pred_check
          %p1222 = pneg %p508
        $region170: #{tpu_custom_call.1} parent=123 // pred_check_branch
          %1224 = sbr.rel (%p1222) target = $region172
        $region171: #{tpu_custom_call.1} parent=123 // pred_region
          %1226 = dma.done %s1219, 16
        $region172: #{tpu_custom_call.1} parent=123 // pred_fallthru
          _
        %s1227 = sand.u32 %s63, 1
        %s1228 = scalar_lea.sflag [#allocation22], %s1227
        %s1229 = sand.u32 %s521, 1
        %s1230 = scalar_lea.vmem [#allocation23], %s1229
        // Predicated region
        $region173: #{tpu_custom_call.1} parent=123 // pred_check
          %p1231 = pneg %p534
        $region174: #{tpu_custom_call.1} parent=123 // pred_check_branch
          %1233 = sbr.rel (%p1231) target = $region176
        $region175: #{tpu_custom_call.1} parent=123 // pred_region
          %1235 = dma.done %s1228, 16
        $region176: #{tpu_custom_call.1} parent=123 // pred_fallthru
          _
        %s1236 = sand.u32 %s63, 1
        %s1237 = scalar_lea.sflag [#allocation25], %s1236
        %s1238 = sand.u32 %s547, 1
        %s1239 = scalar_lea.vmem [#allocation24], %s1238
        // Predicated region
        $region177: #{tpu_custom_call.1} parent=123 // pred_check
          %p1240 = pneg %p560
        $region178: #{tpu_custom_call.1} parent=123 // pred_check_branch
          %1242 = sbr.rel (%p1240) target = $region180
        $region179: #{tpu_custom_call.1} parent=123 // pred_region
          %1244 = dma.done %s1237, 16
        $region180: #{tpu_custom_call.1} parent=123 // pred_fallthru
          _
        %s1245 = sand.u32 %s63, 1
        %s1246 = scalar_lea.sflag [#allocation25], %s1245
        %s1247 = sand.u32 %s573, 1
        %s1248 = smul.addr %s1247, 192
        %s1249 = scalar_lea.vmem [#allocation26], %s1248
        // Predicated region
        $region181: #{tpu_custom_call.1} parent=123 // pred_check
          %p1250 = pneg %p586
        $region182: #{tpu_custom_call.1} parent=123 // pred_check_branch
          %1252 = sbr.rel (%p1250) target = $region184
        $region183: #{tpu_custom_call.1} parent=123 // pred_region
          %1254 = dma.done %s1246, 3072
        $region184: #{tpu_custom_call.1} parent=123 // pred_fallthru
          _
        %s1255 = sand.u32 %s625, 1
        %s1256 = scalar_lea.sflag [#allocation28], %s1255
        %s1257 = sand.u32 %s625, 1
        %s1258 = smul.addr %s1257, 192
        %s1259 = scalar_lea.vmem [#allocation27], %s1258
        // Predicated region
        $region185: #{tpu_custom_call.1} parent=123 // pred_check
          %p1260 = pneg %p638
        $region186: #{tpu_custom_call.1} parent=123 // pred_check_branch
          %1262 = sbr.rel (%p1260) target = $region188
        $region187: #{tpu_custom_call.1} parent=123 // pred_region
          %1264 = dma.done %s1256, 3072
        $region188: #{tpu_custom_call.1} parent=123 // pred_fallthru
          _
        %p1265 = pneg %p91
        %p1266 = pneg %p88
        %p1267 = pneg %p112
        %p1268 = pneg %p109
        %p1269 = pneg %p133
        %p1270 = pneg %p130
        %p1271 = pneg %p154
        %p1272 = pneg %p151
        %p1273 = pneg %p175
        %p1274 = pneg %p172
        %p1275 = pneg %p196
        %p1276 = pneg %p193
        %s1277 = sand.u32 %s63, 1
        %s1278 = scalar_lea.sflag [#allocation7], %s1277
        %s1279 = sand.u32 %s209, 1
        %s1280 = smul.addr %s1279, 64
        %s1281 = scalar_lea.vmem [#allocation6], %s1280
        %p1282 = pneg %p222
        %p1283 = pneg %p219
        %s1284 = sand.u32 %s63, 1
        %s1285 = scalar_lea.sflag [#allocation7], %s1284
        %s1286 = sand.u32 %s235, 1
        %s1287 = scalar_lea.vmem [#allocation8], %s1286
        %p1288 = pneg %p248
        %p1289 = pneg %p245
        %s1290 = sand.u32 %s63, 1
        %s1291 = scalar_lea.sflag [#allocation10], %s1290
        %s1292 = sand.u32 %s261, 1
        %s1293 = smul.addr %s1292, 128
        %s1294 = scalar_lea.vmem [#allocation9], %s1293
        %p1295 = pneg %p274
        %p1296 = pneg %p271
        %s1297 = sand.u32 %s63, 1
        %s1298 = scalar_lea.sflag [#allocation10], %s1297
        %s1299 = sand.u32 %s287, 1
        %s1300 = smul.addr %s1299, 2
        %s1301 = scalar_lea.vmem [#allocation11], %s1300
        %p1302 = pneg %p300
        %p1303 = pneg %p297
        %s1304 = sand.u32 %s63, 1
        %s1305 = scalar_lea.sflag [#allocation13], %s1304
        %s1306 = sand.u32 %s313, 1
        %s1307 = smul.addr %s1306, 64
        %s1308 = scalar_lea.vmem [#allocation12], %s1307
        %p1309 = pneg %p326
        %p1310 = pneg %p323
        %s1311 = sand.u32 %s63, 1
        %s1312 = scalar_lea.sflag [#allocation13], %s1311
        %s1313 = sand.u32 %s339, 1
        %s1314 = scalar_lea.vmem [#allocation14], %s1313
        %p1315 = pneg %p352
        %p1316 = pneg %p349
        %s1317 = sand.u32 %s63, 1
        %s1318 = scalar_lea.sflag [#allocation16], %s1317
        %s1319 = sand.u32 %s365, 1
        %s1320 = scalar_lea.vmem [#allocation15], %s1319
        %p1321 = pneg %p378
        %p1322 = pneg %p375
        %s1323 = sand.u32 %s63, 1
        %s1324 = scalar_lea.sflag [#allocation16], %s1323
        %s1325 = sand.u32 %s391, 1
        %s1326 = scalar_lea.vmem [#allocation17], %s1325
        %p1327 = pneg %p404
        %p1328 = pneg %p401
        %s1329 = sand.u32 %s63, 1
        %s1330 = scalar_lea.sflag [#allocation19], %s1329
        %s1331 = sand.u32 %s417, 1
        %s1332 = smul.addr %s1331, 256
        %s1333 = scalar_lea.vmem [#allocation18], %s1332
        %p1334 = pneg %p430
        %p1335 = pneg %p427
        %p1336 = scmp.lt.s32.totalorder %s67, 1
        %s1337 = scalar_select %p1336, %s67, 1
        %s1338 = smul.addr %s1337, 4
        %s1339 = scalar_lea.vmem %s15, %s1338
        %p1340 = pneg %p456
        %p1341 = pneg %p453
        %s1342 = sand.u32 %s63, 1
        %s1343 = scalar_lea.sflag [#allocation19], %s1342
        %s1344 = sand.u32 %s469, 1
        %s1345 = smul.addr %s1344, 256
        %s1346 = scalar_lea.vmem [#allocation20], %s1345
        %p1347 = pneg %p482
        %p1348 = pneg %p479
        %s1349 = sand.u32 %s63, 1
        %s1350 = scalar_lea.sflag [#allocation22], %s1349
        %s1351 = sand.u32 %s495, 1
        %s1352 = scalar_lea.vmem [#allocation21], %s1351
        %p1353 = pneg %p508
        %p1354 = pneg %p505
        %s1355 = sand.u32 %s63, 1
        %s1356 = scalar_lea.sflag [#allocation22], %s1355
        %s1357 = sand.u32 %s521, 1
        %s1358 = scalar_lea.vmem [#allocation23], %s1357
        %p1359 = pneg %p534
        %p1360 = pneg %p531
        %s1361 = sand.u32 %s63, 1
        %s1362 = scalar_lea.sflag [#allocation25], %s1361
        %s1363 = sand.u32 %s547, 1
        %s1364 = scalar_lea.vmem [#allocation24], %s1363
        %p1365 = pneg %p560
        %p1366 = pneg %p557
        %s1367 = sand.u32 %s63, 1
        %s1368 = scalar_lea.sflag [#allocation25], %s1367
        %s1369 = sand.u32 %s573, 1
        %s1370 = smul.addr %s1369, 192
        %s1371 = scalar_lea.vmem [#allocation26], %s1370
        %p1372 = pneg %p586
        %p1373 = pneg %p583
        %p1374 = scmp.lt.s32.totalorder %s67, 1
        %s1375 = scalar_select %p1374, %s67, 1
        %s1376 = smul.addr %s1375, 3
        %s1377 = scalar_lea.vmem %s21, %s1376
        %p1378 = pneg %p612
        %p1379 = pneg %p609
        %s1380 = sand.u32 %s625, 1
        %s1381 = scalar_lea.sflag [#allocation28], %s1380
        %s1382 = sand.u32 %s625, 1
        %s1383 = smul.addr %s1382, 192
        %s1384 = scalar_lea.vmem [#allocation27], %s1383
        %p1385 = pneg %p638
        %p1386 = pneg %p635
        %p1387 = scmp.lt.s32.totalorder %s67, 1
        %s1388 = scalar_select %p1387, %s67, 1
        %s1389 = smul.addr %s1388, 3
        %s1390 = scalar_lea.vmem %s23, %s1389
        %p1391 = pneg %p664
        %p1392 = pneg %p661
        %p1393 = scmp.lt.s32.totalorder %s67, 1
        %s1394 = scalar_select %p1393, %s67, 1
        %s1395 = scalar_lea.vmem %s24, %s1394
        %p1396 = pneg %p690
        %p1397 = pneg %p687
        %p1398 = scmp.lt.s32.totalorder %s67, 1
        %s1399 = scalar_select %p1398, %s67, 1
        %s1400 = scalar_lea.vmem %s25, %s1399
        %p1401 = pneg %p716
        %p1402 = pneg %p713
        %p1403 = pneg %p737
        %p1404 = pneg %p734
        %p1405 = scmp.lt.s32.totalorder %s67, 1
        %s1406 = scalar_select %p1405, %s67, 1
        %s1407 = smul.addr %s1406, 4
        %s1408 = scalar_lea.vmem %s15, %s1407
        %p1409 = scmp.lt.s32.totalorder %s67, 1
        %s1410 = scalar_select %p1409, %s67, 1
        %s1411 = smul.addr %s1410, 3
        %s1412 = scalar_lea.vmem %s21, %s1411
        %p1413 = scmp.lt.s32.totalorder %s67, 1
        %s1414 = scalar_select %p1413, %s67, 1
        %s1415 = smul.addr %s1414, 3
        %s1416 = scalar_lea.vmem %s23, %s1415
        %p1417 = scmp.lt.s32.totalorder %s67, 1
        %s1418 = scalar_select %p1417, %s67, 1
        %s1419 = scalar_lea.vmem %s24, %s1418
        %p1420 = scmp.lt.s32.totalorder %s67, 1
        %s1421 = scalar_select %p1420, %s67, 1
        %s1422 = scalar_lea.vmem %s25, %s1421
        %p1424 = scmp.eq.s32.totalorder %s67, 0
        %p1425 = scmp.eq.s32.totalorder %s68, 0
        %p1426 = pnand %p1424, %p1425
        %p1427 = pneg %p1426
        // Predicated region
        $region189: #{tpu_custom_call.1} parent=123 // pred_check
          _
        $region190: #{tpu_custom_call.1} parent=123 // pred_check_branch
          %1429 = sbr.rel (%p1426) target = $region192
        $region191: #{tpu_custom_call.1} parent=123 // pred_region
          %v1430 = vld [vmem:[%s0] sm:$0xff]
          %v1431 = vld [vmem:[%s0 + $0x8] sm:$0xff]
          %1432 = vst [vmem:[#allocation29] sm:$0xff] %v1430
          %1433 = vst [vmem:[#allocation29 + $0x8] sm:$0xff] %v1431
        $region192: #{tpu_custom_call.1} parent=123 // pred_fallthru
          _
        // Predicated region
        $region193: #{tpu_custom_call.1} parent=123 // pred_check
          %p1434 = pneg %p1425
        $region194: #{tpu_custom_call.1} parent=123 // pred_check_branch
          %1436 = sbr.rel (%p1434) target = $region196
        $region195: #{tpu_custom_call.1} parent=123 // pred_region
          %v1437 = vld [vmem:[#allocation29] sm:$0xff]
          %v1438 = vld [vmem:[#allocation29 + $0x8] sm:$0xff]
          %1439 = vst [vmem:[#allocation2] sm:$0xff] %v1437
          %1440 = vst [vmem:[#allocation2 + $0x8] sm:$0xff] %v1438
        $region196: #{tpu_custom_call.1} parent=123 // pred_fallthru
          _
        %v1441 = vld [vmem:[#allocation29] sm:$0xff]
        %v1442 = vld [vmem:[#allocation29 + $0x8] sm:$0xff]
        %v1443 = vpack.c.bf16 %v1442, %v1441
        %v1444 = vld [vmem:[#allocation2] sm:$0xff]
        %v1445 = vld [vmem:[#allocation2 + $0x8] sm:$0xff]
        %v1446 = vld [vmem:[%s1] sm:$0xf]
        %v1447 = vld [vmem:[%s1 + $0x4] sm:$0xf]
        %v1448 = vld [vmem:[%s1 + $0x8] sm:$0xf]
        %v1449 = vld [vmem:[%s1 + $0xc] sm:$0xf]
        %v1450 = vunpack.c.l.bf16 %v1446
        %v1451 = vunpack.c.l.bf16 %v1447
        %v1452 = vunpack.c.l.bf16 %v1448
        %v1453 = vunpack.c.l.bf16 %v1449
        %v1454 = vld [vmem:[%s2] sm:$0xf]
        %v1455 = vld [vmem:[%s2 + $0x4] sm:$0xf]
        %v1456 = vld [vmem:[%s3] sm:$0xf]
        %v1457 = vld [vmem:[%s3 + $0x4] sm:$0xf]
        %v1458 = vld [vmem:[%s3 + $0x8] sm:$0xf]
        %v1459 = vld [vmem:[%s3 + $0xc] sm:$0xf]
        %v1460 = vld [vmem:[%s4] sm:$0xf]
        %v1461 = vld [vmem:[%s4 + $0x4] sm:$0xf]
        %v1462 = vld [vmem:[%s4 + $0x8] sm:$0xf]
        %v1463 = vld [vmem:[%s4 + $0xc] sm:$0xf]
        %v1464 = vld [vmem:[#allocation3] sm:$0xf]
        %v1465 = vld [vmem:[#allocation3 + $0x4] sm:$0xf]
        %v1466 = vld [vmem:[#allocation3 + $0x8] sm:$0xf]
        %v1467 = vld [vmem:[#allocation3 + $0xc] sm:$0xf]
        %v1468 = vld [vmem:[#allocation3 + $0x10] sm:$0xf]
        %v1469 = vld [vmem:[#allocation3 + $0x14] sm:$0xf]
        %v1470 = vld [vmem:[#allocation3 + $0x18] sm:$0xf]
        %v1471 = vld [vmem:[#allocation3 + $0x1c] sm:$0xf]
        %v1472 = vld [vmem:[#allocation3 + $0x20] sm:$0xf]
        %v1473 = vld [vmem:[#allocation3 + $0x24] sm:$0xf]
        %v1474 = vld [vmem:[#allocation3 + $0x28] sm:$0xf]
        %v1475 = vld [vmem:[#allocation3 + $0x2c] sm:$0xf]
        %v1476 = vld [vmem:[#allocation3 + $0x30] sm:$0xf]
        %v1477 = vld [vmem:[#allocation3 + $0x34] sm:$0xf]
        %v1478 = vld [vmem:[#allocation3 + $0x38] sm:$0xf]
        %v1479 = vld [vmem:[#allocation3 + $0x3c] sm:$0xf]
        %v1480 = vld [vmem:[%s1126] sm:$0xf]
        %v1481 = vld [vmem:[%s1126 + $0x4] sm:$0xf]
        %v1482 = vld [vmem:[%s1126 + $0x8] sm:$0xf]
        %v1483 = vld [vmem:[%s1126 + $0xc] sm:$0xf]
        %v1484 = vld [vmem:[%s1126 + $0x10] sm:$0xf]
        %v1485 = vld [vmem:[%s1126 + $0x14] sm:$0xf]
        %v1486 = vld [vmem:[%s1126 + $0x18] sm:$0xf]
        %v1487 = vld [vmem:[%s1126 + $0x1c] sm:$0xf]
        %v1488 = vld [vmem:[%s1126 + $0x20] sm:$0xf]
        %v1489 = vld [vmem:[%s1126 + $0x24] sm:$0xf]
        %v1490 = vld [vmem:[%s1126 + $0x28] sm:$0xf]
        %v1491 = vld [vmem:[%s1126 + $0x2c] sm:$0xf]
        %v1492 = vld [vmem:[%s1126 + $0x30] sm:$0xf]
        %v1493 = vld [vmem:[%s1126 + $0x34] sm:$0xf]
        %v1494 = vld [vmem:[%s1126 + $0x38] sm:$0xf]
        %v1495 = vld [vmem:[%s1126 + $0x3c] sm:$0xf]
        %v1496 = vld [vmem:[%s1135] sm:$0x1]
        %v1498 = vperm.slane %v1496, 0
        %v1516 = vunpack.c.l.b16 %v1480
        %v1517 = vunpack.c.l.b16 %v1481
        %v1518 = vunpack.c.l.b16 %v1482
        %v1519 = vunpack.c.l.b16 %v1483
        %v1520 = vunpack.c.l.b16 %v1484
        %v1521 = vunpack.c.l.b16 %v1485
        %v1522 = vunpack.c.l.b16 %v1486
        %v1523 = vunpack.c.l.b16 %v1487
        %v1524 = vunpack.c.l.b16 %v1488
        %v1525 = vunpack.c.l.b16 %v1489
        %v1526 = vunpack.c.l.b16 %v1490
        %v1527 = vunpack.c.l.b16 %v1491
        %v1528 = vunpack.c.l.b16 %v1492
        %v1529 = vunpack.c.l.b16 %v1493
        %v1530 = vunpack.c.l.b16 %v1494
        %v1531 = vunpack.c.l.b16 %v1495
        %v1532 = vpack.c.b16 %v1517, %v1516
        %v1533 = vpack.c.b16 %v1519, %v1518
        %v1534 = vpack.c.b16 %v1521, %v1520
        %v1535 = vpack.c.b16 %v1523, %v1522
        %v1536 = vpack.c.b16 %v1525, %v1524
        %v1537 = vpack.c.b16 %v1527, %v1526
        %v1538 = vpack.c.b16 %v1529, %v1528
        %v1539 = vpack.c.b16 %v1531, %v1530
        %1548 = vmatpush.bf16.msra.mxu0 %v1539
        %1549 = vmatpush.bf16.msra.mxu0 %v1538
        %1550 = vmatpush.bf16.msra.mxu0 %v1537
        %1551 = vmatpush.bf16.msra.mxu0 %v1536
        %1552 = vmatpush.bf16.msra.mxu0 %v1535
        %1553 = vmatpush.bf16.msra.mxu0 %v1534
        %1554 = vmatpush.bf16.msra.mxu0 %v1533
        %1555 = vmatpush.bf16.msra.mxu0 %v1532
        %1556 = vmatmul.bf16.gmra.mxu0 %v1443
        %v1557 = vpop.f32.mrf.mxu0
        %v1558 = vadd.f32 %v1498, %v1557
        %v1559 = vpop.f32.mrf.mxu0
        %v1560 = vadd.f32 %v1498, %v1559
        %1561 = vdwg.mxu0
        %v1562 = vpack.c.bf16 %v1560, %v1558
        %v1567 = vunpack.c.l.b16 %v1456
        %v1568 = vunpack.c.l.b16 %v1457
        %v1569 = vunpack.c.l.b16 %v1458
        %v1570 = vunpack.c.l.b16 %v1459
        %v1571 = vpack.c.b16 %v1568, %v1567
        %v1572 = vpack.c.b16 %v1570, %v1569
        %vm1573 = vcmask 130048
        %v1575 = vsel %vm1573, %v1571, 0
        %v1578 = vsel %vm1573, %v1572, 0
        %1580 = vmatpush.bf16.msra.mxu0 0
        %1581 = vmatpush.bf16.msra.mxu0 0
        %1582 = vmatpush.bf16.msra.mxu0 0
        %1583 = vmatpush.bf16.msra.mxu0 0
        %1584 = vmatpush.bf16.msra.mxu0 0
        %1585 = vmatpush.bf16.msra.mxu0 0
        %1586 = vmatpush.bf16.msra.mxu0 0
        %1587 = vmatpush.bf16.msra.mxu0 %v1562
        %1588 = vmatmul.bf16.gmra.mxu0 %v1575
        %v1589 = vpop.f32.mrf.mxu0
        %v1590 = vadd.f32 0.0, %v1589
        %v1591 = vpop.f32.mrf.mxu0
        %v1592 = vadd.f32 0.0, %v1591
        %1593 = vmatmul.bf16.gmra.mxu0 %v1578
        %v1594 = vpop.f32.mrf.mxu0
        %v1595 = vadd.f32 0.0, %v1594
        %v1596 = vpop.f32.mrf.mxu0
        %v1597 = vadd.f32 0.0, %v1596
        %1598 = vdwg.mxu0
        %v1603 = vunpack.c.l.b16 %v1460
        %v1604 = vunpack.c.l.b16 %v1461
        %v1605 = vunpack.c.l.b16 %v1462
        %v1606 = vunpack.c.l.b16 %v1463
        %v1607 = vpack.c.b16 %v1604, %v1603
        %v1608 = vpack.c.b16 %v1606, %v1605
        %v1610 = vsel %vm1573, %v1607, 0
        %v1613 = vsel %vm1573, %v1608, 0
        %1615 = vmatpush.bf16.msra.mxu0 0
        %1616 = vmatpush.bf16.msra.mxu0 0
        %1617 = vmatpush.bf16.msra.mxu0 0
        %1618 = vmatpush.bf16.msra.mxu0 0
        %1619 = vmatpush.bf16.msra.mxu0 0
        %1620 = vmatpush.bf16.msra.mxu0 0
        %1621 = vmatpush.bf16.msra.mxu0 0
        %1622 = vmatpush.bf16.msra.mxu0 %v1443
        %1623 = vmatmul.bf16.gmra.mxu0 %v1610
        %v1624 = vpop.f32.mrf.mxu0
        %v1625 = vadd.f32 %v1450, %v1624
        %v1626 = vpop.f32.mrf.mxu0
        %v1627 = vadd.f32 %v1451, %v1626
        %1628 = vmatmul.bf16.gmra.mxu0 %v1613
        %v1629 = vpop.f32.mrf.mxu0
        %v1630 = vadd.f32 %v1452, %v1629
        %v1631 = vpop.f32.mrf.mxu0
        %v1632 = vadd.f32 %v1453, %v1631
        %1633 = vdwg.mxu0
        %v1634 = vld [vmem:[%s1145] sm:$0xff]
        %v1635 = vld [vmem:[%s1145 + $0x8] sm:$0xff]
        %v1636 = vld [vmem:[%s1145 + $0x10] sm:$0xff]
        %v1637 = vld [vmem:[%s1145 + $0x18] sm:$0xff]
        %v1638 = vld [vmem:[%s1145 + $0x20] sm:$0xff]
        %v1639 = vld [vmem:[%s1145 + $0x28] sm:$0xff]
        %v1640 = vld [vmem:[%s1145 + $0x30] sm:$0xff]
        %v1641 = vld [vmem:[%s1145 + $0x38] sm:$0xff]
        %v1642 = vld [vmem:[%s1145 + $0x40] sm:$0xff]
        %v1643 = vld [vmem:[%s1145 + $0x48] sm:$0xff]
        %v1644 = vld [vmem:[%s1145 + $0x50] sm:$0xff]
        %v1645 = vld [vmem:[%s1145 + $0x58] sm:$0xff]
        %v1646 = vld [vmem:[%s1145 + $0x60] sm:$0xff]
        %v1647 = vld [vmem:[%s1145 + $0x68] sm:$0xff]
        %v1648 = vld [vmem:[%s1145 + $0x70] sm:$0xff]
        %v1649 = vld [vmem:[%s1145 + $0x78] sm:$0xff]
        %v1650 = vpack.c.bf16 %v1627, %v1625
        %v1651 = vpack.c.bf16 %v1632, %v1630
        %v1652 = vld [vmem:[%s1155] sm:$0x3]
        %v1654 = vperm.slane %v1652, 0
        %v1655 = vperm.slane %v1652, 1
        %v1674 = vunpack.c.l.b16 %v1634
        %v1675 = vunpack.c.h.b16 %v1634
        %v1676 = vunpack.c.l.b16 %v1635
        %v1677 = vunpack.c.h.b16 %v1635
        %v1678 = vunpack.c.l.b16 %v1636
        %v1679 = vunpack.c.h.b16 %v1636
        %v1680 = vunpack.c.l.b16 %v1637
        %v1681 = vunpack.c.h.b16 %v1637
        %v1682 = vunpack.c.l.b16 %v1638
        %v1683 = vunpack.c.h.b16 %v1638
        %v1684 = vunpack.c.l.b16 %v1639
        %v1685 = vunpack.c.h.b16 %v1639
        %v1686 = vunpack.c.l.b16 %v1640
        %v1687 = vunpack.c.h.b16 %v1640
        %v1688 = vunpack.c.l.b16 %v1641
        %v1689 = vunpack.c.h.b16 %v1641
        %v1690 = vunpack.c.l.b16 %v1642
        %v1691 = vunpack.c.h.b16 %v1642
        %v1692 = vunpack.c.l.b16 %v1643
        %v1693 = vunpack.c.h.b16 %v1643
        %v1694 = vunpack.c.l.b16 %v1644
        %v1695 = vunpack.c.h.b16 %v1644
        %v1696 = vunpack.c.l.b16 %v1645
        %v1697 = vunpack.c.h.b16 %v1645
        %v1698 = vunpack.c.l.b16 %v1646
        %v1699 = vunpack.c.h.b16 %v1646
        %v1700 = vunpack.c.l.b16 %v1647
        %v1701 = vunpack.c.h.b16 %v1647
        %v1702 = vunpack.c.l.b16 %v1648
        %v1703 = vunpack.c.h.b16 %v1648
        %v1704 = vunpack.c.l.b16 %v1649
        %v1705 = vunpack.c.h.b16 %v1649
        %v1706 = vpack.c.b16 %v1676, %v1674
        %v1707 = vpack.c.b16 %v1677, %v1675
        %v1708 = vpack.c.b16 %v1680, %v1678
        %v1709 = vpack.c.b16 %v1681, %v1679
        %v1710 = vpack.c.b16 %v1684, %v1682
        %v1711 = vpack.c.b16 %v1685, %v1683
        %v1712 = vpack.c.b16 %v1688, %v1686
        %v1713 = vpack.c.b16 %v1689, %v1687
        %v1714 = vpack.c.b16 %v1692, %v1690
        %v1715 = vpack.c.b16 %v1693, %v1691
        %v1716 = vpack.c.b16 %v1696, %v1694
        %v1717 = vpack.c.b16 %v1697, %v1695
        %v1718 = vpack.c.b16 %v1700, %v1698
        %v1719 = vpack.c.b16 %v1701, %v1699
        %v1720 = vpack.c.b16 %v1704, %v1702
        %v1721 = vpack.c.b16 %v1705, %v1703
        %1738 = vmatpush.bf16.msra.mxu0 %v1720
        %1739 = vmatpush.bf16.msra.mxu0 %v1718
        %1740 = vmatpush.bf16.msra.mxu0 %v1716
        %1741 = vmatpush.bf16.msra.mxu0 %v1714
        %1742 = vmatpush.bf16.msra.mxu0 %v1712
        %1743 = vmatpush.bf16.msra.mxu0 %v1710
        %1744 = vmatpush.bf16.msra.mxu0 %v1708
        %1745 = vmatpush.bf16.msra.mxu0 %v1706
        %1746 = vmatmul.bf16.gmra.mxu0 %v1650
        %v1747 = vpop.f32.mrf.mxu0
        %v1748 = vadd.f32 %v1654, %v1747
        %v1749 = vpop.f32.mrf.mxu0
        %v1750 = vadd.f32 %v1654, %v1749
        %1751 = vmatmul.bf16.gmra.mxu0 %v1651
        %v1752 = vpop.f32.mrf.mxu0
        %v1753 = vadd.f32 %v1654, %v1752
        %v1754 = vpop.f32.mrf.mxu0
        %v1755 = vadd.f32 %v1654, %v1754
        %1756 = vdwg.mxu0
        %1757 = vmatpush.bf16.msra.mxu0 %v1721
        %1758 = vmatpush.bf16.msra.mxu0 %v1719
        %1759 = vmatpush.bf16.msra.mxu0 %v1717
        %1760 = vmatpush.bf16.msra.mxu0 %v1715
        %1761 = vmatpush.bf16.msra.mxu0 %v1713
        %1762 = vmatpush.bf16.msra.mxu0 %v1711
        %1763 = vmatpush.bf16.msra.mxu0 %v1709
        %1764 = vmatpush.bf16.msra.mxu0 %v1707
        %1765 = vmatmul.bf16.gmra.mxu0 %v1650
        %v1766 = vpop.f32.mrf.mxu0
        %v1767 = vadd.f32 %v1655, %v1766
        %v1768 = vpop.f32.mrf.mxu0
        %v1769 = vadd.f32 %v1655, %v1768
        %1770 = vmatmul.bf16.gmra.mxu0 %v1651
        %v1771 = vpop.f32.mrf.mxu0
        %v1772 = vadd.f32 %v1655, %v1771
        %v1773 = vpop.f32.mrf.mxu0
        %v1774 = vadd.f32 %v1655, %v1773
        %1775 = vdwg.mxu0
        %v1776 = vmul.f32 %v1590, %v1748
        %v1777 = vmul.f32 %v1592, %v1750
        %v1778 = vmul.f32 %v1595, %v1753
        %v1779 = vmul.f32 %v1597, %v1755
        %v1780 = vpack.c.bf16 %v1777, %v1776
        %v1781 = vpack.c.bf16 %v1779, %v1778
        %v1798 = vunpack.c.l.b16 %v1464
        %v1799 = vunpack.c.l.b16 %v1465
        %v1800 = vunpack.c.l.b16 %v1466
        %v1801 = vunpack.c.l.b16 %v1467
        %v1802 = vunpack.c.l.b16 %v1468
        %v1803 = vunpack.c.l.b16 %v1469
        %v1804 = vunpack.c.l.b16 %v1470
        %v1805 = vunpack.c.l.b16 %v1471
        %v1806 = vunpack.c.l.b16 %v1472
        %v1807 = vunpack.c.l.b16 %v1473
        %v1808 = vunpack.c.l.b16 %v1474
        %v1809 = vunpack.c.l.b16 %v1475
        %v1810 = vunpack.c.l.b16 %v1476
        %v1811 = vunpack.c.l.b16 %v1477
        %v1812 = vunpack.c.l.b16 %v1478
        %v1813 = vunpack.c.l.b16 %v1479
        %v1814 = vpack.c.b16 %v1799, %v1798
        %v1815 = vpack.c.b16 %v1801, %v1800
        %v1816 = vpack.c.b16 %v1803, %v1802
        %v1817 = vpack.c.b16 %v1805, %v1804
        %v1818 = vpack.c.b16 %v1807, %v1806
        %v1819 = vpack.c.b16 %v1809, %v1808
        %v1820 = vpack.c.b16 %v1811, %v1810
        %v1821 = vpack.c.b16 %v1813, %v1812
        %1830 = vmatpush.bf16.msra.mxu0 %v1821
        %1831 = vmatpush.bf16.msra.mxu0 %v1820
        %1832 = vmatpush.bf16.msra.mxu0 %v1819
        %1833 = vmatpush.bf16.msra.mxu0 %v1818
        %1834 = vmatpush.bf16.msra.mxu0 %v1817
        %1835 = vmatpush.bf16.msra.mxu0 %v1816
        %1836 = vmatpush.bf16.msra.mxu0 %v1815
        %1837 = vmatpush.bf16.msra.mxu0 %v1814
        %1838 = vmatmul.bf16.gmra.mxu0 %v1780
        %v1839 = vpop.f32.mrf.mxu0
        %v1840 = vadd.f32 0.0, %v1839
        %v1841 = vpop.f32.mrf.mxu0
        %v1842 = vadd.f32 0.0, %v1841
        %1843 = vmatmul.bf16.gmra.mxu0 %v1781
        %v1844 = vpop.f32.mrf.mxu0
        %v1845 = vadd.f32 0.0, %v1844
        %v1846 = vpop.f32.mrf.mxu0
        %v1847 = vadd.f32 0.0, %v1846
        %1848 = vdwg.mxu0
        %v1849 = vmul.f32 %v1840, 0.17677669
        %v1850 = vmul.f32 %v1842, 0.17677669
        %v1851 = vmul.f32 %v1845, 0.17677669
        %v1852 = vmul.f32 %v1847, 0.17677669
        %v1853 = vmax.f32 %v1849, %v1850
        %v1854 = vmax.f32 %v1851, %v1852
        %v1855 = vmax.f32 %v1853, %v1854
        %v1856 = vrot.slane %v1855, 4
        %v1857 = vmax.f32 %v1855, %v1856
        %v1858 = vrot.slane %v1857, 2
        %v1859 = vmax.f32 %v1857, %v1858
        %v1860 = vrot.slane %v1859, 1
        %v1861 = vmax.f32 %v1859, %v1860
        %v1862 = vsub.f32 %v1849, %v1861
        %v1863 = vsub.f32 %v1850, %v1861
        %v1864 = vsub.f32 %v1851, %v1861
        %v1865 = vsub.f32 %v1852, %v1861
        %v1866 = vmul.f32 %v1862, 1.442695
        %v1867 = vpow.pop %v1866
        %v1868 = vmul.f32 %v1863, 1.442695
        %v1869 = vpow.pop %v1868
        %v1870 = vmul.f32 %v1864, 1.442695
        %v1871 = vpow.pop %v1870
        %v1872 = vmul.f32 %v1865, 1.442695
        %v1873 = vpow.pop %v1872
        %v1874 = vpack.c.bf16 %v1869, %v1867
        %v1875 = vpack.c.bf16 %v1873, %v1871
        %v1876 = vmul.f32 %v1867, %v1767
        %v1877 = vmul.f32 %v1869, %v1769
        %v1878 = vmul.f32 %v1871, %v1772
        %v1879 = vmul.f32 %v1873, %v1774
        %v1880 = vpack.c.bf16 %v1877, %v1876
        %v1881 = vpack.c.bf16 %v1879, %v1878
        %v1884 = vunpack.c.l.b16 %v1454
        %v1885 = vunpack.c.l.b16 %v1455
        %v1886 = vpack.c.b16 %v1885, %v1884
        %vm1887 = vcmask 261120
        %v1889 = vsel %vm1887, %v1886, 0
        %1891 = vmatpush.bf16.msra.mxu0 0
        %1892 = vmatpush.bf16.msra.mxu0 0
        %1893 = vmatpush.bf16.msra.mxu0 0
        %1894 = vmatpush.bf16.msra.mxu0 0
        %1895 = vmatpush.bf16.msra.mxu0 0
        %1896 = vmatpush.bf16.msra.mxu0 0
        %1897 = vmatpush.bf16.msra.mxu0 %v1881
        %1898 = vmatpush.bf16.msra.mxu0 %v1880
        %1899 = vmatmul.bf16.gmra.mxu0 %v1889
        %v1900 = vpop.f32.mrf.mxu0
        %v1901 = vadd.f32 0.0, %v1900
        %v1902 = vpop.f32.mrf.mxu0
        %v1903 = vadd.f32 0.0, %v1902
        %1904 = vdwg.mxu0
        %1905 = vmatpush.bf16.msra.mxu0 0
        %1906 = vmatpush.bf16.msra.mxu0 0
        %1907 = vmatpush.bf16.msra.mxu0 0
        %1908 = vmatpush.bf16.msra.mxu0 0
        %1909 = vmatpush.bf16.msra.mxu0 0
        %1910 = vmatpush.bf16.msra.mxu0 0
        %1911 = vmatpush.bf16.msra.mxu0 %v1875
        %1912 = vmatpush.bf16.msra.mxu0 %v1874
        %1913 = vmatmul.bf16.gmra.mxu0 %v1889
        %v1914 = vpop.f32.mrf.mxu0
        %v1915 = vadd.f32 1e-16, %v1914
        %v1916 = vpop.f32.mrf.mxu0
        %v1917 = vadd.f32 1e-16, %v1916
        %1918 = vdwg.mxu0
        %v1919 = vrcp.pop %v1915
        %v1920 = vrcp.pop %v1917
        %v1921 = vmul.f32 %v1901, %v1919
        %v1922 = vmul.f32 %v1903, %v1920
        %v1923 = vld [vmem:[%s1165] sm:$0xf]
        %v1924 = vld [vmem:[%s1165 + $0x4] sm:$0xf]
        %v1925 = vld [vmem:[%s1165 + $0x8] sm:$0xf]
        %v1926 = vld [vmem:[%s1165 + $0xc] sm:$0xf]
        %v1927 = vld [vmem:[%s1165 + $0x10] sm:$0xf]
        %v1928 = vld [vmem:[%s1165 + $0x14] sm:$0xf]
        %v1929 = vld [vmem:[%s1165 + $0x18] sm:$0xf]
        %v1930 = vld [vmem:[%s1165 + $0x1c] sm:$0xf]
        %v1931 = vld [vmem:[%s1165 + $0x20] sm:$0xf]
        %v1932 = vld [vmem:[%s1165 + $0x24] sm:$0xf]
        %v1933 = vld [vmem:[%s1165 + $0x28] sm:$0xf]
        %v1934 = vld [vmem:[%s1165 + $0x2c] sm:$0xf]
        %v1935 = vld [vmem:[%s1165 + $0x30] sm:$0xf]
        %v1936 = vld [vmem:[%s1165 + $0x34] sm:$0xf]
        %v1937 = vld [vmem:[%s1165 + $0x38] sm:$0xf]
        %v1938 = vld [vmem:[%s1165 + $0x3c] sm:$0xf]
        %v1939 = vpack.c.bf16 %v1922, %v1921
        %v1940 = vld [vmem:[%s1174] sm:$0x1]
        %v1942 = vperm.slane %v1940, 0
        %v1960 = vunpack.c.l.b16 %v1923
        %v1961 = vunpack.c.l.b16 %v1924
        %v1962 = vunpack.c.l.b16 %v1925
        %v1963 = vunpack.c.l.b16 %v1926
        %v1964 = vunpack.c.l.b16 %v1927
        %v1965 = vunpack.c.l.b16 %v1928
        %v1966 = vunpack.c.l.b16 %v1929
        %v1967 = vunpack.c.l.b16 %v1930
        %v1968 = vunpack.c.l.b16 %v1931
        %v1969 = vunpack.c.l.b16 %v1932
        %v1970 = vunpack.c.l.b16 %v1933
        %v1971 = vunpack.c.l.b16 %v1934
        %v1972 = vunpack.c.l.b16 %v1935
        %v1973 = vunpack.c.l.b16 %v1936
        %v1974 = vunpack.c.l.b16 %v1937
        %v1975 = vunpack.c.l.b16 %v1938
        %v1976 = vpack.c.b16 %v1961, %v1960
        %v1977 = vpack.c.b16 %v1963, %v1962
        %v1978 = vpack.c.b16 %v1965, %v1964
        %v1979 = vpack.c.b16 %v1967, %v1966
        %v1980 = vpack.c.b16 %v1969, %v1968
        %v1981 = vpack.c.b16 %v1971, %v1970
        %v1982 = vpack.c.b16 %v1973, %v1972
        %v1983 = vpack.c.b16 %v1975, %v1974
        %1992 = vmatpush.bf16.msra.mxu0 %v1983
        %1993 = vmatpush.bf16.msra.mxu0 %v1982
        %1994 = vmatpush.bf16.msra.mxu0 %v1981
        %1995 = vmatpush.bf16.msra.mxu0 %v1980
        %1996 = vmatpush.bf16.msra.mxu0 %v1979
        %1997 = vmatpush.bf16.msra.mxu0 %v1978
        %1998 = vmatpush.bf16.msra.mxu0 %v1977
        %1999 = vmatpush.bf16.msra.mxu0 %v1976
        %2000 = vmatmul.bf16.gmra.mxu0 %v1939
        %v2001 = vpop.f32.mrf.mxu0
        %v2002 = vadd.f32 %v1942, %v2001
        %v2003 = vpop.f32.mrf.mxu0
        %v2004 = vadd.f32 %v1942, %v2003
        %2005 = vdwg.mxu0
        %v2006 = vadd.f32 %v2002, %v1441
        %v2007 = vadd.f32 %v2004, %v1442
        %v2008 = vld [vmem:[%s1183] sm:$0x1]
        %v2009 = vld [vmem:[%s1192] sm:$0x1]
        %2010 = vadd.xlane.f32.xlu0 %v2006
        %v2011 = vpop.xlane.xlu0 %2010
        %2012 = vadd.xlane.f32.xlu0 %v2007
        %v2013 = vpop.xlane.xlu0 %2012
        %v2014 = vrcp.pop 128.0
        %v2015 = vmul.f32 128.0, %v2014
        %v2016 = vsub.f32 1.0, %v2015
        %v2017 = vmul.f32 %v2014, %v2016
        %v2018 = vadd.f32 %v2014, %v2017
        %vm2019 = vweird.f32 %v2014
        %v2020 = vsel %vm2019, %v2014, %v2018
        %v2021 = vmul.f32 %v2011, %v2020
        %v2022 = vmul.f32 %v2013, %v2020
        %v2023 = vsub.f32 %v2006, %v2021
        %v2024 = vsub.f32 %v2007, %v2022
        %v2025 = vmul.f32 %v2023, %v2023
        %v2026 = vmul.f32 %v2024, %v2024
        %2027 = vadd.xlane.f32.xlu0 %v2025
        %v2028 = vpop.xlane.xlu0 %2027
        %2029 = vadd.xlane.f32.xlu0 %v2026
        %v2030 = vpop.xlane.xlu0 %2029
        %v2031 = vmul.f32 %v2028, %v2020
        %v2032 = vmul.f32 %v2030, %v2020
        %v2033 = vadd.f32 %v2031, 1e-12
        %v2034 = vadd.f32 %v2032, 1e-12
        %v2035 = vrsqrt.pop %v2033
        %v2036 = vmul.f32 %v2035, %v2033
        %v2037 = vmul.f32 %v2036, %v2035
        %v2038 = vmul.f32 0.5, %v2037
        %v2039 = vsub.f32 1.5, %v2038
        %v2040 = vmul.f32 %v2035, %v2039
        %vm2041 = vweird.f32 %v2033
        %vm2042 = vweird.f32 %v2035
        %vm2043 = vmor %vm2041, %vm2042
        %v2044 = vsel %vm2043, %v2035, %v2040
        %v2045 = vrsqrt.pop %v2034
        %v2046 = vmul.f32 %v2045, %v2034
        %v2047 = vmul.f32 %v2046, %v2045
        %v2048 = vmul.f32 0.5, %v2047
        %v2049 = vsub.f32 1.5, %v2048
        %v2050 = vmul.f32 %v2045, %v2049
        %vm2051 = vweird.f32 %v2034
        %vm2052 = vweird.f32 %v2045
        %vm2053 = vmor %vm2051, %vm2052
        %v2054 = vsel %vm2053, %v2045, %v2050
        %v2055 = vmul.f32 %v2023, %v2044
        %v2056 = vmul.f32 %v2024, %v2054
        %v2058 = vperm.slane %v2008, 0
        %v2060 = vmul.f32 %v2058, %v2055
        %v2061 = vmul.f32 %v2058, %v2056
        %v2063 = vperm.slane %v2009, 0
        %v2065 = vadd.f32 %v2060, %v2063
        %v2066 = vadd.f32 %v2061, %v2063
        %v2067 = vld [vmem:[%s1202] sm:$0xff]
        %v2068 = vld [vmem:[%s1202 + $0x8] sm:$0xff]
        %v2069 = vld [vmem:[%s1202 + $0x10] sm:$0xff]
        %v2070 = vld [vmem:[%s1202 + $0x18] sm:$0xff]
        %v2071 = vld [vmem:[%s1202 + $0x20] sm:$0xff]
        %v2072 = vld [vmem:[%s1202 + $0x28] sm:$0xff]
        %v2073 = vld [vmem:[%s1202 + $0x30] sm:$0xff]
        %v2074 = vld [vmem:[%s1202 + $0x38] sm:$0xff]
        %v2075 = vld [vmem:[%s1202 + $0x40] sm:$0xff]
        %v2076 = vld [vmem:[%s1202 + $0x48] sm:$0xff]
        %v2077 = vld [vmem:[%s1202 + $0x50] sm:$0xff]
        %v2078 = vld [vmem:[%s1202 + $0x58] sm:$0xff]
        %v2079 = vld [vmem:[%s1202 + $0x60] sm:$0xff]
        %v2080 = vld [vmem:[%s1202 + $0x68] sm:$0xff]
        %v2081 = vld [vmem:[%s1202 + $0x70] sm:$0xff]
        %v2082 = vld [vmem:[%s1202 + $0x78] sm:$0xff]
        %v2083 = vld [vmem:[%s1202 + $0x80] sm:$0xff]
        %v2084 = vld [vmem:[%s1202 + $0x88] sm:$0xff]
        %v2085 = vld [vmem:[%s1202 + $0x90] sm:$0xff]
        %v2086 = vld [vmem:[%s1202 + $0x98] sm:$0xff]
        %v2087 = vld [vmem:[%s1202 + $0xa0] sm:$0xff]
        %v2088 = vld [vmem:[%s1202 + $0xa8] sm:$0xff]
        %v2089 = vld [vmem:[%s1202 + $0xb0] sm:$0xff]
        %v2090 = vld [vmem:[%s1202 + $0xb8] sm:$0xff]
        %v2091 = vld [vmem:[%s1202 + $0xc0] sm:$0xff]
        %v2092 = vld [vmem:[%s1202 + $0xc8] sm:$0xff]
        %v2093 = vld [vmem:[%s1202 + $0xd0] sm:$0xff]
        %v2094 = vld [vmem:[%s1202 + $0xd8] sm:$0xff]
        %v2095 = vld [vmem:[%s1202 + $0xe0] sm:$0xff]
        %v2096 = vld [vmem:[%s1202 + $0xe8] sm:$0xff]
        %v2097 = vld [vmem:[%s1202 + $0xf0] sm:$0xff]
        %v2098 = vld [vmem:[%s1202 + $0xf8] sm:$0xff]
        %v2099 = vpack.c.bf16 %v2066, %v2065
        %v2100 = vld [vmem:[%s1408] sm:$0xf]
        %v2102 = vperm.slane %v2100, 0
        %v2103 = vperm.slane %v2100, 1
        %v2104 = vperm.slane %v2100, 2
        %v2105 = vperm.slane %v2100, 3
        %v2142 = vunpack.c.l.b16 %v2067
        %v2143 = vunpack.c.h.b16 %v2067
        %v2144 = vunpack.c.l.b16 %v2068
        %v2145 = vunpack.c.h.b16 %v2068
        %v2146 = vunpack.c.l.b16 %v2069
        %v2147 = vunpack.c.h.b16 %v2069
        %v2148 = vunpack.c.l.b16 %v2070
        %v2149 = vunpack.c.h.b16 %v2070
        %v2150 = vunpack.c.l.b16 %v2071
        %v2151 = vunpack.c.h.b16 %v2071
        %v2152 = vunpack.c.l.b16 %v2072
        %v2153 = vunpack.c.h.b16 %v2072
        %v2154 = vunpack.c.l.b16 %v2073
        %v2155 = vunpack.c.h.b16 %v2073
        %v2156 = vunpack.c.l.b16 %v2074
        %v2157 = vunpack.c.h.b16 %v2074
        %v2158 = vunpack.c.l.b16 %v2075
        %v2159 = vunpack.c.h.b16 %v2075
        %v2160 = vunpack.c.l.b16 %v2076
        %v2161 = vunpack.c.h.b16 %v2076
        %v2162 = vunpack.c.l.b16 %v2077
        %v2163 = vunpack.c.h.b16 %v2077
        %v2164 = vunpack.c.l.b16 %v2078
        %v2165 = vunpack.c.h.b16 %v2078
        %v2166 = vunpack.c.l.b16 %v2079
        %v2167 = vunpack.c.h.b16 %v2079
        %v2168 = vunpack.c.l.b16 %v2080
        %v2169 = vunpack.c.h.b16 %v2080
        %v2170 = vunpack.c.l.b16 %v2081
        %v2171 = vunpack.c.h.b16 %v2081
        %v2172 = vunpack.c.l.b16 %v2082
        %v2173 = vunpack.c.h.b16 %v2082
        %v2174 = vunpack.c.l.b16 %v2083
        %v2175 = vunpack.c.h.b16 %v2083
        %v2176 = vunpack.c.l.b16 %v2084
        %v2177 = vunpack.c.h.b16 %v2084
        %v2178 = vunpack.c.l.b16 %v2085
        %v2179 = vunpack.c.h.b16 %v2085
        %v2180 = vunpack.c.l.b16 %v2086
        %v2181 = vunpack.c.h.b16 %v2086
        %v2182 = vunpack.c.l.b16 %v2087
        %v2183 = vunpack.c.h.b16 %v2087
        %v2184 = vunpack.c.l.b16 %v2088
        %v2185 = vunpack.c.h.b16 %v2088
        %v2186 = vunpack.c.l.b16 %v2089
        %v2187 = vunpack.c.h.b16 %v2089
        %v2188 = vunpack.c.l.b16 %v2090
        %v2189 = vunpack.c.h.b16 %v2090
        %v2190 = vunpack.c.l.b16 %v2091
        %v2191 = vunpack.c.h.b16 %v2091
        %v2192 = vunpack.c.l.b16 %v2092
        %v2193 = vunpack.c.h.b16 %v2092
        %v2194 = vunpack.c.l.b16 %v2093
        %v2195 = vunpack.c.h.b16 %v2093
        %v2196 = vunpack.c.l.b16 %v2094
        %v2197 = vunpack.c.h.b16 %v2094
        %v2198 = vunpack.c.l.b16 %v2095
        %v2199 = vunpack.c.h.b16 %v2095
        %v2200 = vunpack.c.l.b16 %v2096
        %v2201 = vunpack.c.h.b16 %v2096
        %v2202 = vunpack.c.l.b16 %v2097
        %v2203 = vunpack.c.h.b16 %v2097
        %v2204 = vunpack.c.l.b16 %v2098
        %v2205 = vunpack.c.h.b16 %v2098
        %v2206 = vpack.c.b16 %v2146, %v2142
        %v2207 = vpack.c.b16 %v2147, %v2143
        %v2208 = vpack.c.b16 %v2148, %v2144
        %v2209 = vpack.c.b16 %v2149, %v2145
        %v2210 = vpack.c.b16 %v2154, %v2150
        %v2211 = vpack.c.b16 %v2155, %v2151
        %v2212 = vpack.c.b16 %v2156, %v2152
        %v2213 = vpack.c.b16 %v2157, %v2153
        %v2214 = vpack.c.b16 %v2162, %v2158
        %v2215 = vpack.c.b16 %v2163, %v2159
        %v2216 = vpack.c.b16 %v2164, %v2160
        %v2217 = vpack.c.b16 %v2165, %v2161
        %v2218 = vpack.c.b16 %v2170, %v2166
        %v2219 = vpack.c.b16 %v2171, %v2167
        %v2220 = vpack.c.b16 %v2172, %v2168
        %v2221 = vpack.c.b16 %v2173, %v2169
        %v2222 = vpack.c.b16 %v2178, %v2174
        %v2223 = vpack.c.b16 %v2179, %v2175
        %v2224 = vpack.c.b16 %v2180, %v2176
        %v2225 = vpack.c.b16 %v2181, %v2177
        %v2226 = vpack.c.b16 %v2186, %v2182
        %v2227 = vpack.c.b16 %v2187, %v2183
        %v2228 = vpack.c.b16 %v2188, %v2184
        %v2229 = vpack.c.b16 %v2189, %v2185
        %v2230 = vpack.c.b16 %v2194, %v2190
        %v2231 = vpack.c.b16 %v2195, %v2191
        %v2232 = vpack.c.b16 %v2196, %v2192
        %v2233 = vpack.c.b16 %v2197, %v2193
        %v2234 = vpack.c.b16 %v2202, %v2198
        %v2235 = vpack.c.b16 %v2203, %v2199
        %v2236 = vpack.c.b16 %v2204, %v2200
        %v2237 = vpack.c.b16 %v2205, %v2201
        %2270 = vmatpush.bf16.msra.mxu0 %v2234
        %2271 = vmatpush.bf16.msra.mxu0 %v2230
        %2272 = vmatpush.bf16.msra.mxu0 %v2226
        %2273 = vmatpush.bf16.msra.mxu0 %v2222
        %2274 = vmatpush.bf16.msra.mxu0 %v2218
        %2275 = vmatpush.bf16.msra.mxu0 %v2214
        %2276 = vmatpush.bf16.msra.mxu0 %v2210
        %2277 = vmatpush.bf16.msra.mxu0 %v2206
        %2278 = vmatmul.bf16.gmra.mxu0 %v2099
        %v2279 = vpop.f32.mrf.mxu0
        %v2280 = vadd.f32 %v2102, %v2279
        %v2281 = vpop.f32.mrf.mxu0
        %v2282 = vadd.f32 %v2102, %v2281
        %2283 = vdwg.mxu0
        %2284 = vmatpush.bf16.msra.mxu0 %v2235
        %2285 = vmatpush.bf16.msra.mxu0 %v2231
        %2286 = vmatpush.bf16.msra.mxu0 %v2227
        %2287 = vmatpush.bf16.msra.mxu0 %v2223
        %2288 = vmatpush.bf16.msra.mxu0 %v2219
        %2289 = vmatpush.bf16.msra.mxu0 %v2215
        %2290 = vmatpush.bf16.msra.mxu0 %v2211
        %2291 = vmatpush.bf16.msra.mxu0 %v2207
        %2292 = vmatmul.bf16.gmra.mxu0 %v2099
        %v2293 = vpop.f32.mrf.mxu0
        %v2294 = vadd.f32 %v2103, %v2293
        %v2295 = vpop.f32.mrf.mxu0
        %v2296 = vadd.f32 %v2103, %v2295
        %2297 = vdwg.mxu0
        %2298 = vmatpush.bf16.msra.mxu0 %v2236
        %2299 = vmatpush.bf16.msra.mxu0 %v2232
        %2300 = vmatpush.bf16.msra.mxu0 %v2228
        %2301 = vmatpush.bf16.msra.mxu0 %v2224
        %2302 = vmatpush.bf16.msra.mxu0 %v2220
        %2303 = vmatpush.bf16.msra.mxu0 %v2216
        %2304 = vmatpush.bf16.msra.mxu0 %v2212
        %2305 = vmatpush.bf16.msra.mxu0 %v2208
        %2306 = vmatmul.bf16.gmra.mxu0 %v2099
        %v2307 = vpop.f32.mrf.mxu0
        %v2308 = vadd.f32 %v2104, %v2307
        %v2309 = vpop.f32.mrf.mxu0
        %v2310 = vadd.f32 %v2104, %v2309
        %2311 = vdwg.mxu0
        %2312 = vmatpush.bf16.msra.mxu0 %v2237
        %2313 = vmatpush.bf16.msra.mxu0 %v2233
        %2314 = vmatpush.bf16.msra.mxu0 %v2229
        %2315 = vmatpush.bf16.msra.mxu0 %v2225
        %2316 = vmatpush.bf16.msra.mxu0 %v2221
        %2317 = vmatpush.bf16.msra.mxu0 %v2217
        %2318 = vmatpush.bf16.msra.mxu0 %v2213
        %2319 = vmatpush.bf16.msra.mxu0 %v2209
        %2320 = vmatmul.bf16.gmra.mxu0 %v2099
        %v2321 = vpop.f32.mrf.mxu0
        %v2322 = vadd.f32 %v2105, %v2321
        %v2323 = vpop.f32.mrf.mxu0
        %v2324 = vadd.f32 %v2105, %v2323
        %2325 = vdwg.mxu0
        %v2326 = vmul.f32 %v2280, 0.5
        %v2327 = vmul.f32 %v2294, 0.5
        %v2328 = vmul.f32 %v2308, 0.5
        %v2329 = vmul.f32 %v2322, 0.5
        %v2330 = vmul.f32 %v2282, 0.5
        %v2331 = vmul.f32 %v2296, 0.5
        %v2332 = vmul.f32 %v2310, 0.5
        %v2333 = vmul.f32 %v2324, 0.5
        %v2334 = vmul.f32 %v2280, 0.70710856
        %v2335 = vmul.f32 %v2294, 0.70710856
        %v2336 = vmul.f32 %v2308, 0.70710856
        %v2337 = vmul.f32 %v2322, 0.70710856
        %v2338 = vmul.f32 %v2282, 0.70710856
        %v2339 = vmul.f32 %v2296, 0.70710856
        %v2340 = vmul.f32 %v2310, 0.70710856
        %v2341 = vmul.f32 %v2324, 0.70710856
        %v2342 = vand.u32 2147483647, %v2334
        %v2343 = vand.u32 2147483647, %v2335
        %v2344 = vand.u32 2147483647, %v2336
        %v2345 = vand.u32 2147483647, %v2337
        %v2346 = vand.u32 2147483647, %v2338
        %v2347 = vand.u32 2147483647, %v2339
        %v2348 = vand.u32 2147483647, %v2340
        %v2349 = vand.u32 2147483647, %v2341
        %v2350 = vmul.f32 %v2342, 0.3275911
        %v2351 = vmul.f32 %v2343, 0.3275911
        %v2352 = vmul.f32 %v2344, 0.3275911
        %v2353 = vmul.f32 %v2345, 0.3275911
        %v2354 = vmul.f32 %v2346, 0.3275911
        %v2355 = vmul.f32 %v2347, 0.3275911
        %v2356 = vmul.f32 %v2348, 0.3275911
        %v2357 = vmul.f32 %v2349, 0.3275911
        %v2358 = vadd.f32 %v2350, 1.0
        %v2359 = vadd.f32 %v2351, 1.0
        %v2360 = vadd.f32 %v2352, 1.0
        %v2361 = vadd.f32 %v2353, 1.0
        %v2362 = vadd.f32 %v2354, 1.0
        %v2363 = vadd.f32 %v2355, 1.0
        %v2364 = vadd.f32 %v2356, 1.0
        %v2365 = vadd.f32 %v2357, 1.0
        %v2366 = vrcp.pop %v2358
        %v2367 = vrcp.pop %v2359
        %v2368 = vrcp.pop %v2360
        %v2369 = vrcp.pop %v2361
        %v2370 = vrcp.pop %v2362
        %v2371 = vrcp.pop %v2363
        %v2372 = vrcp.pop %v2364
        %v2373 = vrcp.pop %v2365
        %v2374 = vmul.f32 %v2366, 1.0614054
        %v2375 = vmul.f32 %v2367, 1.0614054
        %v2376 = vmul.f32 %v2368, 1.0614054
        %v2377 = vmul.f32 %v2369, 1.0614054
        %v2378 = vmul.f32 %v2370, 1.0614054
        %v2379 = vmul.f32 %v2371, 1.0614054
        %v2380 = vmul.f32 %v2372, 1.0614054
        %v2381 = vmul.f32 %v2373, 1.0614054
        %v2382 = vadd.f32 %v2374, -1.4531521
        %v2383 = vadd.f32 %v2375, -1.4531521
        %v2384 = vadd.f32 %v2376, -1.4531521
        %v2385 = vadd.f32 %v2377, -1.4531521
        %v2386 = vadd.f32 %v2378, -1.4531521
        %v2387 = vadd.f32 %v2379, -1.4531521
        %v2388 = vadd.f32 %v2380, -1.4531521
        %v2389 = vadd.f32 %v2381, -1.4531521
        %v2390 = vmul.f32 %v2382, %v2366
        %v2391 = vmul.f32 %v2383, %v2367
        %v2392 = vmul.f32 %v2384, %v2368
        %v2393 = vmul.f32 %v2385, %v2369
        %v2394 = vmul.f32 %v2386, %v2370
        %v2395 = vmul.f32 %v2387, %v2371
        %v2396 = vmul.f32 %v2388, %v2372
        %v2397 = vmul.f32 %v2389, %v2373
        %v2398 = vadd.f32 %v2390, 1.4214138
        %v2399 = vadd.f32 %v2391, 1.4214138
        %v2400 = vadd.f32 %v2392, 1.4214138
        %v2401 = vadd.f32 %v2393, 1.4214138
        %v2402 = vadd.f32 %v2394, 1.4214138
        %v2403 = vadd.f32 %v2395, 1.4214138
        %v2404 = vadd.f32 %v2396, 1.4214138
        %v2405 = vadd.f32 %v2397, 1.4214138
        %v2406 = vmul.f32 %v2398, %v2366
        %v2407 = vmul.f32 %v2399, %v2367
        %v2408 = vmul.f32 %v2400, %v2368
        %v2409 = vmul.f32 %v2401, %v2369
        %v2410 = vmul.f32 %v2402, %v2370
        %v2411 = vmul.f32 %v2403, %v2371
        %v2412 = vmul.f32 %v2404, %v2372
        %v2413 = vmul.f32 %v2405, %v2373
        %v2414 = vadd.f32 %v2406, -0.28449672
        %v2415 = vadd.f32 %v2407, -0.28449672
        %v2416 = vadd.f32 %v2408, -0.28449672
        %v2417 = vadd.f32 %v2409, -0.28449672
        %v2418 = vadd.f32 %v2410, -0.28449672
        %v2419 = vadd.f32 %v2411, -0.28449672
        %v2420 = vadd.f32 %v2412, -0.28449672
        %v2421 = vadd.f32 %v2413, -0.28449672
        %v2422 = vmul.f32 %v2414, %v2366
        %v2423 = vmul.f32 %v2415, %v2367
        %v2424 = vmul.f32 %v2416, %v2368
        %v2425 = vmul.f32 %v2417, %v2369
        %v2426 = vmul.f32 %v2418, %v2370
        %v2427 = vmul.f32 %v2419, %v2371
        %v2428 = vmul.f32 %v2420, %v2372
        %v2429 = vmul.f32 %v2421, %v2373
        %v2430 = vadd.f32 %v2422, 0.2548296
        %v2431 = vadd.f32 %v2423, 0.2548296
        %v2432 = vadd.f32 %v2424, 0.2548296
        %v2433 = vadd.f32 %v2425, 0.2548296
        %v2434 = vadd.f32 %v2426, 0.2548296
        %v2435 = vadd.f32 %v2427, 0.2548296
        %v2436 = vadd.f32 %v2428, 0.2548296
        %v2437 = vadd.f32 %v2429, 0.2548296
        %v2438 = vmul.f32 %v2430, %v2366
        %v2439 = vmul.f32 %v2431, %v2367
        %v2440 = vmul.f32 %v2432, %v2368
        %v2441 = vmul.f32 %v2433, %v2369
        %v2442 = vmul.f32 %v2434, %v2370
        %v2443 = vmul.f32 %v2435, %v2371
        %v2444 = vmul.f32 %v2436, %v2372
        %v2445 = vmul.f32 %v2437, %v2373
        %v2446 = vsub.f32 0.0, %v2342
        %v2447 = vsub.f32 0.0, %v2343
        %v2448 = vsub.f32 0.0, %v2344
        %v2449 = vsub.f32 0.0, %v2345
        %v2450 = vsub.f32 0.0, %v2346
        %v2451 = vsub.f32 0.0, %v2347
        %v2452 = vsub.f32 0.0, %v2348
        %v2453 = vsub.f32 0.0, %v2349
        %v2454 = vmul.f32 %v2446, %v2342
        %v2455 = vmul.f32 %v2447, %v2343
        %v2456 = vmul.f32 %v2448, %v2344
        %v2457 = vmul.f32 %v2449, %v2345
        %v2458 = vmul.f32 %v2450, %v2346
        %v2459 = vmul.f32 %v2451, %v2347
        %v2460 = vmul.f32 %v2452, %v2348
        %v2461 = vmul.f32 %v2453, %v2349
        %v2462 = vmul.f32 %v2454, 1.442695
        %v2463 = vpow.pop %v2462
        %v2464 = vmul.f32 %v2455, 1.442695
        %v2465 = vpow.pop %v2464
        %v2466 = vmul.f32 %v2456, 1.442695
        %v2467 = vpow.pop %v2466
        %v2468 = vmul.f32 %v2457, 1.442695
        %v2469 = vpow.pop %v2468
        %v2470 = vmul.f32 %v2458, 1.442695
        %v2471 = vpow.pop %v2470
        %v2472 = vmul.f32 %v2459, 1.442695
        %v2473 = vpow.pop %v2472
        %v2474 = vmul.f32 %v2460, 1.442695
        %v2475 = vpow.pop %v2474
        %v2476 = vmul.f32 %v2461, 1.442695
        %v2477 = vpow.pop %v2476
        %v2478 = vmul.f32 %v2438, %v2463
        %v2479 = vmul.f32 %v2439, %v2465
        %v2480 = vmul.f32 %v2440, %v2467
        %v2481 = vmul.f32 %v2441, %v2469
        %v2482 = vmul.f32 %v2442, %v2471
        %v2483 = vmul.f32 %v2443, %v2473
        %v2484 = vmul.f32 %v2444, %v2475
        %v2485 = vmul.f32 %v2445, %v2477
        %v2486 = vsub.f32 1.0, %v2478
        %v2487 = vsub.f32 1.0, %v2479
        %v2488 = vsub.f32 1.0, %v2480
        %v2489 = vsub.f32 1.0, %v2481
        %v2490 = vsub.f32 1.0, %v2482
        %v2491 = vsub.f32 1.0, %v2483
        %v2492 = vsub.f32 1.0, %v2484
        %v2493 = vsub.f32 1.0, %v2485
        %vm2494 = vcmp.ge.f32.partialorder %v2334, 0.0
        %vm2495 = vcmp.ge.f32.partialorder %v2335, 0.0
        %vm2496 = vcmp.ge.f32.partialorder %v2336, 0.0
        %vm2497 = vcmp.ge.f32.partialorder %v2337, 0.0
        %vm2498 = vcmp.ge.f32.partialorder %v2338, 0.0
        %vm2499 = vcmp.ge.f32.partialorder %v2339, 0.0
        %vm2500 = vcmp.ge.f32.partialorder %v2340, 0.0
        %vm2501 = vcmp.ge.f32.partialorder %v2341, 0.0
        %v2502 = vsub.f32 0.0, %v2486
        %v2503 = vsub.f32 0.0, %v2487
        %v2504 = vsub.f32 0.0, %v2488
        %v2505 = vsub.f32 0.0, %v2489
        %v2506 = vsub.f32 0.0, %v2490
        %v2507 = vsub.f32 0.0, %v2491
        %v2508 = vsub.f32 0.0, %v2492
        %v2509 = vsub.f32 0.0, %v2493
        %v2510 = vsel %vm2494, %v2486, %v2502
        %v2511 = vsel %vm2495, %v2487, %v2503
        %v2512 = vsel %vm2496, %v2488, %v2504
        %v2513 = vsel %vm2497, %v2489, %v2505
        %v2514 = vsel %vm2498, %v2490, %v2506
        %v2515 = vsel %vm2499, %v2491, %v2507
        %v2516 = vsel %vm2500, %v2492, %v2508
        %v2517 = vsel %vm2501, %v2493, %v2509
        %v2518 = vadd.f32 %v2510, 1.0
        %v2519 = vadd.f32 %v2511, 1.0
        %v2520 = vadd.f32 %v2512, 1.0
        %v2521 = vadd.f32 %v2513, 1.0
        %v2522 = vadd.f32 %v2514, 1.0
        %v2523 = vadd.f32 %v2515, 1.0
        %v2524 = vadd.f32 %v2516, 1.0
        %v2525 = vadd.f32 %v2517, 1.0
        %v2526 = vmul.f32 %v2326, %v2518
        %v2527 = vmul.f32 %v2327, %v2519
        %v2528 = vmul.f32 %v2328, %v2520
        %v2529 = vmul.f32 %v2329, %v2521
        %v2530 = vmul.f32 %v2330, %v2522
        %v2531 = vmul.f32 %v2331, %v2523
        %v2532 = vmul.f32 %v2332, %v2524
        %v2533 = vmul.f32 %v2333, %v2525
        %v2534 = vld [vmem:[%s1212] sm:$0xf]
        %v2535 = vld [vmem:[%s1212 + $0x4] sm:$0xf]
        %v2536 = vld [vmem:[%s1212 + $0x8] sm:$0xf]
        %v2537 = vld [vmem:[%s1212 + $0xc] sm:$0xf]
        %v2538 = vld [vmem:[%s1212 + $0x10] sm:$0xf]
        %v2539 = vld [vmem:[%s1212 + $0x14] sm:$0xf]
        %v2540 = vld [vmem:[%s1212 + $0x18] sm:$0xf]
        %v2541 = vld [vmem:[%s1212 + $0x1c] sm:$0xf]
        %v2542 = vld [vmem:[%s1212 + $0x20] sm:$0xf]
        %v2543 = vld [vmem:[%s1212 + $0x24] sm:$0xf]
        %v2544 = vld [vmem:[%s1212 + $0x28] sm:$0xf]
        %v2545 = vld [vmem:[%s1212 + $0x2c] sm:$0xf]
        %v2546 = vld [vmem:[%s1212 + $0x30] sm:$0xf]
        %v2547 = vld [vmem:[%s1212 + $0x34] sm:$0xf]
        %v2548 = vld [vmem:[%s1212 + $0x38] sm:$0xf]
        %v2549 = vld [vmem:[%s1212 + $0x3c] sm:$0xf]
        %v2550 = vld [vmem:[%s1212 + $0x40] sm:$0xf]
        %v2551 = vld [vmem:[%s1212 + $0x44] sm:$0xf]
        %v2552 = vld [vmem:[%s1212 + $0x48] sm:$0xf]
        %v2553 = vld [vmem:[%s1212 + $0x4c] sm:$0xf]
        %v2554 = vld [vmem:[%s1212 + $0x50] sm:$0xf]
        %v2555 = vld [vmem:[%s1212 + $0x54] sm:$0xf]
        %v2556 = vld [vmem:[%s1212 + $0x58] sm:$0xf]
        %v2557 = vld [vmem:[%s1212 + $0x5c] sm:$0xf]
        %v2558 = vld [vmem:[%s1212 + $0x60] sm:$0xf]
        %v2559 = vld [vmem:[%s1212 + $0x64] sm:$0xf]
        %v2560 = vld [vmem:[%s1212 + $0x68] sm:$0xf]
        %v2561 = vld [vmem:[%s1212 + $0x6c] sm:$0xf]
        %v2562 = vld [vmem:[%s1212 + $0x70] sm:$0xf]
        %v2563 = vld [vmem:[%s1212 + $0x74] sm:$0xf]
        %v2564 = vld [vmem:[%s1212 + $0x78] sm:$0xf]
        %v2565 = vld [vmem:[%s1212 + $0x7c] sm:$0xf]
        %v2566 = vld [vmem:[%s1212 + $0x80] sm:$0xf]
        %v2567 = vld [vmem:[%s1212 + $0x84] sm:$0xf]
        %v2568 = vld [vmem:[%s1212 + $0x88] sm:$0xf]
        %v2569 = vld [vmem:[%s1212 + $0x8c] sm:$0xf]
        %v2570 = vld [vmem:[%s1212 + $0x90] sm:$0xf]
        %v2571 = vld [vmem:[%s1212 + $0x94] sm:$0xf]
        %v2572 = vld [vmem:[%s1212 + $0x98] sm:$0xf]
        %v2573 = vld [vmem:[%s1212 + $0x9c] sm:$0xf]
        %v2574 = vld [vmem:[%s1212 + $0xa0] sm:$0xf]
        %v2575 = vld [vmem:[%s1212 + $0xa4] sm:$0xf]
        %v2576 = vld [vmem:[%s1212 + $0xa8] sm:$0xf]
        %v2577 = vld [vmem:[%s1212 + $0xac] sm:$0xf]
        %v2578 = vld [vmem:[%s1212 + $0xb0] sm:$0xf]
        %v2579 = vld [vmem:[%s1212 + $0xb4] sm:$0xf]
        %v2580 = vld [vmem:[%s1212 + $0xb8] sm:$0xf]
        %v2581 = vld [vmem:[%s1212 + $0xbc] sm:$0xf]
        %v2582 = vld [vmem:[%s1212 + $0xc0] sm:$0xf]
        %v2583 = vld [vmem:[%s1212 + $0xc4] sm:$0xf]
        %v2584 = vld [vmem:[%s1212 + $0xc8] sm:$0xf]
        %v2585 = vld [vmem:[%s1212 + $0xcc] sm:$0xf]
        %v2586 = vld [vmem:[%s1212 + $0xd0] sm:$0xf]
        %v2587 = vld [vmem:[%s1212 + $0xd4] sm:$0xf]
        %v2588 = vld [vmem:[%s1212 + $0xd8] sm:$0xf]
        %v2589 = vld [vmem:[%s1212 + $0xdc] sm:$0xf]
        %v2590 = vld [vmem:[%s1212 + $0xe0] sm:$0xf]
        %v2591 = vld [vmem:[%s1212 + $0xe4] sm:$0xf]
        %v2592 = vld [vmem:[%s1212 + $0xe8] sm:$0xf]
        %v2593 = vld [vmem:[%s1212 + $0xec] sm:$0xf]
        %v2594 = vld [vmem:[%s1212 + $0xf0] sm:$0xf]
        %v2595 = vld [vmem:[%s1212 + $0xf4] sm:$0xf]
        %v2596 = vld [vmem:[%s1212 + $0xf8] sm:$0xf]
        %v2597 = vld [vmem:[%s1212 + $0xfc] sm:$0xf]
        %v2598 = vpack.c.bf16 %v2530, %v2526
        %v2599 = vpack.c.bf16 %v2531, %v2527
        %v2600 = vpack.c.bf16 %v2532, %v2528
        %v2601 = vpack.c.bf16 %v2533, %v2529
        %v2602 = vld [vmem:[%s1221] sm:$0x1]
        %v2604 = vperm.slane %v2602, 0
        %v2670 = vunpack.c.l.b16 %v2534
        %v2671 = vunpack.c.l.b16 %v2535
        %v2672 = vunpack.c.l.b16 %v2536
        %v2673 = vunpack.c.l.b16 %v2537
        %v2674 = vunpack.c.l.b16 %v2538
        %v2675 = vunpack.c.l.b16 %v2539
        %v2676 = vunpack.c.l.b16 %v2540
        %v2677 = vunpack.c.l.b16 %v2541
        %v2678 = vunpack.c.l.b16 %v2542
        %v2679 = vunpack.c.l.b16 %v2543
        %v2680 = vunpack.c.l.b16 %v2544
        %v2681 = vunpack.c.l.b16 %v2545
        %v2682 = vunpack.c.l.b16 %v2546
        %v2683 = vunpack.c.l.b16 %v2547
        %v2684 = vunpack.c.l.b16 %v2548
        %v2685 = vunpack.c.l.b16 %v2549
        %v2686 = vunpack.c.l.b16 %v2550
        %v2687 = vunpack.c.l.b16 %v2551
        %v2688 = vunpack.c.l.b16 %v2552
        %v2689 = vunpack.c.l.b16 %v2553
        %v2690 = vunpack.c.l.b16 %v2554
        %v2691 = vunpack.c.l.b16 %v2555
        %v2692 = vunpack.c.l.b16 %v2556
        %v2693 = vunpack.c.l.b16 %v2557
        %v2694 = vunpack.c.l.b16 %v2558
        %v2695 = vunpack.c.l.b16 %v2559
        %v2696 = vunpack.c.l.b16 %v2560
        %v2697 = vunpack.c.l.b16 %v2561
        %v2698 = vunpack.c.l.b16 %v2562
        %v2699 = vunpack.c.l.b16 %v2563
        %v2700 = vunpack.c.l.b16 %v2564
        %v2701 = vunpack.c.l.b16 %v2565
        %v2702 = vunpack.c.l.b16 %v2566
        %v2703 = vunpack.c.l.b16 %v2567
        %v2704 = vunpack.c.l.b16 %v2568
        %v2705 = vunpack.c.l.b16 %v2569
        %v2706 = vunpack.c.l.b16 %v2570
        %v2707 = vunpack.c.l.b16 %v2571
        %v2708 = vunpack.c.l.b16 %v2572
        %v2709 = vunpack.c.l.b16 %v2573
        %v2710 = vunpack.c.l.b16 %v2574
        %v2711 = vunpack.c.l.b16 %v2575
        %v2712 = vunpack.c.l.b16 %v2576
        %v2713 = vunpack.c.l.b16 %v2577
        %v2714 = vunpack.c.l.b16 %v2578
        %v2715 = vunpack.c.l.b16 %v2579
        %v2716 = vunpack.c.l.b16 %v2580
        %v2717 = vunpack.c.l.b16 %v2581
        %v2718 = vunpack.c.l.b16 %v2582
        %v2719 = vunpack.c.l.b16 %v2583
        %v2720 = vunpack.c.l.b16 %v2584
        %v2721 = vunpack.c.l.b16 %v2585
        %v2722 = vunpack.c.l.b16 %v2586
        %v2723 = vunpack.c.l.b16 %v2587
        %v2724 = vunpack.c.l.b16 %v2588
        %v2725 = vunpack.c.l.b16 %v2589
        %v2726 = vunpack.c.l.b16 %v2590
        %v2727 = vunpack.c.l.b16 %v2591
        %v2728 = vunpack.c.l.b16 %v2592
        %v2729 = vunpack.c.l.b16 %v2593
        %v2730 = vunpack.c.l.b16 %v2594
        %v2731 = vunpack.c.l.b16 %v2595
        %v2732 = vunpack.c.l.b16 %v2596
        %v2733 = vunpack.c.l.b16 %v2597
        %v2734 = vpack.c.b16 %v2671, %v2670
        %v2735 = vpack.c.b16 %v2673, %v2672
        %v2736 = vpack.c.b16 %v2675, %v2674
        %v2737 = vpack.c.b16 %v2677, %v2676
        %v2738 = vpack.c.b16 %v2679, %v2678
        %v2739 = vpack.c.b16 %v2681, %v2680
        %v2740 = vpack.c.b16 %v2683, %v2682
        %v2741 = vpack.c.b16 %v2685, %v2684
        %v2742 = vpack.c.b16 %v2687, %v2686
        %v2743 = vpack.c.b16 %v2689, %v2688
        %v2744 = vpack.c.b16 %v2691, %v2690
        %v2745 = vpack.c.b16 %v2693, %v2692
        %v2746 = vpack.c.b16 %v2695, %v2694
        %v2747 = vpack.c.b16 %v2697, %v2696
        %v2748 = vpack.c.b16 %v2699, %v2698
        %v2749 = vpack.c.b16 %v2701, %v2700
        %v2750 = vpack.c.b16 %v2703, %v2702
        %v2751 = vpack.c.b16 %v2705, %v2704
        %v2752 = vpack.c.b16 %v2707, %v2706
        %v2753 = vpack.c.b16 %v2709, %v2708
        %v2754 = vpack.c.b16 %v2711, %v2710
        %v2755 = vpack.c.b16 %v2713, %v2712
        %v2756 = vpack.c.b16 %v2715, %v2714
        %v2757 = vpack.c.b16 %v2717, %v2716
        %v2758 = vpack.c.b16 %v2719, %v2718
        %v2759 = vpack.c.b16 %v2721, %v2720
        %v2760 = vpack.c.b16 %v2723, %v2722
        %v2761 = vpack.c.b16 %v2725, %v2724
        %v2762 = vpack.c.b16 %v2727, %v2726
        %v2763 = vpack.c.b16 %v2729, %v2728
        %v2764 = vpack.c.b16 %v2731, %v2730
        %v2765 = vpack.c.b16 %v2733, %v2732
        %2798 = vmatpush.bf16.msra.mxu0 %v2741
        %2799 = vmatpush.bf16.msra.mxu0 %v2740
        %2800 = vmatpush.bf16.msra.mxu0 %v2739
        %2801 = vmatpush.bf16.msra.mxu0 %v2738
        %2802 = vmatpush.bf16.msra.mxu0 %v2737
        %2803 = vmatpush.bf16.msra.mxu0 %v2736
        %2804 = vmatpush.bf16.msra.mxu0 %v2735
        %2805 = vmatpush.bf16.msra.mxu0 %v2734
        %2806 = vmatmul.bf16.gmra.mxu0 %v2598
        %v2807 = vpop.f32.mrf.mxu0
        %v2808 = vadd.f32 %v2604, %v2807
        %v2809 = vpop.f32.mrf.mxu0
        %v2810 = vadd.f32 %v2604, %v2809
        %2811 = vdwg.mxu0
        %2812 = vmatpush.bf16.msra.mxu0 %v2749
        %2813 = vmatpush.bf16.msra.mxu0 %v2748
        %2814 = vmatpush.bf16.msra.mxu0 %v2747
        %2815 = vmatpush.bf16.msra.mxu0 %v2746
        %2816 = vmatpush.bf16.msra.mxu0 %v2745
        %2817 = vmatpush.bf16.msra.mxu0 %v2744
        %2818 = vmatpush.bf16.msra.mxu0 %v2743
        %2819 = vmatpush.bf16.msra.mxu0 %v2742
        %2820 = vmatmul.bf16.gmra.mxu0 %v2599
        %v2821 = vpop.f32.mrf.mxu0
        %v2822 = vadd.f32 %v2808, %v2821
        %v2823 = vpop.f32.mrf.mxu0
        %v2824 = vadd.f32 %v2810, %v2823
        %2825 = vdwg.mxu0
        %2826 = vmatpush.bf16.msra.mxu0 %v2757
        %2827 = vmatpush.bf16.msra.mxu0 %v2756
        %2828 = vmatpush.bf16.msra.mxu0 %v2755
        %2829 = vmatpush.bf16.msra.mxu0 %v2754
        %2830 = vmatpush.bf16.msra.mxu0 %v2753
        %2831 = vmatpush.bf16.msra.mxu0 %v2752
        %2832 = vmatpush.bf16.msra.mxu0 %v2751
        %2833 = vmatpush.bf16.msra.mxu0 %v2750
        %2834 = vmatmul.bf16.gmra.mxu0 %v2600
        %v2835 = vpop.f32.mrf.mxu0
        %v2836 = vadd.f32 %v2822, %v2835
        %v2837 = vpop.f32.mrf.mxu0
        %v2838 = vadd.f32 %v2824, %v2837
        %2839 = vdwg.mxu0
        %2840 = vmatpush.bf16.msra.mxu0 %v2765
        %2841 = vmatpush.bf16.msra.mxu0 %v2764
        %2842 = vmatpush.bf16.msra.mxu0 %v2763
        %2843 = vmatpush.bf16.msra.mxu0 %v2762
        %2844 = vmatpush.bf16.msra.mxu0 %v2761
        %2845 = vmatpush.bf16.msra.mxu0 %v2760
        %2846 = vmatpush.bf16.msra.mxu0 %v2759
        %2847 = vmatpush.bf16.msra.mxu0 %v2758
        %2848 = vmatmul.bf16.gmra.mxu0 %v2601
        %v2849 = vpop.f32.mrf.mxu0
        %v2850 = vadd.f32 %v2836, %v2849
        %v2851 = vpop.f32.mrf.mxu0
        %v2852 = vadd.f32 %v2838, %v2851
        %2853 = vdwg.mxu0
        %v2854 = vadd.f32 %v2850, %v2065
        %v2855 = vadd.f32 %v2852, %v2066
        %v2856 = vld [vmem:[%s1230] sm:$0x1]
        %v2857 = vld [vmem:[%s1239] sm:$0x1]
        %2858 = vadd.xlane.f32.xlu0 %v2854
        %v2859 = vpop.xlane.xlu0 %2858
        %2860 = vadd.xlane.f32.xlu0 %v2855
        %v2861 = vpop.xlane.xlu0 %2860
        %v2862 = vmul.f32 %v2859, %v2020
        %v2863 = vmul.f32 %v2861, %v2020
        %v2864 = vsub.f32 %v2854, %v2862
        %v2865 = vsub.f32 %v2855, %v2863
        %v2866 = vmul.f32 %v2864, %v2864
        %v2867 = vmul.f32 %v2865, %v2865
        %2868 = vadd.xlane.f32.xlu0 %v2866
        %v2869 = vpop.xlane.xlu0 %2868
        %2870 = vadd.xlane.f32.xlu0 %v2867
        %v2871 = vpop.xlane.xlu0 %2870
        %v2872 = vmul.f32 %v2869, %v2020
        %v2873 = vmul.f32 %v2871, %v2020
        %v2874 = vadd.f32 %v2872, 1e-12
        %v2875 = vadd.f32 %v2873, 1e-12
        %v2876 = vrsqrt.pop %v2874
        %v2877 = vmul.f32 %v2876, %v2874
        %v2878 = vmul.f32 %v2877, %v2876
        %v2879 = vmul.f32 0.5, %v2878
        %v2880 = vsub.f32 1.5, %v2879
        %v2881 = vmul.f32 %v2876, %v2880
        %vm2882 = vweird.f32 %v2874
        %vm2883 = vweird.f32 %v2876
        %vm2884 = vmor %vm2882, %vm2883
        %v2885 = vsel %vm2884, %v2876, %v2881
        %v2886 = vrsqrt.pop %v2875
        %v2887 = vmul.f32 %v2886, %v2875
        %v2888 = vmul.f32 %v2887, %v2886
        %v2889 = vmul.f32 0.5, %v2888
        %v2890 = vsub.f32 1.5, %v2889
        %v2891 = vmul.f32 %v2886, %v2890
        %vm2892 = vweird.f32 %v2875
        %vm2893 = vweird.f32 %v2886
        %vm2894 = vmor %vm2892, %vm2893
        %v2895 = vsel %vm2894, %v2886, %v2891
        %v2896 = vmul.f32 %v2864, %v2885
        %v2897 = vmul.f32 %v2865, %v2895
        %v2899 = vperm.slane %v2856, 0
        %v2901 = vmul.f32 %v2899, %v2896
        %v2902 = vmul.f32 %v2899, %v2897
        %v2904 = vperm.slane %v2857, 0
        %v2906 = vadd.f32 %v2901, %v2904
        %v2907 = vadd.f32 %v2902, %v2904
        %v2908 = vld [vmem:[%s1249] sm:$0xff]
        %v2909 = vld [vmem:[%s1249 + $0x8] sm:$0xf]
        %v2910 = vld [vmem:[%s1249 + $0xc] sm:$0xff]
        %v2911 = vld [vmem:[%s1249 + $0x14] sm:$0xf]
        %v2912 = vld [vmem:[%s1249 + $0x18] sm:$0xff]
        %v2913 = vld [vmem:[%s1249 + $0x20] sm:$0xf]
        %v2914 = vld [vmem:[%s1249 + $0x24] sm:$0xff]
        %v2915 = vld [vmem:[%s1249 + $0x2c] sm:$0xf]
        %v2916 = vld [vmem:[%s1249 + $0x30] sm:$0xff]
        %v2917 = vld [vmem:[%s1249 + $0x38] sm:$0xf]
        %v2918 = vld [vmem:[%s1249 + $0x3c] sm:$0xff]
        %v2919 = vld [vmem:[%s1249 + $0x44] sm:$0xf]
        %v2920 = vld [vmem:[%s1249 + $0x48] sm:$0xff]
        %v2921 = vld [vmem:[%s1249 + $0x50] sm:$0xf]
        %v2922 = vld [vmem:[%s1249 + $0x54] sm:$0xff]
        %v2923 = vld [vmem:[%s1249 + $0x5c] sm:$0xf]
        %v2924 = vld [vmem:[%s1249 + $0x60] sm:$0xff]
        %v2925 = vld [vmem:[%s1249 + $0x68] sm:$0xf]
        %v2926 = vld [vmem:[%s1249 + $0x6c] sm:$0xff]
        %v2927 = vld [vmem:[%s1249 + $0x74] sm:$0xf]
        %v2928 = vld [vmem:[%s1249 + $0x78] sm:$0xff]
        %v2929 = vld [vmem:[%s1249 + $0x80] sm:$0xf]
        %v2930 = vld [vmem:[%s1249 + $0x84] sm:$0xff]
        %v2931 = vld [vmem:[%s1249 + $0x8c] sm:$0xf]
        %v2932 = vld [vmem:[%s1249 + $0x90] sm:$0xff]
        %v2933 = vld [vmem:[%s1249 + $0x98] sm:$0xf]
        %v2934 = vld [vmem:[%s1249 + $0x9c] sm:$0xff]
        %v2935 = vld [vmem:[%s1249 + $0xa4] sm:$0xf]
        %v2936 = vld [vmem:[%s1249 + $0xa8] sm:$0xff]
        %v2937 = vld [vmem:[%s1249 + $0xb0] sm:$0xf]
        %v2938 = vld [vmem:[%s1249 + $0xb4] sm:$0xff]
        %v2939 = vld [vmem:[%s1249 + $0xbc] sm:$0xf]
        %v2940 = vpack.c.bf16 %v2907, %v2906
        %v2941 = vld [vmem:[%s1412] sm:$0x7]
        %v2943 = vperm.slane %v2941, 0
        %v2944 = vperm.slane %v2941, 1
        %v2945 = vperm.slane %v2941, 2
        %v2981 = vunpack.c.l.b16 %v2908
        %v2982 = vunpack.c.h.b16 %v2908
        %v2983 = vunpack.c.l.b16 %v2909
        %v2984 = vunpack.c.l.b16 %v2910
        %v2985 = vunpack.c.h.b16 %v2910
        %v2986 = vunpack.c.l.b16 %v2911
        %v2987 = vunpack.c.l.b16 %v2912
        %v2988 = vunpack.c.h.b16 %v2912
        %v2989 = vunpack.c.l.b16 %v2913
        %v2990 = vunpack.c.l.b16 %v2914
        %v2991 = vunpack.c.h.b16 %v2914
        %v2992 = vunpack.c.l.b16 %v2915
        %v2993 = vunpack.c.l.b16 %v2916
        %v2994 = vunpack.c.h.b16 %v2916
        %v2995 = vunpack.c.l.b16 %v2917
        %v2996 = vunpack.c.l.b16 %v2918
        %v2997 = vunpack.c.h.b16 %v2918
        %v2998 = vunpack.c.l.b16 %v2919
        %v2999 = vunpack.c.l.b16 %v2920
        %v3000 = vunpack.c.h.b16 %v2920
        %v3001 = vunpack.c.l.b16 %v2921
        %v3002 = vunpack.c.l.b16 %v2922
        %v3003 = vunpack.c.h.b16 %v2922
        %v3004 = vunpack.c.l.b16 %v2923
        %v3005 = vunpack.c.l.b16 %v2924
        %v3006 = vunpack.c.h.b16 %v2924
        %v3007 = vunpack.c.l.b16 %v2925
        %v3008 = vunpack.c.l.b16 %v2926
        %v3009 = vunpack.c.h.b16 %v2926
        %v3010 = vunpack.c.l.b16 %v2927
        %v3011 = vunpack.c.l.b16 %v2928
        %v3012 = vunpack.c.h.b16 %v2928
        %v3013 = vunpack.c.l.b16 %v2929
        %v3014 = vunpack.c.l.b16 %v2930
        %v3015 = vunpack.c.h.b16 %v2930
        %v3016 = vunpack.c.l.b16 %v2931
        %v3017 = vunpack.c.l.b16 %v2932
        %v3018 = vunpack.c.h.b16 %v2932
        %v3019 = vunpack.c.l.b16 %v2933
        %v3020 = vunpack.c.l.b16 %v2934
        %v3021 = vunpack.c.h.b16 %v2934
        %v3022 = vunpack.c.l.b16 %v2935
        %v3023 = vunpack.c.l.b16 %v2936
        %v3024 = vunpack.c.h.b16 %v2936
        %v3025 = vunpack.c.l.b16 %v2937
        %v3026 = vunpack.c.l.b16 %v2938
        %v3027 = vunpack.c.h.b16 %v2938
        %v3028 = vunpack.c.l.b16 %v2939
        %v3029 = vpack.c.b16 %v2984, %v2981
        %v3030 = vpack.c.b16 %v2985, %v2982
        %v3031 = vpack.c.b16 %v2986, %v2983
        %v3032 = vpack.c.b16 %v2990, %v2987
        %v3033 = vpack.c.b16 %v2991, %v2988
        %v3034 = vpack.c.b16 %v2992, %v2989
        %v3035 = vpack.c.b16 %v2996, %v2993
        %v3036 = vpack.c.b16 %v2997, %v2994
        %v3037 = vpack.c.b16 %v2998, %v2995
        %v3038 = vpack.c.b16 %v3002, %v2999
        %v3039 = vpack.c.b16 %v3003, %v3000
        %v3040 = vpack.c.b16 %v3004, %v3001
        %v3041 = vpack.c.b16 %v3008, %v3005
        %v3042 = vpack.c.b16 %v3009, %v3006
        %v3043 = vpack.c.b16 %v3010, %v3007
        %v3044 = vpack.c.b16 %v3014, %v3011
        %v3045 = vpack.c.b16 %v3015, %v3012
        %v3046 = vpack.c.b16 %v3016, %v3013
        %v3047 = vpack.c.b16 %v3020, %v3017
        %v3048 = vpack.c.b16 %v3021, %v3018
        %v3049 = vpack.c.b16 %v3022, %v3019
        %v3050 = vpack.c.b16 %v3026, %v3023
        %v3051 = vpack.c.b16 %v3027, %v3024
        %v3052 = vpack.c.b16 %v3028, %v3025
        %3077 = vmatpush.bf16.msra.mxu0 %v3050
        %3078 = vmatpush.bf16.msra.mxu0 %v3047
        %3079 = vmatpush.bf16.msra.mxu0 %v3044
        %3080 = vmatpush.bf16.msra.mxu0 %v3041
        %3081 = vmatpush.bf16.msra.mxu0 %v3038
        %3082 = vmatpush.bf16.msra.mxu0 %v3035
        %3083 = vmatpush.bf16.msra.mxu0 %v3032
        %3084 = vmatpush.bf16.msra.mxu0 %v3029
        %3085 = vmatmul.bf16.gmra.mxu0 %v2940
        %v3086 = vpop.f32.mrf.mxu0
        %v3087 = vadd.f32 %v2943, %v3086
        %v3088 = vpop.f32.mrf.mxu0
        %v3089 = vadd.f32 %v2943, %v3088
        %3090 = vdwg.mxu0
        %3091 = vmatpush.bf16.msra.mxu0 %v3051
        %3092 = vmatpush.bf16.msra.mxu0 %v3048
        %3093 = vmatpush.bf16.msra.mxu0 %v3045
        %3094 = vmatpush.bf16.msra.mxu0 %v3042
        %3095 = vmatpush.bf16.msra.mxu0 %v3039
        %3096 = vmatpush.bf16.msra.mxu0 %v3036
        %3097 = vmatpush.bf16.msra.mxu0 %v3033
        %3098 = vmatpush.bf16.msra.mxu0 %v3030
        %3099 = vmatmul.bf16.gmra.mxu0 %v2940
        %v3100 = vpop.f32.mrf.mxu0
        %v3101 = vadd.f32 %v2944, %v3100
        %v3102 = vpop.f32.mrf.mxu0
        %v3103 = vadd.f32 %v2944, %v3102
        %3104 = vdwg.mxu0
        %3105 = vmatpush.bf16.msra.mxu0 %v3052
        %3106 = vmatpush.bf16.msra.mxu0 %v3049
        %3107 = vmatpush.bf16.msra.mxu0 %v3046
        %3108 = vmatpush.bf16.msra.mxu0 %v3043
        %3109 = vmatpush.bf16.msra.mxu0 %v3040
        %3110 = vmatpush.bf16.msra.mxu0 %v3037
        %3111 = vmatpush.bf16.msra.mxu0 %v3034
        %3112 = vmatpush.bf16.msra.mxu0 %v3031
        %3113 = vmatmul.bf16.gmra.mxu0 %v2940
        %v3114 = vpop.f32.mrf.mxu0
        %v3115 = vadd.f32 %v2945, %v3114
        %v3116 = vpop.f32.mrf.mxu0
        %v3117 = vadd.f32 %v2945, %v3116
        %3118 = vdwg.mxu0
        %v3119 = vld [vmem:[%s1259] sm:$0xff]
        %v3120 = vld [vmem:[%s1259 + $0x8] sm:$0xf]
        %v3121 = vld [vmem:[%s1259 + $0xc] sm:$0xff]
        %v3122 = vld [vmem:[%s1259 + $0x14] sm:$0xf]
        %v3123 = vld [vmem:[%s1259 + $0x18] sm:$0xff]
        %v3124 = vld [vmem:[%s1259 + $0x20] sm:$0xf]
        %v3125 = vld [vmem:[%s1259 + $0x24] sm:$0xff]
        %v3126 = vld [vmem:[%s1259 + $0x2c] sm:$0xf]
        %v3127 = vld [vmem:[%s1259 + $0x30] sm:$0xff]
        %v3128 = vld [vmem:[%s1259 + $0x38] sm:$0xf]
        %v3129 = vld [vmem:[%s1259 + $0x3c] sm:$0xff]
        %v3130 = vld [vmem:[%s1259 + $0x44] sm:$0xf]
        %v3131 = vld [vmem:[%s1259 + $0x48] sm:$0xff]
        %v3132 = vld [vmem:[%s1259 + $0x50] sm:$0xf]
        %v3133 = vld [vmem:[%s1259 + $0x54] sm:$0xff]
        %v3134 = vld [vmem:[%s1259 + $0x5c] sm:$0xf]
        %v3135 = vld [vmem:[%s1259 + $0x60] sm:$0xff]
        %v3136 = vld [vmem:[%s1259 + $0x68] sm:$0xf]
        %v3137 = vld [vmem:[%s1259 + $0x6c] sm:$0xff]
        %v3138 = vld [vmem:[%s1259 + $0x74] sm:$0xf]
        %v3139 = vld [vmem:[%s1259 + $0x78] sm:$0xff]
        %v3140 = vld [vmem:[%s1259 + $0x80] sm:$0xf]
        %v3141 = vld [vmem:[%s1259 + $0x84] sm:$0xff]
        %v3142 = vld [vmem:[%s1259 + $0x8c] sm:$0xf]
        %v3143 = vld [vmem:[%s1259 + $0x90] sm:$0xff]
        %v3144 = vld [vmem:[%s1259 + $0x98] sm:$0xf]
        %v3145 = vld [vmem:[%s1259 + $0x9c] sm:$0xff]
        %v3146 = vld [vmem:[%s1259 + $0xa4] sm:$0xf]
        %v3147 = vld [vmem:[%s1259 + $0xa8] sm:$0xff]
        %v3148 = vld [vmem:[%s1259 + $0xb0] sm:$0xf]
        %v3149 = vld [vmem:[%s1259 + $0xb4] sm:$0xff]
        %v3150 = vld [vmem:[%s1259 + $0xbc] sm:$0xf]
        %v3151 = vpack.c.bf16 %v1445, %v1444
        %v3152 = vld [vmem:[%s1416] sm:$0x7]
        %v3154 = vperm.slane %v3152, 0
        %v3155 = vperm.slane %v3152, 1
        %v3156 = vperm.slane %v3152, 2
        %v3192 = vunpack.c.l.b16 %v3119
        %v3193 = vunpack.c.h.b16 %v3119
        %v3194 = vunpack.c.l.b16 %v3120
        %v3195 = vunpack.c.l.b16 %v3121
        %v3196 = vunpack.c.h.b16 %v3121
        %v3197 = vunpack.c.l.b16 %v3122
        %v3198 = vunpack.c.l.b16 %v3123
        %v3199 = vunpack.c.h.b16 %v3123
        %v3200 = vunpack.c.l.b16 %v3124
        %v3201 = vunpack.c.l.b16 %v3125
        %v3202 = vunpack.c.h.b16 %v3125
        %v3203 = vunpack.c.l.b16 %v3126
        %v3204 = vunpack.c.l.b16 %v3127
        %v3205 = vunpack.c.h.b16 %v3127
        %v3206 = vunpack.c.l.b16 %v3128
        %v3207 = vunpack.c.l.b16 %v3129
        %v3208 = vunpack.c.h.b16 %v3129
        %v3209 = vunpack.c.l.b16 %v3130
        %v3210 = vunpack.c.l.b16 %v3131
        %v3211 = vunpack.c.h.b16 %v3131
        %v3212 = vunpack.c.l.b16 %v3132
        %v3213 = vunpack.c.l.b16 %v3133
        %v3214 = vunpack.c.h.b16 %v3133
        %v3215 = vunpack.c.l.b16 %v3134
        %v3216 = vunpack.c.l.b16 %v3135
        %v3217 = vunpack.c.h.b16 %v3135
        %v3218 = vunpack.c.l.b16 %v3136
        %v3219 = vunpack.c.l.b16 %v3137
        %v3220 = vunpack.c.h.b16 %v3137
        %v3221 = vunpack.c.l.b16 %v3138
        %v3222 = vunpack.c.l.b16 %v3139
        %v3223 = vunpack.c.h.b16 %v3139
        %v3224 = vunpack.c.l.b16 %v3140
        %v3225 = vunpack.c.l.b16 %v3141
        %v3226 = vunpack.c.h.b16 %v3141
        %v3227 = vunpack.c.l.b16 %v3142
        %v3228 = vunpack.c.l.b16 %v3143
        %v3229 = vunpack.c.h.b16 %v3143
        %v3230 = vunpack.c.l.b16 %v3144
        %v3231 = vunpack.c.l.b16 %v3145
        %v3232 = vunpack.c.h.b16 %v3145
        %v3233 = vunpack.c.l.b16 %v3146
        %v3234 = vunpack.c.l.b16 %v3147
        %v3235 = vunpack.c.h.b16 %v3147
        %v3236 = vunpack.c.l.b16 %v3148
        %v3237 = vunpack.c.l.b16 %v3149
        %v3238 = vunpack.c.h.b16 %v3149
        %v3239 = vunpack.c.l.b16 %v3150
        %v3240 = vpack.c.b16 %v3195, %v3192
        %v3241 = vpack.c.b16 %v3196, %v3193
        %v3242 = vpack.c.b16 %v3197, %v3194
        %v3243 = vpack.c.b16 %v3201, %v3198
        %v3244 = vpack.c.b16 %v3202, %v3199
        %v3245 = vpack.c.b16 %v3203, %v3200
        %v3246 = vpack.c.b16 %v3207, %v3204
        %v3247 = vpack.c.b16 %v3208, %v3205
        %v3248 = vpack.c.b16 %v3209, %v3206
        %v3249 = vpack.c.b16 %v3213, %v3210
        %v3250 = vpack.c.b16 %v3214, %v3211
        %v3251 = vpack.c.b16 %v3215, %v3212
        %v3252 = vpack.c.b16 %v3219, %v3216
        %v3253 = vpack.c.b16 %v3220, %v3217
        %v3254 = vpack.c.b16 %v3221, %v3218
        %v3255 = vpack.c.b16 %v3225, %v3222
        %v3256 = vpack.c.b16 %v3226, %v3223
        %v3257 = vpack.c.b16 %v3227, %v3224
        %v3258 = vpack.c.b16 %v3231, %v3228
        %v3259 = vpack.c.b16 %v3232, %v3229
        %v3260 = vpack.c.b16 %v3233, %v3230
        %v3261 = vpack.c.b16 %v3237, %v3234
        %v3262 = vpack.c.b16 %v3238, %v3235
        %v3263 = vpack.c.b16 %v3239, %v3236
        %3288 = vmatpush.bf16.msra.mxu0 %v3261
        %3289 = vmatpush.bf16.msra.mxu0 %v3258
        %3290 = vmatpush.bf16.msra.mxu0 %v3255
        %3291 = vmatpush.bf16.msra.mxu0 %v3252
        %3292 = vmatpush.bf16.msra.mxu0 %v3249
        %3293 = vmatpush.bf16.msra.mxu0 %v3246
        %3294 = vmatpush.bf16.msra.mxu0 %v3243
        %3295 = vmatpush.bf16.msra.mxu0 %v3240
        %3296 = vmatmul.bf16.gmra.mxu0 %v3151
        %v3297 = vpop.f32.mrf.mxu0
        %v3298 = vadd.f32 %v3154, %v3297
        %v3299 = vpop.f32.mrf.mxu0
        %v3300 = vadd.f32 %v3154, %v3299
        %3301 = vdwg.mxu0
        %3302 = vmatpush.bf16.msra.mxu0 %v3262
        %3303 = vmatpush.bf16.msra.mxu0 %v3259
        %3304 = vmatpush.bf16.msra.mxu0 %v3256
        %3305 = vmatpush.bf16.msra.mxu0 %v3253
        %3306 = vmatpush.bf16.msra.mxu0 %v3250
        %3307 = vmatpush.bf16.msra.mxu0 %v3247
        %3308 = vmatpush.bf16.msra.mxu0 %v3244
        %3309 = vmatpush.bf16.msra.mxu0 %v3241
        %3310 = vmatmul.bf16.gmra.mxu0 %v3151
        %v3311 = vpop.f32.mrf.mxu0
        %v3312 = vadd.f32 %v3155, %v3311
        %v3313 = vpop.f32.mrf.mxu0
        %v3314 = vadd.f32 %v3155, %v3313
        %3315 = vdwg.mxu0
        %3316 = vmatpush.bf16.msra.mxu0 %v3263
        %3317 = vmatpush.bf16.msra.mxu0 %v3260
        %3318 = vmatpush.bf16.msra.mxu0 %v3257
        %3319 = vmatpush.bf16.msra.mxu0 %v3254
        %3320 = vmatpush.bf16.msra.mxu0 %v3251
        %3321 = vmatpush.bf16.msra.mxu0 %v3248
        %3322 = vmatpush.bf16.msra.mxu0 %v3245
        %3323 = vmatpush.bf16.msra.mxu0 %v3242
        %3324 = vmatmul.bf16.gmra.mxu0 %v3151
        %v3325 = vpop.f32.mrf.mxu0
        %v3326 = vadd.f32 %v3156, %v3325
        %v3327 = vpop.f32.mrf.mxu0
        %v3328 = vadd.f32 %v3156, %v3327
        %3329 = vdwg.mxu0
        %v3330 = vadd.f32 %v3087, %v3298
        %v3331 = vadd.f32 %v3089, %v3300
        %v3332 = vxor.u32 %v3330, 2147483648
        %v3333 = vxor.u32 %v3331, 2147483648
        %v3334 = vmul.f32 %v3332, 1.442695
        %v3335 = vpow.pop %v3334
        %v3336 = vmul.f32 %v3333, 1.442695
        %v3337 = vpow.pop %v3336
        %v3338 = vadd.f32 %v3335, 1.0
        %v3339 = vadd.f32 %v3337, 1.0
        %v3340 = vrcp.pop %v3338
        %v3341 = vmul.f32 %v3338, %v3340
        %v3342 = vsub.f32 1.0, %v3341
        %v3343 = vmul.f32 %v3340, %v3342
        %v3344 = vadd.f32 %v3340, %v3343
        %vm3345 = vweird.f32 %v3338
        %vm3346 = vweird.f32 %v3340
        %vm3347 = vmor %vm3345, %vm3346
        %v3348 = vsel %vm3347, %v3340, %v3344
        %v3349 = vand.u32 2147483647, %v3338
        %vm3350 = vcmp.eq.f32.partialorder %v3349, 8.507059e+37
        %v3351 = vand.u32 %v3338, 2147483648
        %v3352 = vor.u32 1.1754944e-38, %v3351
        %v3353 = vsel %vm3350, %v3352, %v3348
        %v3354 = vmul.f32 1.0, %v3353
        %v3355 = vrcp.pop %v3339
        %v3356 = vmul.f32 %v3339, %v3355
        %v3357 = vsub.f32 1.0, %v3356
        %v3358 = vmul.f32 %v3355, %v3357
        %v3359 = vadd.f32 %v3355, %v3358
        %vm3360 = vweird.f32 %v3339
        %vm3361 = vweird.f32 %v3355
        %vm3362 = vmor %vm3360, %vm3361
        %v3363 = vsel %vm3362, %v3355, %v3359
        %v3364 = vand.u32 2147483647, %v3339
        %vm3365 = vcmp.eq.f32.partialorder %v3364, 8.507059e+37
        %v3366 = vand.u32 %v3339, 2147483648
        %v3367 = vor.u32 1.1754944e-38, %v3366
        %v3368 = vsel %vm3365, %v3367, %v3363
        %v3369 = vmul.f32 1.0, %v3368
        %v3370 = vadd.f32 %v3101, %v3312
        %v3371 = vadd.f32 %v3103, %v3314
        %v3372 = vxor.u32 %v3370, 2147483648
        %v3373 = vxor.u32 %v3371, 2147483648
        %v3374 = vmul.f32 %v3372, 1.442695
        %v3375 = vpow.pop %v3374
        %v3376 = vmul.f32 %v3373, 1.442695
        %v3377 = vpow.pop %v3376
        %v3378 = vadd.f32 %v3375, 1.0
        %v3379 = vadd.f32 %v3377, 1.0
        %v3380 = vrcp.pop %v3378
        %v3381 = vmul.f32 %v3378, %v3380
        %v3382 = vsub.f32 1.0, %v3381
        %v3383 = vmul.f32 %v3380, %v3382
        %v3384 = vadd.f32 %v3380, %v3383
        %vm3385 = vweird.f32 %v3378
        %vm3386 = vweird.f32 %v3380
        %vm3387 = vmor %vm3385, %vm3386
        %v3388 = vsel %vm3387, %v3380, %v3384
        %v3389 = vand.u32 2147483647, %v3378
        %vm3390 = vcmp.eq.f32.partialorder %v3389, 8.507059e+37
        %v3391 = vand.u32 %v3378, 2147483648
        %v3392 = vor.u32 1.1754944e-38, %v3391
        %v3393 = vsel %vm3390, %v3392, %v3388
        %v3394 = vmul.f32 1.0, %v3393
        %v3395 = vrcp.pop %v3379
        %v3396 = vmul.f32 %v3379, %v3395
        %v3397 = vsub.f32 1.0, %v3396
        %v3398 = vmul.f32 %v3395, %v3397
        %v3399 = vadd.f32 %v3395, %v3398
        %vm3400 = vweird.f32 %v3379
        %vm3401 = vweird.f32 %v3395
        %vm3402 = vmor %vm3400, %vm3401
        %v3403 = vsel %vm3402, %v3395, %v3399
        %v3404 = vand.u32 2147483647, %v3379
        %vm3405 = vcmp.eq.f32.partialorder %v3404, 8.507059e+37
        %v3406 = vand.u32 %v3379, 2147483648
        %v3407 = vor.u32 1.1754944e-38, %v3406
        %v3408 = vsel %vm3405, %v3407, %v3403
        %v3409 = vmul.f32 1.0, %v3408
        %v3410 = vmul.f32 %v3354, %v3326
        %v3411 = vmul.f32 %v3369, %v3328
        %v3412 = vadd.f32 %v3115, %v3410
        %v3413 = vadd.f32 %v3117, %v3411
        %v3414 = vtanh.pop %v3412
        %v3415 = vtanh.pop %v3413
        %v3416 = vsub.f32 1.0, %v3394
        %v3417 = vsub.f32 1.0, %v3409
        %v3418 = vmul.f32 %v3416, %v3414
        %v3419 = vmul.f32 %v3417, %v3415
        %v3420 = vmul.f32 %v3394, %v1444
        %v3421 = vmul.f32 %v3409, %v1445
        %v3422 = vadd.f32 %v3418, %v3420
        %v3423 = vadd.f32 %v3419, %v3421
        %v3424 = vld [vmem:[%s1419] sm:$0x1]
        %v3425 = vld [vmem:[%s1422] sm:$0x1]
        %3426 = vadd.xlane.f32.xlu0 %v3422
        %v3427 = vpop.xlane.xlu0 %3426
        %3428 = vadd.xlane.f32.xlu0 %v3423
        %v3429 = vpop.xlane.xlu0 %3428
        %v3430 = vmul.f32 %v3427, %v2020
        %v3431 = vmul.f32 %v3429, %v2020
        %v3432 = vsub.f32 %v3422, %v3430
        %v3433 = vsub.f32 %v3423, %v3431
        %v3434 = vmul.f32 %v3432, %v3432
        %v3435 = vmul.f32 %v3433, %v3433
        %3436 = vadd.xlane.f32.xlu0 %v3434
        %v3437 = vpop.xlane.xlu0 %3436
        %3438 = vadd.xlane.f32.xlu0 %v3435
        %v3439 = vpop.xlane.xlu0 %3438
        %v3440 = vmul.f32 %v3437, %v2020
        %v3441 = vmul.f32 %v3439, %v2020
        %v3442 = vadd.f32 %v3440, 1e-12
        %v3443 = vadd.f32 %v3441, 1e-12
        %v3444 = vrsqrt.pop %v3442
        %v3445 = vmul.f32 %v3444, %v3442
        %v3446 = vmul.f32 %v3445, %v3444
        %v3447 = vmul.f32 0.5, %v3446
        %v3448 = vsub.f32 1.5, %v3447
        %v3449 = vmul.f32 %v3444, %v3448
        %vm3450 = vweird.f32 %v3442
        %vm3451 = vweird.f32 %v3444
        %vm3452 = vmor %vm3450, %vm3451
        %v3453 = vsel %vm3452, %v3444, %v3449
        %v3454 = vrsqrt.pop %v3443
        %v3455 = vmul.f32 %v3454, %v3443
        %v3456 = vmul.f32 %v3455, %v3454
        %v3457 = vmul.f32 0.5, %v3456
        %v3458 = vsub.f32 1.5, %v3457
        %v3459 = vmul.f32 %v3454, %v3458
        %vm3460 = vweird.f32 %v3443
        %vm3461 = vweird.f32 %v3454
        %vm3462 = vmor %vm3460, %vm3461
        %v3463 = vsel %vm3462, %v3454, %v3459
        %v3464 = vmul.f32 %v3432, %v3453
        %v3465 = vmul.f32 %v3433, %v3463
        %v3467 = vperm.slane %v3424, 0
        %v3469 = vmul.f32 %v3467, %v3464
        %v3470 = vmul.f32 %v3467, %v3465
        %v3472 = vperm.slane %v3425, 0
        %v3474 = vadd.f32 %v3469, %v3472
        %v3475 = vadd.f32 %v3470, %v3472
        %3476 = vst [vmem:[#allocation29] sm:$0xff] %v3474
        %3477 = vst [vmem:[#allocation29 + $0x8] sm:$0xff] %v3475
        %3478 = vst [vmem:[#allocation2] sm:$0xff] %v3422
        %3479 = vst [vmem:[#allocation2 + $0x8] sm:$0xff] %v3423
        // Predicated region
        $region197: #{tpu_custom_call.1} parent=123 // pred_check
          %p3480 = pneg %p734
        $region198: #{tpu_custom_call.1} parent=123 // pred_check_branch
          %3482 = sbr.rel (%p3480) target = $region200
        $region199: #{tpu_custom_call.1} parent=123 // pred_region
          %3484 = vsyncadd [#allocation5], 0
          %s3485 = sshll.u32 [#allocation29], 4
          %s3486 = int_to_ptr.vmem [resolvable:$true] %s3485
          %s3487 = sshll.u32 %s26, 4
          %s3488 = int_to_ptr.hbm [resolvable:$true] %s3487
          %3493 = dma.vmem_to_hbm [thread:$0]  %s3486, 256, %s3488, [#allocation5], 128, 128, 8
        $region200: #{tpu_custom_call.1} parent=123 // pred_fallthru
          _
        // Predicated region
        $region201: #{tpu_custom_call.1} parent=123 // pred_check
          %p3494 = pneg %p734
        $region202: #{tpu_custom_call.1} parent=123 // pred_check_branch
          %3496 = sbr.rel (%p3494) target = $region204
        $region203: #{tpu_custom_call.1} parent=123 // pred_region
          %3498 = dma.done [#allocation5], 256
        $region204: #{tpu_custom_call.1} parent=123 // pred_fallthru
          _
      $region124: #{tpu_custom_call.1} parent=5 // pred_fallthru
        _
      %p3499 = scmp.le.s32.totalorder 2, %s58
      // Predicated region
      $region205: #{tpu_custom_call.1} parent=5 // pred_check
        %p3500 = pneg %p3499
      $region206: #{tpu_custom_call.1} parent=5 // pred_check_branch
        %3502 = sbr.rel (%p3500) target = $region208
      $region207: #{tpu_custom_call.1} parent=5 // pred_region
        %s3503 = ssub.s32 %s58, 2
      $region208: #{tpu_custom_call.1} parent=5 // pred_fallthru
        _
    $region6: #{tpu_custom_call.1} parent=1 // loop_footer
      %s62 = sadd.s32 1, %s58
    $region7: #{tpu_custom_call.1} parent=1 // loop_footer_branch
      %57 = sbr.rel target = $region3
    $region8: #{tpu_custom_call.1} parent=1 // loop_exit
      _
    %3504 = vsyncpa [#allocation4], 1
    %s3505 = scalar_lea.sflag [#allocation4], 1
    %3506 = vsyncpa %s3505, 1
    %3507 = vsyncpa [#allocation7], 1
    %s3508 = scalar_lea.sflag [#allocation7], 1
    %3509 = vsyncpa %s3508, 1
    %3510 = vsyncpa [#allocation10], 1
    %s3511 = scalar_lea.sflag [#allocation10], 1
    %3512 = vsyncpa %s3511, 1
    %3513 = vsyncpa [#allocation13], 1
    %s3514 = scalar_lea.sflag [#allocation13], 1
    %3515 = vsyncpa %s3514, 1
    %3516 = vsyncpa [#allocation16], 1
    %s3517 = scalar_lea.sflag [#allocation16], 1
    %3518 = vsyncpa %s3517, 1
    %3519 = vsyncpa [#allocation19], 1
    %s3520 = scalar_lea.sflag [#allocation19], 1
    %3521 = vsyncpa %s3520, 1
    %3522 = vsyncpa [#allocation22], 1
    %s3523 = scalar_lea.sflag [#allocation22], 1
    %3524 = vsyncpa %s3523, 1
    %3525 = vsyncpa [#allocation25], 1
    %s3526 = scalar_lea.sflag [#allocation25], 1
    %3527 = vsyncpa %s3526, 1
    %3528 = vsyncpa [#allocation28], 1
    %s3529 = scalar_lea.sflag [#allocation28], 1
    %3530 = vsyncpa %s3529, 1
    %3531 = vsyncpa [#allocation5], 1
    %s3532 = scalar_lea.sflag [#allocation5], 1
    %3533 = vsyncpa %s3532, 1

</llo_original>
